<compile_context>
chip_gen: v7x
topology: tpu7x:2x2x1
jax: 0.10.0
libtpu: 0.0.40
codegen_flags: <defaults>
</compile_context>

<pallas_src>
import functools
import math

import jax
import jax.numpy as jnp
from jax.experimental import pallas as pl
from jax.experimental.pallas import tpu as pltpu

_SQRT2_INV = 1.0 / math.sqrt(2.0)
_VMEM_LIMIT = 48 * 1024 * 1024  # comfortably under v7x's 64 MiB physical VMEM


def _cp(n_parallel):
    return pltpu.CompilerParams(
        dimension_semantics=("parallel",) * n_parallel,
        vmem_limit_bytes=_VMEM_LIMIT)


def _pick_tm(m, cap=1024):
    for t in (1024, 512, 256, 128, 64, 32, 16, 8):
        if t <= cap and m >= t and m % t == 0:
            return t
    return m  # full block (allowed: equals full array dim)


def _pick_row_tile(L):
    for t in (128, 64, 32, 16, 8):
        if L % t == 0:
            return t
    return L


def _prod(xs):
    r = 1
    for x in xs:
        r *= int(x)
    return r


# ----------------------------- in-kernel helpers -----------------------------
def _gelu(x):
    return 0.5 * x * (1.0 + jax.lax.erf(x * _SQRT2_INV))


def _ln(x, g, b, eps):
    mu = jnp.mean(x, axis=-1, keepdims=True)
    var = jnp.mean(jnp.square(x - mu), axis=-1, keepdims=True)
    return (x - mu) * jax.lax.rsqrt(var + eps) * g + b


def _bf16_dot(x, w_ref):
    # bf16 MXU inputs, f32 accumulation; weights are pre-cast to bf16 outside.
    return jnp.dot(x.astype(jnp.bfloat16), w_ref[...],
                   preferred_element_type=jnp.float32)


# ------------------------------- Pallas kernels -------------------------------
def _linear_kernel(x_ref, w_ref, b_ref, o_ref, *, act):
    y = _bf16_dot(x_ref[...], w_ref) + b_ref[...]
    if act == "tanh":
        y = jnp.tanh(y)
    elif act == "gelu":
        y = _gelu(y)
    elif act == "sigmoid":
        y = jax.nn.sigmoid(y)
    o_ref[...] = y


def _dual_ln_add_kernel(p_ref, d_ref, g_ref, b_ref, o_ref, *, eps):
    o_ref[...] = (_ln(p_ref[...], g_ref[...], b_ref[...], eps)
                  + _ln(d_ref[...], g_ref[...], b_ref[...], eps))


def _encoder_layer_kernel(x_ref, w1_ref, b1_ref, w2_ref, b2_ref, g_ref, be_ref,
                          o_ref, *, eps):
    # ffn -> gelu -> output -> layernorm (dropout = identity), fused.
    h = _gelu(_bf16_dot(x_ref[...], w1_ref) + b1_ref[...])
    y = _bf16_dot(h, w2_ref) + b2_ref[...]
    o_ref[...] = _ln(y, g_ref[...], be_ref[...], eps)


def _att_branch_kernel(x_ref, w1_ref, b1_ref, g1_ref, be1_ref,
                       w2_ref, b2_ref, g2_ref, be2_ref, o_ref, *, eps):
    # Linear -> LayerNorm -> GELU -> Linear -> LayerNorm -> Sigmoid, fused.
    h = _bf16_dot(x_ref[...], w1_ref) + b1_ref[...]
    h = _gelu(_ln(h, g1_ref[...], be1_ref[...], eps))
    y = _bf16_dot(h, w2_ref) + b2_ref[...]
    o_ref[...] = jax.nn.sigmoid(_ln(y, g2_ref[...], be2_ref[...], eps))


def _masked_max_kernel(probs_ref, mask_ref, m_ref):
    # m[b, t, c] = max( max_i (probs*mask)[b,i,t,c], max_j (probs*mask)[b,t,j,c] )
    lm = probs_ref[0] * mask_ref[0][:, :, None]
    a = jnp.max(lm, axis=0)
    b = jnp.max(lm, axis=1)
    m_ref[0] = jnp.maximum(a, b)


def _hop0_kernel(bfr_ref, bfa_ref, mr_ref, ma_ref, probs_ref,
                 wft_ref, wfb_ref, wb1_ref, wb2_ref, wp_ref, bfb_ref,
                 wc_ref, bc_ref, *out_refs, write_features):
    """First hop: features = concat(bf_i, bf_j) is built implicitly.

    nf[i,j] = bf[i]@Wf_top + bf[j]@Wf_bot + (m@Wb1)[i] + (m@Wb2)[j]
              + probs[i,j]@Wp + bias
    lg[i,j] = nf[i,j]@Wc + bc
    """
    probs = probs_ref[0]                                    # (tl, L, C)
    tl, L, C = probs.shape
    F2 = bfb_ref.shape[-1]

    row_vec = (_bf16_dot(bfr_ref[0], wft_ref)
               + jnp.dot(mr_ref[0], wb1_ref[...], preferred_element_type=jnp.float32))
    col_vec = (_bf16_dot(bfa_ref[0], wfb_ref)
               + jnp.dot(ma_ref[0], wb2_ref[...], preferred_element_type=jnp.float32))
    p_term = jnp.dot(probs.reshape(tl * L, C), wp_ref[...],
                     preferred_element_type=jnp.float32).reshape(tl, L, F2)

    nf = row_vec[:, None, :] + col_vec[None, :, :] + p_term + bfb_ref[...]
    lg = (_bf16_dot(nf.reshape(tl * L, F2), wc_ref) + bc_ref[...]).reshape(tl, L, C)

    if write_features:
        out_refs[0][0] = nf
        out_refs[1][0] = lg
    else:
        out_refs[0][0] = lg


def _hop_kernel(feat_ref, mr_ref, ma_ref, probs_ref,
                wff_ref, wb1_ref, wb2_ref, wp_ref, bfb_ref,
                wc_ref, bc_ref, *out_refs, write_features):
    """Generic hop (hop >= 1) on a (1, tl, L, F2) row tile of features."""
    feats = feat_ref[0]                                     # (tl, L, F2)
    probs = probs_ref[0]                                    # (tl, L, C)
    tl, L, F2 = feats.shape
    C = probs.shape[-1]

    base = _bf16_dot(feats.reshape(tl * L, F2), wff_ref).reshape(tl, L, F2)
    mb_row = jnp.dot(mr_ref[0], wb1_ref[...], preferred_element_type=jnp.float32)
    mb_col = jnp.dot(ma_ref[0], wb2_ref[...], preferred_element_type=jnp.float32)
    p_term = jnp.dot(probs.reshape(tl * L, C), wp_ref[...],
                     preferred_element_type=jnp.float32).reshape(tl, L, F2)

    nf = base + mb_row[:, None, :] + mb_col[None, :, :] + p_term + bfb_ref[...]
    lg = (_bf16_dot(nf.reshape(tl * L, F2), wc_ref) + bc_ref[...]).reshape(tl, L, C)

    if write_features:
        out_refs[0][0] = nf
        out_refs[1][0] = lg
    else:
        out_refs[0][0] = lg


# ------------------------------ kernel wrappers -------------------------------
def pallas_linear(x, w, b, act="none"):
    """y = act(x @ w + b); bf16 MXU inputs, f32 accumulation."""
    *lead, K = x.shape
    N = w.shape[1]
    M = _prod(lead)
    tm = _pick_tm(M)
    out = pl.pallas_call(
        functools.partial(_linear_kernel, act=act),
        out_shape=jax.ShapeDtypeStruct((M, N), jnp.float32),
        grid=(M // tm,),
        in_specs=[pl.BlockSpec((tm, K), lambda i: (i, 0)),
                  pl.BlockSpec((K, N), lambda i: (0, 0)),
                  pl.BlockSpec((1, N), lambda i: (0, 0))],
        out_specs=pl.BlockSpec((tm, N), lambda i: (i, 0)),
        compiler_params=_cp(1),
    )(x.reshape(M, K), w.astype(jnp.bfloat16), b.reshape(1, N))
    return out.reshape(*lead, N)


def pallas_dual_ln_add(pe, de, g, b, eps=1e-5):
    *lead, D = pe.shape
    M = _prod(lead)
    tm = _pick_tm(M)
    out = pl.pallas_call(
        functools.partial(_dual_ln_add_kernel, eps=eps),
        out_shape=jax.ShapeDtypeStruct((M, D), jnp.float32),
        grid=(M // tm,),
        in_specs=[pl.BlockSpec((tm, D), lambda i: (i, 0)),
                  pl.BlockSpec((tm, D), lambda i: (i, 0)),
                  pl.BlockSpec((1, D), lambda i: (0, 0)),
                  pl.BlockSpec((1, D), lambda i: (0, 0))],
        out_specs=pl.BlockSpec((tm, D), lambda i: (i, 0)),
        compiler_params=_cp(1),
    )(pe.reshape(M, D), de.reshape(M, D), g.reshape(1, D), b.reshape(1, D))
    return out.reshape(*lead, D)


def pallas_encoder_layer(x, w1, b1, w2, b2, g, be, eps=1e-5):
    *lead, D = x.shape
    H = w1.shape[1]
    M = _prod(lead)
    tm = _pick_tm(M, cap=256)   # keep the (tm, 3072) f32 intermediate modest
    out = pl.pallas_call(
        functools.partial(_encoder_layer_kernel, eps=eps),
        out_shape=jax.ShapeDtypeStruct((M, D), jnp.float32),
        grid=(M // tm,),
        in_specs=[pl.BlockSpec((tm, D), lambda i: (i, 0)),
                  pl.BlockSpec((D, H), lambda i: (0, 0)),
                  pl.BlockSpec((1, H), lambda i: (0, 0)),
                  pl.BlockSpec((H, D), lambda i: (0, 0)),
                  pl.BlockSpec((1, D), lambda i: (0, 0)),
                  pl.BlockSpec((1, D), lambda i: (0, 0)),
                  pl.BlockSpec((1, D), lambda i: (0, 0))],
        out_specs=pl.BlockSpec((tm, D), lambda i: (i, 0)),
        compiler_params=_cp(1),
    )(x.reshape(M, D), w1.astype(jnp.bfloat16), b1.reshape(1, H),
      w2.astype(jnp.bfloat16), b2.reshape(1, D), g.reshape(1, D), be.reshape(1, D))
    return out.reshape(*lead, D)


def pallas_att_branch(p, tag, x, eps=1e-5):
    *lead, Din = x.shape
    M = _prod(lead)
    w1, b1 = p[f"f_{tag}_w1"], p[f"f_{tag}_b1"]
    g1, be1 = p[f"f_{tag}_g1"], p[f"f_{tag}_be1"]
    w2, b2 = p[f"f_{tag}_w2"], p[f"f_{tag}_b2"]
    g2, be2 = p[f"f_{tag}_g2"], p[f"f_{tag}_be2"]
    Dm, Dout = w1.shape[1], w2.shape[1]
    tm = _pick_tm(M)
    out = pl.pallas_call(
        functools.partial(_att_branch_kernel, eps=eps),
        out_shape=jax.ShapeDtypeStruct((M, Dout), jnp.float32),
        grid=(M // tm,),
        in_specs=[pl.BlockSpec((tm, Din), lambda i: (i, 0)),
                  pl.BlockSpec((Din, Dm), lambda i: (0, 0)),
                  pl.BlockSpec((1, Dm), lambda i: (0, 0)),
                  pl.BlockSpec((1, Dm), lambda i: (0, 0)),
                  pl.BlockSpec((1, Dm), lambda i: (0, 0)),
                  pl.BlockSpec((Dm, Dout), lambda i: (0, 0)),
                  pl.BlockSpec((1, Dout), lambda i: (0, 0)),
                  pl.BlockSpec((1, Dout), lambda i: (0, 0)),
                  pl.BlockSpec((1, Dout), lambda i: (0, 0))],
        out_specs=pl.BlockSpec((tm, Dout), lambda i: (i, 0)),
        compiler_params=_cp(1),
    )(x.reshape(M, Din), w1.astype(jnp.bfloat16), b1.reshape(1, Dm),
      g1.reshape(1, Dm), be1.reshape(1, Dm), w2.astype(jnp.bfloat16),
      b2.reshape(1, Dout), g2.reshape(1, Dout), be2.reshape(1, Dout))
    return out.reshape(*lead, Dout)


def pallas_masked_max(probs, mask2):
    B, L, _, C = probs.shape
    return pl.pallas_call(
        _masked_max_kernel,
        out_shape=jax.ShapeDtypeStruct((B, L, C), jnp.float32),
        grid=(B,),
        in_specs=[pl.BlockSpec((1, L, L, C), lambda b: (b, 0, 0, 0)),
                  pl.BlockSpec((1, L, L), lambda b: (b, 0, 0))],
        out_specs=pl.BlockSpec((1, L, C), lambda b: (b, 0, 0)),
        compiler_params=_cp(1),
    )(probs, mask2)


def _hop_outputs(B, L, C, F2, tl, write_features):
    logits_shape = jax.ShapeDtypeStruct((B, L, L, C), jnp.float32)
    logits_spec = pl.BlockSpec((1, tl, L, C), lambda b, r: (b, r, 0, 0))
    if write_features:
        feat_shape = jax.ShapeDtypeStruct((B, L, L, F2), jnp.float32)
        feat_spec = pl.BlockSpec((1, tl, L, F2), lambda b, r: (b, r, 0, 0))
        return (feat_shape, logits_shape), (feat_spec, logits_spec)
    return (logits_shape,), (logits_spec,)


def pallas_hop0(bf, m, probs, wf_top, wf_bot, wf_b1, wf_b2, wf_p, bfb, wc, bc,
                write_features):
    B, L, D = bf.shape
    C = probs.shape[-1]
    F2 = bfb.shape[0]
    tl = _pick_row_tile(L)
    out_shape, out_specs = _hop_outputs(B, L, C, F2, tl, write_features)
    in_specs = [
        pl.BlockSpec((1, tl, D), lambda b, r: (b, r, 0)),      # bf rows of tile
        pl.BlockSpec((1, L, D), lambda b, r: (b, 0, 0)),       # bf all rows (column term)
        pl.BlockSpec((1, tl, C), lambda b, r: (b, r, 0)),      # m rows of tile
        pl.BlockSpec((1, L, C), lambda b, r: (b, 0, 0)),       # m all rows
        pl.BlockSpec((1, tl, L, C), lambda b, r: (b, r, 0, 0)),
        pl.BlockSpec((D, F2), lambda b, r: (0, 0)),
        pl.BlockSpec((D, F2), lambda b, r: (0, 0)),
        pl.BlockSpec((C, F2), lambda b, r: (0, 0)),
        pl.BlockSpec((C, F2), lambda b, r: (0, 0)),
        pl.BlockSpec((C, F2), lambda b, r: (0, 0)),
        pl.BlockSpec((1, F2), lambda b, r: (0, 0)),
        pl.BlockSpec((F2, C), lambda b, r: (0, 0)),
        pl.BlockSpec((1, C), lambda b, r: (0, 0)),
    ]
    outs = pl.pallas_call(
        functools.partial(_hop0_kernel, write_features=write_features),
        out_shape=out_shape, grid=(B, L // tl),
        in_specs=in_specs, out_specs=out_specs,
        compiler_params=_cp(2),
    )(bf, bf, m, m, probs, wf_top, wf_bot, wf_b1, wf_b2, wf_p,
      bfb.reshape(1, F2), wc, bc.reshape(1, C))
    if write_features:
        return outs[0], outs[1]
    return None, outs[0]


def pallas_hop(features, m, probs, wf_f, wf_b1, wf_b2, wf_p, bfb, wc, bc,
               write_features):
    B, L, _, F2 = features.shape
    C = probs.shape[-1]
    tl = _pick_row_tile(L)
    out_shape, out_specs = _hop_outputs(B, L, C, F2, tl, write_features)
    in_specs = [
        pl.BlockSpec((1, tl, L, F2), lambda b, r: (b, r, 0, 0)),
        pl.BlockSpec((1, tl, C), lambda b, r: (b, r, 0)),
        pl.BlockSpec((1, L, C), lambda b, r: (b, 0, 0)),
        pl.BlockSpec((1, tl, L, C), lambda b, r: (b, r, 0, 0)),
        pl.BlockSpec((F2, F2), lambda b, r: (0, 0)),
        pl.BlockSpec((C, F2), lambda b, r: (0, 0)),
        pl.BlockSpec((C, F2), lambda b, r: (0, 0)),
        pl.BlockSpec((C, F2), lambda b, r: (0, 0)),
        pl.BlockSpec((1, F2), lambda b, r: (0, 0)),
        pl.BlockSpec((F2, C), lambda b, r: (0, 0)),
        pl.BlockSpec((1, C), lambda b, r: (0, 0)),
    ]
    # Reuse the incoming features buffer for the outgoing features (same shape/index map).
    aliases = {0: 0} if write_features else {}
    outs = pl.pallas_call(
        functools.partial(_hop_kernel, write_features=write_features),
        out_shape=out_shape, grid=(B, L // tl),
        in_specs=in_specs, out_specs=out_specs,
        input_output_aliases=aliases,
        compiler_params=_cp(2),
    )(features, m, m, probs, wf_f, wf_b1, wf_b2, wf_p,
      bfb.reshape(1, F2), wc, bc.reshape(1, C))
    if write_features:
        return outs[0], outs[1]
    return None, outs[0]


# ------------------------------- model pieces ---------------------------------
def pd_encoder_forward(p, pos_ids, dep_ids, layers_num, ablation_learner):
    pos_e = p["pos_emb"][pos_ids]          # embedding lookup (XLA glue)
    dep_e = p["dep_emb"][dep_ids]
    h = pallas_dual_ln_add(pos_e, dep_e, p["pd_ln_g"], p["pd_ln_b"])
    if ablation_learner == 1:
        return h
    for li in range(layers_num):
        h = pallas_encoder_layer(h, p[f"enc{li}_ffn_w"], p[f"enc{li}_ffn_b"],
                                 p[f"enc{li}_out_w"], p[f"enc{li}_out_b"],
                                 p[f"enc{li}_ln_g"], p[f"enc{li}_ln_b"])
    return pallas_linear(h, p["pd_pool_w"], p["pd_pool_b"], act="tanh")


def fusion_forward(p, x, y):
    xa = x + y
    l = pallas_att_branch(p, "la1", xa)                                 # [B, L, D]
    g = jnp.transpose(
        pallas_att_branch(p, "ga1",
                          jnp.transpose(jnp.mean(xa, axis=-1, keepdims=True), (0, 2, 1))),
        (0, 2, 1))                                                      # [B, L, 1]
    xx = x * l
    yy = y * (1.0 - l)
    z = g * xx + (1.0 - g) * yy

    l2 = pallas_att_branch(p, "la2", z)
    g2 = jnp.transpose(
        pallas_att_branch(p, "ga2",
                          jnp.transpose(jnp.mean(z, axis=-1, keepdims=True), (0, 2, 1))),
        (0, 2, 1))
    xx2 = xx * l2
    yy2 = yy * (1.0 - l2)
    return g2 * xx2 + (1.0 - g2) * yy2


def multi_hops(p, bert_feature, masks, k):
    B, L, D = bert_feature.shape
    C = p["cls_b"].shape[0]
    F2 = 2 * D
    mask = masks[:, :L].astype(jnp.float32)
    mask2 = jnp.triu(mask[:, :, None] * mask[:, None, :])        # [B, L, L]

    wc, bc = p["cls_w"], p["cls_b"]
    wc_bf = wc.astype(jnp.bfloat16)

    # hop-0 logits: cls_linear(concat(bf_i, bf_j)) == bf_i@Wc[:D] + bf_j@Wc[D:] + bc
    # (the [B, L, L, 2D] concat is never materialized in HBM)
    uv = pallas_linear(bert_feature, jnp.concatenate([wc[:D], wc[D:]], axis=1),
                       jnp.zeros((2 * C,), jnp.float32))
    logits = uv[:, :, None, :C] + uv[:, None, :, C:] + bc        # [B, L, L, C]
    if k == 0:
        return logits

    wf, bfb = p["feat_w"], p["feat_b"]
    wf_f = wf[:F2]
    wf_b1 = wf[F2:F2 + C]
    wf_b2 = wf[F2 + C:F2 + 2 * C]
    wf_p = wf[F2 + 2 * C:]
    wf_top_bf = wf_f[:D].astype(jnp.bfloat16)
    wf_bot_bf = wf_f[D:].astype(jnp.bfloat16)
    wf_f_bf = wf_f.astype(jnp.bfloat16)

    features = None
    for hop in range(k):
        probs = logits
        m = pallas_masked_max(probs, mask2)                      # [B, L, C]
        write_features = hop < k - 1                             # final hop: skip dead write
        if hop == 0:
            features, logits = pallas_hop0(bert_feature, m, probs,
                                           wf_top_bf, wf_bot_bf, wf_b1, wf_b2,
                                           wf_p, bfb, wc_bf, bc, write_features)
        else:
            features, logits = pallas_hop(features, m, probs,
                                          wf_f_bf, wf_b1, wf_b2,
                                          wf_p, bfb, wc_bf, bc, write_features)
    return logits


def multi_infer_bert_forward(params, tokens, masks, pos_ids, dep_ids, cfg):
    # TODO(synk): pretrained BertModel/BertTokenizer replaced by a deterministic synthetic
    # token-embedding table (no checkpoint loading possible in-script).
    bert_feature = params["bert_emb"][tokens]                    # [B, L, D]
    # dropout layers -> identity (inference)

    pd = pd_encoder_forward(params, pos_ids, dep_ids,
                            cfg["layers_num"], cfg["ablation_learner"])

    if cfg["ablation_fusion"] == 0:
        bert_feature = fusion_forward(params, bert_feature, pd)
    else:
        bert_feature = bert_feature + pd

    return multi_hops(params, bert_feature, masks, cfg["nhops"])  # logits_list[-1]


# --------------------------------- params -------------------------------------
def init_params(key, cfg):
    L = cfg["max_sequence_len"]
    D = cfg["bert_feature_dim"]
    C = cfg["class_num"]
    r = 4
    Di, Li = D // r, L // r
    keys = iter(jax.random.split(key, 64))

    def w(shape, scale=0.02):
        return scale * jax.random.normal(next(keys), shape, jnp.float32)

    def ones(n):
        return jnp.ones((n,), jnp.float32)

    def zeros(n):
        return jnp.zeros((n,), jnp.float32)

    p = {}
    p["bert_emb"] = w((cfg["vocab_size"], D))
    p["pos_emb"] = w((20, D)).at[0].set(0.0)                     # padding_idx=0
    p["dep_emb"] = w((2 * L - 1, D)).at[0].set(0.0)              # padding_idx=0
    p["pd_ln_g"], p["pd_ln_b"] = ones(D), zeros(D)
    for li in range(cfg["layers_num"]):
        p[f"enc{li}_ffn_w"], p[f"enc{li}_ffn_b"] = w((D, 3072)), zeros(3072)
        p[f"enc{li}_out_w"], p[f"enc{li}_out_b"] = w((3072, D)), zeros(D)
        p[f"enc{li}_ln_g"], p[f"enc{li}_ln_b"] = ones(D), zeros(D)
    p["pd_pool_w"], p["pd_pool_b"] = w((D, D)), zeros(D)
    for tag in ("la1", "la2"):                                   # local_att / local_att2
        p[f"f_{tag}_w1"], p[f"f_{tag}_b1"] = w((D, Di)), zeros(Di)
        p[f"f_{tag}_g1"], p[f"f_{tag}_be1"] = ones(Di), zeros(Di)
        p[f"f_{tag}_w2"], p[f"f_{tag}_b2"] = w((Di, D)), zeros(D)
        p[f"f_{tag}_g2"], p[f"f_{tag}_be2"] = ones(D), zeros(D)
    for tag in ("ga1", "ga2"):                                   # global_att / global_att2
        p[f"f_{tag}_w1"], p[f"f_{tag}_b1"] = w((L, Li)), zeros(Li)
        p[f"f_{tag}_g1"], p[f"f_{tag}_be1"] = ones(Li), zeros(Li)
        p[f"f_{tag}_w2"], p[f"f_{tag}_b2"] = w((Li, L)), zeros(L)
        p[f"f_{tag}_g2"], p[f"f_{tag}_be2"] = ones(L), zeros(L)
    p["cls_w"], p["cls_b"] = w((2 * D, C)), zeros(C)
    p["feat_w"], p["feat_b"] = w((2 * D + 3 * C, 2 * D)), zeros(2 * D)
    return p


# ----------------------------------- main --------------------------------------
if __name__ == "__main__":
    cfg = dict(max_sequence_len=8, bert_feature_dim=32, class_num=6,
               layers_num=1, nhops=3, ablation_learner=0, ablation_fusion=0,
               vocab_size=50)

    key = jax.random.PRNGKey(0)
    kp, kt, kpos, kdep = jax.random.split(key, 4)
    params = init_params(kp, cfg)

    B, L = 2, cfg["max_sequence_len"]
    tokens = jax.random.randint(kt, (B, L), 1, cfg["vocab_size"], dtype=jnp.int32)
    masks = jnp.ones((B, L), dtype=jnp.int32).at[1, L - 2:].set(0)   # some padding in batch 1
    pos_ids = jax.random.randint(kpos, (B, L), 0, 20, dtype=jnp.int32)
    dep_ids = jax.random.randint(kdep, (B, L), 0, 2 * L - 1, dtype=jnp.int32)

    fwd = jax.jit(functools.partial(multi_infer_bert_forward, cfg=cfg))
    logits = fwd(params, tokens, masks, pos_ids, dep_ids)
    jax.block_until_ready(logits)

    assert logits.shape == (B, L, L, cfg["class_num"]), logits.shape
    assert bool(jnp.all(jnp.isfinite(logits)))
    print("KERNEL_OK")
</pallas_src>

<mosaic_0001>
module attributes {stable_mosaic.version = 11 : i64} {
  func.func @_dual_ln_add_kernel(%arg0: i32, %arg1: memref<16x32xf32, #tpu.memory_space<vmem>>, %arg2: memref<16x32xf32, #tpu.memory_space<vmem>>, %arg3: memref<1x32xf32, #tpu.memory_space<vmem>>, %arg4: memref<1x32xf32, #tpu.memory_space<vmem>>, %arg5: memref<16x32xf32, #tpu.memory_space<vmem>>) attributes {dimension_semantics = [#tpu.dimension_semantics<parallel>], iteration_bounds = array<i64: 1>, scalar_prefetch = 0 : i64, scratch_operands = 0 : i64, tpu.core_type = #tpu.core_type<tc>, window_params = [{transform_indices = @transform_0, window_bounds = array<i64: 16, 32>}, {transform_indices = @transform_1, window_bounds = array<i64: 16, 32>}, {pipeline_mode = #tpu.pipeline_mode<synchronous>, transform_indices = @transform_2, window_bounds = array<i64: 1, 32>}, {pipeline_mode = #tpu.pipeline_mode<synchronous>, transform_indices = @transform_3, window_bounds = array<i64: 1, 32>}, {transform_indices = @transform_4, window_bounds = array<i64: 16, 32>}]} {
    %c0 = arith.constant 0 : index
    %c0_0 = arith.constant 0 : index
    %0 = vector.load %arg1[%c0, %c0_0] : memref<16x32xf32, #tpu.memory_space<vmem>>, vector<16x32xf32>
    %c0_1 = arith.constant 0 : index
    %c0_2 = arith.constant 0 : index
    %1 = vector.load %arg3[%c0_1, %c0_2] : memref<1x32xf32, #tpu.memory_space<vmem>>, vector<1x32xf32>
    %c0_3 = arith.constant 0 : index
    %c0_4 = arith.constant 0 : index
    %2 = vector.load %arg4[%c0_3, %c0_4] : memref<1x32xf32, #tpu.memory_space<vmem>>, vector<1x32xf32>
    %cst = arith.constant dense<0.000000e+00> : vector<16xf32>
    %3 = vector.multi_reduction <add>, %0, %cst [1] : vector<16x32xf32> to vector<16xf32>
    %4 = vector.shape_cast %3 : vector<16xf32> to vector<16x1xf32>
    %cst_5 = arith.constant 3.200000e+01 : f32
    %5 = vector.broadcast %cst_5 : f32 to vector<16x1xf32>
    %6 = arith.divf %4, %5 : vector<16x1xf32>
    %7 = vector.broadcast %6 : vector<16x1xf32> to vector<16x32xf32>
    %8 = arith.subf %0, %7 : vector<16x32xf32>
    %9 = arith.mulf %8, %8 : vector<16x32xf32>
    %cst_6 = arith.constant dense<0.000000e+00> : vector<16xf32>
    %10 = vector.multi_reduction <add>, %9, %cst_6 [1] : vector<16x32xf32> to vector<16xf32>
    %11 = vector.shape_cast %10 : vector<16xf32> to vector<16x1xf32>
    %cst_7 = arith.constant 3.200000e+01 : f32
    %12 = vector.broadcast %cst_7 : f32 to vector<16x1xf32>
    %13 = arith.divf %11, %12 : vector<16x1xf32>
    %14 = vector.broadcast %6 : vector<16x1xf32> to vector<16x32xf32>
    %15 = arith.subf %0, %14 : vector<16x32xf32>
    %cst_8 = arith.constant 9.99999974E-6 : f32
    %16 = vector.broadcast %cst_8 : f32 to vector<16x1xf32>
    %17 = arith.addf %13, %16 : vector<16x1xf32>
    %18 = math.rsqrt %17 : vector<16x1xf32>
    %19 = vector.broadcast %18 : vector<16x1xf32> to vector<16x32xf32>
    %20 = arith.mulf %15, %19 : vector<16x32xf32>
    %21 = vector.broadcast %1 : vector<1x32xf32> to vector<16x32xf32>
    %22 = arith.mulf %20, %21 : vector<16x32xf32>
    %23 = vector.broadcast %2 : vector<1x32xf32> to vector<16x32xf32>
    %24 = arith.addf %22, %23 : vector<16x32xf32>
    %c0_9 = arith.constant 0 : index
    %c0_10 = arith.constant 0 : index
    %25 = vector.load %arg2[%c0_9, %c0_10] : memref<16x32xf32, #tpu.memory_space<vmem>>, vector<16x32xf32>
    %c0_11 = arith.constant 0 : index
    %c0_12 = arith.constant 0 : index
    %26 = vector.load %arg3[%c0_11, %c0_12] : memref<1x32xf32, #tpu.memory_space<vmem>>, vector<1x32xf32>
    %c0_13 = arith.constant 0 : index
    %c0_14 = arith.constant 0 : index
    %27 = vector.load %arg4[%c0_13, %c0_14] : memref<1x32xf32, #tpu.memory_space<vmem>>, vector<1x32xf32>
    %cst_15 = arith.constant dense<0.000000e+00> : vector<16xf32>
    %28 = vector.multi_reduction <add>, %25, %cst_15 [1] : vector<16x32xf32> to vector<16xf32>
    %29 = vector.shape_cast %28 : vector<16xf32> to vector<16x1xf32>
    %cst_16 = arith.constant 3.200000e+01 : f32
    %30 = vector.broadcast %cst_16 : f32 to vector<16x1xf32>
    %31 = arith.divf %29, %30 : vector<16x1xf32>
    %32 = vector.broadcast %31 : vector<16x1xf32> to vector<16x32xf32>
    %33 = arith.subf %25, %32 : vector<16x32xf32>
    %34 = arith.mulf %33, %33 : vector<16x32xf32>
    %cst_17 = arith.constant dense<0.000000e+00> : vector<16xf32>
    %35 = vector.multi_reduction <add>, %34, %cst_17 [1] : vector<16x32xf32> to vector<16xf32>
    %36 = vector.shape_cast %35 : vector<16xf32> to vector<16x1xf32>
    %cst_18 = arith.constant 3.200000e+01 : f32
    %37 = vector.broadcast %cst_18 : f32 to vector<16x1xf32>
    %38 = arith.divf %36, %37 : vector<16x1xf32>
    %39 = vector.broadcast %31 : vector<16x1xf32> to vector<16x32xf32>
    %40 = arith.subf %25, %39 : vector<16x32xf32>
    %cst_19 = arith.constant 9.99999974E-6 : f32
    %41 = vector.broadcast %cst_19 : f32 to vector<16x1xf32>
    %42 = arith.addf %38, %41 : vector<16x1xf32>
    %43 = math.rsqrt %42 : vector<16x1xf32>
    %44 = vector.broadcast %43 : vector<16x1xf32> to vector<16x32xf32>
    %45 = arith.mulf %40, %44 : vector<16x32xf32>
    %46 = vector.broadcast %26 : vector<1x32xf32> to vector<16x32xf32>
    %47 = arith.mulf %45, %46 : vector<16x32xf32>
    %48 = vector.broadcast %27 : vector<1x32xf32> to vector<16x32xf32>
    %49 = arith.addf %47, %48 : vector<16x32xf32>
    %50 = arith.addf %24, %49 : vector<16x32xf32>
    %c0_20 = arith.constant 0 : index
    %c0_21 = arith.constant 0 : index
    %51 = vector.load %arg5[%c0_20, %c0_21] : memref<16x32xf32, #tpu.memory_space<vmem>>, vector<16x32xf32>
    tpu.vector_store %arg5[%c0_20, %c0_21], %50 {strides = array<i32>} : memref<16x32xf32, #tpu.memory_space<vmem>>, vector<16x32xf32>,
    return
  }
  func.func @transform_0(%arg0: i32) -> (i32, i32) {
    %c0_i32 = arith.constant 0 : i32
    %c0_i32_0 = arith.constant 0 : i32
    return %arg0, %c0_i32 : i32, i32
  }
  func.func @transform_1(%arg0: i32) -> (i32, i32) {
    %c0_i32 = arith.constant 0 : i32
    %c0_i32_0 = arith.constant 0 : i32
    return %arg0, %c0_i32 : i32, i32
  }
  func.func @transform_2(%arg0: i32) -> (i32, i32) {
    %c0_i32 = arith.constant 0 : i32
    %c0_i32_0 = arith.constant 0 : i32
    %c0_i32_1 = arith.constant 0 : i32
    return %c0_i32, %c0_i32_0 : i32, i32
  }
  func.func @transform_3(%arg0: i32) -> (i32, i32) {
    %c0_i32 = arith.constant 0 : i32
    %c0_i32_0 = arith.constant 0 : i32
    %c0_i32_1 = arith.constant 0 : i32
    return %c0_i32, %c0_i32_0 : i32, i32
  }
  func.func @transform_4(%arg0: i32) -> (i32, i32) {
    %c0_i32 = arith.constant 0 : i32
    %c0_i32_0 = arith.constant 0 : i32
    return %arg0, %c0_i32 : i32, i32
  }
}

module attributes {stable_mosaic.version = 11 : i64} {
  func.func @_linear_kernel(%arg0: i32, %arg1: memref<16x32xf32, #tpu.memory_space<vmem>>, %arg2: memref<32x32xbf16, #tpu.memory_space<vmem>>, %arg3: memref<1x32xf32, #tpu.memory_space<vmem>>, %arg4: memref<16x32xf32, #tpu.memory_space<vmem>>) attributes {dimension_semantics = [#tpu.dimension_semantics<parallel>], iteration_bounds = array<i64: 1>, scalar_prefetch = 0 : i64, scratch_operands = 0 : i64, tpu.core_type = #tpu.core_type<tc>, window_params = [{transform_indices = @transform_0, window_bounds = array<i64: 16, 32>}, {pipeline_mode = #tpu.pipeline_mode<synchronous>, transform_indices = @transform_1, window_bounds = array<i64: 32, 32>}, {pipeline_mode = #tpu.pipeline_mode<synchronous>, transform_indices = @transform_2, window_bounds = array<i64: 1, 32>}, {transform_indices = @transform_3, window_bounds = array<i64: 16, 32>}]} {
    %c0 = arith.constant 0 : index
    %c0_0 = arith.constant 0 : index
    %0 = vector.load %arg1[%c0, %c0_0] : memref<16x32xf32, #tpu.memory_space<vmem>>, vector<16x32xf32>
    %1 = arith.truncf %0 : vector<16x32xf32> to vector<16x32xbf16>
    %c0_1 = arith.constant 0 : index
    %c0_2 = arith.constant 0 : index
    %2 = vector.load %arg2[%c0_1, %c0_2] : memref<32x32xbf16, #tpu.memory_space<vmem>>, vector<32x32xbf16>
    %cst = arith.constant dense<0.000000e+00> : vector<16x32xf32>
    %3 = tpu.matmul %1, %2, %cst {dimension_numbers = #tpu.dot_dimension_numbers<[1], [0], [0], [1], [0, 0, 1, 1], [], []>} : vector<16x32xbf16>, vector<32x32xbf16>, vector<16x32xf32> -> vector<16x32xf32>
    %c0_3 = arith.constant 0 : index
    %c0_4 = arith.constant 0 : index
    %4 = vector.load %arg3[%c0_3, %c0_4] : memref<1x32xf32, #tpu.memory_space<vmem>>, vector<1x32xf32>
    %5 = vector.broadcast %4 : vector<1x32xf32> to vector<16x32xf32>
    %6 = arith.addf %3, %5 : vector<16x32xf32>
    %7 = math.tanh %6 : vector<16x32xf32>
    %c0_5 = arith.constant 0 : index
    %c0_6 = arith.constant 0 : index
    %8 = vector.load %arg4[%c0_5, %c0_6] : memref<16x32xf32, #tpu.memory_space<vmem>>, vector<16x32xf32>
    tpu.vector_store %arg4[%c0_5, %c0_6], %7 {strides = array<i32>} : memref<16x32xf32, #tpu.memory_space<vmem>>, vector<16x32xf32>,
    return
  }
  func.func @transform_0(%arg0: i32) -> (i32, i32) {
    %c0_i32 = arith.constant 0 : i32
    %c0_i32_0 = arith.constant 0 : i32
    return %arg0, %c0_i32 : i32, i32
  }
  func.func @transform_1(%arg0: i32) -> (i32, i32) {
    %c0_i32 = arith.constant 0 : i32
    %c0_i32_0 = arith.constant 0 : i32
    %c0_i32_1 = arith.constant 0 : i32
    return %c0_i32, %c0_i32_0 : i32, i32
  }
  func.func @transform_2(%arg0: i32) -> (i32, i32) {
    %c0_i32 = arith.constant 0 : i32
    %c0_i32_0 = arith.constant 0 : i32
    %c0_i32_1 = arith.constant 0 : i32
    return %c0_i32, %c0_i32_0 : i32, i32
  }
  func.func @transform_3(%arg0: i32) -> (i32, i32) {
    %c0_i32 = arith.constant 0 : i32
    %c0_i32_0 = arith.constant 0 : i32
    return %arg0, %c0_i32 : i32, i32
  }
}

module attributes {stable_mosaic.version = 11 : i64} {
  func.func @_encoder_layer_kernel(%arg0: i32, %arg1: memref<16x32xf32, #tpu.memory_space<vmem>>, %arg2: memref<32x3072xbf16, #tpu.memory_space<vmem>>, %arg3: memref<1x3072xf32, #tpu.memory_space<vmem>>, %arg4: memref<3072x32xbf16, #tpu.memory_space<vmem>>, %arg5: memref<1x32xf32, #tpu.memory_space<vmem>>, %arg6: memref<1x32xf32, #tpu.memory_space<vmem>>, %arg7: memref<1x32xf32, #tpu.memory_space<vmem>>, %arg8: memref<16x32xf32, #tpu.memory_space<vmem>>) attributes {dimension_semantics = [#tpu.dimension_semantics<parallel>], iteration_bounds = array<i64: 1>, scalar_prefetch = 0 : i64, scratch_operands = 0 : i64, tpu.core_type = #tpu.core_type<tc>, window_params = [{transform_indices = @transform_0, window_bounds = array<i64: 16, 32>}, {pipeline_mode = #tpu.pipeline_mode<synchronous>, transform_indices = @transform_1, window_bounds = array<i64: 32, 3072>}, {pipeline_mode = #tpu.pipeline_mode<synchronous>, transform_indices = @transform_2, window_bounds = array<i64: 1, 3072>}, {pipeline_mode = #tpu.pipeline_mode<synchronous>, transform_indices = @transform_3, window_bounds = array<i64: 3072, 32>}, {pipeline_mode = #tpu.pipeline_mode<synchronous>, transform_indices = @transform_4, window_bounds = array<i64: 1, 32>}, {pipeline_mode = #tpu.pipeline_mode<synchronous>, transform_indices = @transform_5, window_bounds = array<i64: 1, 32>}, {pipeline_mode = #tpu.pipeline_mode<synchronous>, transform_indices = @transform_6, window_bounds = array<i64: 1, 32>}, {transform_indices = @transform_7, window_bounds = array<i64: 16, 32>}]} {
    %c0 = arith.constant 0 : index
    %c0_0 = arith.constant 0 : index
    %0 = vector.load %arg1[%c0, %c0_0] : memref<16x32xf32, #tpu.memory_space<vmem>>, vector<16x32xf32>
    %1 = arith.truncf %0 : vector<16x32xf32> to vector<16x32xbf16>
    %c0_1 = arith.constant 0 : index
    %c0_2 = arith.constant 0 : index
    %2 = vector.load %arg2[%c0_1, %c0_2] : memref<32x3072xbf16, #tpu.memory_space<vmem>>, vector<32x3072xbf16>
    %cst = arith.constant dense<0.000000e+00> : vector<16x3072xf32>
    %3 = tpu.matmul %1, %2, %cst {dimension_numbers = #tpu.dot_dimension_numbers<[1], [0], [0], [1], [0, 0, 1, 1], [], []>} : vector<16x32xbf16>, vector<32x3072xbf16>, vector<16x3072xf32> -> vector<16x3072xf32>
    %c0_3 = arith.constant 0 : index
    %c0_4 = arith.constant 0 : index
    %4 = vector.load %arg3[%c0_3, %c0_4] : memref<1x3072xf32, #tpu.memory_space<vmem>>, vector<1x3072xf32>
    %5 = vector.broadcast %4 : vector<1x3072xf32> to vector<16x3072xf32>
    %6 = arith.addf %3, %5 : vector<16x3072xf32>
    %cst_5 = arith.constant 5.000000e-01 : f32
    %7 = vector.broadcast %cst_5 : f32 to vector<16x3072xf32>
    %8 = arith.mulf %7, %6 : vector<16x3072xf32>
    %cst_6 = arith.constant 0.707106769 : f32
    %9 = vector.broadcast %cst_6 : f32 to vector<16x3072xf32>
    %10 = arith.mulf %6, %9 : vector<16x3072xf32>
    %11 = math.erf %10 : vector<16x3072xf32>
    %cst_7 = arith.constant 1.000000e+00 : f32
    %12 = vector.broadcast %cst_7 : f32 to vector<16x3072xf32>
    %13 = arith.addf %12, %11 : vector<16x3072xf32>
    %14 = arith.mulf %8, %13 : vector<16x3072xf32>
    %15 = arith.truncf %14 : vector<16x3072xf32> to vector<16x3072xbf16>
    %c0_8 = arith.constant 0 : index
    %c0_9 = arith.constant 0 : index
    %16 = vector.load %arg4[%c0_8, %c0_9] : memref<3072x32xbf16, #tpu.memory_space<vmem>>, vector<3072x32xbf16>
    %cst_10 = arith.constant dense<0.000000e+00> : vector<16x32xf32>
    %17 = tpu.matmul %15, %16, %cst_10 {dimension_numbers = #tpu.dot_dimension_numbers<[1], [0], [0], [1], [0, 0, 1, 1], [], []>} : vector<16x3072xbf16>, vector<3072x32xbf16>, vector<16x32xf32> -> vector<16x32xf32>
    %c0_11 = arith.constant 0 : index
    %c0_12 = arith.constant 0 : index
    %18 = vector.load %arg5[%c0_11, %c0_12] : memref<1x32xf32, #tpu.memory_space<vmem>>, vector<1x32xf32>
    %19 = vector.broadcast %18 : vector<1x32xf32> to vector<16x32xf32>
    %20 = arith.addf %17, %19 : vector<16x32xf32>
    %c0_13 = arith.constant 0 : index
    %c0_14 = arith.constant 0 : index
    %21 = vector.load %arg6[%c0_13, %c0_14] : memref<1x32xf32, #tpu.memory_space<vmem>>, vector<1x32xf32>
    %c0_15 = arith.constant 0 : index
    %c0_16 = arith.constant 0 : index
    %22 = vector.load %arg7[%c0_15, %c0_16] : memref<1x32xf32, #tpu.memory_space<vmem>>, vector<1x32xf32>
    %cst_17 = arith.constant dense<0.000000e+00> : vector<16xf32>
    %23 = vector.multi_reduction <add>, %20, %cst_17 [1] : vector<16x32xf32> to vector<16xf32>
    %24 = vector.shape_cast %23 : vector<16xf32> to vector<16x1xf32>
    %cst_18 = arith.constant 3.200000e+01 : f32
    %25 = vector.broadcast %cst_18 : f32 to vector<16x1xf32>
    %26 = arith.divf %24, %25 : vector<16x1xf32>
    %27 = vector.broadcast %26 : vector<16x1xf32> to vector<16x32xf32>
    %28 = arith.subf %20, %27 : vector<16x32xf32>
    %29 = arith.mulf %28, %28 : vector<16x32xf32>
    %cst_19 = arith.constant dense<0.000000e+00> : vector<16xf32>
    %30 = vector.multi_reduction <add>, %29, %cst_19 [1] : vector<16x32xf32> to vector<16xf32>
    %31 = vector.shape_cast %30 : vector<16xf32> to vector<16x1xf32>
    %cst_20 = arith.constant 3.200000e+01 : f32
    %32 = vector.broadcast %cst_20 : f32 to vector<16x1xf32>
    %33 = arith.divf %31, %32 : vector<16x1xf32>
    %34 = vector.broadcast %26 : vector<16x1xf32> to vector<16x32xf32>
    %35 = arith.subf %20, %34 : vector<16x32xf32>
    %cst_21 = arith.constant 9.99999974E-6 : f32
    %36 = vector.broadcast %cst_21 : f32 to vector<16x1xf32>
    %37 = arith.addf %33, %36 : vector<16x1xf32>
    %38 = math.rsqrt %37 : vector<16x1xf32>
    %39 = vector.broadcast %38 : vector<16x1xf32> to vector<16x32xf32>
    %40 = arith.mulf %35, %39 : vector<16x32xf32>
    %41 = vector.broadcast %21 : vector<1x32xf32> to vector<16x32xf32>
    %42 = arith.mulf %40, %41 : vector<16x32xf32>
    %43 = vector.broadcast %22 : vector<1x32xf32> to vector<16x32xf32>
    %44 = arith.addf %42, %43 : vector<16x32xf32>
    %c0_22 = arith.constant 0 : index
    %c0_23 = arith.constant 0 : index
    %45 = vector.load %arg8[%c0_22, %c0_23] : memref<16x32xf32, #tpu.memory_space<vmem>>, vector<16x32xf32>
    tpu.vector_store %arg8[%c0_22, %c0_23], %44 {strides = array<i32>} : memref<16x32xf32, #tpu.memory_space<vmem>>, vector<16x32xf32>,
    return
  }
  func.func @transform_0(%arg0: i32) -> (i32, i32) {
    %c0_i32 = arith.constant 0 : i32
    %c0_i32_0 = arith.constant 0 : i32
    return %arg0, %c0_i32 : i32, i32
  }
  func.func @transform_1(%arg0: i32) -> (i32, i32) {
    %c0_i32 = arith.constant 0 : i32
    %c0_i32_0 = arith.constant 0 : i32
    %c0_i32_1 = arith.constant 0 : i32
    return %c0_i32, %c0_i32_0 : i32, i32
  }
  func.func @transform_2(%arg0: i32) -> (i32, i32) {
    %c0_i32 = arith.constant 0 : i32
    %c0_i32_0 = arith.constant 0 : i32
    %c0_i32_1 = arith.constant 0 : i32
    return %c0_i32, %c0_i32_0 : i32, i32
  }
  func.func @transform_3(%arg0: i32) -> (i32, i32) {
    %c0_i32 = arith.constant 0 : i32
    %c0_i32_0 = arith.constant 0 : i32
    %c0_i32_1 = arith.constant 0 : i32
    return %c0_i32, %c0_i32_0 : i32, i32
  }
  func.func @transform_4(%arg0: i32) -> (i32, i32) {
    %c0_i32 = arith.constant 0 : i32
    %c0_i32_0 = arith.constant 0 : i32
    %c0_i32_1 = arith.constant 0 : i32
    return %c0_i32, %c0_i32_0 : i32, i32
  }
  func.func @transform_5(%arg0: i32) -> (i32, i32) {
    %c0_i32 = arith.constant 0 : i32
    %c0_i32_0 = arith.constant 0 : i32
    %c0_i32_1 = arith.constant 0 : i32
    return %c0_i32, %c0_i32_0 : i32, i32
  }
  func.func @transform_6(%arg0: i32) -> (i32, i32) {
    %c0_i32 = arith.constant 0 : i32
    %c0_i32_0 = arith.constant 0 : i32
    %c0_i32_1 = arith.constant 0 : i32
    return %c0_i32, %c0_i32_0 : i32, i32
  }
  func.func @transform_7(%arg0: i32) -> (i32, i32) {
    %c0_i32 = arith.constant 0 : i32
    %c0_i32_0 = arith.constant 0 : i32
    return %arg0, %c0_i32 : i32, i32
  }
}

module attributes {stable_mosaic.version = 11 : i64} {
  func.func @_att_branch_kernel(%arg0: i32, %arg1: memref<16x32xf32, #tpu.memory_space<vmem>>, %arg2: memref<32x8xbf16, #tpu.memory_space<vmem>>, %arg3: memref<1x8xf32, #tpu.memory_space<vmem>>, %arg4: memref<1x8xf32, #tpu.memory_space<vmem>>, %arg5: memref<1x8xf32, #tpu.memory_space<vmem>>, %arg6: memref<8x32xbf16, #tpu.memory_space<vmem>>, %arg7: memref<1x32xf32, #tpu.memory_space<vmem>>, %arg8: memref<1x32xf32, #tpu.memory_space<vmem>>, %arg9: memref<1x32xf32, #tpu.memory_space<vmem>>, %arg10: memref<16x32xf32, #tpu.memory_space<vmem>>) attributes {dimension_semantics = [#tpu.dimension_semantics<parallel>], iteration_bounds = array<i64: 1>, scalar_prefetch = 0 : i64, scratch_operands = 0 : i64, tpu.core_type = #tpu.core_type<tc>, window_params = [{transform_indices = @transform_0, window_bounds = array<i64: 16, 32>}, {pipeline_mode = #tpu.pipeline_mode<synchronous>, transform_indices = @transform_1, window_bounds = array<i64: 32, 8>}, {pipeline_mode = #tpu.pipeline_mode<synchronous>, transform_indices = @transform_2, window_bounds = array<i64: 1, 8>}, {pipeline_mode = #tpu.pipeline_mode<synchronous>, transform_indices = @transform_3, window_bounds = array<i64: 1, 8>}, {pipeline_mode = #tpu.pipeline_mode<synchronous>, transform_indices = @transform_4, window_bounds = array<i64: 1, 8>}, {pipeline_mode = #tpu.pipeline_mode<synchronous>, transform_indices = @transform_5, window_bounds = array<i64: 8, 32>}, {pipeline_mode = #tpu.pipeline_mode<synchronous>, transform_indices = @transform_6, window_bounds = array<i64: 1, 32>}, {pipeline_mode = #tpu.pipeline_mode<synchronous>, transform_indices = @transform_7, window_bounds = array<i64: 1, 32>}, {pipeline_mode = #tpu.pipeline_mode<synchronous>, transform_indices = @transform_8, window_bounds = array<i64: 1, 32>}, {transform_indices = @transform_9, window_bounds = array<i64: 16, 32>}]} {
    %c0 = arith.constant 0 : index
    %c0_0 = arith.constant 0 : index
    %0 = vector.load %arg1[%c0, %c0_0] : memref<16x32xf32, #tpu.memory_space<vmem>>, vector<16x32xf32>
    %1 = arith.truncf %0 : vector<16x32xf32> to vector<16x32xbf16>
    %c0_1 = arith.constant 0 : index
    %c0_2 = arith.constant 0 : index
    %2 = vector.load %arg2[%c0_1, %c0_2] : memref<32x8xbf16, #tpu.memory_space<vmem>>, vector<32x8xbf16>
    %cst = arith.constant dense<0.000000e+00> : vector<16x8xf32>
    %3 = tpu.matmul %1, %2, %cst {dimension_numbers = #tpu.dot_dimension_numbers<[1], [0], [0], [1], [0, 0, 1, 1], [], []>} : vector<16x32xbf16>, vector<32x8xbf16>, vector<16x8xf32> -> vector<16x8xf32>
    %c0_3 = arith.constant 0 : index
    %c0_4 = arith.constant 0 : index
    %4 = vector.load %arg3[%c0_3, %c0_4] : memref<1x8xf32, #tpu.memory_space<vmem>>, vector<1x8xf32>
    %5 = vector.broadcast %4 : vector<1x8xf32> to vector<16x8xf32>
    %6 = arith.addf %3, %5 : vector<16x8xf32>
    %c0_5 = arith.constant 0 : index
    %c0_6 = arith.constant 0 : index
    %7 = vector.load %arg4[%c0_5, %c0_6] : memref<1x8xf32, #tpu.memory_space<vmem>>, vector<1x8xf32>
    %c0_7 = arith.constant 0 : index
    %c0_8 = arith.constant 0 : index
    %8 = vector.load %arg5[%c0_7, %c0_8] : memref<1x8xf32, #tpu.memory_space<vmem>>, vector<1x8xf32>
    %cst_9 = arith.constant dense<0.000000e+00> : vector<16xf32>
    %9 = vector.multi_reduction <add>, %6, %cst_9 [1] : vector<16x8xf32> to vector<16xf32>
    %10 = vector.shape_cast %9 : vector<16xf32> to vector<16x1xf32>
    %cst_10 = arith.constant 8.000000e+00 : f32
    %11 = vector.broadcast %cst_10 : f32 to vector<16x1xf32>
    %12 = arith.divf %10, %11 : vector<16x1xf32>
    %13 = vector.broadcast %12 : vector<16x1xf32> to vector<16x8xf32>
    %14 = arith.subf %6, %13 : vector<16x8xf32>
    %15 = arith.mulf %14, %14 : vector<16x8xf32>
    %cst_11 = arith.constant dense<0.000000e+00> : vector<16xf32>
    %16 = vector.multi_reduction <add>, %15, %cst_11 [1] : vector<16x8xf32> to vector<16xf32>
    %17 = vector.shape_cast %16 : vector<16xf32> to vector<16x1xf32>
    %cst_12 = arith.constant 8.000000e+00 : f32
    %18 = vector.broadcast %cst_12 : f32 to vector<16x1xf32>
    %19 = arith.divf %17, %18 : vector<16x1xf32>
    %20 = vector.broadcast %12 : vector<16x1xf32> to vector<16x8xf32>
    %21 = arith.subf %6, %20 : vector<16x8xf32>
    %cst_13 = arith.constant 9.99999974E-6 : f32
    %22 = vector.broadcast %cst_13 : f32 to vector<16x1xf32>
    %23 = arith.addf %19, %22 : vector<16x1xf32>
    %24 = math.rsqrt %23 : vector<16x1xf32>
    %25 = vector.broadcast %24 : vector<16x1xf32> to vector<16x8xf32>
    %26 = arith.mulf %21, %25 : vector<16x8xf32>
    %27 = vector.broadcast %7 : vector<1x8xf32> to vector<16x8xf32>
    %28 = arith.mulf %26, %27 : vector<16x8xf32>
    %29 = vector.broadcast %8 : vector<1x8xf32> to vector<16x8xf32>
    %30 = arith.addf %28, %29 : vector<16x8xf32>
    %cst_14 = arith.constant 5.000000e-01 : f32
    %31 = vector.broadcast %cst_14 : f32 to vector<16x8xf32>
    %32 = arith.mulf %31, %30 : vector<16x8xf32>
    %cst_15 = arith.constant 0.707106769 : f32
    %33 = vector.broadcast %cst_15 : f32 to vector<16x8xf32>
    %34 = arith.mulf %30, %33 : vector<16x8xf32>
    %35 = math.erf %34 : vector<16x8xf32>
    %cst_16 = arith.constant 1.000000e+00 : f32
    %36 = vector.broadcast %cst_16 : f32 to vector<16x8xf32>
    %37 = arith.addf %36, %35 : vector<16x8xf32>
    %38 = arith.mulf %32, %37 : vector<16x8xf32>
    %39 = arith.truncf %38 : vector<16x8xf32> to vector<16x8xbf16>
    %c0_17 = arith.constant 0 : index
    %c0_18 = arith.constant 0 : index
    %40 = vector.load %arg6[%c0_17, %c0_18] : memref<8x32xbf16, #tpu.memory_space<vmem>>, vector<8x32xbf16>
    %cst_19 = arith.constant dense<0.000000e+00> : vector<16x32xf32>
    %41 = tpu.matmul %39, %40, %cst_19 {dimension_numbers = #tpu.dot_dimension_numbers<[1], [0], [0], [1], [0, 0, 1, 1], [], []>} : vector<16x8xbf16>, vector<8x32xbf16>, vector<16x32xf32> -> vector<16x32xf32>
    %c0_20 = arith.constant 0 : index
    %c0_21 = arith.constant 0 : index
    %42 = vector.load %arg7[%c0_20, %c0_21] : memref<1x32xf32, #tpu.memory_space<vmem>>, vector<1x32xf32>
    %43 = vector.broadcast %42 : vector<1x32xf32> to vector<16x32xf32>
    %44 = arith.addf %41, %43 : vector<16x32xf32>
    %c0_22 = arith.constant 0 : index
    %c0_23 = arith.constant 0 : index
    %45 = vector.load %arg8[%c0_22, %c0_23] : memref<1x32xf32, #tpu.memory_space<vmem>>, vector<1x32xf32>
    %c0_24 = arith.constant 0 : index
    %c0_25 = arith.constant 0 : index
    %46 = vector.load %arg9[%c0_24, %c0_25] : memref<1x32xf32, #tpu.memory_space<vmem>>, vector<1x32xf32>
    %cst_26 = arith.constant dense<0.000000e+00> : vector<16xf32>
    %47 = vector.multi_reduction <add>, %44, %cst_26 [1] : vector<16x32xf32> to vector<16xf32>
    %48 = vector.shape_cast %47 : vector<16xf32> to vector<16x1xf32>
    %cst_27 = arith.constant 3.200000e+01 : f32
    %49 = vector.broadcast %cst_27 : f32 to vector<16x1xf32>
    %50 = arith.divf %48, %49 : vector<16x1xf32>
    %51 = vector.broadcast %50 : vector<16x1xf32> to vector<16x32xf32>
    %52 = arith.subf %44, %51 : vector<16x32xf32>
    %53 = arith.mulf %52, %52 : vector<16x32xf32>
    %cst_28 = arith.constant dense<0.000000e+00> : vector<16xf32>
    %54 = vector.multi_reduction <add>, %53, %cst_28 [1] : vector<16x32xf32> to vector<16xf32>
    %55 = vector.shape_cast %54 : vector<16xf32> to vector<16x1xf32>
    %cst_29 = arith.constant 3.200000e+01 : f32
    %56 = vector.broadcast %cst_29 : f32 to vector<16x1xf32>
    %57 = arith.divf %55, %56 : vector<16x1xf32>
    %58 = vector.broadcast %50 : vector<16x1xf32> to vector<16x32xf32>
    %59 = arith.subf %44, %58 : vector<16x32xf32>
    %cst_30 = arith.constant 9.99999974E-6 : f32
    %60 = vector.broadcast %cst_30 : f32 to vector<16x1xf32>
    %61 = arith.addf %57, %60 : vector<16x1xf32>
    %62 = math.rsqrt %61 : vector<16x1xf32>
    %63 = vector.broadcast %62 : vector<16x1xf32> to vector<16x32xf32>
    %64 = arith.mulf %59, %63 : vector<16x32xf32>
    %65 = vector.broadcast %45 : vector<1x32xf32> to vector<16x32xf32>
    %66 = arith.mulf %64, %65 : vector<16x32xf32>
    %67 = vector.broadcast %46 : vector<1x32xf32> to vector<16x32xf32>
    %68 = arith.addf %66, %67 : vector<16x32xf32>
    %69 = arith.negf %68 : vector<16x32xf32>
    %70 = math.exp %69 : vector<16x32xf32>
    %cst_31 = arith.constant 1.000000e+00 : f32
    %71 = vector.broadcast %cst_31 : f32 to vector<16x32xf32>
    %72 = arith.addf %71, %70 : vector<16x32xf32>
    %73 = arith.divf %71, %72 : vector<16x32xf32>
    %c0_32 = arith.constant 0 : index
    %c0_33 = arith.constant 0 : index
    %74 = vector.load %arg10[%c0_32, %c0_33] : memref<16x32xf32, #tpu.memory_space<vmem>>, vector<16x32xf32>
    tpu.vector_store %arg10[%c0_32, %c0_33], %73 {strides = array<i32>} : memref<16x32xf32, #tpu.memory_space<vmem>>, vector<16x32xf32>,
    return
  }
  func.func @transform_0(%arg0: i32) -> (i32, i32) {
    %c0_i32 = arith.constant 0 : i32
    %c0_i32_0 = arith.constant 0 : i32
    return %arg0, %c0_i32 : i32, i32
  }
  func.func @transform_1(%arg0: i32) -> (i32, i32) {
    %c0_i32 = arith.constant 0 : i32
    %c0_i32_0 = arith.constant 0 : i32
    %c0_i32_1 = arith.constant 0 : i32
    return %c0_i32, %c0_i32_0 : i32, i32
  }
  func.func @transform_2(%arg0: i32) -> (i32, i32) {
    %c0_i32 = arith.constant 0 : i32
    %c0_i32_0 = arith.constant 0 : i32
    %c0_i32_1 = arith.constant 0 : i32
    return %c0_i32, %c0_i32_0 : i32, i32
  }
  func.func @transform_3(%arg0: i32) -> (i32, i32) {
    %c0_i32 = arith.constant 0 : i32
    %c0_i32_0 = arith.constant 0 : i32
    %c0_i32_1 = arith.constant 0 : i32
    return %c0_i32, %c0_i32_0 : i32, i32
  }
  func.func @transform_4(%arg0: i32) -> (i32, i32) {
    %c0_i32 = arith.constant 0 : i32
    %c0_i32_0 = arith.constant 0 : i32
    %c0_i32_1 = arith.constant 0 : i32
    return %c0_i32, %c0_i32_0 : i32, i32
  }
  func.func @transform_5(%arg0: i32) -> (i32, i32) {
    %c0_i32 = arith.constant 0 : i32
    %c0_i32_0 = arith.constant 0 : i32
    %c0_i32_1 = arith.constant 0 : i32
    return %c0_i32, %c0_i32_0 : i32, i32
  }
  func.func @transform_6(%arg0: i32) -> (i32, i32) {
    %c0_i32 = arith.constant 0 : i32
    %c0_i32_0 = arith.constant 0 : i32
    %c0_i32_1 = arith.constant 0 : i32
    return %c0_i32, %c0_i32_0 : i32, i32
  }
  func.func @transform_7(%arg0: i32) -> (i32, i32) {
    %c0_i32 = arith.constant 0 : i32
    %c0_i32_0 = arith.constant 0 : i32
    %c0_i32_1 = arith.constant 0 : i32
    return %c0_i32, %c0_i32_0 : i32, i32
  }
  func.func @transform_8(%arg0: i32) -> (i32, i32) {
    %c0_i32 = arith.constant 0 : i32
    %c0_i32_0 = arith.constant 0 : i32
    %c0_i32_1 = arith.constant 0 : i32
    return %c0_i32, %c0_i32_0 : i32, i32
  }
  func.func @transform_9(%arg0: i32) -> (i32, i32) {
    %c0_i32 = arith.constant 0 : i32
    %c0_i32_0 = arith.constant 0 : i32
    return %arg0, %c0_i32 : i32, i32
  }
}

module attributes {stable_mosaic.version = 11 : i64} {
  func.func @_att_branch_kernel(%arg0: i32, %arg1: memref<2x8xf32, #tpu.memory_space<vmem>>, %arg2: memref<8x2xbf16, #tpu.memory_space<vmem>>, %arg3: memref<1x2xf32, #tpu.memory_space<vmem>>, %arg4: memref<1x2xf32, #tpu.memory_space<vmem>>, %arg5: memref<1x2xf32, #tpu.memory_space<vmem>>, %arg6: memref<2x8xbf16, #tpu.memory_space<vmem>>, %arg7: memref<1x8xf32, #tpu.memory_space<vmem>>, %arg8: memref<1x8xf32, #tpu.memory_space<vmem>>, %arg9: memref<1x8xf32, #tpu.memory_space<vmem>>, %arg10: memref<2x8xf32, #tpu.memory_space<vmem>>) attributes {dimension_semantics = [#tpu.dimension_semantics<parallel>], iteration_bounds = array<i64: 1>, scalar_prefetch = 0 : i64, scratch_operands = 0 : i64, tpu.core_type = #tpu.core_type<tc>, window_params = [{transform_indices = @transform_0, window_bounds = array<i64: 2, 8>}, {pipeline_mode = #tpu.pipeline_mode<synchronous>, transform_indices = @transform_1, window_bounds = array<i64: 8, 2>}, {pipeline_mode = #tpu.pipeline_mode<synchronous>, transform_indices = @transform_2, window_bounds = array<i64: 1, 2>}, {pipeline_mode = #tpu.pipeline_mode<synchronous>, transform_indices = @transform_3, window_bounds = array<i64: 1, 2>}, {pipeline_mode = #tpu.pipeline_mode<synchronous>, transform_indices = @transform_4, window_bounds = array<i64: 1, 2>}, {pipeline_mode = #tpu.pipeline_mode<synchronous>, transform_indices = @transform_5, window_bounds = array<i64: 2, 8>}, {pipeline_mode = #tpu.pipeline_mode<synchronous>, transform_indices = @transform_6, window_bounds = array<i64: 1, 8>}, {pipeline_mode = #tpu.pipeline_mode<synchronous>, transform_indices = @transform_7, window_bounds = array<i64: 1, 8>}, {pipeline_mode = #tpu.pipeline_mode<synchronous>, transform_indices = @transform_8, window_bounds = array<i64: 1, 8>}, {transform_indices = @transform_9, window_bounds = array<i64: 2, 8>}]} {
    %c0 = arith.constant 0 : index
    %c0_0 = arith.constant 0 : index
    %0 = vector.load %arg1[%c0, %c0_0] : memref<2x8xf32, #tpu.memory_space<vmem>>, vector<2x8xf32>
    %1 = arith.truncf %0 : vector<2x8xf32> to vector<2x8xbf16>
    %c0_1 = arith.constant 0 : index
    %c0_2 = arith.constant 0 : index
    %2 = vector.load %arg2[%c0_1, %c0_2] : memref<8x2xbf16, #tpu.memory_space<vmem>>, vector<8x2xbf16>
    %cst = arith.constant dense<0.000000e+00> : vector<2x2xf32>
    %3 = tpu.matmul %1, %2, %cst {dimension_numbers = #tpu.dot_dimension_numbers<[1], [0], [0], [1], [0, 0, 1, 1], [], []>} : vector<2x8xbf16>, vector<8x2xbf16>, vector<2x2xf32> -> vector<2x2xf32>
    %c0_3 = arith.constant 0 : index
    %c0_4 = arith.constant 0 : index
    %4 = vector.load %arg3[%c0_3, %c0_4] : memref<1x2xf32, #tpu.memory_space<vmem>>, vector<1x2xf32>
    %5 = vector.broadcast %4 : vector<1x2xf32> to vector<2x2xf32>
    %6 = arith.addf %3, %5 : vector<2x2xf32>
    %c0_5 = arith.constant 0 : index
    %c0_6 = arith.constant 0 : index
    %7 = vector.load %arg4[%c0_5, %c0_6] : memref<1x2xf32, #tpu.memory_space<vmem>>, vector<1x2xf32>
    %c0_7 = arith.constant 0 : index
    %c0_8 = arith.constant 0 : index
    %8 = vector.load %arg5[%c0_7, %c0_8] : memref<1x2xf32, #tpu.memory_space<vmem>>, vector<1x2xf32>
    %cst_9 = arith.constant dense<0.000000e+00> : vector<2xf32>
    %9 = vector.multi_reduction <add>, %6, %cst_9 [1] : vector<2x2xf32> to vector<2xf32>
    %10 = vector.shape_cast %9 : vector<2xf32> to vector<2x1xf32>
    %cst_10 = arith.constant 2.000000e+00 : f32
    %11 = vector.broadcast %cst_10 : f32 to vector<2x1xf32>
    %12 = arith.divf %10, %11 : vector<2x1xf32>
    %13 = vector.broadcast %12 : vector<2x1xf32> to vector<2x2xf32>
    %14 = arith.subf %6, %13 : vector<2x2xf32>
    %15 = arith.mulf %14, %14 : vector<2x2xf32>
    %cst_11 = arith.constant dense<0.000000e+00> : vector<2xf32>
    %16 = vector.multi_reduction <add>, %15, %cst_11 [1] : vector<2x2xf32> to vector<2xf32>
    %17 = vector.shape_cast %16 : vector<2xf32> to vector<2x1xf32>
    %cst_12 = arith.constant 2.000000e+00 : f32
    %18 = vector.broadcast %cst_12 : f32 to vector<2x1xf32>
    %19 = arith.divf %17, %18 : vector<2x1xf32>
    %20 = vector.broadcast %12 : vector<2x1xf32> to vector<2x2xf32>
    %21 = arith.subf %6, %20 : vector<2x2xf32>
    %cst_13 = arith.constant 9.99999974E-6 : f32
    %22 = vector.broadcast %cst_13 : f32 to vector<2x1xf32>
    %23 = arith.addf %19, %22 : vector<2x1xf32>
    %24 = math.rsqrt %23 : vector<2x1xf32>
    %25 = vector.broadcast %24 : vector<2x1xf32> to vector<2x2xf32>
    %26 = arith.mulf %21, %25 : vector<2x2xf32>
    %27 = vector.broadcast %7 : vector<1x2xf32> to vector<2x2xf32>
    %28 = arith.mulf %26, %27 : vector<2x2xf32>
    %29 = vector.broadcast %8 : vector<1x2xf32> to vector<2x2xf32>
    %30 = arith.addf %28, %29 : vector<2x2xf32>
    %cst_14 = arith.constant 5.000000e-01 : f32
    %31 = vector.broadcast %cst_14 : f32 to vector<2x2xf32>
    %32 = arith.mulf %31, %30 : vector<2x2xf32>
    %cst_15 = arith.constant 0.707106769 : f32
    %33 = vector.broadcast %cst_15 : f32 to vector<2x2xf32>
    %34 = arith.mulf %30, %33 : vector<2x2xf32>
    %35 = math.erf %34 : vector<2x2xf32>
    %cst_16 = arith.constant 1.000000e+00 : f32
    %36 = vector.broadcast %cst_16 : f32 to vector<2x2xf32>
    %37 = arith.addf %36, %35 : vector<2x2xf32>
    %38 = arith.mulf %32, %37 : vector<2x2xf32>
    %39 = arith.truncf %38 : vector<2x2xf32> to vector<2x2xbf16>
    %c0_17 = arith.constant 0 : index
    %c0_18 = arith.constant 0 : index
    %40 = vector.load %arg6[%c0_17, %c0_18] : memref<2x8xbf16, #tpu.memory_space<vmem>>, vector<2x8xbf16>
    %cst_19 = arith.constant dense<0.000000e+00> : vector<2x8xf32>
    %41 = tpu.matmul %39, %40, %cst_19 {dimension_numbers = #tpu.dot_dimension_numbers<[1], [0], [0], [1], [0, 0, 1, 1], [], []>} : vector<2x2xbf16>, vector<2x8xbf16>, vector<2x8xf32> -> vector<2x8xf32>
    %c0_20 = arith.constant 0 : index
    %c0_21 = arith.constant 0 : index
    %42 = vector.load %arg7[%c0_20, %c0_21] : memref<1x8xf32, #tpu.memory_space<vmem>>, vector<1x8xf32>
    %43 = vector.broadcast %42 : vector<1x8xf32> to vector<2x8xf32>
    %44 = arith.addf %41, %43 : vector<2x8xf32>
    %c0_22 = arith.constant 0 : index
    %c0_23 = arith.constant 0 : index
    %45 = vector.load %arg8[%c0_22, %c0_23] : memref<1x8xf32, #tpu.memory_space<vmem>>, vector<1x8xf32>
    %c0_24 = arith.constant 0 : index
    %c0_25 = arith.constant 0 : index
    %46 = vector.load %arg9[%c0_24, %c0_25] : memref<1x8xf32, #tpu.memory_space<vmem>>, vector<1x8xf32>
    %cst_26 = arith.constant dense<0.000000e+00> : vector<2xf32>
    %47 = vector.multi_reduction <add>, %44, %cst_26 [1] : vector<2x8xf32> to vector<2xf32>
    %48 = vector.shape_cast %47 : vector<2xf32> to vector<2x1xf32>
    %cst_27 = arith.constant 8.000000e+00 : f32
    %49 = vector.broadcast %cst_27 : f32 to vector<2x1xf32>
    %50 = arith.divf %48, %49 : vector<2x1xf32>
    %51 = vector.broadcast %50 : vector<2x1xf32> to vector<2x8xf32>
    %52 = arith.subf %44, %51 : vector<2x8xf32>
    %53 = arith.mulf %52, %52 : vector<2x8xf32>
    %cst_28 = arith.constant dense<0.000000e+00> : vector<2xf32>
    %54 = vector.multi_reduction <add>, %53, %cst_28 [1] : vector<2x8xf32> to vector<2xf32>
    %55 = vector.shape_cast %54 : vector<2xf32> to vector<2x1xf32>
    %cst_29 = arith.constant 8.000000e+00 : f32
    %56 = vector.broadcast %cst_29 : f32 to vector<2x1xf32>
    %57 = arith.divf %55, %56 : vector<2x1xf32>
    %58 = vector.broadcast %50 : vector<2x1xf32> to vector<2x8xf32>
    %59 = arith.subf %44, %58 : vector<2x8xf32>
    %cst_30 = arith.constant 9.99999974E-6 : f32
    %60 = vector.broadcast %cst_30 : f32 to vector<2x1xf32>
    %61 = arith.addf %57, %60 : vector<2x1xf32>
    %62 = math.rsqrt %61 : vector<2x1xf32>
    %63 = vector.broadcast %62 : vector<2x1xf32> to vector<2x8xf32>
    %64 = arith.mulf %59, %63 : vector<2x8xf32>
    %65 = vector.broadcast %45 : vector<1x8xf32> to vector<2x8xf32>
    %66 = arith.mulf %64, %65 : vector<2x8xf32>
    %67 = vector.broadcast %46 : vector<1x8xf32> to vector<2x8xf32>
    %68 = arith.addf %66, %67 : vector<2x8xf32>
    %69 = arith.negf %68 : vector<2x8xf32>
    %70 = math.exp %69 : vector<2x8xf32>
    %cst_31 = arith.constant 1.000000e+00 : f32
    %71 = vector.broadcast %cst_31 : f32 to vector<2x8xf32>
    %72 = arith.addf %71, %70 : vector<2x8xf32>
    %73 = arith.divf %71, %72 : vector<2x8xf32>
    %c0_32 = arith.constant 0 : index
    %c0_33 = arith.constant 0 : index
    %74 = vector.load %arg10[%c0_32, %c0_33] : memref<2x8xf32, #tpu.memory_space<vmem>>, vector<2x8xf32>
    tpu.vector_store %arg10[%c0_32, %c0_33], %73 {strides = array<i32>} : memref<2x8xf32, #tpu.memory_space<vmem>>, vector<2x8xf32>,
    return
  }
  func.func @transform_0(%arg0: i32) -> (i32, i32) {
    %c0_i32 = arith.constant 0 : i32
    %c0_i32_0 = arith.constant 0 : i32
    return %arg0, %c0_i32 : i32, i32
  }
  func.func @transform_1(%arg0: i32) -> (i32, i32) {
    %c0_i32 = arith.constant 0 : i32
    %c0_i32_0 = arith.constant 0 : i32
    %c0_i32_1 = arith.constant 0 : i32
    return %c0_i32, %c0_i32_0 : i32, i32
  }
  func.func @transform_2(%arg0: i32) -> (i32, i32) {
    %c0_i32 = arith.constant 0 : i32
    %c0_i32_0 = arith.constant 0 : i32
    %c0_i32_1 = arith.constant 0 : i32
    return %c0_i32, %c0_i32_0 : i32, i32
  }
  func.func @transform_3(%arg0: i32) -> (i32, i32) {
    %c0_i32 = arith.constant 0 : i32
    %c0_i32_0 = arith.constant 0 : i32
    %c0_i32_1 = arith.constant 0 : i32
    return %c0_i32, %c0_i32_0 : i32, i32
  }
  func.func @transform_4(%arg0: i32) -> (i32, i32) {
    %c0_i32 = arith.constant 0 : i32
    %c0_i32_0 = arith.constant 0 : i32
    %c0_i32_1 = arith.constant 0 : i32
    return %c0_i32, %c0_i32_0 : i32, i32
  }
  func.func @transform_5(%arg0: i32) -> (i32, i32) {
    %c0_i32 = arith.constant 0 : i32
    %c0_i32_0 = arith.constant 0 : i32
    %c0_i32_1 = arith.constant 0 : i32
    return %c0_i32, %c0_i32_0 : i32, i32
  }
  func.func @transform_6(%arg0: i32) -> (i32, i32) {
    %c0_i32 = arith.constant 0 : i32
    %c0_i32_0 = arith.constant 0 : i32
    %c0_i32_1 = arith.constant 0 : i32
    return %c0_i32, %c0_i32_0 : i32, i32
  }
  func.func @transform_7(%arg0: i32) -> (i32, i32) {
    %c0_i32 = arith.constant 0 : i32
    %c0_i32_0 = arith.constant 0 : i32
    %c0_i32_1 = arith.constant 0 : i32
    return %c0_i32, %c0_i32_0 : i32, i32
  }
  func.func @transform_8(%arg0: i32) -> (i32, i32) {
    %c0_i32 = arith.constant 0 : i32
    %c0_i32_0 = arith.constant 0 : i32
    %c0_i32_1 = arith.constant 0 : i32
    return %c0_i32, %c0_i32_0 : i32, i32
  }
  func.func @transform_9(%arg0: i32) -> (i32, i32) {
    %c0_i32 = arith.constant 0 : i32
    %c0_i32_0 = arith.constant 0 : i32
    return %arg0, %c0_i32 : i32, i32
  }
}

module attributes {stable_mosaic.version = 11 : i64} {
  func.func @_linear_kernel(%arg0: i32, %arg1: memref<16x32xf32, #tpu.memory_space<vmem>>, %arg2: memref<32x12xbf16, #tpu.memory_space<vmem>>, %arg3: memref<1x12xf32, #tpu.memory_space<vmem>>, %arg4: memref<16x12xf32, #tpu.memory_space<vmem>>) attributes {dimension_semantics = [#tpu.dimension_semantics<parallel>], iteration_bounds = array<i64: 1>, scalar_prefetch = 0 : i64, scratch_operands = 0 : i64, tpu.core_type = #tpu.core_type<tc>, window_params = [{transform_indices = @transform_0, window_bounds = array<i64: 16, 32>}, {pipeline_mode = #tpu.pipeline_mode<synchronous>, transform_indices = @transform_1, window_bounds = array<i64: 32, 12>}, {pipeline_mode = #tpu.pipeline_mode<synchronous>, transform_indices = @transform_2, window_bounds = array<i64: 1, 12>}, {transform_indices = @transform_3, window_bounds = array<i64: 16, 12>}]} {
    %c0 = arith.constant 0 : index
    %c0_0 = arith.constant 0 : index
    %0 = vector.load %arg1[%c0, %c0_0] : memref<16x32xf32, #tpu.memory_space<vmem>>, vector<16x32xf32>
    %1 = arith.truncf %0 : vector<16x32xf32> to vector<16x32xbf16>
    %c0_1 = arith.constant 0 : index
    %c0_2 = arith.constant 0 : index
    %2 = vector.load %arg2[%c0_1, %c0_2] : memref<32x12xbf16, #tpu.memory_space<vmem>>, vector<32x12xbf16>
    %cst = arith.constant dense<0.000000e+00> : vector<16x12xf32>
    %3 = tpu.matmul %1, %2, %cst {dimension_numbers = #tpu.dot_dimension_numbers<[1], [0], [0], [1], [0, 0, 1, 1], [], []>} : vector<16x32xbf16>, vector<32x12xbf16>, vector<16x12xf32> -> vector<16x12xf32>
    %c0_3 = arith.constant 0 : index
    %c0_4 = arith.constant 0 : index
    %4 = vector.load %arg3[%c0_3, %c0_4] : memref<1x12xf32, #tpu.memory_space<vmem>>, vector<1x12xf32>
    %5 = vector.broadcast %4 : vector<1x12xf32> to vector<16x12xf32>
    %6 = arith.addf %3, %5 : vector<16x12xf32>
    %c0_5 = arith.constant 0 : index
    %c0_6 = arith.constant 0 : index
    %7 = vector.load %arg4[%c0_5, %c0_6] : memref<16x12xf32, #tpu.memory_space<vmem>>, vector<16x12xf32>
    tpu.vector_store %arg4[%c0_5, %c0_6], %6 {strides = array<i32>} : memref<16x12xf32, #tpu.memory_space<vmem>>, vector<16x12xf32>,
    return
  }
  func.func @transform_0(%arg0: i32) -> (i32, i32) {
    %c0_i32 = arith.constant 0 : i32
    %c0_i32_0 = arith.constant 0 : i32
    return %arg0, %c0_i32 : i32, i32
  }
  func.func @transform_1(%arg0: i32) -> (i32, i32) {
    %c0_i32 = arith.constant 0 : i32
    %c0_i32_0 = arith.constant 0 : i32
    %c0_i32_1 = arith.constant 0 : i32
    return %c0_i32, %c0_i32_0 : i32, i32
  }
  func.func @transform_2(%arg0: i32) -> (i32, i32) {
    %c0_i32 = arith.constant 0 : i32
    %c0_i32_0 = arith.constant 0 : i32
    %c0_i32_1 = arith.constant 0 : i32
    return %c0_i32, %c0_i32_0 : i32, i32
  }
  func.func @transform_3(%arg0: i32) -> (i32, i32) {
    %c0_i32 = arith.constant 0 : i32
    %c0_i32_0 = arith.constant 0 : i32
    return %arg0, %c0_i32 : i32, i32
  }
}

module attributes {stable_mosaic.version = 11 : i64} {
  func.func @_masked_max_kernel(%arg0: i32, %arg1: memref<1x8x8x6xf32, #tpu.memory_space<vmem>>, %arg2: memref<1x8x8xf32, #tpu.memory_space<vmem>>, %arg3: memref<1x8x6xf32, #tpu.memory_space<vmem>>) attributes {dimension_semantics = [#tpu.dimension_semantics<parallel>], iteration_bounds = array<i64: 2>, scalar_prefetch = 0 : i64, scratch_operands = 0 : i64, tpu.core_type = #tpu.core_type<tc>, window_params = [{transform_indices = @transform_0, window_bounds = array<i64: 1, 8, 8, 6>}, {transform_indices = @transform_1, window_bounds = array<i64: 1, 8, 8>}, {transform_indices = @transform_2, window_bounds = array<i64: 1, 8, 6>}]} {
    %c0 = arith.constant 0 : index
    %c0_0 = arith.constant 0 : index
    %c0_1 = arith.constant 0 : index
    %c0_2 = arith.constant 0 : index
    %0 = vector.load %arg1[%c0, %c0_0, %c0_1, %c0_2] : memref<1x8x8x6xf32, #tpu.memory_space<vmem>>, vector<1x8x8x6xf32>
    %1 = vector.shape_cast %0 : vector<1x8x8x6xf32> to vector<8x8x6xf32>
    %c0_3 = arith.constant 0 : index
    %c0_4 = arith.constant 0 : index
    %c0_5 = arith.constant 0 : index
    %2 = vector.load %arg2[%c0_3, %c0_4, %c0_5] : memref<1x8x8xf32, #tpu.memory_space<vmem>>, vector<1x8x8xf32>
    %3 = vector.shape_cast %2 : vector<1x8x8xf32> to vector<8x8xf32>
    %4 = vector.shape_cast %3 : vector<8x8xf32> to vector<8x8x1xf32>
    %5 = vector.broadcast %4 : vector<8x8x1xf32> to vector<8x8x6xf32>
    %6 = arith.mulf %1, %5 : vector<8x8x6xf32>
    %cst = arith.constant dense<0xFF800000> : vector<8x6xf32>
    %7 = vector.multi_reduction <maximumf>, %6, %cst [0] : vector<8x8x6xf32> to vector<8x6xf32>
    %cst_6 = arith.constant dense<0xFF800000> : vector<8x6xf32>
    %8 = vector.multi_reduction <maximumf>, %6, %cst_6 [1] : vector<8x8x6xf32> to vector<8x6xf32>
    %9 = arith.maximumf %7, %8 : vector<8x6xf32>
    %c0_7 = arith.constant 0 : index
    %c0_8 = arith.constant 0 : index
    %c0_9 = arith.constant 0 : index
    %10 = vector.load %arg3[%c0_7, %c0_8, %c0_9] : memref<1x8x6xf32, #tpu.memory_space<vmem>>, vector<1x8x6xf32>
    %11 = vector.shape_cast %10 : vector<1x8x6xf32> to vector<8x6xf32>
    %12 = vector.shape_cast %9 : vector<8x6xf32> to vector<1x8x6xf32>
    tpu.vector_store %arg3[%c0_7, %c0_8, %c0_9], %12 {strides = array<i32>} : memref<1x8x6xf32, #tpu.memory_space<vmem>>, vector<1x8x6xf32>,
    return
  }
  func.func @transform_0(%arg0: i32) -> (i32, i32, i32, i32) {
    %c0_i32 = arith.constant 0 : i32
    %c0_i32_0 = arith.constant 0 : i32
    %c0_i32_1 = arith.constant 0 : i32
    %c0_i32_2 = arith.constant 0 : i32
    return %arg0, %c0_i32, %c0_i32_0, %c0_i32_1 : i32, i32, i32, i32
  }
  func.func @transform_1(%arg0: i32) -> (i32, i32, i32) {
    %c0_i32 = arith.constant 0 : i32
    %c0_i32_0 = arith.constant 0 : i32
    %c0_i32_1 = arith.constant 0 : i32
    return %arg0, %c0_i32, %c0_i32_0 : i32, i32, i32
  }
  func.func @transform_2(%arg0: i32) -> (i32, i32, i32) {
    %c0_i32 = arith.constant 0 : i32
    %c0_i32_0 = arith.constant 0 : i32
    %c0_i32_1 = arith.constant 0 : i32
    return %arg0, %c0_i32, %c0_i32_0 : i32, i32, i32
  }
}

module attributes {stable_mosaic.version = 11 : i64} {
  func.func @_hop0_kernel(%arg0: i32, %arg1: i32, %arg2: memref<1x8x32xf32, #tpu.memory_space<vmem>>, %arg3: memref<1x8x32xf32, #tpu.memory_space<vmem>>, %arg4: memref<1x8x6xf32, #tpu.memory_space<vmem>>, %arg5: memref<1x8x6xf32, #tpu.memory_space<vmem>>, %arg6: memref<1x8x8x6xf32, #tpu.memory_space<vmem>>, %arg7: memref<32x64xbf16, #tpu.memory_space<vmem>>, %arg8: memref<32x64xbf16, #tpu.memory_space<vmem>>, %arg9: memref<6x64xf32, #tpu.memory_space<vmem>>, %arg10: memref<6x64xf32, #tpu.memory_space<vmem>>, %arg11: memref<6x64xf32, #tpu.memory_space<vmem>>, %arg12: memref<1x64xf32, #tpu.memory_space<vmem>>, %arg13: memref<64x6xbf16, #tpu.memory_space<vmem>>, %arg14: memref<1x6xf32, #tpu.memory_space<vmem>>, %arg15: memref<1x8x8x64xf32, #tpu.memory_space<vmem>>, %arg16: memref<1x8x8x6xf32, #tpu.memory_space<vmem>>) attributes {dimension_semantics = [#tpu.dimension_semantics<parallel>, #tpu.dimension_semantics<parallel>], iteration_bounds = array<i64: 2, 1>, scalar_prefetch = 0 : i64, scratch_operands = 0 : i64, tpu.core_type = #tpu.core_type<tc>, window_params = [{transform_indices = @transform_0, window_bounds = array<i64: 1, 8, 32>}, {transform_indices = @transform_1, window_bounds = array<i64: 1, 8, 32>}, {transform_indices = @transform_2, window_bounds = array<i64: 1, 8, 6>}, {transform_indices = @transform_3, window_bounds = array<i64: 1, 8, 6>}, {transform_indices = @transform_4, window_bounds = array<i64: 1, 8, 8, 6>}, {pipeline_mode = #tpu.pipeline_mode<synchronous>, transform_indices = @transform_5, window_bounds = array<i64: 32, 64>}, {pipeline_mode = #tpu.pipeline_mode<synchronous>, transform_indices = @transform_6, window_bounds = array<i64: 32, 64>}, {pipeline_mode = #tpu.pipeline_mode<synchronous>, transform_indices = @transform_7, window_bounds = array<i64: 6, 64>}, {pipeline_mode = #tpu.pipeline_mode<synchronous>, transform_indices = @transform_8, window_bounds = array<i64: 6, 64>}, {pipeline_mode = #tpu.pipeline_mode<synchronous>, transform_indices = @transform_9, window_bounds = array<i64: 6, 64>}, {pipeline_mode = #tpu.pipeline_mode<synchronous>, transform_indices = @transform_10, window_bounds = array<i64: 1, 64>}, {pipeline_mode = #tpu.pipeline_mode<synchronous>, transform_indices = @transform_11, window_bounds = array<i64: 64, 6>}, {pipeline_mode = #tpu.pipeline_mode<synchronous>, transform_indices = @transform_12, window_bounds = array<i64: 1, 6>}, {transform_indices = @transform_13, window_bounds = array<i64: 1, 8, 8, 64>}, {transform_indices = @transform_14, window_bounds = array<i64: 1, 8, 8, 6>}]} {
    %c0 = arith.constant 0 : index
    %c0_0 = arith.constant 0 : index
    %c0_1 = arith.constant 0 : index
    %c0_2 = arith.constant 0 : index
    %0 = vector.load %arg6[%c0, %c0_0, %c0_1, %c0_2] : memref<1x8x8x6xf32, #tpu.memory_space<vmem>>, vector<1x8x8x6xf32>
    %1 = vector.shape_cast %0 : vector<1x8x8x6xf32> to vector<8x8x6xf32>
    %c0_3 = arith.constant 0 : index
    %c0_4 = arith.constant 0 : index
    %c0_5 = arith.constant 0 : index
    %2 = vector.load %arg2[%c0_3, %c0_4, %c0_5] : memref<1x8x32xf32, #tpu.memory_space<vmem>>, vector<1x8x32xf32>
    %3 = vector.shape_cast %2 : vector<1x8x32xf32> to vector<8x32xf32>
    %4 = arith.truncf %3 : vector<8x32xf32> to vector<8x32xbf16>
    %c0_6 = arith.constant 0 : index
    %c0_7 = arith.constant 0 : index
    %5 = vector.load %arg7[%c0_6, %c0_7] : memref<32x64xbf16, #tpu.memory_space<vmem>>, vector<32x64xbf16>
    %cst = arith.constant dense<0.000000e+00> : vector<8x64xf32>
    %6 = tpu.matmul %4, %5, %cst {dimension_numbers = #tpu.dot_dimension_numbers<[1], [0], [0], [1], [0, 0, 1, 1], [], []>} : vector<8x32xbf16>, vector<32x64xbf16>, vector<8x64xf32> -> vector<8x64xf32>
    %c0_8 = arith.constant 0 : index
    %c0_9 = arith.constant 0 : index
    %c0_10 = arith.constant 0 : index
    %7 = vector.load %arg4[%c0_8, %c0_9, %c0_10] : memref<1x8x6xf32, #tpu.memory_space<vmem>>, vector<1x8x6xf32>
    %8 = vector.shape_cast %7 : vector<1x8x6xf32> to vector<8x6xf32>
    %c0_11 = arith.constant 0 : index
    %c0_12 = arith.constant 0 : index
    %9 = vector.load %arg9[%c0_11, %c0_12] : memref<6x64xf32, #tpu.memory_space<vmem>>, vector<6x64xf32>
    %cst_13 = arith.constant dense<0.000000e+00> : vector<8x64xf32>
    %10 = tpu.matmul %8, %9, %cst_13 {dimension_numbers = #tpu.dot_dimension_numbers<[1], [0], [0], [1], [0, 0, 1, 1], [], []>} : vector<8x6xf32>, vector<6x64xf32>, vector<8x64xf32> -> vector<8x64xf32>
    %11 = arith.addf %6, %10 : vector<8x64xf32>
    %c0_14 = arith.constant 0 : index
    %c0_15 = arith.constant 0 : index
    %c0_16 = arith.constant 0 : index
    %12 = vector.load %arg3[%c0_14, %c0_15, %c0_16] : memref<1x8x32xf32, #tpu.memory_space<vmem>>, vector<1x8x32xf32>
    %13 = vector.shape_cast %12 : vector<1x8x32xf32> to vector<8x32xf32>
    %14 = arith.truncf %13 : vector<8x32xf32> to vector<8x32xbf16>
    %c0_17 = arith.constant 0 : index
    %c0_18 = arith.constant 0 : index
    %15 = vector.load %arg8[%c0_17, %c0_18] : memref<32x64xbf16, #tpu.memory_space<vmem>>, vector<32x64xbf16>
    %cst_19 = arith.constant dense<0.000000e+00> : vector<8x64xf32>
    %16 = tpu.matmul %14, %15, %cst_19 {dimension_numbers = #tpu.dot_dimension_numbers<[1], [0], [0], [1], [0, 0, 1, 1], [], []>} : vector<8x32xbf16>, vector<32x64xbf16>, vector<8x64xf32> -> vector<8x64xf32>
    %c0_20 = arith.constant 0 : index
    %c0_21 = arith.constant 0 : index
    %c0_22 = arith.constant 0 : index
    %17 = vector.load %arg5[%c0_20, %c0_21, %c0_22] : memref<1x8x6xf32, #tpu.memory_space<vmem>>, vector<1x8x6xf32>
    %18 = vector.shape_cast %17 : vector<1x8x6xf32> to vector<8x6xf32>
    %c0_23 = arith.constant 0 : index
    %c0_24 = arith.constant 0 : index
    %19 = vector.load %arg10[%c0_23, %c0_24] : memref<6x64xf32, #tpu.memory_space<vmem>>, vector<6x64xf32>
    %cst_25 = arith.constant dense<0.000000e+00> : vector<8x64xf32>
    %20 = tpu.matmul %18, %19, %cst_25 {dimension_numbers = #tpu.dot_dimension_numbers<[1], [0], [0], [1], [0, 0, 1, 1], [], []>} : vector<8x6xf32>, vector<6x64xf32>, vector<8x64xf32> -> vector<8x64xf32>
    %21 = arith.addf %16, %20 : vector<8x64xf32>
    %22 = vector.shape_cast %1 : vector<8x8x6xf32> to vector<64x6xf32>
    %c0_26 = arith.constant 0 : index
    %c0_27 = arith.constant 0 : index
    %23 = vector.load %arg11[%c0_26, %c0_27] : memref<6x64xf32, #tpu.memory_space<vmem>>, vector<6x64xf32>
    %cst_28 = arith.constant dense<0.000000e+00> : vector<64x64xf32>
    %24 = tpu.matmul %22, %23, %cst_28 {dimension_numbers = #tpu.dot_dimension_numbers<[1], [0], [0], [1], [0, 0, 1, 1], [], []>} : vector<64x6xf32>, vector<6x64xf32>, vector<64x64xf32> -> vector<64x64xf32>
    %25 = vector.shape_cast %24 : vector<64x64xf32> to vector<8x8x64xf32>
    %26 = vector.shape_cast %11 : vector<8x64xf32> to vector<8x1x64xf32>
    %27 = vector.shape_cast %21 : vector<8x64xf32> to vector<1x8x64xf32>
    %28 = vector.broadcast %26 : vector<8x1x64xf32> to vector<8x8x64xf32>
    %29 = vector.broadcast %27 : vector<1x8x64xf32> to vector<8x8x64xf32>
    %30 = arith.addf %28, %29 : vector<8x8x64xf32>
    %31 = arith.addf %30, %25 : vector<8x8x64xf32>
    %c0_29 = arith.constant 0 : index
    %c0_30 = arith.constant 0 : index
    %32 = vector.load %arg12[%c0_29, %c0_30] : memref<1x64xf32, #tpu.memory_space<vmem>>, vector<1x64xf32>
    %33 = vector.shape_cast %32 : vector<1x64xf32> to vector<1x1x64xf32>
    %34 = vector.broadcast %33 : vector<1x1x64xf32> to vector<8x8x64xf32>
    %35 = arith.addf %31, %34 : vector<8x8x64xf32>
    %36 = vector.shape_cast %35 : vector<8x8x64xf32> to vector<64x64xf32>
    %37 = arith.truncf %36 : vector<64x64xf32> to vector<64x64xbf16>
    %c0_31 = arith.constant 0 : index
    %c0_32 = arith.constant 0 : index
    %38 = vector.load %arg13[%c0_31, %c0_32] : memref<64x6xbf16, #tpu.memory_space<vmem>>, vector<64x6xbf16>
    %cst_33 = arith.constant dense<0.000000e+00> : vector<64x6xf32>
    %39 = tpu.matmul %37, %38, %cst_33 {dimension_numbers = #tpu.dot_dimension_numbers<[1], [0], [0], [1], [0, 0, 1, 1], [], []>} : vector<64x64xbf16>, vector<64x6xbf16>, vector<64x6xf32> -> vector<64x6xf32>
    %c0_34 = arith.constant 0 : index
    %c0_35 = arith.constant 0 : index
    %40 = vector.load %arg14[%c0_34, %c0_35] : memref<1x6xf32, #tpu.memory_space<vmem>>, vector<1x6xf32>
    %41 = vector.broadcast %40 : vector<1x6xf32> to vector<64x6xf32>
    %42 = arith.addf %39, %41 : vector<64x6xf32>
    %43 = vector.shape_cast %42 : vector<64x6xf32> to vector<8x8x6xf32>
    %c0_36 = arith.constant 0 : index
    %c0_37 = arith.constant 0 : index
    %c0_38 = arith.constant 0 : index
    %c0_39 = arith.constant 0 : index
    %44 = vector.load %arg15[%c0_36, %c0_37, %c0_38, %c0_39] : memref<1x8x8x64xf32, #tpu.memory_space<vmem>>, vector<1x8x8x64xf32>
    %45 = vector.shape_cast %44 : vector<1x8x8x64xf32> to vector<8x8x64xf32>
    %46 = vector.shape_cast %35 : vector<8x8x64xf32> to vector<1x8x8x64xf32>
    tpu.vector_store %arg15[%c0_36, %c0_37, %c0_38, %c0_39], %46 {strides = array<i32>} : memref<1x8x8x64xf32, #tpu.memory_space<vmem>>, vector<1x8x8x64xf32>,
    %c0_40 = arith.constant 0 : index
    %c0_41 = arith.constant 0 : index
    %c0_42 = arith.constant 0 : index
    %c0_43 = arith.constant 0 : index
    %47 = vector.load %arg16[%c0_40, %c0_41, %c0_42, %c0_43] : memref<1x8x8x6xf32, #tpu.memory_space<vmem>>, vector<1x8x8x6xf32>
    %48 = vector.shape_cast %47 : vector<1x8x8x6xf32> to vector<8x8x6xf32>
    %49 = vector.shape_cast %43 : vector<8x8x6xf32> to vector<1x8x8x6xf32>
    tpu.vector_store %arg16[%c0_40, %c0_41, %c0_42, %c0_43], %49 {strides = array<i32>} : memref<1x8x8x6xf32, #tpu.memory_space<vmem>>, vector<1x8x8x6xf32>,
    return
  }
  func.func @transform_0(%arg0: i32, %arg1: i32) -> (i32, i32, i32) {
    %c0_i32 = arith.constant 0 : i32
    %c0_i32_0 = arith.constant 0 : i32
    return %arg0, %arg1, %c0_i32 : i32, i32, i32
  }
  func.func @transform_1(%arg0: i32, %arg1: i32) -> (i32, i32, i32) {
    %c0_i32 = arith.constant 0 : i32
    %c0_i32_0 = arith.constant 0 : i32
    %c0_i32_1 = arith.constant 0 : i32
    return %arg0, %c0_i32, %c0_i32_0 : i32, i32, i32
  }
  func.func @transform_2(%arg0: i32, %arg1: i32) -> (i32, i32, i32) {
    %c0_i32 = arith.constant 0 : i32
    %c0_i32_0 = arith.constant 0 : i32
    return %arg0, %arg1, %c0_i32 : i32, i32, i32
  }
  func.func @transform_3(%arg0: i32, %arg1: i32) -> (i32, i32, i32) {
    %c0_i32 = arith.constant 0 : i32
    %c0_i32_0 = arith.constant 0 : i32
    %c0_i32_1 = arith.constant 0 : i32
    return %arg0, %c0_i32, %c0_i32_0 : i32, i32, i32
  }
  func.func @transform_4(%arg0: i32, %arg1: i32) -> (i32, i32, i32, i32) {
    %c0_i32 = arith.constant 0 : i32
    %c0_i32_0 = arith.constant 0 : i32
    %c0_i32_1 = arith.constant 0 : i32
    return %arg0, %arg1, %c0_i32, %c0_i32_0 : i32, i32, i32, i32
  }
  func.func @transform_5(%arg0: i32, %arg1: i32) -> (i32, i32) {
    %c0_i32 = arith.constant 0 : i32
    %c0_i32_0 = arith.constant 0 : i32
    %c0_i32_1 = arith.constant 0 : i32
    return %c0_i32, %c0_i32_0 : i32, i32
  }
  func.func @transform_6(%arg0: i32, %arg1: i32) -> (i32, i32) {
    %c0_i32 = arith.constant 0 : i32
    %c0_i32_0 = arith.constant 0 : i32
    %c0_i32_1 = arith.constant 0 : i32
    return %c0_i32, %c0_i32_0 : i32, i32
  }
  func.func @transform_7(%arg0: i32, %arg1: i32) -> (i32, i32) {
    %c0_i32 = arith.constant 0 : i32
    %c0_i32_0 = arith.constant 0 : i32
    %c0_i32_1 = arith.constant 0 : i32
    return %c0_i32, %c0_i32_0 : i32, i32
  }
  func.func @transform_8(%arg0: i32, %arg1: i32) -> (i32, i32) {
    %c0_i32 = arith.constant 0 : i32
    %c0_i32_0 = arith.constant 0 : i32
    %c0_i32_1 = arith.constant 0 : i32
    return %c0_i32, %c0_i32_0 : i32, i32
  }
  func.func @transform_9(%arg0: i32, %arg1: i32) -> (i32, i32) {
    %c0_i32 = arith.constant 0 : i32
    %c0_i32_0 = arith.constant 0 : i32
    %c0_i32_1 = arith.constant 0 : i32
    return %c0_i32, %c0_i32_0 : i32, i32
  }
  func.func @transform_10(%arg0: i32, %arg1: i32) -> (i32, i32) {
    %c0_i32 = arith.constant 0 : i32
    %c0_i32_0 = arith.constant 0 : i32
    %c0_i32_1 = arith.constant 0 : i32
    return %c0_i32, %c0_i32_0 : i32, i32
  }
  func.func @transform_11(%arg0: i32, %arg1: i32) -> (i32, i32) {
    %c0_i32 = arith.constant 0 : i32
    %c0_i32_0 = arith.constant 0 : i32
    %c0_i32_1 = arith.constant 0 : i32
    return %c0_i32, %c0_i32_0 : i32, i32
  }
  func.func @transform_12(%arg0: i32, %arg1: i32) -> (i32, i32) {
    %c0_i32 = arith.constant 0 : i32
    %c0_i32_0 = arith.constant 0 : i32
    %c0_i32_1 = arith.constant 0 : i32
    return %c0_i32, %c0_i32_0 : i32, i32
  }
  func.func @transform_13(%arg0: i32, %arg1: i32) -> (i32, i32, i32, i32) {
    %c0_i32 = arith.constant 0 : i32
    %c0_i32_0 = arith.constant 0 : i32
    %c0_i32_1 = arith.constant 0 : i32
    return %arg0, %arg1, %c0_i32, %c0_i32_0 : i32, i32, i32, i32
  }
  func.func @transform_14(%arg0: i32, %arg1: i32) -> (i32, i32, i32, i32) {
    %c0_i32 = arith.constant 0 : i32
    %c0_i32_0 = arith.constant 0 : i32
    %c0_i32_1 = arith.constant 0 : i32
    return %arg0, %arg1, %c0_i32, %c0_i32_0 : i32, i32, i32, i32
  }
}

module attributes {stable_mosaic.version = 11 : i64} {
  func.func @_hop_kernel(%arg0: i32, %arg1: i32, %arg2: memref<1x8x8x64xf32, #tpu.memory_space<vmem>>, %arg3: memref<1x8x6xf32, #tpu.memory_space<vmem>>, %arg4: memref<1x8x6xf32, #tpu.memory_space<vmem>>, %arg5: memref<1x8x8x6xf32, #tpu.memory_space<vmem>>, %arg6: memref<64x64xbf16, #tpu.memory_space<vmem>>, %arg7: memref<6x64xf32, #tpu.memory_space<vmem>>, %arg8: memref<6x64xf32, #tpu.memory_space<vmem>>, %arg9: memref<6x64xf32, #tpu.memory_space<vmem>>, %arg10: memref<1x64xf32, #tpu.memory_space<vmem>>, %arg11: memref<64x6xbf16, #tpu.memory_space<vmem>>, %arg12: memref<1x6xf32, #tpu.memory_space<vmem>>, %arg13: memref<1x8x8x64xf32, #tpu.memory_space<vmem>>, %arg14: memref<1x8x8x6xf32, #tpu.memory_space<vmem>>) attributes {dimension_semantics = [#tpu.dimension_semantics<parallel>, #tpu.dimension_semantics<parallel>], iteration_bounds = array<i64: 2, 1>, scalar_prefetch = 0 : i64, scratch_operands = 0 : i64, tpu.core_type = #tpu.core_type<tc>, window_params = [{transform_indices = @transform_0, window_bounds = array<i64: 1, 8, 8, 64>}, {transform_indices = @transform_1, window_bounds = array<i64: 1, 8, 6>}, {transform_indices = @transform_2, window_bounds = array<i64: 1, 8, 6>}, {transform_indices = @transform_3, window_bounds = array<i64: 1, 8, 8, 6>}, {pipeline_mode = #tpu.pipeline_mode<synchronous>, transform_indices = @transform_4, window_bounds = array<i64: 64, 64>}, {pipeline_mode = #tpu.pipeline_mode<synchronous>, transform_indices = @transform_5, window_bounds = array<i64: 6, 64>}, {pipeline_mode = #tpu.pipeline_mode<synchronous>, transform_indices = @transform_6, window_bounds = array<i64: 6, 64>}, {pipeline_mode = #tpu.pipeline_mode<synchronous>, transform_indices = @transform_7, window_bounds = array<i64: 6, 64>}, {pipeline_mode = #tpu.pipeline_mode<synchronous>, transform_indices = @transform_8, window_bounds = array<i64: 1, 64>}, {pipeline_mode = #tpu.pipeline_mode<synchronous>, transform_indices = @transform_9, window_bounds = array<i64: 64, 6>}, {pipeline_mode = #tpu.pipeline_mode<synchronous>, transform_indices = @transform_10, window_bounds = array<i64: 1, 6>}, {transform_indices = @transform_11, window_bounds = array<i64: 1, 8, 8, 64>}, {transform_indices = @transform_12, window_bounds = array<i64: 1, 8, 8, 6>}]} {
    %c0 = arith.constant 0 : index
    %c0_0 = arith.constant 0 : index
    %c0_1 = arith.constant 0 : index
    %c0_2 = arith.constant 0 : index
    %0 = vector.load %arg2[%c0, %c0_0, %c0_1, %c0_2] : memref<1x8x8x64xf32, #tpu.memory_space<vmem>>, vector<1x8x8x64xf32>
    %1 = vector.shape_cast %0 : vector<1x8x8x64xf32> to vector<8x8x64xf32>
    %c0_3 = arith.constant 0 : index
    %c0_4 = arith.constant 0 : index
    %c0_5 = arith.constant 0 : index
    %c0_6 = arith.constant 0 : index
    %2 = vector.load %arg5[%c0_3, %c0_4, %c0_5, %c0_6] : memref<1x8x8x6xf32, #tpu.memory_space<vmem>>, vector<1x8x8x6xf32>
    %3 = vector.shape_cast %2 : vector<1x8x8x6xf32> to vector<8x8x6xf32>
    %4 = vector.shape_cast %1 : vector<8x8x64xf32> to vector<64x64xf32>
    %5 = arith.truncf %4 : vector<64x64xf32> to vector<64x64xbf16>
    %c0_7 = arith.constant 0 : index
    %c0_8 = arith.constant 0 : index
    %6 = vector.load %arg6[%c0_7, %c0_8] : memref<64x64xbf16, #tpu.memory_space<vmem>>, vector<64x64xbf16>
    %cst = arith.constant dense<0.000000e+00> : vector<64x64xf32>
    %7 = tpu.matmul %5, %6, %cst {dimension_numbers = #tpu.dot_dimension_numbers<[1], [0], [0], [1], [0, 0, 1, 1], [], []>} : vector<64x64xbf16>, vector<64x64xbf16>, vector<64x64xf32> -> vector<64x64xf32>
    %8 = vector.shape_cast %7 : vector<64x64xf32> to vector<8x8x64xf32>
    %c0_9 = arith.constant 0 : index
    %c0_10 = arith.constant 0 : index
    %c0_11 = arith.constant 0 : index
    %9 = vector.load %arg3[%c0_9, %c0_10, %c0_11] : memref<1x8x6xf32, #tpu.memory_space<vmem>>, vector<1x8x6xf32>
    %10 = vector.shape_cast %9 : vector<1x8x6xf32> to vector<8x6xf32>
    %c0_12 = arith.constant 0 : index
    %c0_13 = arith.constant 0 : index
    %11 = vector.load %arg7[%c0_12, %c0_13] : memref<6x64xf32, #tpu.memory_space<vmem>>, vector<6x64xf32>
    %cst_14 = arith.constant dense<0.000000e+00> : vector<8x64xf32>
    %12 = tpu.matmul %10, %11, %cst_14 {dimension_numbers = #tpu.dot_dimension_numbers<[1], [0], [0], [1], [0, 0, 1, 1], [], []>} : vector<8x6xf32>, vector<6x64xf32>, vector<8x64xf32> -> vector<8x64xf32>
    %c0_15 = arith.constant 0 : index
    %c0_16 = arith.constant 0 : index
    %c0_17 = arith.constant 0 : index
    %13 = vector.load %arg4[%c0_15, %c0_16, %c0_17] : memref<1x8x6xf32, #tpu.memory_space<vmem>>, vector<1x8x6xf32>
    %14 = vector.shape_cast %13 : vector<1x8x6xf32> to vector<8x6xf32>
    %c0_18 = arith.constant 0 : index
    %c0_19 = arith.constant 0 : index
    %15 = vector.load %arg8[%c0_18, %c0_19] : memref<6x64xf32, #tpu.memory_space<vmem>>, vector<6x64xf32>
    %cst_20 = arith.constant dense<0.000000e+00> : vector<8x64xf32>
    %16 = tpu.matmul %14, %15, %cst_20 {dimension_numbers = #tpu.dot_dimension_numbers<[1], [0], [0], [1], [0, 0, 1, 1], [], []>} : vector<8x6xf32>, vector<6x64xf32>, vector<8x64xf32> -> vector<8x64xf32>
    %17 = vector.shape_cast %3 : vector<8x8x6xf32> to vector<64x6xf32>
    %c0_21 = arith.constant 0 : index
    %c0_22 = arith.constant 0 : index
    %18 = vector.load %arg9[%c0_21, %c0_22] : memref<6x64xf32, #tpu.memory_space<vmem>>, vector<6x64xf32>
    %cst_23 = arith.constant dense<0.000000e+00> : vector<64x64xf32>
    %19 = tpu.matmul %17, %18, %cst_23 {dimension_numbers = #tpu.dot_dimension_numbers<[1], [0], [0], [1], [0, 0, 1, 1], [], []>} : vector<64x6xf32>, vector<6x64xf32>, vector<64x64xf32> -> vector<64x64xf32>
    %20 = vector.shape_cast %19 : vector<64x64xf32> to vector<8x8x64xf32>
    %21 = vector.shape_cast %12 : vector<8x64xf32> to vector<8x1x64xf32>
    %22 = vector.broadcast %21 : vector<8x1x64xf32> to vector<8x8x64xf32>
    %23 = arith.addf %8, %22 : vector<8x8x64xf32>
    %24 = vector.shape_cast %16 : vector<8x64xf32> to vector<1x8x64xf32>
    %25 = vector.broadcast %24 : vector<1x8x64xf32> to vector<8x8x64xf32>
    %26 = arith.addf %23, %25 : vector<8x8x64xf32>
    %27 = arith.addf %26, %20 : vector<8x8x64xf32>
    %c0_24 = arith.constant 0 : index
    %c0_25 = arith.constant 0 : index
    %28 = vector.load %arg10[%c0_24, %c0_25] : memref<1x64xf32, #tpu.memory_space<vmem>>, vector<1x64xf32>
    %29 = vector.shape_cast %28 : vector<1x64xf32> to vector<1x1x64xf32>
    %30 = vector.broadcast %29 : vector<1x1x64xf32> to vector<8x8x64xf32>
    %31 = arith.addf %27, %30 : vector<8x8x64xf32>
    %32 = vector.shape_cast %31 : vector<8x8x64xf32> to vector<64x64xf32>
    %33 = arith.truncf %32 : vector<64x64xf32> to vector<64x64xbf16>
    %c0_26 = arith.constant 0 : index
    %c0_27 = arith.constant 0 : index
    %34 = vector.load %arg11[%c0_26, %c0_27] : memref<64x6xbf16, #tpu.memory_space<vmem>>, vector<64x6xbf16>
    %cst_28 = arith.constant dense<0.000000e+00> : vector<64x6xf32>
    %35 = tpu.matmul %33, %34, %cst_28 {dimension_numbers = #tpu.dot_dimension_numbers<[1], [0], [0], [1], [0, 0, 1, 1], [], []>} : vector<64x64xbf16>, vector<64x6xbf16>, vector<64x6xf32> -> vector<64x6xf32>
    %c0_29 = arith.constant 0 : index
    %c0_30 = arith.constant 0 : index
    %36 = vector.load %arg12[%c0_29, %c0_30] : memref<1x6xf32, #tpu.memory_space<vmem>>, vector<1x6xf32>
    %37 = vector.broadcast %36 : vector<1x6xf32> to vector<64x6xf32>
    %38 = arith.addf %35, %37 : vector<64x6xf32>
    %39 = vector.shape_cast %38 : vector<64x6xf32> to vector<8x8x6xf32>
    %c0_31 = arith.constant 0 : index
    %c0_32 = arith.constant 0 : index
    %c0_33 = arith.constant 0 : index
    %c0_34 = arith.constant 0 : index
    %40 = vector.load %arg13[%c0_31, %c0_32, %c0_33, %c0_34] : memref<1x8x8x64xf32, #tpu.memory_space<vmem>>, vector<1x8x8x64xf32>
    %41 = vector.shape_cast %40 : vector<1x8x8x64xf32> to vector<8x8x64xf32>
    %42 = vector.shape_cast %31 : vector<8x8x64xf32> to vector<1x8x8x64xf32>
    tpu.vector_store %arg13[%c0_31, %c0_32, %c0_33, %c0_34], %42 {strides = array<i32>} : memref<1x8x8x64xf32, #tpu.memory_space<vmem>>, vector<1x8x8x64xf32>,
    %c0_35 = arith.constant 0 : index
    %c0_36 = arith.constant 0 : index
    %c0_37 = arith.constant 0 : index
    %c0_38 = arith.constant 0 : index
    %43 = vector.load %arg14[%c0_35, %c0_36, %c0_37, %c0_38] : memref<1x8x8x6xf32, #tpu.memory_space<vmem>>, vector<1x8x8x6xf32>
    %44 = vector.shape_cast %43 : vector<1x8x8x6xf32> to vector<8x8x6xf32>
    %45 = vector.shape_cast %39 : vector<8x8x6xf32> to vector<1x8x8x6xf32>
    tpu.vector_store %arg14[%c0_35, %c0_36, %c0_37, %c0_38], %45 {strides = array<i32>} : memref<1x8x8x6xf32, #tpu.memory_space<vmem>>, vector<1x8x8x6xf32>,
    return
  }
  func.func @transform_0(%arg0: i32, %arg1: i32) -> (i32, i32, i32, i32) {
    %c0_i32 = arith.constant 0 : i32
    %c0_i32_0 = arith.constant 0 : i32
    %c0_i32_1 = arith.constant 0 : i32
    return %arg0, %arg1, %c0_i32, %c0_i32_0 : i32, i32, i32, i32
  }
  func.func @transform_1(%arg0: i32, %arg1: i32) -> (i32, i32, i32) {
    %c0_i32 = arith.constant 0 : i32
    %c0_i32_0 = arith.constant 0 : i32
    return %arg0, %arg1, %c0_i32 : i32, i32, i32
  }
  func.func @transform_2(%arg0: i32, %arg1: i32) -> (i32, i32, i32) {
    %c0_i32 = arith.constant 0 : i32
    %c0_i32_0 = arith.constant 0 : i32
    %c0_i32_1 = arith.constant 0 : i32
    return %arg0, %c0_i32, %c0_i32_0 : i32, i32, i32
  }
  func.func @transform_3(%arg0: i32, %arg1: i32) -> (i32, i32, i32, i32) {
    %c0_i32 = arith.constant 0 : i32
    %c0_i32_0 = arith.constant 0 : i32
    %c0_i32_1 = arith.constant 0 : i32
    return %arg0, %arg1, %c0_i32, %c0_i32_0 : i32, i32, i32, i32
  }
  func.func @transform_4(%arg0: i32, %arg1: i32) -> (i32, i32) {
    %c0_i32 = arith.constant 0 : i32
    %c0_i32_0 = arith.constant 0 : i32
    %c0_i32_1 = arith.constant 0 : i32
    return %c0_i32, %c0_i32_0 : i32, i32
  }
  func.func @transform_5(%arg0: i32, %arg1: i32) -> (i32, i32) {
    %c0_i32 = arith.constant 0 : i32
    %c0_i32_0 = arith.constant 0 : i32
    %c0_i32_1 = arith.constant 0 : i32
    return %c0_i32, %c0_i32_0 : i32, i32
  }
  func.func @transform_6(%arg0: i32, %arg1: i32) -> (i32, i32) {
    %c0_i32 = arith.constant 0 : i32
    %c0_i32_0 = arith.constant 0 : i32
    %c0_i32_1 = arith.constant 0 : i32
    return %c0_i32, %c0_i32_0 : i32, i32
  }
  func.func @transform_7(%arg0: i32, %arg1: i32) -> (i32, i32) {
    %c0_i32 = arith.constant 0 : i32
    %c0_i32_0 = arith.constant 0 : i32
    %c0_i32_1 = arith.constant 0 : i32
    return %c0_i32, %c0_i32_0 : i32, i32
  }
  func.func @transform_8(%arg0: i32, %arg1: i32) -> (i32, i32) {
    %c0_i32 = arith.constant 0 : i32
    %c0_i32_0 = arith.constant 0 : i32
    %c0_i32_1 = arith.constant 0 : i32
    return %c0_i32, %c0_i32_0 : i32, i32
  }
  func.func @transform_9(%arg0: i32, %arg1: i32) -> (i32, i32) {
    %c0_i32 = arith.constant 0 : i32
    %c0_i32_0 = arith.constant 0 : i32
    %c0_i32_1 = arith.constant 0 : i32
    return %c0_i32, %c0_i32_0 : i32, i32
  }
  func.func @transform_10(%arg0: i32, %arg1: i32) -> (i32, i32) {
    %c0_i32 = arith.constant 0 : i32
    %c0_i32_0 = arith.constant 0 : i32
    %c0_i32_1 = arith.constant 0 : i32
    return %c0_i32, %c0_i32_0 : i32, i32
  }
  func.func @transform_11(%arg0: i32, %arg1: i32) -> (i32, i32, i32, i32) {
    %c0_i32 = arith.constant 0 : i32
    %c0_i32_0 = arith.constant 0 : i32
    %c0_i32_1 = arith.constant 0 : i32
    return %arg0, %arg1, %c0_i32, %c0_i32_0 : i32, i32, i32, i32
  }
  func.func @transform_12(%arg0: i32, %arg1: i32) -> (i32, i32, i32, i32) {
    %c0_i32 = arith.constant 0 : i32
    %c0_i32_0 = arith.constant 0 : i32
    %c0_i32_1 = arith.constant 0 : i32
    return %arg0, %arg1, %c0_i32, %c0_i32_0 : i32, i32, i32, i32
  }
}

module attributes {stable_mosaic.version = 11 : i64} {
  func.func @_hop_kernel(%arg0: i32, %arg1: i32, %arg2: memref<1x8x8x64xf32, #tpu.memory_space<vmem>>, %arg3: memref<1x8x6xf32, #tpu.memory_space<vmem>>, %arg4: memref<1x8x6xf32, #tpu.memory_space<vmem>>, %arg5: memref<1x8x8x6xf32, #tpu.memory_space<vmem>>, %arg6: memref<64x64xbf16, #tpu.memory_space<vmem>>, %arg7: memref<6x64xf32, #tpu.memory_space<vmem>>, %arg8: memref<6x64xf32, #tpu.memory_space<vmem>>, %arg9: memref<6x64xf32, #tpu.memory_space<vmem>>, %arg10: memref<1x64xf32, #tpu.memory_space<vmem>>, %arg11: memref<64x6xbf16, #tpu.memory_space<vmem>>, %arg12: memref<1x6xf32, #tpu.memory_space<vmem>>, %arg13: memref<1x8x8x6xf32, #tpu.memory_space<vmem>>) attributes {dimension_semantics = [#tpu.dimension_semantics<parallel>, #tpu.dimension_semantics<parallel>], iteration_bounds = array<i64: 2, 1>, scalar_prefetch = 0 : i64, scratch_operands = 0 : i64, tpu.core_type = #tpu.core_type<tc>, window_params = [{transform_indices = @transform_0, window_bounds = array<i64: 1, 8, 8, 64>}, {transform_indices = @transform_1, window_bounds = array<i64: 1, 8, 6>}, {transform_indices = @transform_2, window_bounds = array<i64: 1, 8, 6>}, {transform_indices = @transform_3, window_bounds = array<i64: 1, 8, 8, 6>}, {pipeline_mode = #tpu.pipeline_mode<synchronous>, transform_indices = @transform_4, window_bounds = array<i64: 64, 64>}, {pipeline_mode = #tpu.pipeline_mode<synchronous>, transform_indices = @transform_5, window_bounds = array<i64: 6, 64>}, {pipeline_mode = #tpu.pipeline_mode<synchronous>, transform_indices = @transform_6, window_bounds = array<i64: 6, 64>}, {pipeline_mode = #tpu.pipeline_mode<synchronous>, transform_indices = @transform_7, window_bounds = array<i64: 6, 64>}, {pipeline_mode = #tpu.pipeline_mode<synchronous>, transform_indices = @transform_8, window_bounds = array<i64: 1, 64>}, {pipeline_mode = #tpu.pipeline_mode<synchronous>, transform_indices = @transform_9, window_bounds = array<i64: 64, 6>}, {pipeline_mode = #tpu.pipeline_mode<synchronous>, transform_indices = @transform_10, window_bounds = array<i64: 1, 6>}, {transform_indices = @transform_11, window_bounds = array<i64: 1, 8, 8, 6>}]} {
    %c0 = arith.constant 0 : index
    %c0_0 = arith.constant 0 : index
    %c0_1 = arith.constant 0 : index
    %c0_2 = arith.constant 0 : index
    %0 = vector.load %arg2[%c0, %c0_0, %c0_1, %c0_2] : memref<1x8x8x64xf32, #tpu.memory_space<vmem>>, vector<1x8x8x64xf32>
    %1 = vector.shape_cast %0 : vector<1x8x8x64xf32> to vector<8x8x64xf32>
    %c0_3 = arith.constant 0 : index
    %c0_4 = arith.constant 0 : index
    %c0_5 = arith.constant 0 : index
    %c0_6 = arith.constant 0 : index
    %2 = vector.load %arg5[%c0_3, %c0_4, %c0_5, %c0_6] : memref<1x8x8x6xf32, #tpu.memory_space<vmem>>, vector<1x8x8x6xf32>
    %3 = vector.shape_cast %2 : vector<1x8x8x6xf32> to vector<8x8x6xf32>
    %4 = vector.shape_cast %1 : vector<8x8x64xf32> to vector<64x64xf32>
    %5 = arith.truncf %4 : vector<64x64xf32> to vector<64x64xbf16>
    %c0_7 = arith.constant 0 : index
    %c0_8 = arith.constant 0 : index
    %6 = vector.load %arg6[%c0_7, %c0_8] : memref<64x64xbf16, #tpu.memory_space<vmem>>, vector<64x64xbf16>
    %cst = arith.constant dense<0.000000e+00> : vector<64x64xf32>
    %7 = tpu.matmul %5, %6, %cst {dimension_numbers = #tpu.dot_dimension_numbers<[1], [0], [0], [1], [0, 0, 1, 1], [], []>} : vector<64x64xbf16>, vector<64x64xbf16>, vector<64x64xf32> -> vector<64x64xf32>
    %8 = vector.shape_cast %7 : vector<64x64xf32> to vector<8x8x64xf32>
    %c0_9 = arith.constant 0 : index
    %c0_10 = arith.constant 0 : index
    %c0_11 = arith.constant 0 : index
    %9 = vector.load %arg3[%c0_9, %c0_10, %c0_11] : memref<1x8x6xf32, #tpu.memory_space<vmem>>, vector<1x8x6xf32>
    %10 = vector.shape_cast %9 : vector<1x8x6xf32> to vector<8x6xf32>
    %c0_12 = arith.constant 0 : index
    %c0_13 = arith.constant 0 : index
    %11 = vector.load %arg7[%c0_12, %c0_13] : memref<6x64xf32, #tpu.memory_space<vmem>>, vector<6x64xf32>
    %cst_14 = arith.constant dense<0.000000e+00> : vector<8x64xf32>
    %12 = tpu.matmul %10, %11, %cst_14 {dimension_numbers = #tpu.dot_dimension_numbers<[1], [0], [0], [1], [0, 0, 1, 1], [], []>} : vector<8x6xf32>, vector<6x64xf32>, vector<8x64xf32> -> vector<8x64xf32>
    %c0_15 = arith.constant 0 : index
    %c0_16 = arith.constant 0 : index
    %c0_17 = arith.constant 0 : index
    %13 = vector.load %arg4[%c0_15, %c0_16, %c0_17] : memref<1x8x6xf32, #tpu.memory_space<vmem>>, vector<1x8x6xf32>
    %14 = vector.shape_cast %13 : vector<1x8x6xf32> to vector<8x6xf32>
    %c0_18 = arith.constant 0 : index
    %c0_19 = arith.constant 0 : index
    %15 = vector.load %arg8[%c0_18, %c0_19] : memref<6x64xf32, #tpu.memory_space<vmem>>, vector<6x64xf32>
    %cst_20 = arith.constant dense<0.000000e+00> : vector<8x64xf32>
    %16 = tpu.matmul %14, %15, %cst_20 {dimension_numbers = #tpu.dot_dimension_numbers<[1], [0], [0], [1], [0, 0, 1, 1], [], []>} : vector<8x6xf32>, vector<6x64xf32>, vector<8x64xf32> -> vector<8x64xf32>
    %17 = vector.shape_cast %3 : vector<8x8x6xf32> to vector<64x6xf32>
    %c0_21 = arith.constant 0 : index
    %c0_22 = arith.constant 0 : index
    %18 = vector.load %arg9[%c0_21, %c0_22] : memref<6x64xf32, #tpu.memory_space<vmem>>, vector<6x64xf32>
    %cst_23 = arith.constant dense<0.000000e+00> : vector<64x64xf32>
    %19 = tpu.matmul %17, %18, %cst_23 {dimension_numbers = #tpu.dot_dimension_numbers<[1], [0], [0], [1], [0, 0, 1, 1], [], []>} : vector<64x6xf32>, vector<6x64xf32>, vector<64x64xf32> -> vector<64x64xf32>
    %20 = vector.shape_cast %19 : vector<64x64xf32> to vector<8x8x64xf32>
    %21 = vector.shape_cast %12 : vector<8x64xf32> to vector<8x1x64xf32>
    %22 = vector.broadcast %21 : vector<8x1x64xf32> to vector<8x8x64xf32>
    %23 = arith.addf %8, %22 : vector<8x8x64xf32>
    %24 = vector.shape_cast %16 : vector<8x64xf32> to vector<1x8x64xf32>
    %25 = vector.broadcast %24 : vector<1x8x64xf32> to vector<8x8x64xf32>
    %26 = arith.addf %23, %25 : vector<8x8x64xf32>
    %27 = arith.addf %26, %20 : vector<8x8x64xf32>
    %c0_24 = arith.constant 0 : index
    %c0_25 = arith.constant 0 : index
    %28 = vector.load %arg10[%c0_24, %c0_25] : memref<1x64xf32, #tpu.memory_space<vmem>>, vector<1x64xf32>
    %29 = vector.shape_cast %28 : vector<1x64xf32> to vector<1x1x64xf32>
    %30 = vector.broadcast %29 : vector<1x1x64xf32> to vector<8x8x64xf32>
    %31 = arith.addf %27, %30 : vector<8x8x64xf32>
    %32 = vector.shape_cast %31 : vector<8x8x64xf32> to vector<64x64xf32>
    %33 = arith.truncf %32 : vector<64x64xf32> to vector<64x64xbf16>
    %c0_26 = arith.constant 0 : index
    %c0_27 = arith.constant 0 : index
    %34 = vector.load %arg11[%c0_26, %c0_27] : memref<64x6xbf16, #tpu.memory_space<vmem>>, vector<64x6xbf16>
    %cst_28 = arith.constant dense<0.000000e+00> : vector<64x6xf32>
    %35 = tpu.matmul %33, %34, %cst_28 {dimension_numbers = #tpu.dot_dimension_numbers<[1], [0], [0], [1], [0, 0, 1, 1], [], []>} : vector<64x64xbf16>, vector<64x6xbf16>, vector<64x6xf32> -> vector<64x6xf32>
    %c0_29 = arith.constant 0 : index
    %c0_30 = arith.constant 0 : index
    %36 = vector.load %arg12[%c0_29, %c0_30] : memref<1x6xf32, #tpu.memory_space<vmem>>, vector<1x6xf32>
    %37 = vector.broadcast %36 : vector<1x6xf32> to vector<64x6xf32>
    %38 = arith.addf %35, %37 : vector<64x6xf32>
    %39 = vector.shape_cast %38 : vector<64x6xf32> to vector<8x8x6xf32>
    %c0_31 = arith.constant 0 : index
    %c0_32 = arith.constant 0 : index
    %c0_33 = arith.constant 0 : index
    %c0_34 = arith.constant 0 : index
    %40 = vector.load %arg13[%c0_31, %c0_32, %c0_33, %c0_34] : memref<1x8x8x6xf32, #tpu.memory_space<vmem>>, vector<1x8x8x6xf32>
    %41 = vector.shape_cast %40 : vector<1x8x8x6xf32> to vector<8x8x6xf32>
    %42 = vector.shape_cast %39 : vector<8x8x6xf32> to vector<1x8x8x6xf32>
    tpu.vector_store %arg13[%c0_31, %c0_32, %c0_33, %c0_34], %42 {strides = array<i32>} : memref<1x8x8x6xf32, #tpu.memory_space<vmem>>, vector<1x8x8x6xf32>,
    return
  }
  func.func @transform_0(%arg0: i32, %arg1: i32) -> (i32, i32, i32, i32) {
    %c0_i32 = arith.constant 0 : i32
    %c0_i32_0 = arith.constant 0 : i32
    %c0_i32_1 = arith.constant 0 : i32
    return %arg0, %arg1, %c0_i32, %c0_i32_0 : i32, i32, i32, i32
  }
  func.func @transform_1(%arg0: i32, %arg1: i32) -> (i32, i32, i32) {
    %c0_i32 = arith.constant 0 : i32
    %c0_i32_0 = arith.constant 0 : i32
    return %arg0, %arg1, %c0_i32 : i32, i32, i32
  }
  func.func @transform_2(%arg0: i32, %arg1: i32) -> (i32, i32, i32) {
    %c0_i32 = arith.constant 0 : i32
    %c0_i32_0 = arith.constant 0 : i32
    %c0_i32_1 = arith.constant 0 : i32
    return %arg0, %c0_i32, %c0_i32_0 : i32, i32, i32
  }
  func.func @transform_3(%arg0: i32, %arg1: i32) -> (i32, i32, i32, i32) {
    %c0_i32 = arith.constant 0 : i32
    %c0_i32_0 = arith.constant 0 : i32
    %c0_i32_1 = arith.constant 0 : i32
    return %arg0, %arg1, %c0_i32, %c0_i32_0 : i32, i32, i32, i32
  }
  func.func @transform_4(%arg0: i32, %arg1: i32) -> (i32, i32) {
    %c0_i32 = arith.constant 0 : i32
    %c0_i32_0 = arith.constant 0 : i32
    %c0_i32_1 = arith.constant 0 : i32
    return %c0_i32, %c0_i32_0 : i32, i32
  }
  func.func @transform_5(%arg0: i32, %arg1: i32) -> (i32, i32) {
    %c0_i32 = arith.constant 0 : i32
    %c0_i32_0 = arith.constant 0 : i32
    %c0_i32_1 = arith.constant 0 : i32
    return %c0_i32, %c0_i32_0 : i32, i32
  }
  func.func @transform_6(%arg0: i32, %arg1: i32) -> (i32, i32) {
    %c0_i32 = arith.constant 0 : i32
    %c0_i32_0 = arith.constant 0 : i32
    %c0_i32_1 = arith.constant 0 : i32
    return %c0_i32, %c0_i32_0 : i32, i32
  }
  func.func @transform_7(%arg0: i32, %arg1: i32) -> (i32, i32) {
    %c0_i32 = arith.constant 0 : i32
    %c0_i32_0 = arith.constant 0 : i32
    %c0_i32_1 = arith.constant 0 : i32
    return %c0_i32, %c0_i32_0 : i32, i32
  }
  func.func @transform_8(%arg0: i32, %arg1: i32) -> (i32, i32) {
    %c0_i32 = arith.constant 0 : i32
    %c0_i32_0 = arith.constant 0 : i32
    %c0_i32_1 = arith.constant 0 : i32
    return %c0_i32, %c0_i32_0 : i32, i32
  }
  func.func @transform_9(%arg0: i32, %arg1: i32) -> (i32, i32) {
    %c0_i32 = arith.constant 0 : i32
    %c0_i32_0 = arith.constant 0 : i32
    %c0_i32_1 = arith.constant 0 : i32
    return %c0_i32, %c0_i32_0 : i32, i32
  }
  func.func @transform_10(%arg0: i32, %arg1: i32) -> (i32, i32) {
    %c0_i32 = arith.constant 0 : i32
    %c0_i32_0 = arith.constant 0 : i32
    %c0_i32_1 = arith.constant 0 : i32
    return %c0_i32, %c0_i32_0 : i32, i32
  }
  func.func @transform_11(%arg0: i32, %arg1: i32) -> (i32, i32, i32, i32) {
    %c0_i32 = arith.constant 0 : i32
    %c0_i32_0 = arith.constant 0 : i32
    %c0_i32_1 = arith.constant 0 : i32
    return %arg0, %arg1, %c0_i32, %c0_i32_0 : i32, i32, i32, i32
  }
}

</mosaic_0001>

<llo_original>
// kernel: multi_infer_bert_forward.16
$region0: #{multi_infer_bert_forward.16}
  #allocation0 [shape = 'u32[]', space=smem, size = 0x4, offset = 0x4, fixed_abs, tag = 'smem constant byte address 0x4 - core index']
  #allocation1 [shape = 'u32[144,128]{1,0:T(1,128)}', space=vmem, size = 0x12000, scoped, tag = 'internal scratch']
  %s0 = inlined_call_operand.vmem [shape: f32[16,32], index: 0, kind: input, shape index: {}]
  %s1 = inlined_call_operand.vmem [shape: bf16[32,32], index: 1, kind: input, shape index: {}]
  %s2 = inlined_call_operand.vmem [shape: f32[1,32], index: 2, kind: input, shape index: {}]
  %s3 = inlined_call_operand.vmem [shape: f32[16,32], index: 3, kind: output, shape index: {}]
  %s4 = sld [smem:[#allocation0]]
  $region22: #{multi_infer_bert_forward.16} parent=0
    _
  %s6 = ssub.s32 1, %s4
  %s7 = scalar_select 0, %s6, %s4
  // Predicated region
  $region2: #{multi_infer_bert_forward.16} parent=0 // pred_check
    _
  $region3: #{multi_infer_bert_forward.16} parent=0 // pred_check_branch
    %9 = sbr.rel (0) target = $region5
  $region4: #{multi_infer_bert_forward.16} parent=0 // pred_region
    _
  $region5: #{multi_infer_bert_forward.16} parent=0 // pred_fallthru
    _
  // Predicated region
  $region6: #{multi_infer_bert_forward.16} parent=0 // pred_check
    _
  $region7: #{multi_infer_bert_forward.16} parent=0 // pred_check_branch
    %11 = sbr.rel (0) target = $region9
  $region8: #{multi_infer_bert_forward.16} parent=0 // pred_region
    _
  $region9: #{multi_infer_bert_forward.16} parent=0 // pred_fallthru
    _
  // Predicated region
  $region10: #{multi_infer_bert_forward.16} parent=0 // pred_check
    _
  $region11: #{multi_infer_bert_forward.16} parent=0 // pred_check_branch
    %13 = sbr.rel (0) target = $region13
  $region12: #{multi_infer_bert_forward.16} parent=0 // pred_region
    _
  $region13: #{multi_infer_bert_forward.16} parent=0 // pred_fallthru
    _
  %v15 = vld [vmem:[%s0] sm:$0xff]
  %v16 = vld [vmem:[%s0 + $0x8] sm:$0xff]
  %v17 = vpack.c.bf16 %v16, %v15
  %v18 = vld [vmem:[%s1] sm:$0xf]
  %v19 = vld [vmem:[%s1 + $0x4] sm:$0xf]
  %v20 = vld [vmem:[%s1 + $0x8] sm:$0xf]
  %v21 = vld [vmem:[%s1 + $0xc] sm:$0xf]
  %v22 = vld [vmem:[%s2] sm:$0x1]
  %v24 = vlaneseq
  %v25 = vshrl.u32 %v24, 7
  %v26 = vsub.s32 0, %v25
  %v27 = vrot.slane %v22, %v26
  %v33 = vunpack.c.l.b16 %v18
  %v34 = vunpack.c.l.b16 %v19
  %v35 = vunpack.c.l.b16 %v20
  %v36 = vunpack.c.l.b16 %v21
  %v37 = vpack.c.b16 %v34, %v33
  %v38 = vpack.c.b16 %v36, %v35
  %vm41 = vcmask 261120
  %v43 = vsel %vm41, %v17, 0
  %45 = vmatprep.subr.bf16.mxu0 0
  %46 = vmatpush1.bf16.msra.mxu0 %v37
  %47 = vmatprep.subr.bf16.mxu0 0
  %48 = vmatpush1.bf16.msra.mxu0 %v38
  %49 = vmatprep.subr.bf16.mxu0 0
  %50 = vmatpush1.bf16.msra.mxu0 0
  %51 = vmatprep.subr.bf16.mxu0 0
  %52 = vmatpush1.bf16.msra.mxu0 0
  %53 = vmatprep.subr.bf16.mxu0 0
  %54 = vmatpush1.bf16.msra.mxu0 0
  %55 = vmatprep.subr.bf16.mxu0 0
  %56 = vmatpush1.bf16.msra.mxu0 0
  %57 = vmatprep.subr.bf16.mxu0 0
  %58 = vmatpush1.bf16.msra.mxu0 0
  %59 = vmatprep.subr.bf16.mxu0 0
  %60 = vmatpush1.bf16.msra.mxu0 0
  %61 = vmatprep.subr.bf16.mxu0 0
  %62 = vmatpush1.bf16.msra.mxu0 0
  %63 = vmatprep.subr.bf16.mxu0 0
  %64 = vmatpush1.bf16.msra.mxu0 0
  %65 = vmatprep.subr.bf16.mxu0 0
  %66 = vmatpush1.bf16.msra.mxu0 0
  %67 = vmatprep.subr.bf16.mxu0 0
  %68 = vmatpush1.bf16.msra.mxu0 0
  %69 = vmatprep.subr.bf16.mxu0 0
  %70 = vmatpush1.bf16.msra.mxu0 0
  %71 = vmatprep.subr.bf16.mxu0 0
  %72 = vmatpush1.bf16.msra.mxu0 0
  %73 = vmatprep.subr.bf16.mxu0 0
  %74 = vmatpush1.bf16.msra.mxu0 0
  %75 = vmatprep.subr.bf16.mxu0 0
  %76 = vmatpush1.bf16.msra.mxu0 0
  %77 = vmatprep.mubr.bf16.mxu0 0
  %78 = vmatmul.mubr.bf16.gmra.mrb[0].mxu0 %v43
  %v79 = vpop.f32.mrb[0].mxu0
  %v80 = vadd.f32 %v27, %v79
  %v81 = vpop.f32.mrb[0].mxu0
  %v82 = vpop.f32.mrb[0].mxu0
  %v83 = vadd.f32 %v27, %v82
  %v84 = vpop.f32.mrb[0].mxu0
  %85 = vdwg.mxu0
  %v86 = vtanh.pop %v80
  %v87 = vtanh.pop %v83
  %88 = vst.msk [vmem:[%s3] sm:$0xff] %vm41, %v86
  %89 = vst.msk [vmem:[%s3 + $0x8] sm:$0xff] %vm41, %v87
  // Predicated region
  $region14: #{multi_infer_bert_forward.16} parent=0 // pred_check
    _
  $region15: #{multi_infer_bert_forward.16} parent=0 // pred_check_branch
    %91 = sbr.rel (0) target = $region17
  $region16: #{multi_infer_bert_forward.16} parent=0 // pred_region
    _
  $region17: #{multi_infer_bert_forward.16} parent=0 // pred_fallthru
    _
  // Predicated region
  $region18: #{multi_infer_bert_forward.16} parent=0 // pred_check
    _
  $region19: #{multi_infer_bert_forward.16} parent=0 // pred_check_branch
    %93 = sbr.rel (0) target = $region21
  $region20: #{multi_infer_bert_forward.16} parent=0 // pred_region
    _
  $region21: #{multi_infer_bert_forward.16} parent=0 // pred_fallthru
    _

// kernel: multi_infer_bert_forward.14
$region0: #{multi_infer_bert_forward.14}
  #allocation0 [shape = 'u32[]', space=smem, size = 0x4, offset = 0x4, fixed_abs, tag = 'smem constant byte address 0x4 - core index']
  #allocation1 [shape = 'u32[144,128]{1,0:T(1,128)}', space=vmem, size = 0x12000, scoped, tag = 'internal scratch']
  %s0 = inlined_call_operand.vmem [shape: f32[16,32], index: 0, kind: input, shape index: {}]
  %s1 = inlined_call_operand.vmem [shape: f32[16,32], index: 1, kind: input, shape index: {}]
  %s2 = inlined_call_operand.vmem [shape: f32[1,32], index: 2, kind: input, shape index: {}]
  %s3 = inlined_call_operand.vmem [shape: f32[1,32], index: 3, kind: input, shape index: {}]
  %s4 = inlined_call_operand.vmem [shape: f32[16,32], index: 4, kind: output, shape index: {}]
  %s5 = sld [smem:[#allocation0]]
  $region26: #{multi_infer_bert_forward.14} parent=0
    _
  %s7 = ssub.s32 1, %s5
  %s8 = scalar_select 0, %s7, %s5
  // Predicated region
  $region2: #{multi_infer_bert_forward.14} parent=0 // pred_check
    _
  $region3: #{multi_infer_bert_forward.14} parent=0 // pred_check_branch
    %10 = sbr.rel (0) target = $region5
  $region4: #{multi_infer_bert_forward.14} parent=0 // pred_region
    _
  $region5: #{multi_infer_bert_forward.14} parent=0 // pred_fallthru
    _
  // Predicated region
  $region6: #{multi_infer_bert_forward.14} parent=0 // pred_check
    _
  $region7: #{multi_infer_bert_forward.14} parent=0 // pred_check_branch
    %12 = sbr.rel (0) target = $region9
  $region8: #{multi_infer_bert_forward.14} parent=0 // pred_region
    _
  $region9: #{multi_infer_bert_forward.14} parent=0 // pred_fallthru
    _
  // Predicated region
  $region10: #{multi_infer_bert_forward.14} parent=0 // pred_check
    _
  $region11: #{multi_infer_bert_forward.14} parent=0 // pred_check_branch
    %14 = sbr.rel (0) target = $region13
  $region12: #{multi_infer_bert_forward.14} parent=0 // pred_region
    _
  $region13: #{multi_infer_bert_forward.14} parent=0 // pred_fallthru
    _
  // Predicated region
  $region14: #{multi_infer_bert_forward.14} parent=0 // pred_check
    _
  $region15: #{multi_infer_bert_forward.14} parent=0 // pred_check_branch
    %16 = sbr.rel (0) target = $region17
  $region16: #{multi_infer_bert_forward.14} parent=0 // pred_region
    _
  $region17: #{multi_infer_bert_forward.14} parent=0 // pred_fallthru
    _
  %v17 = vld [vmem:[%s0] sm:$0xff]
  %v18 = vld [vmem:[%s0 + $0x8] sm:$0xff]
  %v19 = vld [vmem:[%s2] sm:$0x1]
  %v20 = vld [vmem:[%s3] sm:$0x1]
  %vm21 = vcmask 261120
  %v22 = vsel %vm21, %v17, 0.0
  %23 = vadd.xlane.f32.xlu0 %v22
  %v24 = vpop.xlane.xlu0 %23
  %v25 = vsel %vm21, %v18, 0.0
  %26 = vadd.xlane.f32.xlu0 %v25
  %v27 = vpop.xlane.xlu0 %26
  %v28 = vrcp.pop 32.0
  %v29 = vmul.f32 %v24, %v28
  %v30 = vmul.f32 %v27, %v28
  %v31 = vsub.f32 %v17, %v29
  %v32 = vsub.f32 %v18, %v30
  %v33 = vmul.f32 %v31, %v31
  %v34 = vmul.f32 %v32, %v32
  %v35 = vsel %vm21, %v33, 0.0
  %36 = vadd.xlane.f32.xlu0 %v35
  %v37 = vpop.xlane.xlu0 %36
  %v38 = vsel %vm21, %v34, 0.0
  %39 = vadd.xlane.f32.xlu0 %v38
  %v40 = vpop.xlane.xlu0 %39
  %v41 = vmul.f32 %v37, %v28
  %v42 = vmul.f32 %v40, %v28
  %v43 = vadd.f32 %v41, 1e-05
  %v44 = vadd.f32 %v42, 1e-05
  %v45 = vrsqrt.pop %v43
  %v46 = vrsqrt.pop %v44
  %v47 = vmul.f32 %v31, %v45
  %v48 = vmul.f32 %v32, %v46
  %v50 = vlaneseq
  %v51 = vshrl.u32 %v50, 7
  %v52 = vsub.s32 0, %v51
  %v53 = vrot.slane %v19, %v52
  %v55 = vmul.f32 %v47, %v53
  %v56 = vmul.f32 %v48, %v53
  %v58 = vlaneseq
  %v59 = vshrl.u32 %v58, 7
  %v60 = vsub.s32 0, %v59
  %v61 = vrot.slane %v20, %v60
  %v63 = vadd.f32 %v55, %v61
  %v64 = vadd.f32 %v56, %v61
  %v65 = vld [vmem:[%s1] sm:$0xff]
  %v66 = vld [vmem:[%s1 + $0x8] sm:$0xff]
  %v67 = vsel %vm21, %v65, 0.0
  %68 = vadd.xlane.f32.xlu0 %v67
  %v69 = vpop.xlane.xlu0 %68
  %v70 = vsel %vm21, %v66, 0.0
  %71 = vadd.xlane.f32.xlu0 %v70
  %v72 = vpop.xlane.xlu0 %71
  %v73 = vmul.f32 %v69, %v28
  %v74 = vmul.f32 %v72, %v28
  %v75 = vsub.f32 %v65, %v73
  %v76 = vsub.f32 %v66, %v74
  %v77 = vmul.f32 %v75, %v75
  %v78 = vmul.f32 %v76, %v76
  %v79 = vsel %vm21, %v77, 0.0
  %80 = vadd.xlane.f32.xlu0 %v79
  %v81 = vpop.xlane.xlu0 %80
  %v82 = vsel %vm21, %v78, 0.0
  %83 = vadd.xlane.f32.xlu0 %v82
  %v84 = vpop.xlane.xlu0 %83
  %v85 = vmul.f32 %v81, %v28
  %v86 = vmul.f32 %v84, %v28
  %v87 = vadd.f32 %v85, 1e-05
  %v88 = vadd.f32 %v86, 1e-05
  %v89 = vrsqrt.pop %v87
  %v90 = vrsqrt.pop %v88
  %v91 = vmul.f32 %v75, %v89
  %v92 = vmul.f32 %v76, %v90
  %v93 = vmul.f32 %v91, %v53
  %v94 = vmul.f32 %v92, %v53
  %v95 = vadd.f32 %v93, %v61
  %v96 = vadd.f32 %v94, %v61
  %v97 = vadd.f32 %v63, %v95
  %v98 = vadd.f32 %v64, %v96
  %99 = vst.msk [vmem:[%s4] sm:$0xff] %vm21, %v97
  %100 = vst.msk [vmem:[%s4 + $0x8] sm:$0xff] %vm21, %v98
  // Predicated region
  $region18: #{multi_infer_bert_forward.14} parent=0 // pred_check
    _
  $region19: #{multi_infer_bert_forward.14} parent=0 // pred_check_branch
    %102 = sbr.rel (0) target = $region21
  $region20: #{multi_infer_bert_forward.14} parent=0 // pred_region
    _
  $region21: #{multi_infer_bert_forward.14} parent=0 // pred_fallthru
    _
  // Predicated region
  $region22: #{multi_infer_bert_forward.14} parent=0 // pred_check
    _
  $region23: #{multi_infer_bert_forward.14} parent=0 // pred_check_branch
    %104 = sbr.rel (0) target = $region25
  $region24: #{multi_infer_bert_forward.14} parent=0 // pred_region
    _
  $region25: #{multi_infer_bert_forward.14} parent=0 // pred_fallthru
    _

// kernel: multi_infer_bert_forward.17
$region0: #{multi_infer_bert_forward.17}
  #allocation0 [shape = 'u32[]', space=smem, size = 0x4, offset = 0x4, fixed_abs, tag = 'smem constant byte address 0x4 - core index']
  #allocation1 [shape = 'u32[144,128]{1,0:T(1,128)}', space=vmem, size = 0x12000, scoped, tag = 'internal scratch']
  %s0 = inlined_call_operand.vmem [shape: f32[16,32], index: 0, kind: input, shape index: {}]
  %s1 = inlined_call_operand.vmem [shape: bf16[32,8], index: 1, kind: input, shape index: {}]
  %s2 = inlined_call_operand.vmem [shape: f32[1,8], index: 2, kind: input, shape index: {}]
  %s3 = inlined_call_operand.vmem [shape: f32[1,8], index: 3, kind: input, shape index: {}]
  %s4 = inlined_call_operand.vmem [shape: f32[1,8], index: 4, kind: input, shape index: {}]
  %s5 = inlined_call_operand.vmem [shape: bf16[8,32], index: 5, kind: input, shape index: {}]
  %s6 = inlined_call_operand.vmem [shape: f32[1,32], index: 6, kind: input, shape index: {}]
  %s7 = inlined_call_operand.vmem [shape: f32[1,32], index: 7, kind: input, shape index: {}]
  %s8 = inlined_call_operand.vmem [shape: f32[1,32], index: 8, kind: input, shape index: {}]
  %s9 = inlined_call_operand.vmem [shape: f32[16,32], index: 9, kind: output, shape index: {}]
  %s10 = sld [smem:[#allocation0]]
  $region46: #{multi_infer_bert_forward.17} parent=0
    _
  %s12 = ssub.s32 1, %s10
  %s13 = scalar_select 0, %s12, %s10
  // Predicated region
  $region2: #{multi_infer_bert_forward.17} parent=0 // pred_check
    _
  $region3: #{multi_infer_bert_forward.17} parent=0 // pred_check_branch
    %15 = sbr.rel (0) target = $region5
  $region4: #{multi_infer_bert_forward.17} parent=0 // pred_region
    _
  $region5: #{multi_infer_bert_forward.17} parent=0 // pred_fallthru
    _
  // Predicated region
  $region6: #{multi_infer_bert_forward.17} parent=0 // pred_check
    _
  $region7: #{multi_infer_bert_forward.17} parent=0 // pred_check_branch
    %17 = sbr.rel (0) target = $region9
  $region8: #{multi_infer_bert_forward.17} parent=0 // pred_region
    _
  $region9: #{multi_infer_bert_forward.17} parent=0 // pred_fallthru
    _
  // Predicated region
  $region10: #{multi_infer_bert_forward.17} parent=0 // pred_check
    _
  $region11: #{multi_infer_bert_forward.17} parent=0 // pred_check_branch
    %19 = sbr.rel (0) target = $region13
  $region12: #{multi_infer_bert_forward.17} parent=0 // pred_region
    _
  $region13: #{multi_infer_bert_forward.17} parent=0 // pred_fallthru
    _
  // Predicated region
  $region14: #{multi_infer_bert_forward.17} parent=0 // pred_check
    _
  $region15: #{multi_infer_bert_forward.17} parent=0 // pred_check_branch
    %21 = sbr.rel (0) target = $region17
  $region16: #{multi_infer_bert_forward.17} parent=0 // pred_region
    _
  $region17: #{multi_infer_bert_forward.17} parent=0 // pred_fallthru
    _
  // Predicated region
  $region18: #{multi_infer_bert_forward.17} parent=0 // pred_check
    _
  $region19: #{multi_infer_bert_forward.17} parent=0 // pred_check_branch
    %23 = sbr.rel (0) target = $region21
  $region20: #{multi_infer_bert_forward.17} parent=0 // pred_region
    _
  $region21: #{multi_infer_bert_forward.17} parent=0 // pred_fallthru
    _
  // Predicated region
  $region22: #{multi_infer_bert_forward.17} parent=0 // pred_check
    _
  $region23: #{multi_infer_bert_forward.17} parent=0 // pred_check_branch
    %25 = sbr.rel (0) target = $region25
  $region24: #{multi_infer_bert_forward.17} parent=0 // pred_region
    _
  $region25: #{multi_infer_bert_forward.17} parent=0 // pred_fallthru
    _
  // Predicated region
  $region26: #{multi_infer_bert_forward.17} parent=0 // pred_check
    _
  $region27: #{multi_infer_bert_forward.17} parent=0 // pred_check_branch
    %27 = sbr.rel (0) target = $region29
  $region28: #{multi_infer_bert_forward.17} parent=0 // pred_region
    _
  $region29: #{multi_infer_bert_forward.17} parent=0 // pred_fallthru
    _
  // Predicated region
  $region30: #{multi_infer_bert_forward.17} parent=0 // pred_check
    _
  $region31: #{multi_infer_bert_forward.17} parent=0 // pred_check_branch
    %29 = sbr.rel (0) target = $region33
  $region32: #{multi_infer_bert_forward.17} parent=0 // pred_region
    _
  $region33: #{multi_infer_bert_forward.17} parent=0 // pred_fallthru
    _
  // Predicated region
  $region34: #{multi_infer_bert_forward.17} parent=0 // pred_check
    _
  $region35: #{multi_infer_bert_forward.17} parent=0 // pred_check_branch
    %31 = sbr.rel (0) target = $region37
  $region36: #{multi_infer_bert_forward.17} parent=0 // pred_region
    _
  $region37: #{multi_infer_bert_forward.17} parent=0 // pred_fallthru
    _
  %v33 = vld [vmem:[%s0] sm:$0xff]
  %v34 = vld [vmem:[%s0 + $0x8] sm:$0xff]
  %v35 = vpack.c.bf16 %v34, %v33
  %v36 = vld [vmem:[%s1] sm:$0xf]
  %v37 = vld [vmem:[%s1 + $0x4] sm:$0xf]
  %v38 = vld [vmem:[%s1 + $0x8] sm:$0xf]
  %v39 = vld [vmem:[%s1 + $0xc] sm:$0xf]
  %v40 = vld [vmem:[%s2] sm:$0x1]
  %v42 = vlaneseq
  %v43 = vshrl.u32 %v42, 7
  %v44 = vsub.s32 0, %v43
  %v45 = vrot.slane %v40, %v44
  %v51 = vunpack.c.l.b16 %v36
  %v52 = vunpack.c.l.b16 %v37
  %v53 = vunpack.c.l.b16 %v38
  %v54 = vunpack.c.l.b16 %v39
  %v55 = vpack.c.b16 %v52, %v51
  %v56 = vpack.c.b16 %v54, %v53
  %vm59 = vcmask 261120
  %v61 = vsel %vm59, %v35, 0
  %63 = vmatprep.subr.bf16.mxu0 0
  %64 = vmatpush1.bf16.msra.mxu0 %v55
  %65 = vmatprep.subr.bf16.mxu0 0
  %66 = vmatpush1.bf16.msra.mxu0 %v56
  %67 = vmatprep.subr.bf16.mxu0 0
  %68 = vmatpush1.bf16.msra.mxu0 0
  %69 = vmatprep.subr.bf16.mxu0 0
  %70 = vmatpush1.bf16.msra.mxu0 0
  %71 = vmatprep.subr.bf16.mxu0 0
  %72 = vmatpush1.bf16.msra.mxu0 0
  %73 = vmatprep.subr.bf16.mxu0 0
  %74 = vmatpush1.bf16.msra.mxu0 0
  %75 = vmatprep.subr.bf16.mxu0 0
  %76 = vmatpush1.bf16.msra.mxu0 0
  %77 = vmatprep.subr.bf16.mxu0 0
  %78 = vmatpush1.bf16.msra.mxu0 0
  %79 = vmatprep.subr.bf16.mxu0 0
  %80 = vmatpush1.bf16.msra.mxu0 0
  %81 = vmatprep.subr.bf16.mxu0 0
  %82 = vmatpush1.bf16.msra.mxu0 0
  %83 = vmatprep.subr.bf16.mxu0 0
  %84 = vmatpush1.bf16.msra.mxu0 0
  %85 = vmatprep.subr.bf16.mxu0 0
  %86 = vmatpush1.bf16.msra.mxu0 0
  %87 = vmatprep.subr.bf16.mxu0 0
  %88 = vmatpush1.bf16.msra.mxu0 0
  %89 = vmatprep.subr.bf16.mxu0 0
  %90 = vmatpush1.bf16.msra.mxu0 0
  %91 = vmatprep.subr.bf16.mxu0 0
  %92 = vmatpush1.bf16.msra.mxu0 0
  %93 = vmatprep.subr.bf16.mxu0 0
  %94 = vmatpush1.bf16.msra.mxu0 0
  %95 = vmatprep.mubr.bf16.mxu0 0
  %96 = vmatmul.mubr.bf16.gmra.mrb[0].mxu0 %v61
  %v97 = vpop.f32.mrb[0].mxu0
  %v98 = vadd.f32 %v45, %v97
  %v99 = vpop.f32.mrb[0].mxu0
  %v100 = vpop.f32.mrb[0].mxu0
  %v101 = vadd.f32 %v45, %v100
  %v102 = vpop.f32.mrb[0].mxu0
  %103 = vdwg.mxu0
  %v104 = vld [vmem:[%s3] sm:$0x1]
  %v105 = vld [vmem:[%s4] sm:$0x1]
  %vm106 = vcmask 64512
  %v107 = vsel %vm106, %v98, 0.0
  %108 = vadd.xlane.f32.xlu0 %v107
  %v109 = vpop.xlane.xlu0 %108
  %v110 = vsel %vm106, %v101, 0.0
  %111 = vadd.xlane.f32.xlu0 %v110
  %v112 = vpop.xlane.xlu0 %111
  %v113 = vrcp.pop 8.0
  %v114 = vmul.f32 %v109, %v113
  %v115 = vmul.f32 %v112, %v113
  %v116 = vsub.f32 %v98, %v114
  %v117 = vsub.f32 %v101, %v115
  %v118 = vmul.f32 %v116, %v116
  %v119 = vmul.f32 %v117, %v117
  %v120 = vsel %vm106, %v118, 0.0
  %121 = vadd.xlane.f32.xlu0 %v120
  %v122 = vpop.xlane.xlu0 %121
  %v123 = vsel %vm106, %v119, 0.0
  %124 = vadd.xlane.f32.xlu0 %v123
  %v125 = vpop.xlane.xlu0 %124
  %v126 = vmul.f32 %v122, %v113
  %v127 = vmul.f32 %v125, %v113
  %v128 = vadd.f32 %v126, 1e-05
  %v129 = vadd.f32 %v127, 1e-05
  %v130 = vrsqrt.pop %v128
  %v131 = vrsqrt.pop %v129
  %v132 = vmul.f32 %v116, %v130
  %v133 = vmul.f32 %v117, %v131
  %v135 = vlaneseq
  %v136 = vshrl.u32 %v135, 7
  %v137 = vsub.s32 0, %v136
  %v138 = vrot.slane %v104, %v137
  %v140 = vmul.f32 %v132, %v138
  %v141 = vmul.f32 %v133, %v138
  %v143 = vlaneseq
  %v144 = vshrl.u32 %v143, 7
  %v145 = vsub.s32 0, %v144
  %v146 = vrot.slane %v105, %v145
  %v148 = vadd.f32 %v140, %v146
  %v149 = vadd.f32 %v141, %v146
  %v150 = vmul.f32 %v148, 0.5
  %v151 = vmul.f32 %v149, 0.5
  %v152 = vmul.f32 %v148, 0.70710677
  %v153 = vmul.f32 %v149, 0.70710677
  %v154 = verf.f32.pop %v152
  %v155 = verf.f32.pop %v153
  %v156 = vadd.f32 %v154, 1.0
  %v157 = vadd.f32 %v155, 1.0
  %v158 = vmul.f32 %v150, %v156
  %v159 = vmul.f32 %v151, %v157
  %v160 = vpack.c.bf16 %v159, %v158
  %v161 = vld [vmem:[%s5] sm:$0xf]
  %v162 = vld [vmem:[%s6] sm:$0x1]
  %v164 = vlaneseq
  %v165 = vshrl.u32 %v164, 7
  %v166 = vsub.s32 0, %v165
  %v167 = vrot.slane %v162, %v166
  %v170 = vsel %vm106, %v160, 0
  %vm172 = vcmask 1043456
  %v174 = vsel %vm172, %v161, 0
  %176 = vmatprep.subr.bf16.mxu0 0
  %177 = vmatpush1.bf16.msra.mxu0 %v174
  %178 = vmatprep.subr.bf16.mxu0 0
  %179 = vmatpush1.bf16.msra.mxu0 0
  %180 = vmatprep.subr.bf16.mxu0 0
  %181 = vmatpush1.bf16.msra.mxu0 0
  %182 = vmatprep.subr.bf16.mxu0 0
  %183 = vmatpush1.bf16.msra.mxu0 0
  %184 = vmatprep.subr.bf16.mxu0 0
  %185 = vmatpush1.bf16.msra.mxu0 0
  %186 = vmatprep.subr.bf16.mxu0 0
  %187 = vmatpush1.bf16.msra.mxu0 0
  %188 = vmatprep.subr.bf16.mxu0 0
  %189 = vmatpush1.bf16.msra.mxu0 0
  %190 = vmatprep.subr.bf16.mxu0 0
  %191 = vmatpush1.bf16.msra.mxu0 0
  %192 = vmatprep.subr.bf16.mxu0 0
  %193 = vmatpush1.bf16.msra.mxu0 0
  %194 = vmatprep.subr.bf16.mxu0 0
  %195 = vmatpush1.bf16.msra.mxu0 0
  %196 = vmatprep.subr.bf16.mxu0 0
  %197 = vmatpush1.bf16.msra.mxu0 0
  %198 = vmatprep.subr.bf16.mxu0 0
  %199 = vmatpush1.bf16.msra.mxu0 0
  %200 = vmatprep.subr.bf16.mxu0 0
  %201 = vmatpush1.bf16.msra.mxu0 0
  %202 = vmatprep.subr.bf16.mxu0 0
  %203 = vmatpush1.bf16.msra.mxu0 0
  %204 = vmatprep.subr.bf16.mxu0 0
  %205 = vmatpush1.bf16.msra.mxu0 0
  %206 = vmatprep.subr.bf16.mxu0 0
  %207 = vmatpush1.bf16.msra.mxu0 0
  %208 = vmatprep.mubr.bf16.mxu0 0
  %209 = vmatmul.mubr.bf16.gmra.mrb[0].mxu0 %v170
  %v210 = vpop.f32.mrb[0].mxu0
  %v211 = vadd.f32 %v167, %v210
  %v212 = vpop.f32.mrb[0].mxu0
  %v213 = vpop.f32.mrb[0].mxu0
  %v214 = vadd.f32 %v167, %v213
  %v215 = vpop.f32.mrb[0].mxu0
  %216 = vdwg.mxu0
  %v217 = vld [vmem:[%s7] sm:$0x1]
  %v218 = vld [vmem:[%s8] sm:$0x1]
  %v219 = vsel %vm59, %v211, 0.0
  %220 = vadd.xlane.f32.xlu0 %v219
  %v221 = vpop.xlane.xlu0 %220
  %v222 = vsel %vm59, %v214, 0.0
  %223 = vadd.xlane.f32.xlu0 %v222
  %v224 = vpop.xlane.xlu0 %223
  %v225 = vrcp.pop 32.0
  %v226 = vmul.f32 %v221, %v225
  %v227 = vmul.f32 %v224, %v225
  %v228 = vsub.f32 %v211, %v226
  %v229 = vsub.f32 %v214, %v227
  %v230 = vmul.f32 %v228, %v228
  %v231 = vmul.f32 %v229, %v229
  %v232 = vsel %vm59, %v230, 0.0
  %233 = vadd.xlane.f32.xlu0 %v232
  %v234 = vpop.xlane.xlu0 %233
  %v235 = vsel %vm59, %v231, 0.0
  %236 = vadd.xlane.f32.xlu0 %v235
  %v237 = vpop.xlane.xlu0 %236
  %v238 = vmul.f32 %v234, %v225
  %v239 = vmul.f32 %v237, %v225
  %v240 = vadd.f32 %v238, 1e-05
  %v241 = vadd.f32 %v239, 1e-05
  %v242 = vrsqrt.pop %v240
  %v243 = vrsqrt.pop %v241
  %v244 = vmul.f32 %v228, %v242
  %v245 = vmul.f32 %v229, %v243
  %v247 = vlaneseq
  %v248 = vshrl.u32 %v247, 7
  %v249 = vsub.s32 0, %v248
  %v250 = vrot.slane %v217, %v249
  %v252 = vmul.f32 %v244, %v250
  %v253 = vmul.f32 %v245, %v250
  %v255 = vlaneseq
  %v256 = vshrl.u32 %v255, 7
  %v257 = vsub.s32 0, %v256
  %v258 = vrot.slane %v218, %v257
  %v260 = vadd.f32 %v252, %v258
  %v261 = vadd.f32 %v253, %v258
  %v262 = vxor.u32 %v260, 2147483648
  %v263 = vxor.u32 %v261, 2147483648
  %v264 = vmul.f32 %v262, 1.442695
  %v265 = vpow.pop %v264
  %v266 = vmul.f32 %v263, 1.442695
  %v267 = vpow.pop %v266
  %v268 = vadd.f32 %v265, 1.0
  %v269 = vadd.f32 %v267, 1.0
  %v270 = vrcp.pop %v268
  %v271 = vmul.f32 1.0, %v270
  %v272 = vrcp.pop %v269
  %v273 = vmul.f32 1.0, %v272
  %274 = vst.msk [vmem:[%s9] sm:$0xff] %vm59, %v271
  %275 = vst.msk [vmem:[%s9 + $0x8] sm:$0xff] %vm59, %v273
  // Predicated region
  $region38: #{multi_infer_bert_forward.17} parent=0 // pred_check
    _
  $region39: #{multi_infer_bert_forward.17} parent=0 // pred_check_branch
    %277 = sbr.rel (0) target = $region41
  $region40: #{multi_infer_bert_forward.17} parent=0 // pred_region
    _
  $region41: #{multi_infer_bert_forward.17} parent=0 // pred_fallthru
    _
  // Predicated region
  $region42: #{multi_infer_bert_forward.17} parent=0 // pred_check
    _
  $region43: #{multi_infer_bert_forward.17} parent=0 // pred_check_branch
    %279 = sbr.rel (0) target = $region45
  $region44: #{multi_infer_bert_forward.17} parent=0 // pred_region
    _
  $region45: #{multi_infer_bert_forward.17} parent=0 // pred_fallthru
    _

// kernel: multi_infer_bert_forward.18
$region0: #{multi_infer_bert_forward.18}
  #allocation0 [shape = 'u32[]', space=smem, size = 0x4, offset = 0x4, fixed_abs, tag = 'smem constant byte address 0x4 - core index']
  #allocation1 [shape = 'u32[144,128]{1,0:T(1,128)}', space=vmem, size = 0x12000, scoped, tag = 'internal scratch']
  %s0 = inlined_call_operand.vmem [shape: f32[2,8], index: 0, kind: input, shape index: {}]
  %s1 = inlined_call_operand.vmem [shape: bf16[8,2], index: 1, kind: input, shape index: {}]
  %s2 = inlined_call_operand.vmem [shape: f32[1,2], index: 2, kind: input, shape index: {}]
  %s3 = inlined_call_operand.vmem [shape: f32[1,2], index: 3, kind: input, shape index: {}]
  %s4 = inlined_call_operand.vmem [shape: f32[1,2], index: 4, kind: input, shape index: {}]
  %s5 = inlined_call_operand.vmem [shape: bf16[2,8], index: 5, kind: input, shape index: {}]
  %s6 = inlined_call_operand.vmem [shape: f32[1,8], index: 6, kind: input, shape index: {}]
  %s7 = inlined_call_operand.vmem [shape: f32[1,8], index: 7, kind: input, shape index: {}]
  %s8 = inlined_call_operand.vmem [shape: f32[1,8], index: 8, kind: input, shape index: {}]
  %s9 = inlined_call_operand.vmem [shape: f32[2,8], index: 9, kind: output, shape index: {}]
  %s10 = sld [smem:[#allocation0]]
  $region46: #{multi_infer_bert_forward.18} parent=0
    _
  %s12 = ssub.s32 1, %s10
  %s13 = scalar_select 0, %s12, %s10
  // Predicated region
  $region2: #{multi_infer_bert_forward.18} parent=0 // pred_check
    _
  $region3: #{multi_infer_bert_forward.18} parent=0 // pred_check_branch
    %15 = sbr.rel (0) target = $region5
  $region4: #{multi_infer_bert_forward.18} parent=0 // pred_region
    _
  $region5: #{multi_infer_bert_forward.18} parent=0 // pred_fallthru
    _
  // Predicated region
  $region6: #{multi_infer_bert_forward.18} parent=0 // pred_check
    _
  $region7: #{multi_infer_bert_forward.18} parent=0 // pred_check_branch
    %17 = sbr.rel (0) target = $region9
  $region8: #{multi_infer_bert_forward.18} parent=0 // pred_region
    _
  $region9: #{multi_infer_bert_forward.18} parent=0 // pred_fallthru
    _
  // Predicated region
  $region10: #{multi_infer_bert_forward.18} parent=0 // pred_check
    _
  $region11: #{multi_infer_bert_forward.18} parent=0 // pred_check_branch
    %19 = sbr.rel (0) target = $region13
  $region12: #{multi_infer_bert_forward.18} parent=0 // pred_region
    _
  $region13: #{multi_infer_bert_forward.18} parent=0 // pred_fallthru
    _
  // Predicated region
  $region14: #{multi_infer_bert_forward.18} parent=0 // pred_check
    _
  $region15: #{multi_infer_bert_forward.18} parent=0 // pred_check_branch
    %21 = sbr.rel (0) target = $region17
  $region16: #{multi_infer_bert_forward.18} parent=0 // pred_region
    _
  $region17: #{multi_infer_bert_forward.18} parent=0 // pred_fallthru
    _
  // Predicated region
  $region18: #{multi_infer_bert_forward.18} parent=0 // pred_check
    _
  $region19: #{multi_infer_bert_forward.18} parent=0 // pred_check_branch
    %23 = sbr.rel (0) target = $region21
  $region20: #{multi_infer_bert_forward.18} parent=0 // pred_region
    _
  $region21: #{multi_infer_bert_forward.18} parent=0 // pred_fallthru
    _
  // Predicated region
  $region22: #{multi_infer_bert_forward.18} parent=0 // pred_check
    _
  $region23: #{multi_infer_bert_forward.18} parent=0 // pred_check_branch
    %25 = sbr.rel (0) target = $region25
  $region24: #{multi_infer_bert_forward.18} parent=0 // pred_region
    _
  $region25: #{multi_infer_bert_forward.18} parent=0 // pred_fallthru
    _
  // Predicated region
  $region26: #{multi_infer_bert_forward.18} parent=0 // pred_check
    _
  $region27: #{multi_infer_bert_forward.18} parent=0 // pred_check_branch
    %27 = sbr.rel (0) target = $region29
  $region28: #{multi_infer_bert_forward.18} parent=0 // pred_region
    _
  $region29: #{multi_infer_bert_forward.18} parent=0 // pred_fallthru
    _
  // Predicated region
  $region30: #{multi_infer_bert_forward.18} parent=0 // pred_check
    _
  $region31: #{multi_infer_bert_forward.18} parent=0 // pred_check_branch
    %29 = sbr.rel (0) target = $region33
  $region32: #{multi_infer_bert_forward.18} parent=0 // pred_region
    _
  $region33: #{multi_infer_bert_forward.18} parent=0 // pred_fallthru
    _
  // Predicated region
  $region34: #{multi_infer_bert_forward.18} parent=0 // pred_check
    _
  $region35: #{multi_infer_bert_forward.18} parent=0 // pred_check_branch
    %31 = sbr.rel (0) target = $region37
  $region36: #{multi_infer_bert_forward.18} parent=0 // pred_region
    _
  $region37: #{multi_infer_bert_forward.18} parent=0 // pred_fallthru
    _
  %v33 = vld [vmem:[%s0] sm:$0x3]
  %v34 = vpack.c.bf16 %v33, %v33
  %v35 = vld [vmem:[%s1] sm:$0xf]
  %v36 = vld [vmem:[%s2] sm:$0x1]
  %v38 = vlaneseq
  %v39 = vshrl.u32 %v38, 7
  %v40 = vsub.s32 0, %v39
  %v41 = vrot.slane %v36, %v40
  %vm43 = vcmask 64512
  %v45 = vsel %vm43, %v34, 0
  %vm47 = vcmask 1043456
  %v49 = vsel %vm47, %v35, 0
  %51 = vmatprep.subr.bf16.mxu0 0
  %52 = vmatpush1.bf16.msra.mxu0 %v49
  %53 = vmatprep.subr.bf16.mxu0 0
  %54 = vmatpush1.bf16.msra.mxu0 0
  %55 = vmatprep.subr.bf16.mxu0 0
  %56 = vmatpush1.bf16.msra.mxu0 0
  %57 = vmatprep.subr.bf16.mxu0 0
  %58 = vmatpush1.bf16.msra.mxu0 0
  %59 = vmatprep.subr.bf16.mxu0 0
  %60 = vmatpush1.bf16.msra.mxu0 0
  %61 = vmatprep.subr.bf16.mxu0 0
  %62 = vmatpush1.bf16.msra.mxu0 0
  %63 = vmatprep.subr.bf16.mxu0 0
  %64 = vmatpush1.bf16.msra.mxu0 0
  %65 = vmatprep.subr.bf16.mxu0 0
  %66 = vmatpush1.bf16.msra.mxu0 0
  %67 = vmatprep.subr.bf16.mxu0 0
  %68 = vmatpush1.bf16.msra.mxu0 0
  %69 = vmatprep.subr.bf16.mxu0 0
  %70 = vmatpush1.bf16.msra.mxu0 0
  %71 = vmatprep.subr.bf16.mxu0 0
  %72 = vmatpush1.bf16.msra.mxu0 0
  %73 = vmatprep.subr.bf16.mxu0 0
  %74 = vmatpush1.bf16.msra.mxu0 0
  %75 = vmatprep.subr.bf16.mxu0 0
  %76 = vmatpush1.bf16.msra.mxu0 0
  %77 = vmatprep.subr.bf16.mxu0 0
  %78 = vmatpush1.bf16.msra.mxu0 0
  %79 = vmatprep.subr.bf16.mxu0 0
  %80 = vmatpush1.bf16.msra.mxu0 0
  %81 = vmatprep.subr.bf16.mxu0 0
  %82 = vmatpush1.bf16.msra.mxu0 0
  %83 = vmatprep.mubr.bf16.mxu0 0
  %84 = vmatmul.mubr.bf16.gmra.mrb[0].mxu0 %v45
  %v85 = vpop.f32.mrb[0].mxu0
  %v86 = vadd.f32 %v41, %v85
  %v87 = vpop.f32.mrb[0].mxu0
  %v88 = vpop.f32.mrb[0].mxu0
  %v89 = vpop.f32.mrb[0].mxu0
  %90 = vdwg.mxu0
  %v91 = vld [vmem:[%s3] sm:$0x1]
  %v92 = vld [vmem:[%s4] sm:$0x1]
  %vm93 = vcmask 9216
  %v94 = vsel %vm93, %v86, 0.0
  %95 = vadd.xlane.f32.xlu0 %v94
  %v96 = vpop.xlane.xlu0 %95
  %v97 = vrcp.pop 2.0
  %v98 = vmul.f32 %v96, %v97
  %v99 = vsub.f32 %v86, %v98
  %v100 = vmul.f32 %v99, %v99
  %v101 = vsel %vm93, %v100, 0.0
  %102 = vadd.xlane.f32.xlu0 %v101
  %v103 = vpop.xlane.xlu0 %102
  %v104 = vmul.f32 %v103, %v97
  %v105 = vadd.f32 %v104, 1e-05
  %v106 = vrsqrt.pop %v105
  %v107 = vmul.f32 %v99, %v106
  %v109 = vlaneseq
  %v110 = vshrl.u32 %v109, 7
  %v111 = vsub.s32 0, %v110
  %v112 = vrot.slane %v91, %v111
  %v114 = vmul.f32 %v107, %v112
  %v116 = vlaneseq
  %v117 = vshrl.u32 %v116, 7
  %v118 = vsub.s32 0, %v117
  %v119 = vrot.slane %v92, %v118
  %v121 = vadd.f32 %v114, %v119
  %v122 = vmul.f32 %v121, 0.5
  %v123 = vmul.f32 %v121, 0.70710677
  %v124 = verf.f32.pop %v123
  %v125 = vadd.f32 %v124, 1.0
  %v126 = vmul.f32 %v122, %v125
  %v127 = vpack.c.bf16 %v126, %v126
  %v128 = vld [vmem:[%s5] sm:$0x1]
  %v129 = vld [vmem:[%s6] sm:$0x1]
  %v131 = vlaneseq
  %v132 = vshrl.u32 %v131, 7
  %v133 = vsub.s32 0, %v132
  %v134 = vrot.slane %v129, %v133
  %vm136 = vcmask 15360
  %v138 = vsel %vm136, %v127, 0
  %vm140 = vcmask 1040384
  %v142 = vsel %vm140, %v128, 0
  %144 = vmatprep.subr.bf16.mxu0 0
  %145 = vmatpush1.bf16.msra.mxu0 %v142
  %146 = vmatprep.subr.bf16.mxu0 0
  %147 = vmatpush1.bf16.msra.mxu0 0
  %148 = vmatprep.subr.bf16.mxu0 0
  %149 = vmatpush1.bf16.msra.mxu0 0
  %150 = vmatprep.subr.bf16.mxu0 0
  %151 = vmatpush1.bf16.msra.mxu0 0
  %152 = vmatprep.subr.bf16.mxu0 0
  %153 = vmatpush1.bf16.msra.mxu0 0
  %154 = vmatprep.subr.bf16.mxu0 0
  %155 = vmatpush1.bf16.msra.mxu0 0
  %156 = vmatprep.subr.bf16.mxu0 0
  %157 = vmatpush1.bf16.msra.mxu0 0
  %158 = vmatprep.subr.bf16.mxu0 0
  %159 = vmatpush1.bf16.msra.mxu0 0
  %160 = vmatprep.subr.bf16.mxu0 0
  %161 = vmatpush1.bf16.msra.mxu0 0
  %162 = vmatprep.subr.bf16.mxu0 0
  %163 = vmatpush1.bf16.msra.mxu0 0
  %164 = vmatprep.subr.bf16.mxu0 0
  %165 = vmatpush1.bf16.msra.mxu0 0
  %166 = vmatprep.subr.bf16.mxu0 0
  %167 = vmatpush1.bf16.msra.mxu0 0
  %168 = vmatprep.subr.bf16.mxu0 0
  %169 = vmatpush1.bf16.msra.mxu0 0
  %170 = vmatprep.subr.bf16.mxu0 0
  %171 = vmatpush1.bf16.msra.mxu0 0
  %172 = vmatprep.subr.bf16.mxu0 0
  %173 = vmatpush1.bf16.msra.mxu0 0
  %174 = vmatprep.subr.bf16.mxu0 0
  %175 = vmatpush1.bf16.msra.mxu0 0
  %176 = vmatprep.mubr.bf16.mxu0 0
  %177 = vmatmul.mubr.bf16.gmra.mrb[0].mxu0 %v138
  %v178 = vpop.f32.mrb[0].mxu0
  %v179 = vadd.f32 %v134, %v178
  %v180 = vpop.f32.mrb[0].mxu0
  %v181 = vpop.f32.mrb[0].mxu0
  %v182 = vpop.f32.mrb[0].mxu0
  %183 = vdwg.mxu0
  %v184 = vld [vmem:[%s7] sm:$0x1]
  %v185 = vld [vmem:[%s8] sm:$0x1]
  %vm186 = vcmask 58368
  %v187 = vsel %vm186, %v179, 0.0
  %188 = vadd.xlane.f32.xlu0 %v187
  %v189 = vpop.xlane.xlu0 %188
  %v190 = vrcp.pop 8.0
  %v191 = vmul.f32 %v189, %v190
  %v192 = vsub.f32 %v179, %v191
  %v193 = vmul.f32 %v192, %v192
  %v194 = vsel %vm186, %v193, 0.0
  %195 = vadd.xlane.f32.xlu0 %v194
  %v196 = vpop.xlane.xlu0 %195
  %v197 = vmul.f32 %v196, %v190
  %v198 = vadd.f32 %v197, 1e-05
  %v199 = vrsqrt.pop %v198
  %v200 = vmul.f32 %v192, %v199
  %v202 = vlaneseq
  %v203 = vshrl.u32 %v202, 7
  %v204 = vsub.s32 0, %v203
  %v205 = vrot.slane %v184, %v204
  %v207 = vmul.f32 %v200, %v205
  %v209 = vlaneseq
  %v210 = vshrl.u32 %v209, 7
  %v211 = vsub.s32 0, %v210
  %v212 = vrot.slane %v185, %v211
  %v214 = vadd.f32 %v207, %v212
  %v215 = vxor.u32 %v214, 2147483648
  %v216 = vmul.f32 %v215, 1.442695
  %v217 = vpow.pop %v216
  %v218 = vadd.f32 %v217, 1.0
  %v219 = vrcp.pop %v218
  %v220 = vmul.f32 1.0, %v219
  %221 = vst.msk [vmem:[%s9] sm:$0x3] %vm186, %v220
  // Predicated region
  $region38: #{multi_infer_bert_forward.18} parent=0 // pred_check
    _
  $region39: #{multi_infer_bert_forward.18} parent=0 // pred_check_branch
    %223 = sbr.rel (0) target = $region41
  $region40: #{multi_infer_bert_forward.18} parent=0 // pred_region
    _
  $region41: #{multi_infer_bert_forward.18} parent=0 // pred_fallthru
    _
  // Predicated region
  $region42: #{multi_infer_bert_forward.18} parent=0 // pred_check
    _
  $region43: #{multi_infer_bert_forward.18} parent=0 // pred_check_branch
    %225 = sbr.rel (0) target = $region45
  $region44: #{multi_infer_bert_forward.18} parent=0 // pred_region
    _
  $region45: #{multi_infer_bert_forward.18} parent=0 // pred_fallthru
    _

// kernel: multi_infer_bert_forward.21
$region0: #{multi_infer_bert_forward.21}
  #allocation0 [shape = 'u32[]', space=smem, size = 0x4, offset = 0x4, fixed_abs, tag = 'smem constant byte address 0x4 - core index']
  #allocation1 [shape = 'u32[144,128]{1,0:T(1,128)}', space=vmem, size = 0x12000, scoped, tag = 'internal scratch']
  %s0 = inlined_call_operand.vmem [shape: f32[16,32], index: 0, kind: input, shape index: {}]
  %s1 = inlined_call_operand.vmem [shape: bf16[32,12], index: 1, kind: input, shape index: {}]
  %s2 = inlined_call_operand.vmem [shape: f32[1,12], index: 2, kind: input, shape index: {}]
  %s3 = inlined_call_operand.vmem [shape: f32[16,12], index: 3, kind: output, shape index: {}]
  %s4 = sld [smem:[#allocation0]]
  $region22: #{multi_infer_bert_forward.21} parent=0
    _
  %s6 = ssub.s32 1, %s4
  %s7 = scalar_select 0, %s6, %s4
  // Predicated region
  $region2: #{multi_infer_bert_forward.21} parent=0 // pred_check
    _
  $region3: #{multi_infer_bert_forward.21} parent=0 // pred_check_branch
    %9 = sbr.rel (0) target = $region5
  $region4: #{multi_infer_bert_forward.21} parent=0 // pred_region
    _
  $region5: #{multi_infer_bert_forward.21} parent=0 // pred_fallthru
    _
  // Predicated region
  $region6: #{multi_infer_bert_forward.21} parent=0 // pred_check
    _
  $region7: #{multi_infer_bert_forward.21} parent=0 // pred_check_branch
    %11 = sbr.rel (0) target = $region9
  $region8: #{multi_infer_bert_forward.21} parent=0 // pred_region
    _
  $region9: #{multi_infer_bert_forward.21} parent=0 // pred_fallthru
    _
  // Predicated region
  $region10: #{multi_infer_bert_forward.21} parent=0 // pred_check
    _
  $region11: #{multi_infer_bert_forward.21} parent=0 // pred_check_branch
    %13 = sbr.rel (0) target = $region13
  $region12: #{multi_infer_bert_forward.21} parent=0 // pred_region
    _
  $region13: #{multi_infer_bert_forward.21} parent=0 // pred_fallthru
    _
  %v15 = vld [vmem:[%s0] sm:$0xff]
  %v16 = vld [vmem:[%s0 + $0x8] sm:$0xff]
  %v17 = vpack.c.bf16 %v16, %v15
  %v18 = vld [vmem:[%s1] sm:$0xf]
  %v19 = vld [vmem:[%s1 + $0x4] sm:$0xf]
  %v20 = vld [vmem:[%s1 + $0x8] sm:$0xf]
  %v21 = vld [vmem:[%s1 + $0xc] sm:$0xf]
  %v22 = vld [vmem:[%s2] sm:$0x1]
  %v24 = vlaneseq
  %v25 = vshrl.u32 %v24, 7
  %v26 = vsub.s32 0, %v25
  %v27 = vrot.slane %v22, %v26
  %v33 = vunpack.c.l.b16 %v18
  %v34 = vunpack.c.l.b16 %v19
  %v35 = vunpack.c.l.b16 %v20
  %v36 = vunpack.c.l.b16 %v21
  %v37 = vpack.c.b16 %v34, %v33
  %v38 = vpack.c.b16 %v36, %v35
  %vm41 = vcmask 261120
  %v43 = vsel %vm41, %v17, 0
  %45 = vmatprep.subr.bf16.mxu0 0
  %46 = vmatpush1.bf16.msra.mxu0 %v37
  %47 = vmatprep.subr.bf16.mxu0 0
  %48 = vmatpush1.bf16.msra.mxu0 %v38
  %49 = vmatprep.subr.bf16.mxu0 0
  %50 = vmatpush1.bf16.msra.mxu0 0
  %51 = vmatprep.subr.bf16.mxu0 0
  %52 = vmatpush1.bf16.msra.mxu0 0
  %53 = vmatprep.subr.bf16.mxu0 0
  %54 = vmatpush1.bf16.msra.mxu0 0
  %55 = vmatprep.subr.bf16.mxu0 0
  %56 = vmatpush1.bf16.msra.mxu0 0
  %57 = vmatprep.subr.bf16.mxu0 0
  %58 = vmatpush1.bf16.msra.mxu0 0
  %59 = vmatprep.subr.bf16.mxu0 0
  %60 = vmatpush1.bf16.msra.mxu0 0
  %61 = vmatprep.subr.bf16.mxu0 0
  %62 = vmatpush1.bf16.msra.mxu0 0
  %63 = vmatprep.subr.bf16.mxu0 0
  %64 = vmatpush1.bf16.msra.mxu0 0
  %65 = vmatprep.subr.bf16.mxu0 0
  %66 = vmatpush1.bf16.msra.mxu0 0
  %67 = vmatprep.subr.bf16.mxu0 0
  %68 = vmatpush1.bf16.msra.mxu0 0
  %69 = vmatprep.subr.bf16.mxu0 0
  %70 = vmatpush1.bf16.msra.mxu0 0
  %71 = vmatprep.subr.bf16.mxu0 0
  %72 = vmatpush1.bf16.msra.mxu0 0
  %73 = vmatprep.subr.bf16.mxu0 0
  %74 = vmatpush1.bf16.msra.mxu0 0
  %75 = vmatprep.subr.bf16.mxu0 0
  %76 = vmatpush1.bf16.msra.mxu0 0
  %77 = vmatprep.mubr.bf16.mxu0 0
  %78 = vmatmul.mubr.bf16.gmra.mrb[0].mxu0 %v43
  %v79 = vpop.f32.mrb[0].mxu0
  %v80 = vadd.f32 %v27, %v79
  %v81 = vpop.f32.mrb[0].mxu0
  %v82 = vpop.f32.mrb[0].mxu0
  %v83 = vadd.f32 %v27, %v82
  %v84 = vpop.f32.mrb[0].mxu0
  %85 = vdwg.mxu0
  %vm86 = vcmask 97280
  %87 = vst.msk [vmem:[%s3] sm:$0xff] %vm86, %v80
  %88 = vst.msk [vmem:[%s3 + $0x8] sm:$0xff] %vm86, %v83
  // Predicated region
  $region14: #{multi_infer_bert_forward.21} parent=0 // pred_check
    _
  $region15: #{multi_infer_bert_forward.21} parent=0 // pred_check_branch
    %90 = sbr.rel (0) target = $region17
  $region16: #{multi_infer_bert_forward.21} parent=0 // pred_region
    _
  $region17: #{multi_infer_bert_forward.21} parent=0 // pred_fallthru
    _
  // Predicated region
  $region18: #{multi_infer_bert_forward.21} parent=0 // pred_check
    _
  $region19: #{multi_infer_bert_forward.21} parent=0 // pred_check_branch
    %92 = sbr.rel (0) target = $region21
  $region20: #{multi_infer_bert_forward.21} parent=0 // pred_region
    _
  $region21: #{multi_infer_bert_forward.21} parent=0 // pred_fallthru
    _

// kernel: multi_infer_bert_forward.15
$region0: #{multi_infer_bert_forward.15}
  #allocation0 [shape = 'u32[]', space=smem, size = 0x4, offset = 0x4, fixed_abs, tag = 'smem constant byte address 0x4 - core index']
  #allocation1 [shape = 'u32[144,128]{1,0:T(1,128)}', space=vmem, size = 0x12000, scoped, tag = 'internal scratch']
  %s0 = inlined_call_operand.vmem [shape: f32[16,32], index: 0, kind: input, shape index: {}]
  %s1 = inlined_call_operand.vmem [shape: bf16[32,3072], index: 1, kind: input, shape index: {}]
  %s2 = inlined_call_operand.vmem [shape: f32[1,3072], index: 2, kind: input, shape index: {}]
  %s3 = inlined_call_operand.vmem [shape: bf16[3072,32], index: 3, kind: input, shape index: {}]
  %s4 = inlined_call_operand.vmem [shape: f32[1,32], index: 4, kind: input, shape index: {}]
  %s5 = inlined_call_operand.vmem [shape: f32[1,32], index: 5, kind: input, shape index: {}]
  %s6 = inlined_call_operand.vmem [shape: f32[1,32], index: 6, kind: input, shape index: {}]
  %s7 = inlined_call_operand.vmem [shape: f32[16,32], index: 7, kind: output, shape index: {}]
  %s8 = sld [smem:[#allocation0]]
  $region38: #{multi_infer_bert_forward.15} parent=0
    _
  %s10 = ssub.s32 1, %s8
  %s11 = scalar_select 0, %s10, %s8
  // Predicated region
  $region2: #{multi_infer_bert_forward.15} parent=0 // pred_check
    _
  $region3: #{multi_infer_bert_forward.15} parent=0 // pred_check_branch
    %13 = sbr.rel (0) target = $region5
  $region4: #{multi_infer_bert_forward.15} parent=0 // pred_region
    _
  $region5: #{multi_infer_bert_forward.15} parent=0 // pred_fallthru
    _
  // Predicated region
  $region6: #{multi_infer_bert_forward.15} parent=0 // pred_check
    _
  $region7: #{multi_infer_bert_forward.15} parent=0 // pred_check_branch
    %15 = sbr.rel (0) target = $region9
  $region8: #{multi_infer_bert_forward.15} parent=0 // pred_region
    _
  $region9: #{multi_infer_bert_forward.15} parent=0 // pred_fallthru
    _
  // Predicated region
  $region10: #{multi_infer_bert_forward.15} parent=0 // pred_check
    _
  $region11: #{multi_infer_bert_forward.15} parent=0 // pred_check_branch
    %17 = sbr.rel (0) target = $region13
  $region12: #{multi_infer_bert_forward.15} parent=0 // pred_region
    _
  $region13: #{multi_infer_bert_forward.15} parent=0 // pred_fallthru
    _
  // Predicated region
  $region14: #{multi_infer_bert_forward.15} parent=0 // pred_check
    _
  $region15: #{multi_infer_bert_forward.15} parent=0 // pred_check_branch
    %19 = sbr.rel (0) target = $region17
  $region16: #{multi_infer_bert_forward.15} parent=0 // pred_region
    _
  $region17: #{multi_infer_bert_forward.15} parent=0 // pred_fallthru
    _
  // Predicated region
  $region18: #{multi_infer_bert_forward.15} parent=0 // pred_check
    _
  $region19: #{multi_infer_bert_forward.15} parent=0 // pred_check_branch
    %21 = sbr.rel (0) target = $region21
  $region20: #{multi_infer_bert_forward.15} parent=0 // pred_region
    _
  $region21: #{multi_infer_bert_forward.15} parent=0 // pred_fallthru
    _
  // Predicated region
  $region22: #{multi_infer_bert_forward.15} parent=0 // pred_check
    _
  $region23: #{multi_infer_bert_forward.15} parent=0 // pred_check_branch
    %23 = sbr.rel (0) target = $region25
  $region24: #{multi_infer_bert_forward.15} parent=0 // pred_region
    _
  $region25: #{multi_infer_bert_forward.15} parent=0 // pred_fallthru
    _
  // Predicated region
  $region26: #{multi_infer_bert_forward.15} parent=0 // pred_check
    _
  $region27: #{multi_infer_bert_forward.15} parent=0 // pred_check_branch
    %25 = sbr.rel (0) target = $region29
  $region28: #{multi_infer_bert_forward.15} parent=0 // pred_region
    _
  $region29: #{multi_infer_bert_forward.15} parent=0 // pred_fallthru
    _
  %v27 = vld [vmem:[%s0] sm:$0xff]
  %v28 = vld [vmem:[%s0 + $0x8] sm:$0xff]
  %v29 = vpack.c.bf16 %v28, %v27
  %v30 = vld [vmem:[%s1] sm:$0xff]
  %v31 = vld [vmem:[%s1 + $0x8] sm:$0xff]
  %v32 = vld [vmem:[%s1 + $0x10] sm:$0xff]
  %v33 = vld [vmem:[%s1 + $0x18] sm:$0xff]
  %v34 = vld [vmem:[%s1 + $0x20] sm:$0xff]
  %v35 = vld [vmem:[%s1 + $0x28] sm:$0xff]
  %v36 = vld [vmem:[%s1 + $0x30] sm:$0xff]
  %v37 = vld [vmem:[%s1 + $0x38] sm:$0xff]
  %v38 = vld [vmem:[%s1 + $0x40] sm:$0xff]
  %v39 = vld [vmem:[%s1 + $0x48] sm:$0xff]
  %v40 = vld [vmem:[%s1 + $0x50] sm:$0xff]
  %v41 = vld [vmem:[%s1 + $0x58] sm:$0xff]
  %v42 = vld [vmem:[%s1 + $0x60] sm:$0xff]
  %v43 = vld [vmem:[%s1 + $0x68] sm:$0xff]
  %v44 = vld [vmem:[%s1 + $0x70] sm:$0xff]
  %v45 = vld [vmem:[%s1 + $0x78] sm:$0xff]
  %v46 = vld [vmem:[%s1 + $0x80] sm:$0xff]
  %v47 = vld [vmem:[%s1 + $0x88] sm:$0xff]
  %v48 = vld [vmem:[%s1 + $0x90] sm:$0xff]
  %v49 = vld [vmem:[%s1 + $0x98] sm:$0xff]
  %v50 = vld [vmem:[%s1 + $0xa0] sm:$0xff]
  %v51 = vld [vmem:[%s1 + $0xa8] sm:$0xff]
  %v52 = vld [vmem:[%s1 + $0xb0] sm:$0xff]
  %v53 = vld [vmem:[%s1 + $0xb8] sm:$0xff]
  %v54 = vld [vmem:[%s1 + $0xc0] sm:$0xff]
  %v55 = vld [vmem:[%s1 + $0xc8] sm:$0xff]
  %v56 = vld [vmem:[%s1 + $0xd0] sm:$0xff]
  %v57 = vld [vmem:[%s1 + $0xd8] sm:$0xff]
  %v58 = vld [vmem:[%s1 + $0xe0] sm:$0xff]
  %v59 = vld [vmem:[%s1 + $0xe8] sm:$0xff]
  %v60 = vld [vmem:[%s1 + $0xf0] sm:$0xff]
  %v61 = vld [vmem:[%s1 + $0xf8] sm:$0xff]
  %v62 = vld [vmem:[%s1 + $0x100] sm:$0xff]
  %v63 = vld [vmem:[%s1 + $0x108] sm:$0xff]
  %v64 = vld [vmem:[%s1 + $0x110] sm:$0xff]
  %v65 = vld [vmem:[%s1 + $0x118] sm:$0xff]
  %v66 = vld [vmem:[%s1 + $0x120] sm:$0xff]
  %v67 = vld [vmem:[%s1 + $0x128] sm:$0xff]
  %v68 = vld [vmem:[%s1 + $0x130] sm:$0xff]
  %v69 = vld [vmem:[%s1 + $0x138] sm:$0xff]
  %v70 = vld [vmem:[%s1 + $0x140] sm:$0xff]
  %v71 = vld [vmem:[%s1 + $0x148] sm:$0xff]
  %v72 = vld [vmem:[%s1 + $0x150] sm:$0xff]
  %v73 = vld [vmem:[%s1 + $0x158] sm:$0xff]
  %v74 = vld [vmem:[%s1 + $0x160] sm:$0xff]
  %v75 = vld [vmem:[%s1 + $0x168] sm:$0xff]
  %v76 = vld [vmem:[%s1 + $0x170] sm:$0xff]
  %v77 = vld [vmem:[%s1 + $0x178] sm:$0xff]
  %v78 = vld [vmem:[%s2] sm:$0xff]
  %v79 = vld [vmem:[%s2 + $0x8] sm:$0xff]
  %v80 = vld [vmem:[%s2 + $0x10] sm:$0xff]
  %v84 = vlaneseq
  %v85 = vshrl.u32 %v84, 7
  %v86 = vsub.s32 0, %v85
  %v87 = vrot.slane %v78, %v86
  %v88 = vlaneseq
  %v89 = vshrl.u32 %v88, 7
  %v90 = vsub.s32 1, %v89
  %v91 = vrot.slane %v78, %v90
  %v92 = vlaneseq
  %v93 = vshrl.u32 %v92, 7
  %v94 = vsub.s32 2, %v93
  %v95 = vrot.slane %v78, %v94
  %v96 = vlaneseq
  %v97 = vshrl.u32 %v96, 7
  %v98 = vsub.s32 3, %v97
  %v99 = vrot.slane %v78, %v98
  %v100 = vlaneseq
  %v101 = vshrl.u32 %v100, 7
  %v102 = vsub.s32 4, %v101
  %v103 = vrot.slane %v78, %v102
  %v104 = vlaneseq
  %v105 = vshrl.u32 %v104, 7
  %v106 = vsub.s32 5, %v105
  %v107 = vrot.slane %v78, %v106
  %v108 = vlaneseq
  %v109 = vshrl.u32 %v108, 7
  %v110 = vsub.s32 6, %v109
  %v111 = vrot.slane %v78, %v110
  %v112 = vlaneseq
  %v113 = vshrl.u32 %v112, 7
  %v114 = vsub.s32 7, %v113
  %v115 = vrot.slane %v78, %v114
  %v116 = vlaneseq
  %v117 = vshrl.u32 %v116, 7
  %v118 = vsub.s32 0, %v117
  %v119 = vrot.slane %v79, %v118
  %v120 = vlaneseq
  %v121 = vshrl.u32 %v120, 7
  %v122 = vsub.s32 1, %v121
  %v123 = vrot.slane %v79, %v122
  %v124 = vlaneseq
  %v125 = vshrl.u32 %v124, 7
  %v126 = vsub.s32 2, %v125
  %v127 = vrot.slane %v79, %v126
  %v128 = vlaneseq
  %v129 = vshrl.u32 %v128, 7
  %v130 = vsub.s32 3, %v129
  %v131 = vrot.slane %v79, %v130
  %v132 = vlaneseq
  %v133 = vshrl.u32 %v132, 7
  %v134 = vsub.s32 4, %v133
  %v135 = vrot.slane %v79, %v134
  %v136 = vlaneseq
  %v137 = vshrl.u32 %v136, 7
  %v138 = vsub.s32 5, %v137
  %v139 = vrot.slane %v79, %v138
  %v140 = vlaneseq
  %v141 = vshrl.u32 %v140, 7
  %v142 = vsub.s32 6, %v141
  %v143 = vrot.slane %v79, %v142
  %v144 = vlaneseq
  %v145 = vshrl.u32 %v144, 7
  %v146 = vsub.s32 7, %v145
  %v147 = vrot.slane %v79, %v146
  %v148 = vlaneseq
  %v149 = vshrl.u32 %v148, 7
  %v150 = vsub.s32 0, %v149
  %v151 = vrot.slane %v80, %v150
  %v152 = vlaneseq
  %v153 = vshrl.u32 %v152, 7
  %v154 = vsub.s32 1, %v153
  %v155 = vrot.slane %v80, %v154
  %v156 = vlaneseq
  %v157 = vshrl.u32 %v156, 7
  %v158 = vsub.s32 2, %v157
  %v159 = vrot.slane %v80, %v158
  %v160 = vlaneseq
  %v161 = vshrl.u32 %v160, 7
  %v162 = vsub.s32 3, %v161
  %v163 = vrot.slane %v80, %v162
  %v164 = vlaneseq
  %v165 = vshrl.u32 %v164, 7
  %v166 = vsub.s32 4, %v165
  %v167 = vrot.slane %v80, %v166
  %v168 = vlaneseq
  %v169 = vshrl.u32 %v168, 7
  %v170 = vsub.s32 5, %v169
  %v171 = vrot.slane %v80, %v170
  %v172 = vlaneseq
  %v173 = vshrl.u32 %v172, 7
  %v174 = vsub.s32 6, %v173
  %v175 = vrot.slane %v80, %v174
  %v176 = vlaneseq
  %v177 = vshrl.u32 %v176, 7
  %v178 = vsub.s32 7, %v177
  %v179 = vrot.slane %v80, %v178
  %v252 = vunpack.c.l.b16 %v30
  %v253 = vunpack.c.h.b16 %v30
  %v254 = vunpack.c.l.b16 %v31
  %v255 = vunpack.c.h.b16 %v31
  %v256 = vunpack.c.l.b16 %v32
  %v257 = vunpack.c.h.b16 %v32
  %v258 = vunpack.c.l.b16 %v33
  %v259 = vunpack.c.h.b16 %v33
  %v260 = vunpack.c.l.b16 %v34
  %v261 = vunpack.c.h.b16 %v34
  %v262 = vunpack.c.l.b16 %v35
  %v263 = vunpack.c.h.b16 %v35
  %v264 = vunpack.c.l.b16 %v36
  %v265 = vunpack.c.h.b16 %v36
  %v266 = vunpack.c.l.b16 %v37
  %v267 = vunpack.c.h.b16 %v37
  %v268 = vunpack.c.l.b16 %v38
  %v269 = vunpack.c.h.b16 %v38
  %v270 = vunpack.c.l.b16 %v39
  %v271 = vunpack.c.h.b16 %v39
  %v272 = vunpack.c.l.b16 %v40
  %v273 = vunpack.c.h.b16 %v40
  %v274 = vunpack.c.l.b16 %v41
  %v275 = vunpack.c.h.b16 %v41
  %v276 = vunpack.c.l.b16 %v42
  %v277 = vunpack.c.h.b16 %v42
  %v278 = vunpack.c.l.b16 %v43
  %v279 = vunpack.c.h.b16 %v43
  %v280 = vunpack.c.l.b16 %v44
  %v281 = vunpack.c.h.b16 %v44
  %v282 = vunpack.c.l.b16 %v45
  %v283 = vunpack.c.h.b16 %v45
  %v284 = vunpack.c.l.b16 %v46
  %v285 = vunpack.c.h.b16 %v46
  %v286 = vunpack.c.l.b16 %v47
  %v287 = vunpack.c.h.b16 %v47
  %v288 = vunpack.c.l.b16 %v48
  %v289 = vunpack.c.h.b16 %v48
  %v290 = vunpack.c.l.b16 %v49
  %v291 = vunpack.c.h.b16 %v49
  %v292 = vunpack.c.l.b16 %v50
  %v293 = vunpack.c.h.b16 %v50
  %v294 = vunpack.c.l.b16 %v51
  %v295 = vunpack.c.h.b16 %v51
  %v296 = vunpack.c.l.b16 %v52
  %v297 = vunpack.c.h.b16 %v52
  %v298 = vunpack.c.l.b16 %v53
  %v299 = vunpack.c.h.b16 %v53
  %v300 = vunpack.c.l.b16 %v54
  %v301 = vunpack.c.h.b16 %v54
  %v302 = vunpack.c.l.b16 %v55
  %v303 = vunpack.c.h.b16 %v55
  %v304 = vunpack.c.l.b16 %v56
  %v305 = vunpack.c.h.b16 %v56
  %v306 = vunpack.c.l.b16 %v57
  %v307 = vunpack.c.h.b16 %v57
  %v308 = vunpack.c.l.b16 %v58
  %v309 = vunpack.c.h.b16 %v58
  %v310 = vunpack.c.l.b16 %v59
  %v311 = vunpack.c.h.b16 %v59
  %v312 = vunpack.c.l.b16 %v60
  %v313 = vunpack.c.h.b16 %v60
  %v314 = vunpack.c.l.b16 %v61
  %v315 = vunpack.c.h.b16 %v61
  %v316 = vunpack.c.l.b16 %v62
  %v317 = vunpack.c.h.b16 %v62
  %v318 = vunpack.c.l.b16 %v63
  %v319 = vunpack.c.h.b16 %v63
  %v320 = vunpack.c.l.b16 %v64
  %v321 = vunpack.c.h.b16 %v64
  %v322 = vunpack.c.l.b16 %v65
  %v323 = vunpack.c.h.b16 %v65
  %v324 = vunpack.c.l.b16 %v66
  %v325 = vunpack.c.h.b16 %v66
  %v326 = vunpack.c.l.b16 %v67
  %v327 = vunpack.c.h.b16 %v67
  %v328 = vunpack.c.l.b16 %v68
  %v329 = vunpack.c.h.b16 %v68
  %v330 = vunpack.c.l.b16 %v69
  %v331 = vunpack.c.h.b16 %v69
  %v332 = vunpack.c.l.b16 %v70
  %v333 = vunpack.c.h.b16 %v70
  %v334 = vunpack.c.l.b16 %v71
  %v335 = vunpack.c.h.b16 %v71
  %v336 = vunpack.c.l.b16 %v72
  %v337 = vunpack.c.h.b16 %v72
  %v338 = vunpack.c.l.b16 %v73
  %v339 = vunpack.c.h.b16 %v73
  %v340 = vunpack.c.l.b16 %v74
  %v341 = vunpack.c.h.b16 %v74
  %v342 = vunpack.c.l.b16 %v75
  %v343 = vunpack.c.h.b16 %v75
  %v344 = vunpack.c.l.b16 %v76
  %v345 = vunpack.c.h.b16 %v76
  %v346 = vunpack.c.l.b16 %v77
  %v347 = vunpack.c.h.b16 %v77
  %v348 = vpack.c.b16 %v276, %v252
  %v349 = vpack.c.b16 %v277, %v253
  %v350 = vpack.c.b16 %v278, %v254
  %v351 = vpack.c.b16 %v279, %v255
  %v352 = vpack.c.b16 %v280, %v256
  %v353 = vpack.c.b16 %v281, %v257
  %v354 = vpack.c.b16 %v282, %v258
  %v355 = vpack.c.b16 %v283, %v259
  %v356 = vpack.c.b16 %v284, %v260
  %v357 = vpack.c.b16 %v285, %v261
  %v358 = vpack.c.b16 %v286, %v262
  %v359 = vpack.c.b16 %v287, %v263
  %v360 = vpack.c.b16 %v288, %v264
  %v361 = vpack.c.b16 %v289, %v265
  %v362 = vpack.c.b16 %v290, %v266
  %v363 = vpack.c.b16 %v291, %v267
  %v364 = vpack.c.b16 %v292, %v268
  %v365 = vpack.c.b16 %v293, %v269
  %v366 = vpack.c.b16 %v294, %v270
  %v367 = vpack.c.b16 %v295, %v271
  %v368 = vpack.c.b16 %v296, %v272
  %v369 = vpack.c.b16 %v297, %v273
  %v370 = vpack.c.b16 %v298, %v274
  %v371 = vpack.c.b16 %v299, %v275
  %v372 = vpack.c.b16 %v324, %v300
  %v373 = vpack.c.b16 %v325, %v301
  %v374 = vpack.c.b16 %v326, %v302
  %v375 = vpack.c.b16 %v327, %v303
  %v376 = vpack.c.b16 %v328, %v304
  %v377 = vpack.c.b16 %v329, %v305
  %v378 = vpack.c.b16 %v330, %v306
  %v379 = vpack.c.b16 %v331, %v307
  %v380 = vpack.c.b16 %v332, %v308
  %v381 = vpack.c.b16 %v333, %v309
  %v382 = vpack.c.b16 %v334, %v310
  %v383 = vpack.c.b16 %v335, %v311
  %v384 = vpack.c.b16 %v336, %v312
  %v385 = vpack.c.b16 %v337, %v313
  %v386 = vpack.c.b16 %v338, %v314
  %v387 = vpack.c.b16 %v339, %v315
  %v388 = vpack.c.b16 %v340, %v316
  %v389 = vpack.c.b16 %v341, %v317
  %v390 = vpack.c.b16 %v342, %v318
  %v391 = vpack.c.b16 %v343, %v319
  %v392 = vpack.c.b16 %v344, %v320
  %v393 = vpack.c.b16 %v345, %v321
  %v394 = vpack.c.b16 %v346, %v322
  %v395 = vpack.c.b16 %v347, %v323
  %vm444 = vcmask 261120
  %v446 = vsel %vm444, %v29, 0
  %448 = vmatprep.subr.bf16.mxu0 %v349
  %449 = vmatpush1.bf16.msra.mxu0 %v348
  %450 = vmatprep.subr.bf16.mxu0 %v373
  %451 = vmatpush1.bf16.msra.mxu0 %v372
  %452 = vmatprep.subr.bf16.mxu0 0
  %453 = vmatpush1.bf16.msra.mxu0 0
  %454 = vmatprep.subr.bf16.mxu0 0
  %455 = vmatpush1.bf16.msra.mxu0 0
  %456 = vmatprep.subr.bf16.mxu0 0
  %457 = vmatpush1.bf16.msra.mxu0 0
  %458 = vmatprep.subr.bf16.mxu0 0
  %459 = vmatpush1.bf16.msra.mxu0 0
  %460 = vmatprep.subr.bf16.mxu0 0
  %461 = vmatpush1.bf16.msra.mxu0 0
  %462 = vmatprep.subr.bf16.mxu0 0
  %463 = vmatpush1.bf16.msra.mxu0 0
  %464 = vmatprep.subr.bf16.mxu0 0
  %465 = vmatpush1.bf16.msra.mxu0 0
  %466 = vmatprep.subr.bf16.mxu0 0
  %467 = vmatpush1.bf16.msra.mxu0 0
  %468 = vmatprep.subr.bf16.mxu0 0
  %469 = vmatpush1.bf16.msra.mxu0 0
  %470 = vmatprep.subr.bf16.mxu0 0
  %471 = vmatpush1.bf16.msra.mxu0 0
  %472 = vmatprep.subr.bf16.mxu0 0
  %473 = vmatpush1.bf16.msra.mxu0 0
  %474 = vmatprep.subr.bf16.mxu0 0
  %475 = vmatpush1.bf16.msra.mxu0 0
  %476 = vmatprep.subr.bf16.mxu0 0
  %477 = vmatpush1.bf16.msra.mxu0 0
  %478 = vmatprep.subr.bf16.mxu0 0
  %479 = vmatpush1.bf16.msra.mxu0 0
  %480 = vmatprep.mubr.bf16.mxu0 0
  %481 = vmatmul.mubr.bf16.gmra.mrb[0].mxu0 %v446
  %v482 = vpop.f32.mrb[0].mxu0
  %v483 = vadd.f32 %v87, %v482
  %v484 = vpop.f32.mrb[0].mxu0
  %v485 = vadd.f32 %v91, %v484
  %v486 = vpop.f32.mrb[0].mxu0
  %v487 = vadd.f32 %v87, %v486
  %v488 = vpop.f32.mrb[0].mxu0
  %v489 = vadd.f32 %v91, %v488
  %490 = vdwg.mxu0
  %491 = vmatprep.subr.bf16.mxu0 %v351
  %492 = vmatpush1.bf16.msra.mxu0 %v350
  %493 = vmatprep.subr.bf16.mxu0 %v375
  %494 = vmatpush1.bf16.msra.mxu0 %v374
  %495 = vmatprep.subr.bf16.mxu0 0
  %496 = vmatpush1.bf16.msra.mxu0 0
  %497 = vmatprep.subr.bf16.mxu0 0
  %498 = vmatpush1.bf16.msra.mxu0 0
  %499 = vmatprep.subr.bf16.mxu0 0
  %500 = vmatpush1.bf16.msra.mxu0 0
  %501 = vmatprep.subr.bf16.mxu0 0
  %502 = vmatpush1.bf16.msra.mxu0 0
  %503 = vmatprep.subr.bf16.mxu0 0
  %504 = vmatpush1.bf16.msra.mxu0 0
  %505 = vmatprep.subr.bf16.mxu0 0
  %506 = vmatpush1.bf16.msra.mxu0 0
  %507 = vmatprep.subr.bf16.mxu0 0
  %508 = vmatpush1.bf16.msra.mxu0 0
  %509 = vmatprep.subr.bf16.mxu0 0
  %510 = vmatpush1.bf16.msra.mxu0 0
  %511 = vmatprep.subr.bf16.mxu0 0
  %512 = vmatpush1.bf16.msra.mxu0 0
  %513 = vmatprep.subr.bf16.mxu0 0
  %514 = vmatpush1.bf16.msra.mxu0 0
  %515 = vmatprep.subr.bf16.mxu0 0
  %516 = vmatpush1.bf16.msra.mxu0 0
  %517 = vmatprep.subr.bf16.mxu0 0
  %518 = vmatpush1.bf16.msra.mxu0 0
  %519 = vmatprep.subr.bf16.mxu0 0
  %520 = vmatpush1.bf16.msra.mxu0 0
  %521 = vmatprep.subr.bf16.mxu0 0
  %522 = vmatpush1.bf16.msra.mxu0 0
  %523 = vmatprep.mubr.bf16.mxu0 0
  %524 = vmatmul.mubr.bf16.gmra.mrb[0].mxu0 %v446
  %v525 = vpop.f32.mrb[0].mxu0
  %v526 = vadd.f32 %v95, %v525
  %v527 = vpop.f32.mrb[0].mxu0
  %v528 = vadd.f32 %v99, %v527
  %v529 = vpop.f32.mrb[0].mxu0
  %v530 = vadd.f32 %v95, %v529
  %v531 = vpop.f32.mrb[0].mxu0
  %v532 = vadd.f32 %v99, %v531
  %533 = vdwg.mxu0
  %534 = vmatprep.subr.bf16.mxu0 %v353
  %535 = vmatpush1.bf16.msra.mxu0 %v352
  %536 = vmatprep.subr.bf16.mxu0 %v377
  %537 = vmatpush1.bf16.msra.mxu0 %v376
  %538 = vmatprep.subr.bf16.mxu0 0
  %539 = vmatpush1.bf16.msra.mxu0 0
  %540 = vmatprep.subr.bf16.mxu0 0
  %541 = vmatpush1.bf16.msra.mxu0 0
  %542 = vmatprep.subr.bf16.mxu0 0
  %543 = vmatpush1.bf16.msra.mxu0 0
  %544 = vmatprep.subr.bf16.mxu0 0
  %545 = vmatpush1.bf16.msra.mxu0 0
  %546 = vmatprep.subr.bf16.mxu0 0
  %547 = vmatpush1.bf16.msra.mxu0 0
  %548 = vmatprep.subr.bf16.mxu0 0
  %549 = vmatpush1.bf16.msra.mxu0 0
  %550 = vmatprep.subr.bf16.mxu0 0
  %551 = vmatpush1.bf16.msra.mxu0 0
  %552 = vmatprep.subr.bf16.mxu0 0
  %553 = vmatpush1.bf16.msra.mxu0 0
  %554 = vmatprep.subr.bf16.mxu0 0
  %555 = vmatpush1.bf16.msra.mxu0 0
  %556 = vmatprep.subr.bf16.mxu0 0
  %557 = vmatpush1.bf16.msra.mxu0 0
  %558 = vmatprep.subr.bf16.mxu0 0
  %559 = vmatpush1.bf16.msra.mxu0 0
  %560 = vmatprep.subr.bf16.mxu0 0
  %561 = vmatpush1.bf16.msra.mxu0 0
  %562 = vmatprep.subr.bf16.mxu0 0
  %563 = vmatpush1.bf16.msra.mxu0 0
  %564 = vmatprep.subr.bf16.mxu0 0
  %565 = vmatpush1.bf16.msra.mxu0 0
  %566 = vmatprep.mubr.bf16.mxu0 0
  %567 = vmatmul.mubr.bf16.gmra.mrb[0].mxu0 %v446
  %v568 = vpop.f32.mrb[0].mxu0
  %v569 = vadd.f32 %v103, %v568
  %v570 = vpop.f32.mrb[0].mxu0
  %v571 = vadd.f32 %v107, %v570
  %v572 = vpop.f32.mrb[0].mxu0
  %v573 = vadd.f32 %v103, %v572
  %v574 = vpop.f32.mrb[0].mxu0
  %v575 = vadd.f32 %v107, %v574
  %576 = vdwg.mxu0
  %577 = vmatprep.subr.bf16.mxu0 %v355
  %578 = vmatpush1.bf16.msra.mxu0 %v354
  %579 = vmatprep.subr.bf16.mxu0 %v379
  %580 = vmatpush1.bf16.msra.mxu0 %v378
  %581 = vmatprep.subr.bf16.mxu0 0
  %582 = vmatpush1.bf16.msra.mxu0 0
  %583 = vmatprep.subr.bf16.mxu0 0
  %584 = vmatpush1.bf16.msra.mxu0 0
  %585 = vmatprep.subr.bf16.mxu0 0
  %586 = vmatpush1.bf16.msra.mxu0 0
  %587 = vmatprep.subr.bf16.mxu0 0
  %588 = vmatpush1.bf16.msra.mxu0 0
  %589 = vmatprep.subr.bf16.mxu0 0
  %590 = vmatpush1.bf16.msra.mxu0 0
  %591 = vmatprep.subr.bf16.mxu0 0
  %592 = vmatpush1.bf16.msra.mxu0 0
  %593 = vmatprep.subr.bf16.mxu0 0
  %594 = vmatpush1.bf16.msra.mxu0 0
  %595 = vmatprep.subr.bf16.mxu0 0
  %596 = vmatpush1.bf16.msra.mxu0 0
  %597 = vmatprep.subr.bf16.mxu0 0
  %598 = vmatpush1.bf16.msra.mxu0 0
  %599 = vmatprep.subr.bf16.mxu0 0
  %600 = vmatpush1.bf16.msra.mxu0 0
  %601 = vmatprep.subr.bf16.mxu0 0
  %602 = vmatpush1.bf16.msra.mxu0 0
  %603 = vmatprep.subr.bf16.mxu0 0
  %604 = vmatpush1.bf16.msra.mxu0 0
  %605 = vmatprep.subr.bf16.mxu0 0
  %606 = vmatpush1.bf16.msra.mxu0 0
  %607 = vmatprep.subr.bf16.mxu0 0
  %608 = vmatpush1.bf16.msra.mxu0 0
  %609 = vmatprep.mubr.bf16.mxu0 0
  %610 = vmatmul.mubr.bf16.gmra.mrb[0].mxu0 %v446
  %v611 = vpop.f32.mrb[0].mxu0
  %v612 = vadd.f32 %v111, %v611
  %v613 = vpop.f32.mrb[0].mxu0
  %v614 = vadd.f32 %v115, %v613
  %v615 = vpop.f32.mrb[0].mxu0
  %v616 = vadd.f32 %v111, %v615
  %v617 = vpop.f32.mrb[0].mxu0
  %v618 = vadd.f32 %v115, %v617
  %619 = vdwg.mxu0
  %620 = vmatprep.subr.bf16.mxu0 %v357
  %621 = vmatpush1.bf16.msra.mxu0 %v356
  %622 = vmatprep.subr.bf16.mxu0 %v381
  %623 = vmatpush1.bf16.msra.mxu0 %v380
  %624 = vmatprep.subr.bf16.mxu0 0
  %625 = vmatpush1.bf16.msra.mxu0 0
  %626 = vmatprep.subr.bf16.mxu0 0
  %627 = vmatpush1.bf16.msra.mxu0 0
  %628 = vmatprep.subr.bf16.mxu0 0
  %629 = vmatpush1.bf16.msra.mxu0 0
  %630 = vmatprep.subr.bf16.mxu0 0
  %631 = vmatpush1.bf16.msra.mxu0 0
  %632 = vmatprep.subr.bf16.mxu0 0
  %633 = vmatpush1.bf16.msra.mxu0 0
  %634 = vmatprep.subr.bf16.mxu0 0
  %635 = vmatpush1.bf16.msra.mxu0 0
  %636 = vmatprep.subr.bf16.mxu0 0
  %637 = vmatpush1.bf16.msra.mxu0 0
  %638 = vmatprep.subr.bf16.mxu0 0
  %639 = vmatpush1.bf16.msra.mxu0 0
  %640 = vmatprep.subr.bf16.mxu0 0
  %641 = vmatpush1.bf16.msra.mxu0 0
  %642 = vmatprep.subr.bf16.mxu0 0
  %643 = vmatpush1.bf16.msra.mxu0 0
  %644 = vmatprep.subr.bf16.mxu0 0
  %645 = vmatpush1.bf16.msra.mxu0 0
  %646 = vmatprep.subr.bf16.mxu0 0
  %647 = vmatpush1.bf16.msra.mxu0 0
  %648 = vmatprep.subr.bf16.mxu0 0
  %649 = vmatpush1.bf16.msra.mxu0 0
  %650 = vmatprep.subr.bf16.mxu0 0
  %651 = vmatpush1.bf16.msra.mxu0 0
  %652 = vmatprep.mubr.bf16.mxu0 0
  %653 = vmatmul.mubr.bf16.gmra.mrb[0].mxu0 %v446
  %v654 = vpop.f32.mrb[0].mxu0
  %v655 = vadd.f32 %v119, %v654
  %v656 = vpop.f32.mrb[0].mxu0
  %v657 = vadd.f32 %v123, %v656
  %v658 = vpop.f32.mrb[0].mxu0
  %v659 = vadd.f32 %v119, %v658
  %v660 = vpop.f32.mrb[0].mxu0
  %v661 = vadd.f32 %v123, %v660
  %662 = vdwg.mxu0
  %663 = vmatprep.subr.bf16.mxu0 %v359
  %664 = vmatpush1.bf16.msra.mxu0 %v358
  %665 = vmatprep.subr.bf16.mxu0 %v383
  %666 = vmatpush1.bf16.msra.mxu0 %v382
  %667 = vmatprep.subr.bf16.mxu0 0
  %668 = vmatpush1.bf16.msra.mxu0 0
  %669 = vmatprep.subr.bf16.mxu0 0
  %670 = vmatpush1.bf16.msra.mxu0 0
  %671 = vmatprep.subr.bf16.mxu0 0
  %672 = vmatpush1.bf16.msra.mxu0 0
  %673 = vmatprep.subr.bf16.mxu0 0
  %674 = vmatpush1.bf16.msra.mxu0 0
  %675 = vmatprep.subr.bf16.mxu0 0
  %676 = vmatpush1.bf16.msra.mxu0 0
  %677 = vmatprep.subr.bf16.mxu0 0
  %678 = vmatpush1.bf16.msra.mxu0 0
  %679 = vmatprep.subr.bf16.mxu0 0
  %680 = vmatpush1.bf16.msra.mxu0 0
  %681 = vmatprep.subr.bf16.mxu0 0
  %682 = vmatpush1.bf16.msra.mxu0 0
  %683 = vmatprep.subr.bf16.mxu0 0
  %684 = vmatpush1.bf16.msra.mxu0 0
  %685 = vmatprep.subr.bf16.mxu0 0
  %686 = vmatpush1.bf16.msra.mxu0 0
  %687 = vmatprep.subr.bf16.mxu0 0
  %688 = vmatpush1.bf16.msra.mxu0 0
  %689 = vmatprep.subr.bf16.mxu0 0
  %690 = vmatpush1.bf16.msra.mxu0 0
  %691 = vmatprep.subr.bf16.mxu0 0
  %692 = vmatpush1.bf16.msra.mxu0 0
  %693 = vmatprep.subr.bf16.mxu0 0
  %694 = vmatpush1.bf16.msra.mxu0 0
  %695 = vmatprep.mubr.bf16.mxu0 0
  %696 = vmatmul.mubr.bf16.gmra.mrb[0].mxu0 %v446
  %v697 = vpop.f32.mrb[0].mxu0
  %v698 = vadd.f32 %v127, %v697
  %v699 = vpop.f32.mrb[0].mxu0
  %v700 = vadd.f32 %v131, %v699
  %v701 = vpop.f32.mrb[0].mxu0
  %v702 = vadd.f32 %v127, %v701
  %v703 = vpop.f32.mrb[0].mxu0
  %v704 = vadd.f32 %v131, %v703
  %705 = vdwg.mxu0
  %706 = vmatprep.subr.bf16.mxu0 %v361
  %707 = vmatpush1.bf16.msra.mxu0 %v360
  %708 = vmatprep.subr.bf16.mxu0 %v385
  %709 = vmatpush1.bf16.msra.mxu0 %v384
  %710 = vmatprep.subr.bf16.mxu0 0
  %711 = vmatpush1.bf16.msra.mxu0 0
  %712 = vmatprep.subr.bf16.mxu0 0
  %713 = vmatpush1.bf16.msra.mxu0 0
  %714 = vmatprep.subr.bf16.mxu0 0
  %715 = vmatpush1.bf16.msra.mxu0 0
  %716 = vmatprep.subr.bf16.mxu0 0
  %717 = vmatpush1.bf16.msra.mxu0 0
  %718 = vmatprep.subr.bf16.mxu0 0
  %719 = vmatpush1.bf16.msra.mxu0 0
  %720 = vmatprep.subr.bf16.mxu0 0
  %721 = vmatpush1.bf16.msra.mxu0 0
  %722 = vmatprep.subr.bf16.mxu0 0
  %723 = vmatpush1.bf16.msra.mxu0 0
  %724 = vmatprep.subr.bf16.mxu0 0
  %725 = vmatpush1.bf16.msra.mxu0 0
  %726 = vmatprep.subr.bf16.mxu0 0
  %727 = vmatpush1.bf16.msra.mxu0 0
  %728 = vmatprep.subr.bf16.mxu0 0
  %729 = vmatpush1.bf16.msra.mxu0 0
  %730 = vmatprep.subr.bf16.mxu0 0
  %731 = vmatpush1.bf16.msra.mxu0 0
  %732 = vmatprep.subr.bf16.mxu0 0
  %733 = vmatpush1.bf16.msra.mxu0 0
  %734 = vmatprep.subr.bf16.mxu0 0
  %735 = vmatpush1.bf16.msra.mxu0 0
  %736 = vmatprep.subr.bf16.mxu0 0
  %737 = vmatpush1.bf16.msra.mxu0 0
  %738 = vmatprep.mubr.bf16.mxu0 0
  %739 = vmatmul.mubr.bf16.gmra.mrb[0].mxu0 %v446
  %v740 = vpop.f32.mrb[0].mxu0
  %v741 = vadd.f32 %v135, %v740
  %v742 = vpop.f32.mrb[0].mxu0
  %v743 = vadd.f32 %v139, %v742
  %v744 = vpop.f32.mrb[0].mxu0
  %v745 = vadd.f32 %v135, %v744
  %v746 = vpop.f32.mrb[0].mxu0
  %v747 = vadd.f32 %v139, %v746
  %748 = vdwg.mxu0
  %749 = vmatprep.subr.bf16.mxu0 %v363
  %750 = vmatpush1.bf16.msra.mxu0 %v362
  %751 = vmatprep.subr.bf16.mxu0 %v387
  %752 = vmatpush1.bf16.msra.mxu0 %v386
  %753 = vmatprep.subr.bf16.mxu0 0
  %754 = vmatpush1.bf16.msra.mxu0 0
  %755 = vmatprep.subr.bf16.mxu0 0
  %756 = vmatpush1.bf16.msra.mxu0 0
  %757 = vmatprep.subr.bf16.mxu0 0
  %758 = vmatpush1.bf16.msra.mxu0 0
  %759 = vmatprep.subr.bf16.mxu0 0
  %760 = vmatpush1.bf16.msra.mxu0 0
  %761 = vmatprep.subr.bf16.mxu0 0
  %762 = vmatpush1.bf16.msra.mxu0 0
  %763 = vmatprep.subr.bf16.mxu0 0
  %764 = vmatpush1.bf16.msra.mxu0 0
  %765 = vmatprep.subr.bf16.mxu0 0
  %766 = vmatpush1.bf16.msra.mxu0 0
  %767 = vmatprep.subr.bf16.mxu0 0
  %768 = vmatpush1.bf16.msra.mxu0 0
  %769 = vmatprep.subr.bf16.mxu0 0
  %770 = vmatpush1.bf16.msra.mxu0 0
  %771 = vmatprep.subr.bf16.mxu0 0
  %772 = vmatpush1.bf16.msra.mxu0 0
  %773 = vmatprep.subr.bf16.mxu0 0
  %774 = vmatpush1.bf16.msra.mxu0 0
  %775 = vmatprep.subr.bf16.mxu0 0
  %776 = vmatpush1.bf16.msra.mxu0 0
  %777 = vmatprep.subr.bf16.mxu0 0
  %778 = vmatpush1.bf16.msra.mxu0 0
  %779 = vmatprep.subr.bf16.mxu0 0
  %780 = vmatpush1.bf16.msra.mxu0 0
  %781 = vmatprep.mubr.bf16.mxu0 0
  %782 = vmatmul.mubr.bf16.gmra.mrb[0].mxu0 %v446
  %v783 = vpop.f32.mrb[0].mxu0
  %v784 = vadd.f32 %v143, %v783
  %v785 = vpop.f32.mrb[0].mxu0
  %v786 = vadd.f32 %v147, %v785
  %v787 = vpop.f32.mrb[0].mxu0
  %v788 = vadd.f32 %v143, %v787
  %v789 = vpop.f32.mrb[0].mxu0
  %v790 = vadd.f32 %v147, %v789
  %791 = vdwg.mxu0
  %792 = vmatprep.subr.bf16.mxu0 %v365
  %793 = vmatpush1.bf16.msra.mxu0 %v364
  %794 = vmatprep.subr.bf16.mxu0 %v389
  %795 = vmatpush1.bf16.msra.mxu0 %v388
  %796 = vmatprep.subr.bf16.mxu0 0
  %797 = vmatpush1.bf16.msra.mxu0 0
  %798 = vmatprep.subr.bf16.mxu0 0
  %799 = vmatpush1.bf16.msra.mxu0 0
  %800 = vmatprep.subr.bf16.mxu0 0
  %801 = vmatpush1.bf16.msra.mxu0 0
  %802 = vmatprep.subr.bf16.mxu0 0
  %803 = vmatpush1.bf16.msra.mxu0 0
  %804 = vmatprep.subr.bf16.mxu0 0
  %805 = vmatpush1.bf16.msra.mxu0 0
  %806 = vmatprep.subr.bf16.mxu0 0
  %807 = vmatpush1.bf16.msra.mxu0 0
  %808 = vmatprep.subr.bf16.mxu0 0
  %809 = vmatpush1.bf16.msra.mxu0 0
  %810 = vmatprep.subr.bf16.mxu0 0
  %811 = vmatpush1.bf16.msra.mxu0 0
  %812 = vmatprep.subr.bf16.mxu0 0
  %813 = vmatpush1.bf16.msra.mxu0 0
  %814 = vmatprep.subr.bf16.mxu0 0
  %815 = vmatpush1.bf16.msra.mxu0 0
  %816 = vmatprep.subr.bf16.mxu0 0
  %817 = vmatpush1.bf16.msra.mxu0 0
  %818 = vmatprep.subr.bf16.mxu0 0
  %819 = vmatpush1.bf16.msra.mxu0 0
  %820 = vmatprep.subr.bf16.mxu0 0
  %821 = vmatpush1.bf16.msra.mxu0 0
  %822 = vmatprep.subr.bf16.mxu0 0
  %823 = vmatpush1.bf16.msra.mxu0 0
  %824 = vmatprep.mubr.bf16.mxu0 0
  %825 = vmatmul.mubr.bf16.gmra.mrb[0].mxu0 %v446
  %v826 = vpop.f32.mrb[0].mxu0
  %v827 = vadd.f32 %v151, %v826
  %v828 = vpop.f32.mrb[0].mxu0
  %v829 = vadd.f32 %v155, %v828
  %v830 = vpop.f32.mrb[0].mxu0
  %v831 = vadd.f32 %v151, %v830
  %v832 = vpop.f32.mrb[0].mxu0
  %v833 = vadd.f32 %v155, %v832
  %834 = vdwg.mxu0
  %835 = vmatprep.subr.bf16.mxu0 %v367
  %836 = vmatpush1.bf16.msra.mxu0 %v366
  %837 = vmatprep.subr.bf16.mxu0 %v391
  %838 = vmatpush1.bf16.msra.mxu0 %v390
  %839 = vmatprep.subr.bf16.mxu0 0
  %840 = vmatpush1.bf16.msra.mxu0 0
  %841 = vmatprep.subr.bf16.mxu0 0
  %842 = vmatpush1.bf16.msra.mxu0 0
  %843 = vmatprep.subr.bf16.mxu0 0
  %844 = vmatpush1.bf16.msra.mxu0 0
  %845 = vmatprep.subr.bf16.mxu0 0
  %846 = vmatpush1.bf16.msra.mxu0 0
  %847 = vmatprep.subr.bf16.mxu0 0
  %848 = vmatpush1.bf16.msra.mxu0 0
  %849 = vmatprep.subr.bf16.mxu0 0
  %850 = vmatpush1.bf16.msra.mxu0 0
  %851 = vmatprep.subr.bf16.mxu0 0
  %852 = vmatpush1.bf16.msra.mxu0 0
  %853 = vmatprep.subr.bf16.mxu0 0
  %854 = vmatpush1.bf16.msra.mxu0 0
  %855 = vmatprep.subr.bf16.mxu0 0
  %856 = vmatpush1.bf16.msra.mxu0 0
  %857 = vmatprep.subr.bf16.mxu0 0
  %858 = vmatpush1.bf16.msra.mxu0 0
  %859 = vmatprep.subr.bf16.mxu0 0
  %860 = vmatpush1.bf16.msra.mxu0 0
  %861 = vmatprep.subr.bf16.mxu0 0
  %862 = vmatpush1.bf16.msra.mxu0 0
  %863 = vmatprep.subr.bf16.mxu0 0
  %864 = vmatpush1.bf16.msra.mxu0 0
  %865 = vmatprep.subr.bf16.mxu0 0
  %866 = vmatpush1.bf16.msra.mxu0 0
  %867 = vmatprep.mubr.bf16.mxu0 0
  %868 = vmatmul.mubr.bf16.gmra.mrb[0].mxu0 %v446
  %v869 = vpop.f32.mrb[0].mxu0
  %v870 = vadd.f32 %v159, %v869
  %v871 = vpop.f32.mrb[0].mxu0
  %v872 = vadd.f32 %v163, %v871
  %v873 = vpop.f32.mrb[0].mxu0
  %v874 = vadd.f32 %v159, %v873
  %v875 = vpop.f32.mrb[0].mxu0
  %v876 = vadd.f32 %v163, %v875
  %877 = vdwg.mxu0
  %878 = vmatprep.subr.bf16.mxu0 %v369
  %879 = vmatpush1.bf16.msra.mxu0 %v368
  %880 = vmatprep.subr.bf16.mxu0 %v393
  %881 = vmatpush1.bf16.msra.mxu0 %v392
  %882 = vmatprep.subr.bf16.mxu0 0
  %883 = vmatpush1.bf16.msra.mxu0 0
  %884 = vmatprep.subr.bf16.mxu0 0
  %885 = vmatpush1.bf16.msra.mxu0 0
  %886 = vmatprep.subr.bf16.mxu0 0
  %887 = vmatpush1.bf16.msra.mxu0 0
  %888 = vmatprep.subr.bf16.mxu0 0
  %889 = vmatpush1.bf16.msra.mxu0 0
  %890 = vmatprep.subr.bf16.mxu0 0
  %891 = vmatpush1.bf16.msra.mxu0 0
  %892 = vmatprep.subr.bf16.mxu0 0
  %893 = vmatpush1.bf16.msra.mxu0 0
  %894 = vmatprep.subr.bf16.mxu0 0
  %895 = vmatpush1.bf16.msra.mxu0 0
  %896 = vmatprep.subr.bf16.mxu0 0
  %897 = vmatpush1.bf16.msra.mxu0 0
  %898 = vmatprep.subr.bf16.mxu0 0
  %899 = vmatpush1.bf16.msra.mxu0 0
  %900 = vmatprep.subr.bf16.mxu0 0
  %901 = vmatpush1.bf16.msra.mxu0 0
  %902 = vmatprep.subr.bf16.mxu0 0
  %903 = vmatpush1.bf16.msra.mxu0 0
  %904 = vmatprep.subr.bf16.mxu0 0
  %905 = vmatpush1.bf16.msra.mxu0 0
  %906 = vmatprep.subr.bf16.mxu0 0
  %907 = vmatpush1.bf16.msra.mxu0 0
  %908 = vmatprep.subr.bf16.mxu0 0
  %909 = vmatpush1.bf16.msra.mxu0 0
  %910 = vmatprep.mubr.bf16.mxu0 0
  %911 = vmatmul.mubr.bf16.gmra.mrb[0].mxu0 %v446
  %v912 = vpop.f32.mrb[0].mxu0
  %v913 = vadd.f32 %v167, %v912
  %v914 = vpop.f32.mrb[0].mxu0
  %v915 = vadd.f32 %v171, %v914
  %v916 = vpop.f32.mrb[0].mxu0
  %v917 = vadd.f32 %v167, %v916
  %v918 = vpop.f32.mrb[0].mxu0
  %v919 = vadd.f32 %v171, %v918
  %920 = vdwg.mxu0
  %921 = vmatprep.subr.bf16.mxu0 %v371
  %922 = vmatpush1.bf16.msra.mxu0 %v370
  %923 = vmatprep.subr.bf16.mxu0 %v395
  %924 = vmatpush1.bf16.msra.mxu0 %v394
  %925 = vmatprep.subr.bf16.mxu0 0
  %926 = vmatpush1.bf16.msra.mxu0 0
  %927 = vmatprep.subr.bf16.mxu0 0
  %928 = vmatpush1.bf16.msra.mxu0 0
  %929 = vmatprep.subr.bf16.mxu0 0
  %930 = vmatpush1.bf16.msra.mxu0 0
  %931 = vmatprep.subr.bf16.mxu0 0
  %932 = vmatpush1.bf16.msra.mxu0 0
  %933 = vmatprep.subr.bf16.mxu0 0
  %934 = vmatpush1.bf16.msra.mxu0 0
  %935 = vmatprep.subr.bf16.mxu0 0
  %936 = vmatpush1.bf16.msra.mxu0 0
  %937 = vmatprep.subr.bf16.mxu0 0
  %938 = vmatpush1.bf16.msra.mxu0 0
  %939 = vmatprep.subr.bf16.mxu0 0
  %940 = vmatpush1.bf16.msra.mxu0 0
  %941 = vmatprep.subr.bf16.mxu0 0
  %942 = vmatpush1.bf16.msra.mxu0 0
  %943 = vmatprep.subr.bf16.mxu0 0
  %944 = vmatpush1.bf16.msra.mxu0 0
  %945 = vmatprep.subr.bf16.mxu0 0
  %946 = vmatpush1.bf16.msra.mxu0 0
  %947 = vmatprep.subr.bf16.mxu0 0
  %948 = vmatpush1.bf16.msra.mxu0 0
  %949 = vmatprep.subr.bf16.mxu0 0
  %950 = vmatpush1.bf16.msra.mxu0 0
  %951 = vmatprep.subr.bf16.mxu0 0
  %952 = vmatpush1.bf16.msra.mxu0 0
  %953 = vmatprep.mubr.bf16.mxu0 0
  %954 = vmatmul.mubr.bf16.gmra.mrb[0].mxu0 %v446
  %v955 = vpop.f32.mrb[0].mxu0
  %v956 = vadd.f32 %v175, %v955
  %v957 = vpop.f32.mrb[0].mxu0
  %v958 = vadd.f32 %v179, %v957
  %v959 = vpop.f32.mrb[0].mxu0
  %v960 = vadd.f32 %v175, %v959
  %v961 = vpop.f32.mrb[0].mxu0
  %v962 = vadd.f32 %v179, %v961
  %963 = vdwg.mxu0
  %v964 = vmul.f32 %v483, 0.5
  %v965 = vmul.f32 %v485, 0.5
  %v966 = vmul.f32 %v526, 0.5
  %v967 = vmul.f32 %v528, 0.5
  %v968 = vmul.f32 %v569, 0.5
  %v969 = vmul.f32 %v571, 0.5
  %v970 = vmul.f32 %v612, 0.5
  %v971 = vmul.f32 %v614, 0.5
  %v972 = vmul.f32 %v655, 0.5
  %v973 = vmul.f32 %v657, 0.5
  %v974 = vmul.f32 %v698, 0.5
  %v975 = vmul.f32 %v700, 0.5
  %v976 = vmul.f32 %v741, 0.5
  %v977 = vmul.f32 %v743, 0.5
  %v978 = vmul.f32 %v784, 0.5
  %v979 = vmul.f32 %v786, 0.5
  %v980 = vmul.f32 %v827, 0.5
  %v981 = vmul.f32 %v829, 0.5
  %v982 = vmul.f32 %v870, 0.5
  %v983 = vmul.f32 %v872, 0.5
  %v984 = vmul.f32 %v913, 0.5
  %v985 = vmul.f32 %v915, 0.5
  %v986 = vmul.f32 %v956, 0.5
  %v987 = vmul.f32 %v958, 0.5
  %v988 = vmul.f32 %v487, 0.5
  %v989 = vmul.f32 %v489, 0.5
  %v990 = vmul.f32 %v530, 0.5
  %v991 = vmul.f32 %v532, 0.5
  %v992 = vmul.f32 %v573, 0.5
  %v993 = vmul.f32 %v575, 0.5
  %v994 = vmul.f32 %v616, 0.5
  %v995 = vmul.f32 %v618, 0.5
  %v996 = vmul.f32 %v659, 0.5
  %v997 = vmul.f32 %v661, 0.5
  %v998 = vmul.f32 %v702, 0.5
  %v999 = vmul.f32 %v704, 0.5
  %v1000 = vmul.f32 %v745, 0.5
  %v1001 = vmul.f32 %v747, 0.5
  %v1002 = vmul.f32 %v788, 0.5
  %v1003 = vmul.f32 %v790, 0.5
  %v1004 = vmul.f32 %v831, 0.5
  %v1005 = vmul.f32 %v833, 0.5
  %v1006 = vmul.f32 %v874, 0.5
  %v1007 = vmul.f32 %v876, 0.5
  %v1008 = vmul.f32 %v917, 0.5
  %v1009 = vmul.f32 %v919, 0.5
  %v1010 = vmul.f32 %v960, 0.5
  %v1011 = vmul.f32 %v962, 0.5
  %v1012 = vmul.f32 %v483, 0.70710677
  %v1013 = vmul.f32 %v485, 0.70710677
  %v1014 = vmul.f32 %v526, 0.70710677
  %v1015 = vmul.f32 %v528, 0.70710677
  %v1016 = vmul.f32 %v569, 0.70710677
  %v1017 = vmul.f32 %v571, 0.70710677
  %v1018 = vmul.f32 %v612, 0.70710677
  %v1019 = vmul.f32 %v614, 0.70710677
  %v1020 = vmul.f32 %v655, 0.70710677
  %v1021 = vmul.f32 %v657, 0.70710677
  %v1022 = vmul.f32 %v698, 0.70710677
  %v1023 = vmul.f32 %v700, 0.70710677
  %v1024 = vmul.f32 %v741, 0.70710677
  %v1025 = vmul.f32 %v743, 0.70710677
  %v1026 = vmul.f32 %v784, 0.70710677
  %v1027 = vmul.f32 %v786, 0.70710677
  %v1028 = vmul.f32 %v827, 0.70710677
  %v1029 = vmul.f32 %v829, 0.70710677
  %v1030 = vmul.f32 %v870, 0.70710677
  %v1031 = vmul.f32 %v872, 0.70710677
  %v1032 = vmul.f32 %v913, 0.70710677
  %v1033 = vmul.f32 %v915, 0.70710677
  %v1034 = vmul.f32 %v956, 0.70710677
  %v1035 = vmul.f32 %v958, 0.70710677
  %v1036 = vmul.f32 %v487, 0.70710677
  %v1037 = vmul.f32 %v489, 0.70710677
  %v1038 = vmul.f32 %v530, 0.70710677
  %v1039 = vmul.f32 %v532, 0.70710677
  %v1040 = vmul.f32 %v573, 0.70710677
  %v1041 = vmul.f32 %v575, 0.70710677
  %v1042 = vmul.f32 %v616, 0.70710677
  %v1043 = vmul.f32 %v618, 0.70710677
  %v1044 = vmul.f32 %v659, 0.70710677
  %v1045 = vmul.f32 %v661, 0.70710677
  %v1046 = vmul.f32 %v702, 0.70710677
  %v1047 = vmul.f32 %v704, 0.70710677
  %v1048 = vmul.f32 %v745, 0.70710677
  %v1049 = vmul.f32 %v747, 0.70710677
  %v1050 = vmul.f32 %v788, 0.70710677
  %v1051 = vmul.f32 %v790, 0.70710677
  %v1052 = vmul.f32 %v831, 0.70710677
  %v1053 = vmul.f32 %v833, 0.70710677
  %v1054 = vmul.f32 %v874, 0.70710677
  %v1055 = vmul.f32 %v876, 0.70710677
  %v1056 = vmul.f32 %v917, 0.70710677
  %v1057 = vmul.f32 %v919, 0.70710677
  %v1058 = vmul.f32 %v960, 0.70710677
  %v1059 = vmul.f32 %v962, 0.70710677
  %v1060 = verf.f32.pop %v1012
  %v1061 = verf.f32.pop %v1013
  %v1062 = verf.f32.pop %v1014
  %v1063 = verf.f32.pop %v1015
  %v1064 = verf.f32.pop %v1016
  %v1065 = verf.f32.pop %v1017
  %v1066 = verf.f32.pop %v1018
  %v1067 = verf.f32.pop %v1019
  %v1068 = verf.f32.pop %v1020
  %v1069 = verf.f32.pop %v1021
  %v1070 = verf.f32.pop %v1022
  %v1071 = verf.f32.pop %v1023
  %v1072 = verf.f32.pop %v1024
  %v1073 = verf.f32.pop %v1025
  %v1074 = verf.f32.pop %v1026
  %v1075 = verf.f32.pop %v1027
  %v1076 = verf.f32.pop %v1028
  %v1077 = verf.f32.pop %v1029
  %v1078 = verf.f32.pop %v1030
  %v1079 = verf.f32.pop %v1031
  %v1080 = verf.f32.pop %v1032
  %v1081 = verf.f32.pop %v1033
  %v1082 = verf.f32.pop %v1034
  %v1083 = verf.f32.pop %v1035
  %v1084 = verf.f32.pop %v1036
  %v1085 = verf.f32.pop %v1037
  %v1086 = verf.f32.pop %v1038
  %v1087 = verf.f32.pop %v1039
  %v1088 = verf.f32.pop %v1040
  %v1089 = verf.f32.pop %v1041
  %v1090 = verf.f32.pop %v1042
  %v1091 = verf.f32.pop %v1043
  %v1092 = verf.f32.pop %v1044
  %v1093 = verf.f32.pop %v1045
  %v1094 = verf.f32.pop %v1046
  %v1095 = verf.f32.pop %v1047
  %v1096 = verf.f32.pop %v1048
  %v1097 = verf.f32.pop %v1049
  %v1098 = verf.f32.pop %v1050
  %v1099 = verf.f32.pop %v1051
  %v1100 = verf.f32.pop %v1052
  %v1101 = verf.f32.pop %v1053
  %v1102 = verf.f32.pop %v1054
  %v1103 = verf.f32.pop %v1055
  %v1104 = verf.f32.pop %v1056
  %v1105 = verf.f32.pop %v1057
  %v1106 = verf.f32.pop %v1058
  %v1107 = verf.f32.pop %v1059
  %v1108 = vadd.f32 %v1060, 1.0
  %v1109 = vadd.f32 %v1061, 1.0
  %v1110 = vadd.f32 %v1062, 1.0
  %v1111 = vadd.f32 %v1063, 1.0
  %v1112 = vadd.f32 %v1064, 1.0
  %v1113 = vadd.f32 %v1065, 1.0
  %v1114 = vadd.f32 %v1066, 1.0
  %v1115 = vadd.f32 %v1067, 1.0
  %v1116 = vadd.f32 %v1068, 1.0
  %v1117 = vadd.f32 %v1069, 1.0
  %v1118 = vadd.f32 %v1070, 1.0
  %v1119 = vadd.f32 %v1071, 1.0
  %v1120 = vadd.f32 %v1072, 1.0
  %v1121 = vadd.f32 %v1073, 1.0
  %v1122 = vadd.f32 %v1074, 1.0
  %v1123 = vadd.f32 %v1075, 1.0
  %v1124 = vadd.f32 %v1076, 1.0
  %v1125 = vadd.f32 %v1077, 1.0
  %v1126 = vadd.f32 %v1078, 1.0
  %v1127 = vadd.f32 %v1079, 1.0
  %v1128 = vadd.f32 %v1080, 1.0
  %v1129 = vadd.f32 %v1081, 1.0
  %v1130 = vadd.f32 %v1082, 1.0
  %v1131 = vadd.f32 %v1083, 1.0
  %v1132 = vadd.f32 %v1084, 1.0
  %v1133 = vadd.f32 %v1085, 1.0
  %v1134 = vadd.f32 %v1086, 1.0
  %v1135 = vadd.f32 %v1087, 1.0
  %v1136 = vadd.f32 %v1088, 1.0
  %v1137 = vadd.f32 %v1089, 1.0
  %v1138 = vadd.f32 %v1090, 1.0
  %v1139 = vadd.f32 %v1091, 1.0
  %v1140 = vadd.f32 %v1092, 1.0
  %v1141 = vadd.f32 %v1093, 1.0
  %v1142 = vadd.f32 %v1094, 1.0
  %v1143 = vadd.f32 %v1095, 1.0
  %v1144 = vadd.f32 %v1096, 1.0
  %v1145 = vadd.f32 %v1097, 1.0
  %v1146 = vadd.f32 %v1098, 1.0
  %v1147 = vadd.f32 %v1099, 1.0
  %v1148 = vadd.f32 %v1100, 1.0
  %v1149 = vadd.f32 %v1101, 1.0
  %v1150 = vadd.f32 %v1102, 1.0
  %v1151 = vadd.f32 %v1103, 1.0
  %v1152 = vadd.f32 %v1104, 1.0
  %v1153 = vadd.f32 %v1105, 1.0
  %v1154 = vadd.f32 %v1106, 1.0
  %v1155 = vadd.f32 %v1107, 1.0
  %v1156 = vmul.f32 %v964, %v1108
  %v1157 = vmul.f32 %v965, %v1109
  %v1158 = vmul.f32 %v966, %v1110
  %v1159 = vmul.f32 %v967, %v1111
  %v1160 = vmul.f32 %v968, %v1112
  %v1161 = vmul.f32 %v969, %v1113
  %v1162 = vmul.f32 %v970, %v1114
  %v1163 = vmul.f32 %v971, %v1115
  %v1164 = vmul.f32 %v972, %v1116
  %v1165 = vmul.f32 %v973, %v1117
  %v1166 = vmul.f32 %v974, %v1118
  %v1167 = vmul.f32 %v975, %v1119
  %v1168 = vmul.f32 %v976, %v1120
  %v1169 = vmul.f32 %v977, %v1121
  %v1170 = vmul.f32 %v978, %v1122
  %v1171 = vmul.f32 %v979, %v1123
  %v1172 = vmul.f32 %v980, %v1124
  %v1173 = vmul.f32 %v981, %v1125
  %v1174 = vmul.f32 %v982, %v1126
  %v1175 = vmul.f32 %v983, %v1127
  %v1176 = vmul.f32 %v984, %v1128
  %v1177 = vmul.f32 %v985, %v1129
  %v1178 = vmul.f32 %v986, %v1130
  %v1179 = vmul.f32 %v987, %v1131
  %v1180 = vmul.f32 %v988, %v1132
  %v1181 = vmul.f32 %v989, %v1133
  %v1182 = vmul.f32 %v990, %v1134
  %v1183 = vmul.f32 %v991, %v1135
  %v1184 = vmul.f32 %v992, %v1136
  %v1185 = vmul.f32 %v993, %v1137
  %v1186 = vmul.f32 %v994, %v1138
  %v1187 = vmul.f32 %v995, %v1139
  %v1188 = vmul.f32 %v996, %v1140
  %v1189 = vmul.f32 %v997, %v1141
  %v1190 = vmul.f32 %v998, %v1142
  %v1191 = vmul.f32 %v999, %v1143
  %v1192 = vmul.f32 %v1000, %v1144
  %v1193 = vmul.f32 %v1001, %v1145
  %v1194 = vmul.f32 %v1002, %v1146
  %v1195 = vmul.f32 %v1003, %v1147
  %v1196 = vmul.f32 %v1004, %v1148
  %v1197 = vmul.f32 %v1005, %v1149
  %v1198 = vmul.f32 %v1006, %v1150
  %v1199 = vmul.f32 %v1007, %v1151
  %v1200 = vmul.f32 %v1008, %v1152
  %v1201 = vmul.f32 %v1009, %v1153
  %v1202 = vmul.f32 %v1010, %v1154
  %v1203 = vmul.f32 %v1011, %v1155
  %v1204 = vpack.c.bf16 %v1180, %v1156
  %v1205 = vpack.c.bf16 %v1181, %v1157
  %v1206 = vpack.c.bf16 %v1182, %v1158
  %v1207 = vpack.c.bf16 %v1183, %v1159
  %v1208 = vpack.c.bf16 %v1184, %v1160
  %v1209 = vpack.c.bf16 %v1185, %v1161
  %v1210 = vpack.c.bf16 %v1186, %v1162
  %v1211 = vpack.c.bf16 %v1187, %v1163
  %v1212 = vpack.c.bf16 %v1188, %v1164
  %v1213 = vpack.c.bf16 %v1189, %v1165
  %v1214 = vpack.c.bf16 %v1190, %v1166
  %v1215 = vpack.c.bf16 %v1191, %v1167
  %v1216 = vpack.c.bf16 %v1192, %v1168
  %v1217 = vpack.c.bf16 %v1193, %v1169
  %v1218 = vpack.c.bf16 %v1194, %v1170
  %v1219 = vpack.c.bf16 %v1195, %v1171
  %v1220 = vpack.c.bf16 %v1196, %v1172
  %v1221 = vpack.c.bf16 %v1197, %v1173
  %v1222 = vpack.c.bf16 %v1198, %v1174
  %v1223 = vpack.c.bf16 %v1199, %v1175
  %v1224 = vpack.c.bf16 %v1200, %v1176
  %v1225 = vpack.c.bf16 %v1201, %v1177
  %v1226 = vpack.c.bf16 %v1202, %v1178
  %v1227 = vpack.c.bf16 %v1203, %v1179
  %v1228 = vld [vmem:[%s3] sm:$0xf]
  %v1229 = vld [vmem:[%s3 + $0x4] sm:$0xf]
  %v1230 = vld [vmem:[%s3 + $0x8] sm:$0xf]
  %v1231 = vld [vmem:[%s3 + $0xc] sm:$0xf]
  %v1232 = vld [vmem:[%s3 + $0x10] sm:$0xf]
  %v1233 = vld [vmem:[%s3 + $0x14] sm:$0xf]
  %v1234 = vld [vmem:[%s3 + $0x18] sm:$0xf]
  %v1235 = vld [vmem:[%s3 + $0x1c] sm:$0xf]
  %v1236 = vld [vmem:[%s3 + $0x20] sm:$0xf]
  %v1237 = vld [vmem:[%s3 + $0x24] sm:$0xf]
  %v1238 = vld [vmem:[%s3 + $0x28] sm:$0xf]
  %v1239 = vld [vmem:[%s3 + $0x2c] sm:$0xf]
  %v1240 = vld [vmem:[%s3 + $0x30] sm:$0xf]
  %v1241 = vld [vmem:[%s3 + $0x34] sm:$0xf]
  %v1242 = vld [vmem:[%s3 + $0x38] sm:$0xf]
  %v1243 = vld [vmem:[%s3 + $0x3c] sm:$0xf]
  %v1244 = vld [vmem:[%s3 + $0x40] sm:$0xf]
  %v1245 = vld [vmem:[%s3 + $0x44] sm:$0xf]
  %v1246 = vld [vmem:[%s3 + $0x48] sm:$0xf]
  %v1247 = vld [vmem:[%s3 + $0x4c] sm:$0xf]
  %v1248 = vld [vmem:[%s3 + $0x50] sm:$0xf]
  %v1249 = vld [vmem:[%s3 + $0x54] sm:$0xf]
  %v1250 = vld [vmem:[%s3 + $0x58] sm:$0xf]
  %v1251 = vld [vmem:[%s3 + $0x5c] sm:$0xf]
  %v1252 = vld [vmem:[%s3 + $0x60] sm:$0xf]
  %v1253 = vld [vmem:[%s3 + $0x64] sm:$0xf]
  %v1254 = vld [vmem:[%s3 + $0x68] sm:$0xf]
  %v1255 = vld [vmem:[%s3 + $0x6c] sm:$0xf]
  %v1256 = vld [vmem:[%s3 + $0x70] sm:$0xf]
  %v1257 = vld [vmem:[%s3 + $0x74] sm:$0xf]
  %v1258 = vld [vmem:[%s3 + $0x78] sm:$0xf]
  %v1259 = vld [vmem:[%s3 + $0x7c] sm:$0xf]
  %v1260 = vld [vmem:[%s3 + $0x80] sm:$0xf]
  %v1261 = vld [vmem:[%s3 + $0x84] sm:$0xf]
  %v1262 = vld [vmem:[%s3 + $0x88] sm:$0xf]
  %v1263 = vld [vmem:[%s3 + $0x8c] sm:$0xf]
  %v1264 = vld [vmem:[%s3 + $0x90] sm:$0xf]
  %v1265 = vld [vmem:[%s3 + $0x94] sm:$0xf]
  %v1266 = vld [vmem:[%s3 + $0x98] sm:$0xf]
  %v1267 = vld [vmem:[%s3 + $0x9c] sm:$0xf]
  %v1268 = vld [vmem:[%s3 + $0xa0] sm:$0xf]
  %v1269 = vld [vmem:[%s3 + $0xa4] sm:$0xf]
  %v1270 = vld [vmem:[%s3 + $0xa8] sm:$0xf]
  %v1271 = vld [vmem:[%s3 + $0xac] sm:$0xf]
  %v1272 = vld [vmem:[%s3 + $0xb0] sm:$0xf]
  %v1273 = vld [vmem:[%s3 + $0xb4] sm:$0xf]
  %v1274 = vld [vmem:[%s3 + $0xb8] sm:$0xf]
  %v1275 = vld [vmem:[%s3 + $0xbc] sm:$0xf]
  %v1276 = vld [vmem:[%s3 + $0xc0] sm:$0xf]
  %v1277 = vld [vmem:[%s3 + $0xc4] sm:$0xf]
  %v1278 = vld [vmem:[%s3 + $0xc8] sm:$0xf]
  %v1279 = vld [vmem:[%s3 + $0xcc] sm:$0xf]
  %v1280 = vld [vmem:[%s3 + $0xd0] sm:$0xf]
  %v1281 = vld [vmem:[%s3 + $0xd4] sm:$0xf]
  %v1282 = vld [vmem:[%s3 + $0xd8] sm:$0xf]
  %v1283 = vld [vmem:[%s3 + $0xdc] sm:$0xf]
  %v1284 = vld [vmem:[%s3 + $0xe0] sm:$0xf]
  %v1285 = vld [vmem:[%s3 + $0xe4] sm:$0xf]
  %v1286 = vld [vmem:[%s3 + $0xe8] sm:$0xf]
  %v1287 = vld [vmem:[%s3 + $0xec] sm:$0xf]
  %v1288 = vld [vmem:[%s3 + $0xf0] sm:$0xf]
  %v1289 = vld [vmem:[%s3 + $0xf4] sm:$0xf]
  %v1290 = vld [vmem:[%s3 + $0xf8] sm:$0xf]
  %v1291 = vld [vmem:[%s3 + $0xfc] sm:$0xf]
  %v1292 = vld [vmem:[%s3 + $0x100] sm:$0xf]
  %v1293 = vld [vmem:[%s3 + $0x104] sm:$0xf]
  %v1294 = vld [vmem:[%s3 + $0x108] sm:$0xf]
  %v1295 = vld [vmem:[%s3 + $0x10c] sm:$0xf]
  %v1296 = vld [vmem:[%s3 + $0x110] sm:$0xf]
  %v1297 = vld [vmem:[%s3 + $0x114] sm:$0xf]
  %v1298 = vld [vmem:[%s3 + $0x118] sm:$0xf]
  %v1299 = vld [vmem:[%s3 + $0x11c] sm:$0xf]
  %v1300 = vld [vmem:[%s3 + $0x120] sm:$0xf]
  %v1301 = vld [vmem:[%s3 + $0x124] sm:$0xf]
  %v1302 = vld [vmem:[%s3 + $0x128] sm:$0xf]
  %v1303 = vld [vmem:[%s3 + $0x12c] sm:$0xf]
  %v1304 = vld [vmem:[%s3 + $0x130] sm:$0xf]
  %v1305 = vld [vmem:[%s3 + $0x134] sm:$0xf]
  %v1306 = vld [vmem:[%s3 + $0x138] sm:$0xf]
  %v1307 = vld [vmem:[%s3 + $0x13c] sm:$0xf]
  %v1308 = vld [vmem:[%s3 + $0x140] sm:$0xf]
  %v1309 = vld [vmem:[%s3 + $0x144] sm:$0xf]
  %v1310 = vld [vmem:[%s3 + $0x148] sm:$0xf]
  %v1311 = vld [vmem:[%s3 + $0x14c] sm:$0xf]
  %v1312 = vld [vmem:[%s3 + $0x150] sm:$0xf]
  %v1313 = vld [vmem:[%s3 + $0x154] sm:$0xf]
  %v1314 = vld [vmem:[%s3 + $0x158] sm:$0xf]
  %v1315 = vld [vmem:[%s3 + $0x15c] sm:$0xf]
  %v1316 = vld [vmem:[%s3 + $0x160] sm:$0xf]
  %v1317 = vld [vmem:[%s3 + $0x164] sm:$0xf]
  %v1318 = vld [vmem:[%s3 + $0x168] sm:$0xf]
  %v1319 = vld [vmem:[%s3 + $0x16c] sm:$0xf]
  %v1320 = vld [vmem:[%s3 + $0x170] sm:$0xf]
  %v1321 = vld [vmem:[%s3 + $0x174] sm:$0xf]
  %v1322 = vld [vmem:[%s3 + $0x178] sm:$0xf]
  %v1323 = vld [vmem:[%s3 + $0x17c] sm:$0xf]
  %v1324 = vld [vmem:[%s3 + $0x180] sm:$0xf]
  %v1325 = vld [vmem:[%s3 + $0x184] sm:$0xf]
  %v1326 = vld [vmem:[%s3 + $0x188] sm:$0xf]
  %v1327 = vld [vmem:[%s3 + $0x18c] sm:$0xf]
  %v1328 = vld [vmem:[%s3 + $0x190] sm:$0xf]
  %v1329 = vld [vmem:[%s3 + $0x194] sm:$0xf]
  %v1330 = vld [vmem:[%s3 + $0x198] sm:$0xf]
  %v1331 = vld [vmem:[%s3 + $0x19c] sm:$0xf]
  %v1332 = vld [vmem:[%s3 + $0x1a0] sm:$0xf]
  %v1333 = vld [vmem:[%s3 + $0x1a4] sm:$0xf]
  %v1334 = vld [vmem:[%s3 + $0x1a8] sm:$0xf]
  %v1335 = vld [vmem:[%s3 + $0x1ac] sm:$0xf]
  %v1336 = vld [vmem:[%s3 + $0x1b0] sm:$0xf]
  %v1337 = vld [vmem:[%s3 + $0x1b4] sm:$0xf]
  %v1338 = vld [vmem:[%s3 + $0x1b8] sm:$0xf]
  %v1339 = vld [vmem:[%s3 + $0x1bc] sm:$0xf]
  %v1340 = vld [vmem:[%s3 + $0x1c0] sm:$0xf]
  %v1341 = vld [vmem:[%s3 + $0x1c4] sm:$0xf]
  %v1342 = vld [vmem:[%s3 + $0x1c8] sm:$0xf]
  %v1343 = vld [vmem:[%s3 + $0x1cc] sm:$0xf]
  %v1344 = vld [vmem:[%s3 + $0x1d0] sm:$0xf]
  %v1345 = vld [vmem:[%s3 + $0x1d4] sm:$0xf]
  %v1346 = vld [vmem:[%s3 + $0x1d8] sm:$0xf]
  %v1347 = vld [vmem:[%s3 + $0x1dc] sm:$0xf]
  %v1348 = vld [vmem:[%s3 + $0x1e0] sm:$0xf]
  %v1349 = vld [vmem:[%s3 + $0x1e4] sm:$0xf]
  %v1350 = vld [vmem:[%s3 + $0x1e8] sm:$0xf]
  %v1351 = vld [vmem:[%s3 + $0x1ec] sm:$0xf]
  %v1352 = vld [vmem:[%s3 + $0x1f0] sm:$0xf]
  %v1353 = vld [vmem:[%s3 + $0x1f4] sm:$0xf]
  %v1354 = vld [vmem:[%s3 + $0x1f8] sm:$0xf]
  %v1355 = vld [vmem:[%s3 + $0x1fc] sm:$0xf]
  %v1356 = vld [vmem:[%s3 + $0x200] sm:$0xf]
  %v1357 = vld [vmem:[%s3 + $0x204] sm:$0xf]
  %v1358 = vld [vmem:[%s3 + $0x208] sm:$0xf]
  %v1359 = vld [vmem:[%s3 + $0x20c] sm:$0xf]
  %v1360 = vld [vmem:[%s3 + $0x210] sm:$0xf]
  %v1361 = vld [vmem:[%s3 + $0x214] sm:$0xf]
  %v1362 = vld [vmem:[%s3 + $0x218] sm:$0xf]
  %v1363 = vld [vmem:[%s3 + $0x21c] sm:$0xf]
  %v1364 = vld [vmem:[%s3 + $0x220] sm:$0xf]
  %v1365 = vld [vmem:[%s3 + $0x224] sm:$0xf]
  %v1366 = vld [vmem:[%s3 + $0x228] sm:$0xf]
  %v1367 = vld [vmem:[%s3 + $0x22c] sm:$0xf]
  %v1368 = vld [vmem:[%s3 + $0x230] sm:$0xf]
  %v1369 = vld [vmem:[%s3 + $0x234] sm:$0xf]
  %v1370 = vld [vmem:[%s3 + $0x238] sm:$0xf]
  %v1371 = vld [vmem:[%s3 + $0x23c] sm:$0xf]
  %v1372 = vld [vmem:[%s3 + $0x240] sm:$0xf]
  %v1373 = vld [vmem:[%s3 + $0x244] sm:$0xf]
  %v1374 = vld [vmem:[%s3 + $0x248] sm:$0xf]
  %v1375 = vld [vmem:[%s3 + $0x24c] sm:$0xf]
  %v1376 = vld [vmem:[%s3 + $0x250] sm:$0xf]
  %v1377 = vld [vmem:[%s3 + $0x254] sm:$0xf]
  %v1378 = vld [vmem:[%s3 + $0x258] sm:$0xf]
  %v1379 = vld [vmem:[%s3 + $0x25c] sm:$0xf]
  %v1380 = vld [vmem:[%s3 + $0x260] sm:$0xf]
  %v1381 = vld [vmem:[%s3 + $0x264] sm:$0xf]
  %v1382 = vld [vmem:[%s3 + $0x268] sm:$0xf]
  %v1383 = vld [vmem:[%s3 + $0x26c] sm:$0xf]
  %v1384 = vld [vmem:[%s3 + $0x270] sm:$0xf]
  %v1385 = vld [vmem:[%s3 + $0x274] sm:$0xf]
  %v1386 = vld [vmem:[%s3 + $0x278] sm:$0xf]
  %v1387 = vld [vmem:[%s3 + $0x27c] sm:$0xf]
  %v1388 = vld [vmem:[%s3 + $0x280] sm:$0xf]
  %v1389 = vld [vmem:[%s3 + $0x284] sm:$0xf]
  %v1390 = vld [vmem:[%s3 + $0x288] sm:$0xf]
  %v1391 = vld [vmem:[%s3 + $0x28c] sm:$0xf]
  %v1392 = vld [vmem:[%s3 + $0x290] sm:$0xf]
  %v1393 = vld [vmem:[%s3 + $0x294] sm:$0xf]
  %v1394 = vld [vmem:[%s3 + $0x298] sm:$0xf]
  %v1395 = vld [vmem:[%s3 + $0x29c] sm:$0xf]
  %v1396 = vld [vmem:[%s3 + $0x2a0] sm:$0xf]
  %v1397 = vld [vmem:[%s3 + $0x2a4] sm:$0xf]
  %v1398 = vld [vmem:[%s3 + $0x2a8] sm:$0xf]
  %v1399 = vld [vmem:[%s3 + $0x2ac] sm:$0xf]
  %v1400 = vld [vmem:[%s3 + $0x2b0] sm:$0xf]
  %v1401 = vld [vmem:[%s3 + $0x2b4] sm:$0xf]
  %v1402 = vld [vmem:[%s3 + $0x2b8] sm:$0xf]
  %v1403 = vld [vmem:[%s3 + $0x2bc] sm:$0xf]
  %v1404 = vld [vmem:[%s3 + $0x2c0] sm:$0xf]
  %v1405 = vld [vmem:[%s3 + $0x2c4] sm:$0xf]
  %v1406 = vld [vmem:[%s3 + $0x2c8] sm:$0xf]
  %v1407 = vld [vmem:[%s3 + $0x2cc] sm:$0xf]
  %v1408 = vld [vmem:[%s3 + $0x2d0] sm:$0xf]
  %v1409 = vld [vmem:[%s3 + $0x2d4] sm:$0xf]
  %v1410 = vld [vmem:[%s3 + $0x2d8] sm:$0xf]
  %v1411 = vld [vmem:[%s3 + $0x2dc] sm:$0xf]
  %v1412 = vld [vmem:[%s3 + $0x2e0] sm:$0xf]
  %v1413 = vld [vmem:[%s3 + $0x2e4] sm:$0xf]
  %v1414 = vld [vmem:[%s3 + $0x2e8] sm:$0xf]
  %v1415 = vld [vmem:[%s3 + $0x2ec] sm:$0xf]
  %v1416 = vld [vmem:[%s3 + $0x2f0] sm:$0xf]
  %v1417 = vld [vmem:[%s3 + $0x2f4] sm:$0xf]
  %v1418 = vld [vmem:[%s3 + $0x2f8] sm:$0xf]
  %v1419 = vld [vmem:[%s3 + $0x2fc] sm:$0xf]
  %v1420 = vld [vmem:[%s3 + $0x300] sm:$0xf]
  %v1421 = vld [vmem:[%s3 + $0x304] sm:$0xf]
  %v1422 = vld [vmem:[%s3 + $0x308] sm:$0xf]
  %v1423 = vld [vmem:[%s3 + $0x30c] sm:$0xf]
  %v1424 = vld [vmem:[%s3 + $0x310] sm:$0xf]
  %v1425 = vld [vmem:[%s3 + $0x314] sm:$0xf]
  %v1426 = vld [vmem:[%s3 + $0x318] sm:$0xf]
  %v1427 = vld [vmem:[%s3 + $0x31c] sm:$0xf]
  %v1428 = vld [vmem:[%s3 + $0x320] sm:$0xf]
  %v1429 = vld [vmem:[%s3 + $0x324] sm:$0xf]
  %v1430 = vld [vmem:[%s3 + $0x328] sm:$0xf]
  %v1431 = vld [vmem:[%s3 + $0x32c] sm:$0xf]
  %v1432 = vld [vmem:[%s3 + $0x330] sm:$0xf]
  %v1433 = vld [vmem:[%s3 + $0x334] sm:$0xf]
  %v1434 = vld [vmem:[%s3 + $0x338] sm:$0xf]
  %v1435 = vld [vmem:[%s3 + $0x33c] sm:$0xf]
  %v1436 = vld [vmem:[%s3 + $0x340] sm:$0xf]
  %v1437 = vld [vmem:[%s3 + $0x344] sm:$0xf]
  %v1438 = vld [vmem:[%s3 + $0x348] sm:$0xf]
  %v1439 = vld [vmem:[%s3 + $0x34c] sm:$0xf]
  %v1440 = vld [vmem:[%s3 + $0x350] sm:$0xf]
  %v1441 = vld [vmem:[%s3 + $0x354] sm:$0xf]
  %v1442 = vld [vmem:[%s3 + $0x358] sm:$0xf]
  %v1443 = vld [vmem:[%s3 + $0x35c] sm:$0xf]
  %v1444 = vld [vmem:[%s3 + $0x360] sm:$0xf]
  %v1445 = vld [vmem:[%s3 + $0x364] sm:$0xf]
  %v1446 = vld [vmem:[%s3 + $0x368] sm:$0xf]
  %v1447 = vld [vmem:[%s3 + $0x36c] sm:$0xf]
  %v1448 = vld [vmem:[%s3 + $0x370] sm:$0xf]
  %v1449 = vld [vmem:[%s3 + $0x374] sm:$0xf]
  %v1450 = vld [vmem:[%s3 + $0x378] sm:$0xf]
  %v1451 = vld [vmem:[%s3 + $0x37c] sm:$0xf]
  %v1452 = vld [vmem:[%s3 + $0x380] sm:$0xf]
  %v1453 = vld [vmem:[%s3 + $0x384] sm:$0xf]
  %v1454 = vld [vmem:[%s3 + $0x388] sm:$0xf]
  %v1455 = vld [vmem:[%s3 + $0x38c] sm:$0xf]
  %v1456 = vld [vmem:[%s3 + $0x390] sm:$0xf]
  %v1457 = vld [vmem:[%s3 + $0x394] sm:$0xf]
  %v1458 = vld [vmem:[%s3 + $0x398] sm:$0xf]
  %v1459 = vld [vmem:[%s3 + $0x39c] sm:$0xf]
  %v1460 = vld [vmem:[%s3 + $0x3a0] sm:$0xf]
  %v1461 = vld [vmem:[%s3 + $0x3a4] sm:$0xf]
  %v1462 = vld [vmem:[%s3 + $0x3a8] sm:$0xf]
  %v1463 = vld [vmem:[%s3 + $0x3ac] sm:$0xf]
  %v1464 = vld [vmem:[%s3 + $0x3b0] sm:$0xf]
  %v1465 = vld [vmem:[%s3 + $0x3b4] sm:$0xf]
  %v1466 = vld [vmem:[%s3 + $0x3b8] sm:$0xf]
  %v1467 = vld [vmem:[%s3 + $0x3bc] sm:$0xf]
  %v1468 = vld [vmem:[%s3 + $0x3c0] sm:$0xf]
  %v1469 = vld [vmem:[%s3 + $0x3c4] sm:$0xf]
  %v1470 = vld [vmem:[%s3 + $0x3c8] sm:$0xf]
  %v1471 = vld [vmem:[%s3 + $0x3cc] sm:$0xf]
  %v1472 = vld [vmem:[%s3 + $0x3d0] sm:$0xf]
  %v1473 = vld [vmem:[%s3 + $0x3d4] sm:$0xf]
  %v1474 = vld [vmem:[%s3 + $0x3d8] sm:$0xf]
  %v1475 = vld [vmem:[%s3 + $0x3dc] sm:$0xf]
  %v1476 = vld [vmem:[%s3 + $0x3e0] sm:$0xf]
  %v1477 = vld [vmem:[%s3 + $0x3e4] sm:$0xf]
  %v1478 = vld [vmem:[%s3 + $0x3e8] sm:$0xf]
  %v1479 = vld [vmem:[%s3 + $0x3ec] sm:$0xf]
  %v1480 = vld [vmem:[%s3 + $0x3f0] sm:$0xf]
  %v1481 = vld [vmem:[%s3 + $0x3f4] sm:$0xf]
  %v1482 = vld [vmem:[%s3 + $0x3f8] sm:$0xf]
  %v1483 = vld [vmem:[%s3 + $0x3fc] sm:$0xf]
  %v1484 = vld [vmem:[%s3 + $0x400] sm:$0xf]
  %v1485 = vld [vmem:[%s3 + $0x404] sm:$0xf]
  %v1486 = vld [vmem:[%s3 + $0x408] sm:$0xf]
  %v1487 = vld [vmem:[%s3 + $0x40c] sm:$0xf]
  %v1488 = vld [vmem:[%s3 + $0x410] sm:$0xf]
  %v1489 = vld [vmem:[%s3 + $0x414] sm:$0xf]
  %v1490 = vld [vmem:[%s3 + $0x418] sm:$0xf]
  %v1491 = vld [vmem:[%s3 + $0x41c] sm:$0xf]
  %v1492 = vld [vmem:[%s3 + $0x420] sm:$0xf]
  %v1493 = vld [vmem:[%s3 + $0x424] sm:$0xf]
  %v1494 = vld [vmem:[%s3 + $0x428] sm:$0xf]
  %v1495 = vld [vmem:[%s3 + $0x42c] sm:$0xf]
  %v1496 = vld [vmem:[%s3 + $0x430] sm:$0xf]
  %v1497 = vld [vmem:[%s3 + $0x434] sm:$0xf]
  %v1498 = vld [vmem:[%s3 + $0x438] sm:$0xf]
  %v1499 = vld [vmem:[%s3 + $0x43c] sm:$0xf]
  %v1500 = vld [vmem:[%s3 + $0x440] sm:$0xf]
  %v1501 = vld [vmem:[%s3 + $0x444] sm:$0xf]
  %v1502 = vld [vmem:[%s3 + $0x448] sm:$0xf]
  %v1503 = vld [vmem:[%s3 + $0x44c] sm:$0xf]
  %v1504 = vld [vmem:[%s3 + $0x450] sm:$0xf]
  %v1505 = vld [vmem:[%s3 + $0x454] sm:$0xf]
  %v1506 = vld [vmem:[%s3 + $0x458] sm:$0xf]
  %v1507 = vld [vmem:[%s3 + $0x45c] sm:$0xf]
  %v1508 = vld [vmem:[%s3 + $0x460] sm:$0xf]
  %v1509 = vld [vmem:[%s3 + $0x464] sm:$0xf]
  %v1510 = vld [vmem:[%s3 + $0x468] sm:$0xf]
  %v1511 = vld [vmem:[%s3 + $0x46c] sm:$0xf]
  %v1512 = vld [vmem:[%s3 + $0x470] sm:$0xf]
  %v1513 = vld [vmem:[%s3 + $0x474] sm:$0xf]
  %v1514 = vld [vmem:[%s3 + $0x478] sm:$0xf]
  %v1515 = vld [vmem:[%s3 + $0x47c] sm:$0xf]
  %v1516 = vld [vmem:[%s3 + $0x480] sm:$0xf]
  %v1517 = vld [vmem:[%s3 + $0x484] sm:$0xf]
  %v1518 = vld [vmem:[%s3 + $0x488] sm:$0xf]
  %v1519 = vld [vmem:[%s3 + $0x48c] sm:$0xf]
  %v1520 = vld [vmem:[%s3 + $0x490] sm:$0xf]
  %v1521 = vld [vmem:[%s3 + $0x494] sm:$0xf]
  %v1522 = vld [vmem:[%s3 + $0x498] sm:$0xf]
  %v1523 = vld [vmem:[%s3 + $0x49c] sm:$0xf]
  %v1524 = vld [vmem:[%s3 + $0x4a0] sm:$0xf]
  %v1525 = vld [vmem:[%s3 + $0x4a4] sm:$0xf]
  %v1526 = vld [vmem:[%s3 + $0x4a8] sm:$0xf]
  %v1527 = vld [vmem:[%s3 + $0x4ac] sm:$0xf]
  %v1528 = vld [vmem:[%s3 + $0x4b0] sm:$0xf]
  %v1529 = vld [vmem:[%s3 + $0x4b4] sm:$0xf]
  %v1530 = vld [vmem:[%s3 + $0x4b8] sm:$0xf]
  %v1531 = vld [vmem:[%s3 + $0x4bc] sm:$0xf]
  %v1532 = vld [vmem:[%s3 + $0x4c0] sm:$0xf]
  %v1533 = vld [vmem:[%s3 + $0x4c4] sm:$0xf]
  %v1534 = vld [vmem:[%s3 + $0x4c8] sm:$0xf]
  %v1535 = vld [vmem:[%s3 + $0x4cc] sm:$0xf]
  %v1536 = vld [vmem:[%s3 + $0x4d0] sm:$0xf]
  %v1537 = vld [vmem:[%s3 + $0x4d4] sm:$0xf]
  %v1538 = vld [vmem:[%s3 + $0x4d8] sm:$0xf]
  %v1539 = vld [vmem:[%s3 + $0x4dc] sm:$0xf]
  %v1540 = vld [vmem:[%s3 + $0x4e0] sm:$0xf]
  %v1541 = vld [vmem:[%s3 + $0x4e4] sm:$0xf]
  %v1542 = vld [vmem:[%s3 + $0x4e8] sm:$0xf]
  %v1543 = vld [vmem:[%s3 + $0x4ec] sm:$0xf]
  %v1544 = vld [vmem:[%s3 + $0x4f0] sm:$0xf]
  %v1545 = vld [vmem:[%s3 + $0x4f4] sm:$0xf]
  %v1546 = vld [vmem:[%s3 + $0x4f8] sm:$0xf]
  %v1547 = vld [vmem:[%s3 + $0x4fc] sm:$0xf]
  %v1548 = vld [vmem:[%s3 + $0x500] sm:$0xf]
  %v1549 = vld [vmem:[%s3 + $0x504] sm:$0xf]
  %v1550 = vld [vmem:[%s3 + $0x508] sm:$0xf]
  %v1551 = vld [vmem:[%s3 + $0x50c] sm:$0xf]
  %v1552 = vld [vmem:[%s3 + $0x510] sm:$0xf]
  %v1553 = vld [vmem:[%s3 + $0x514] sm:$0xf]
  %v1554 = vld [vmem:[%s3 + $0x518] sm:$0xf]
  %v1555 = vld [vmem:[%s3 + $0x51c] sm:$0xf]
  %v1556 = vld [vmem:[%s3 + $0x520] sm:$0xf]
  %v1557 = vld [vmem:[%s3 + $0x524] sm:$0xf]
  %v1558 = vld [vmem:[%s3 + $0x528] sm:$0xf]
  %v1559 = vld [vmem:[%s3 + $0x52c] sm:$0xf]
  %v1560 = vld [vmem:[%s3 + $0x530] sm:$0xf]
  %v1561 = vld [vmem:[%s3 + $0x534] sm:$0xf]
  %v1562 = vld [vmem:[%s3 + $0x538] sm:$0xf]
  %v1563 = vld [vmem:[%s3 + $0x53c] sm:$0xf]
  %v1564 = vld [vmem:[%s3 + $0x540] sm:$0xf]
  %v1565 = vld [vmem:[%s3 + $0x544] sm:$0xf]
  %v1566 = vld [vmem:[%s3 + $0x548] sm:$0xf]
  %v1567 = vld [vmem:[%s3 + $0x54c] sm:$0xf]
  %v1568 = vld [vmem:[%s3 + $0x550] sm:$0xf]
  %v1569 = vld [vmem:[%s3 + $0x554] sm:$0xf]
  %v1570 = vld [vmem:[%s3 + $0x558] sm:$0xf]
  %v1571 = vld [vmem:[%s3 + $0x55c] sm:$0xf]
  %v1572 = vld [vmem:[%s3 + $0x560] sm:$0xf]
  %v1573 = vld [vmem:[%s3 + $0x564] sm:$0xf]
  %v1574 = vld [vmem:[%s3 + $0x568] sm:$0xf]
  %v1575 = vld [vmem:[%s3 + $0x56c] sm:$0xf]
  %v1576 = vld [vmem:[%s3 + $0x570] sm:$0xf]
  %v1577 = vld [vmem:[%s3 + $0x574] sm:$0xf]
  %v1578 = vld [vmem:[%s3 + $0x578] sm:$0xf]
  %v1579 = vld [vmem:[%s3 + $0x57c] sm:$0xf]
  %v1580 = vld [vmem:[%s3 + $0x580] sm:$0xf]
  %v1581 = vld [vmem:[%s3 + $0x584] sm:$0xf]
  %v1582 = vld [vmem:[%s3 + $0x588] sm:$0xf]
  %v1583 = vld [vmem:[%s3 + $0x58c] sm:$0xf]
  %v1584 = vld [vmem:[%s3 + $0x590] sm:$0xf]
  %v1585 = vld [vmem:[%s3 + $0x594] sm:$0xf]
  %v1586 = vld [vmem:[%s3 + $0x598] sm:$0xf]
  %v1587 = vld [vmem:[%s3 + $0x59c] sm:$0xf]
  %v1588 = vld [vmem:[%s3 + $0x5a0] sm:$0xf]
  %v1589 = vld [vmem:[%s3 + $0x5a4] sm:$0xf]
  %v1590 = vld [vmem:[%s3 + $0x5a8] sm:$0xf]
  %v1591 = vld [vmem:[%s3 + $0x5ac] sm:$0xf]
  %v1592 = vld [vmem:[%s3 + $0x5b0] sm:$0xf]
  %v1593 = vld [vmem:[%s3 + $0x5b4] sm:$0xf]
  %v1594 = vld [vmem:[%s3 + $0x5b8] sm:$0xf]
  %v1595 = vld [vmem:[%s3 + $0x5bc] sm:$0xf]
  %v1596 = vld [vmem:[%s3 + $0x5c0] sm:$0xf]
  %v1597 = vld [vmem:[%s3 + $0x5c4] sm:$0xf]
  %v1598 = vld [vmem:[%s3 + $0x5c8] sm:$0xf]
  %v1599 = vld [vmem:[%s3 + $0x5cc] sm:$0xf]
  %v1600 = vld [vmem:[%s3 + $0x5d0] sm:$0xf]
  %v1601 = vld [vmem:[%s3 + $0x5d4] sm:$0xf]
  %v1602 = vld [vmem:[%s3 + $0x5d8] sm:$0xf]
  %v1603 = vld [vmem:[%s3 + $0x5dc] sm:$0xf]
  %v1604 = vld [vmem:[%s3 + $0x5e0] sm:$0xf]
  %v1605 = vld [vmem:[%s3 + $0x5e4] sm:$0xf]
  %v1606 = vld [vmem:[%s3 + $0x5e8] sm:$0xf]
  %v1607 = vld [vmem:[%s3 + $0x5ec] sm:$0xf]
  %v1608 = vld [vmem:[%s3 + $0x5f0] sm:$0xf]
  %v1609 = vld [vmem:[%s3 + $0x5f4] sm:$0xf]
  %v1610 = vld [vmem:[%s3 + $0x5f8] sm:$0xf]
  %v1611 = vld [vmem:[%s3 + $0x5fc] sm:$0xf]
  %v1612 = vld [vmem:[%s4] sm:$0x1]
  %v1614 = vlaneseq
  %v1615 = vshrl.u32 %v1614, 7
  %v1616 = vsub.s32 0, %v1615
  %v1617 = vrot.slane %v1612, %v1616
  %v2003 = vunpack.c.l.b16 %v1228
  %v2004 = vunpack.c.l.b16 %v1229
  %v2005 = vunpack.c.l.b16 %v1230
  %v2006 = vunpack.c.l.b16 %v1231
  %v2007 = vunpack.c.l.b16 %v1232
  %v2008 = vunpack.c.l.b16 %v1233
  %v2009 = vunpack.c.l.b16 %v1234
  %v2010 = vunpack.c.l.b16 %v1235
  %v2011 = vunpack.c.l.b16 %v1236
  %v2012 = vunpack.c.l.b16 %v1237
  %v2013 = vunpack.c.l.b16 %v1238
  %v2014 = vunpack.c.l.b16 %v1239
  %v2015 = vunpack.c.l.b16 %v1240
  %v2016 = vunpack.c.l.b16 %v1241
  %v2017 = vunpack.c.l.b16 %v1242
  %v2018 = vunpack.c.l.b16 %v1243
  %v2019 = vunpack.c.l.b16 %v1244
  %v2020 = vunpack.c.l.b16 %v1245
  %v2021 = vunpack.c.l.b16 %v1246
  %v2022 = vunpack.c.l.b16 %v1247
  %v2023 = vunpack.c.l.b16 %v1248
  %v2024 = vunpack.c.l.b16 %v1249
  %v2025 = vunpack.c.l.b16 %v1250
  %v2026 = vunpack.c.l.b16 %v1251
  %v2027 = vunpack.c.l.b16 %v1252
  %v2028 = vunpack.c.l.b16 %v1253
  %v2029 = vunpack.c.l.b16 %v1254
  %v2030 = vunpack.c.l.b16 %v1255
  %v2031 = vunpack.c.l.b16 %v1256
  %v2032 = vunpack.c.l.b16 %v1257
  %v2033 = vunpack.c.l.b16 %v1258
  %v2034 = vunpack.c.l.b16 %v1259
  %v2035 = vunpack.c.l.b16 %v1260
  %v2036 = vunpack.c.l.b16 %v1261
  %v2037 = vunpack.c.l.b16 %v1262
  %v2038 = vunpack.c.l.b16 %v1263
  %v2039 = vunpack.c.l.b16 %v1264
  %v2040 = vunpack.c.l.b16 %v1265
  %v2041 = vunpack.c.l.b16 %v1266
  %v2042 = vunpack.c.l.b16 %v1267
  %v2043 = vunpack.c.l.b16 %v1268
  %v2044 = vunpack.c.l.b16 %v1269
  %v2045 = vunpack.c.l.b16 %v1270
  %v2046 = vunpack.c.l.b16 %v1271
  %v2047 = vunpack.c.l.b16 %v1272
  %v2048 = vunpack.c.l.b16 %v1273
  %v2049 = vunpack.c.l.b16 %v1274
  %v2050 = vunpack.c.l.b16 %v1275
  %v2051 = vunpack.c.l.b16 %v1276
  %v2052 = vunpack.c.l.b16 %v1277
  %v2053 = vunpack.c.l.b16 %v1278
  %v2054 = vunpack.c.l.b16 %v1279
  %v2055 = vunpack.c.l.b16 %v1280
  %v2056 = vunpack.c.l.b16 %v1281
  %v2057 = vunpack.c.l.b16 %v1282
  %v2058 = vunpack.c.l.b16 %v1283
  %v2059 = vunpack.c.l.b16 %v1284
  %v2060 = vunpack.c.l.b16 %v1285
  %v2061 = vunpack.c.l.b16 %v1286
  %v2062 = vunpack.c.l.b16 %v1287
  %v2063 = vunpack.c.l.b16 %v1288
  %v2064 = vunpack.c.l.b16 %v1289
  %v2065 = vunpack.c.l.b16 %v1290
  %v2066 = vunpack.c.l.b16 %v1291
  %v2067 = vunpack.c.l.b16 %v1292
  %v2068 = vunpack.c.l.b16 %v1293
  %v2069 = vunpack.c.l.b16 %v1294
  %v2070 = vunpack.c.l.b16 %v1295
  %v2071 = vunpack.c.l.b16 %v1296
  %v2072 = vunpack.c.l.b16 %v1297
  %v2073 = vunpack.c.l.b16 %v1298
  %v2074 = vunpack.c.l.b16 %v1299
  %v2075 = vunpack.c.l.b16 %v1300
  %v2076 = vunpack.c.l.b16 %v1301
  %v2077 = vunpack.c.l.b16 %v1302
  %v2078 = vunpack.c.l.b16 %v1303
  %v2079 = vunpack.c.l.b16 %v1304
  %v2080 = vunpack.c.l.b16 %v1305
  %v2081 = vunpack.c.l.b16 %v1306
  %v2082 = vunpack.c.l.b16 %v1307
  %v2083 = vunpack.c.l.b16 %v1308
  %v2084 = vunpack.c.l.b16 %v1309
  %v2085 = vunpack.c.l.b16 %v1310
  %v2086 = vunpack.c.l.b16 %v1311
  %v2087 = vunpack.c.l.b16 %v1312
  %v2088 = vunpack.c.l.b16 %v1313
  %v2089 = vunpack.c.l.b16 %v1314
  %v2090 = vunpack.c.l.b16 %v1315
  %v2091 = vunpack.c.l.b16 %v1316
  %v2092 = vunpack.c.l.b16 %v1317
  %v2093 = vunpack.c.l.b16 %v1318
  %v2094 = vunpack.c.l.b16 %v1319
  %v2095 = vunpack.c.l.b16 %v1320
  %v2096 = vunpack.c.l.b16 %v1321
  %v2097 = vunpack.c.l.b16 %v1322
  %v2098 = vunpack.c.l.b16 %v1323
  %v2099 = vunpack.c.l.b16 %v1324
  %v2100 = vunpack.c.l.b16 %v1325
  %v2101 = vunpack.c.l.b16 %v1326
  %v2102 = vunpack.c.l.b16 %v1327
  %v2103 = vunpack.c.l.b16 %v1328
  %v2104 = vunpack.c.l.b16 %v1329
  %v2105 = vunpack.c.l.b16 %v1330
  %v2106 = vunpack.c.l.b16 %v1331
  %v2107 = vunpack.c.l.b16 %v1332
  %v2108 = vunpack.c.l.b16 %v1333
  %v2109 = vunpack.c.l.b16 %v1334
  %v2110 = vunpack.c.l.b16 %v1335
  %v2111 = vunpack.c.l.b16 %v1336
  %v2112 = vunpack.c.l.b16 %v1337
  %v2113 = vunpack.c.l.b16 %v1338
  %v2114 = vunpack.c.l.b16 %v1339
  %v2115 = vunpack.c.l.b16 %v1340
  %v2116 = vunpack.c.l.b16 %v1341
  %v2117 = vunpack.c.l.b16 %v1342
  %v2118 = vunpack.c.l.b16 %v1343
  %v2119 = vunpack.c.l.b16 %v1344
  %v2120 = vunpack.c.l.b16 %v1345
  %v2121 = vunpack.c.l.b16 %v1346
  %v2122 = vunpack.c.l.b16 %v1347
  %v2123 = vunpack.c.l.b16 %v1348
  %v2124 = vunpack.c.l.b16 %v1349
  %v2125 = vunpack.c.l.b16 %v1350
  %v2126 = vunpack.c.l.b16 %v1351
  %v2127 = vunpack.c.l.b16 %v1352
  %v2128 = vunpack.c.l.b16 %v1353
  %v2129 = vunpack.c.l.b16 %v1354
  %v2130 = vunpack.c.l.b16 %v1355
  %v2131 = vunpack.c.l.b16 %v1356
  %v2132 = vunpack.c.l.b16 %v1357
  %v2133 = vunpack.c.l.b16 %v1358
  %v2134 = vunpack.c.l.b16 %v1359
  %v2135 = vunpack.c.l.b16 %v1360
  %v2136 = vunpack.c.l.b16 %v1361
  %v2137 = vunpack.c.l.b16 %v1362
  %v2138 = vunpack.c.l.b16 %v1363
  %v2139 = vunpack.c.l.b16 %v1364
  %v2140 = vunpack.c.l.b16 %v1365
  %v2141 = vunpack.c.l.b16 %v1366
  %v2142 = vunpack.c.l.b16 %v1367
  %v2143 = vunpack.c.l.b16 %v1368
  %v2144 = vunpack.c.l.b16 %v1369
  %v2145 = vunpack.c.l.b16 %v1370
  %v2146 = vunpack.c.l.b16 %v1371
  %v2147 = vunpack.c.l.b16 %v1372
  %v2148 = vunpack.c.l.b16 %v1373
  %v2149 = vunpack.c.l.b16 %v1374
  %v2150 = vunpack.c.l.b16 %v1375
  %v2151 = vunpack.c.l.b16 %v1376
  %v2152 = vunpack.c.l.b16 %v1377
  %v2153 = vunpack.c.l.b16 %v1378
  %v2154 = vunpack.c.l.b16 %v1379
  %v2155 = vunpack.c.l.b16 %v1380
  %v2156 = vunpack.c.l.b16 %v1381
  %v2157 = vunpack.c.l.b16 %v1382
  %v2158 = vunpack.c.l.b16 %v1383
  %v2159 = vunpack.c.l.b16 %v1384
  %v2160 = vunpack.c.l.b16 %v1385
  %v2161 = vunpack.c.l.b16 %v1386
  %v2162 = vunpack.c.l.b16 %v1387
  %v2163 = vunpack.c.l.b16 %v1388
  %v2164 = vunpack.c.l.b16 %v1389
  %v2165 = vunpack.c.l.b16 %v1390
  %v2166 = vunpack.c.l.b16 %v1391
  %v2167 = vunpack.c.l.b16 %v1392
  %v2168 = vunpack.c.l.b16 %v1393
  %v2169 = vunpack.c.l.b16 %v1394
  %v2170 = vunpack.c.l.b16 %v1395
  %v2171 = vunpack.c.l.b16 %v1396
  %v2172 = vunpack.c.l.b16 %v1397
  %v2173 = vunpack.c.l.b16 %v1398
  %v2174 = vunpack.c.l.b16 %v1399
  %v2175 = vunpack.c.l.b16 %v1400
  %v2176 = vunpack.c.l.b16 %v1401
  %v2177 = vunpack.c.l.b16 %v1402
  %v2178 = vunpack.c.l.b16 %v1403
  %v2179 = vunpack.c.l.b16 %v1404
  %v2180 = vunpack.c.l.b16 %v1405
  %v2181 = vunpack.c.l.b16 %v1406
  %v2182 = vunpack.c.l.b16 %v1407
  %v2183 = vunpack.c.l.b16 %v1408
  %v2184 = vunpack.c.l.b16 %v1409
  %v2185 = vunpack.c.l.b16 %v1410
  %v2186 = vunpack.c.l.b16 %v1411
  %v2187 = vunpack.c.l.b16 %v1412
  %v2188 = vunpack.c.l.b16 %v1413
  %v2189 = vunpack.c.l.b16 %v1414
  %v2190 = vunpack.c.l.b16 %v1415
  %v2191 = vunpack.c.l.b16 %v1416
  %v2192 = vunpack.c.l.b16 %v1417
  %v2193 = vunpack.c.l.b16 %v1418
  %v2194 = vunpack.c.l.b16 %v1419
  %v2195 = vunpack.c.l.b16 %v1420
  %v2196 = vunpack.c.l.b16 %v1421
  %v2197 = vunpack.c.l.b16 %v1422
  %v2198 = vunpack.c.l.b16 %v1423
  %v2199 = vunpack.c.l.b16 %v1424
  %v2200 = vunpack.c.l.b16 %v1425
  %v2201 = vunpack.c.l.b16 %v1426
  %v2202 = vunpack.c.l.b16 %v1427
  %v2203 = vunpack.c.l.b16 %v1428
  %v2204 = vunpack.c.l.b16 %v1429
  %v2205 = vunpack.c.l.b16 %v1430
  %v2206 = vunpack.c.l.b16 %v1431
  %v2207 = vunpack.c.l.b16 %v1432
  %v2208 = vunpack.c.l.b16 %v1433
  %v2209 = vunpack.c.l.b16 %v1434
  %v2210 = vunpack.c.l.b16 %v1435
  %v2211 = vunpack.c.l.b16 %v1436
  %v2212 = vunpack.c.l.b16 %v1437
  %v2213 = vunpack.c.l.b16 %v1438
  %v2214 = vunpack.c.l.b16 %v1439
  %v2215 = vunpack.c.l.b16 %v1440
  %v2216 = vunpack.c.l.b16 %v1441
  %v2217 = vunpack.c.l.b16 %v1442
  %v2218 = vunpack.c.l.b16 %v1443
  %v2219 = vunpack.c.l.b16 %v1444
  %v2220 = vunpack.c.l.b16 %v1445
  %v2221 = vunpack.c.l.b16 %v1446
  %v2222 = vunpack.c.l.b16 %v1447
  %v2223 = vunpack.c.l.b16 %v1448
  %v2224 = vunpack.c.l.b16 %v1449
  %v2225 = vunpack.c.l.b16 %v1450
  %v2226 = vunpack.c.l.b16 %v1451
  %v2227 = vunpack.c.l.b16 %v1452
  %v2228 = vunpack.c.l.b16 %v1453
  %v2229 = vunpack.c.l.b16 %v1454
  %v2230 = vunpack.c.l.b16 %v1455
  %v2231 = vunpack.c.l.b16 %v1456
  %v2232 = vunpack.c.l.b16 %v1457
  %v2233 = vunpack.c.l.b16 %v1458
  %v2234 = vunpack.c.l.b16 %v1459
  %v2235 = vunpack.c.l.b16 %v1460
  %v2236 = vunpack.c.l.b16 %v1461
  %v2237 = vunpack.c.l.b16 %v1462
  %v2238 = vunpack.c.l.b16 %v1463
  %v2239 = vunpack.c.l.b16 %v1464
  %v2240 = vunpack.c.l.b16 %v1465
  %v2241 = vunpack.c.l.b16 %v1466
  %v2242 = vunpack.c.l.b16 %v1467
  %v2243 = vunpack.c.l.b16 %v1468
  %v2244 = vunpack.c.l.b16 %v1469
  %v2245 = vunpack.c.l.b16 %v1470
  %v2246 = vunpack.c.l.b16 %v1471
  %v2247 = vunpack.c.l.b16 %v1472
  %v2248 = vunpack.c.l.b16 %v1473
  %v2249 = vunpack.c.l.b16 %v1474
  %v2250 = vunpack.c.l.b16 %v1475
  %v2251 = vunpack.c.l.b16 %v1476
  %v2252 = vunpack.c.l.b16 %v1477
  %v2253 = vunpack.c.l.b16 %v1478
  %v2254 = vunpack.c.l.b16 %v1479
  %v2255 = vunpack.c.l.b16 %v1480
  %v2256 = vunpack.c.l.b16 %v1481
  %v2257 = vunpack.c.l.b16 %v1482
  %v2258 = vunpack.c.l.b16 %v1483
  %v2259 = vunpack.c.l.b16 %v1484
  %v2260 = vunpack.c.l.b16 %v1485
  %v2261 = vunpack.c.l.b16 %v1486
  %v2262 = vunpack.c.l.b16 %v1487
  %v2263 = vunpack.c.l.b16 %v1488
  %v2264 = vunpack.c.l.b16 %v1489
  %v2265 = vunpack.c.l.b16 %v1490
  %v2266 = vunpack.c.l.b16 %v1491
  %v2267 = vunpack.c.l.b16 %v1492
  %v2268 = vunpack.c.l.b16 %v1493
  %v2269 = vunpack.c.l.b16 %v1494
  %v2270 = vunpack.c.l.b16 %v1495
  %v2271 = vunpack.c.l.b16 %v1496
  %v2272 = vunpack.c.l.b16 %v1497
  %v2273 = vunpack.c.l.b16 %v1498
  %v2274 = vunpack.c.l.b16 %v1499
  %v2275 = vunpack.c.l.b16 %v1500
  %v2276 = vunpack.c.l.b16 %v1501
  %v2277 = vunpack.c.l.b16 %v1502
  %v2278 = vunpack.c.l.b16 %v1503
  %v2279 = vunpack.c.l.b16 %v1504
  %v2280 = vunpack.c.l.b16 %v1505
  %v2281 = vunpack.c.l.b16 %v1506
  %v2282 = vunpack.c.l.b16 %v1507
  %v2283 = vunpack.c.l.b16 %v1508
  %v2284 = vunpack.c.l.b16 %v1509
  %v2285 = vunpack.c.l.b16 %v1510
  %v2286 = vunpack.c.l.b16 %v1511
  %v2287 = vunpack.c.l.b16 %v1512
  %v2288 = vunpack.c.l.b16 %v1513
  %v2289 = vunpack.c.l.b16 %v1514
  %v2290 = vunpack.c.l.b16 %v1515
  %v2291 = vunpack.c.l.b16 %v1516
  %v2292 = vunpack.c.l.b16 %v1517
  %v2293 = vunpack.c.l.b16 %v1518
  %v2294 = vunpack.c.l.b16 %v1519
  %v2295 = vunpack.c.l.b16 %v1520
  %v2296 = vunpack.c.l.b16 %v1521
  %v2297 = vunpack.c.l.b16 %v1522
  %v2298 = vunpack.c.l.b16 %v1523
  %v2299 = vunpack.c.l.b16 %v1524
  %v2300 = vunpack.c.l.b16 %v1525
  %v2301 = vunpack.c.l.b16 %v1526
  %v2302 = vunpack.c.l.b16 %v1527
  %v2303 = vunpack.c.l.b16 %v1528
  %v2304 = vunpack.c.l.b16 %v1529
  %v2305 = vunpack.c.l.b16 %v1530
  %v2306 = vunpack.c.l.b16 %v1531
  %v2307 = vunpack.c.l.b16 %v1532
  %v2308 = vunpack.c.l.b16 %v1533
  %v2309 = vunpack.c.l.b16 %v1534
  %v2310 = vunpack.c.l.b16 %v1535
  %v2311 = vunpack.c.l.b16 %v1536
  %v2312 = vunpack.c.l.b16 %v1537
  %v2313 = vunpack.c.l.b16 %v1538
  %v2314 = vunpack.c.l.b16 %v1539
  %v2315 = vunpack.c.l.b16 %v1540
  %v2316 = vunpack.c.l.b16 %v1541
  %v2317 = vunpack.c.l.b16 %v1542
  %v2318 = vunpack.c.l.b16 %v1543
  %v2319 = vunpack.c.l.b16 %v1544
  %v2320 = vunpack.c.l.b16 %v1545
  %v2321 = vunpack.c.l.b16 %v1546
  %v2322 = vunpack.c.l.b16 %v1547
  %v2323 = vunpack.c.l.b16 %v1548
  %v2324 = vunpack.c.l.b16 %v1549
  %v2325 = vunpack.c.l.b16 %v1550
  %v2326 = vunpack.c.l.b16 %v1551
  %v2327 = vunpack.c.l.b16 %v1552
  %v2328 = vunpack.c.l.b16 %v1553
  %v2329 = vunpack.c.l.b16 %v1554
  %v2330 = vunpack.c.l.b16 %v1555
  %v2331 = vunpack.c.l.b16 %v1556
  %v2332 = vunpack.c.l.b16 %v1557
  %v2333 = vunpack.c.l.b16 %v1558
  %v2334 = vunpack.c.l.b16 %v1559
  %v2335 = vunpack.c.l.b16 %v1560
  %v2336 = vunpack.c.l.b16 %v1561
  %v2337 = vunpack.c.l.b16 %v1562
  %v2338 = vunpack.c.l.b16 %v1563
  %v2339 = vunpack.c.l.b16 %v1564
  %v2340 = vunpack.c.l.b16 %v1565
  %v2341 = vunpack.c.l.b16 %v1566
  %v2342 = vunpack.c.l.b16 %v1567
  %v2343 = vunpack.c.l.b16 %v1568
  %v2344 = vunpack.c.l.b16 %v1569
  %v2345 = vunpack.c.l.b16 %v1570
  %v2346 = vunpack.c.l.b16 %v1571
  %v2347 = vunpack.c.l.b16 %v1572
  %v2348 = vunpack.c.l.b16 %v1573
  %v2349 = vunpack.c.l.b16 %v1574
  %v2350 = vunpack.c.l.b16 %v1575
  %v2351 = vunpack.c.l.b16 %v1576
  %v2352 = vunpack.c.l.b16 %v1577
  %v2353 = vunpack.c.l.b16 %v1578
  %v2354 = vunpack.c.l.b16 %v1579
  %v2355 = vunpack.c.l.b16 %v1580
  %v2356 = vunpack.c.l.b16 %v1581
  %v2357 = vunpack.c.l.b16 %v1582
  %v2358 = vunpack.c.l.b16 %v1583
  %v2359 = vunpack.c.l.b16 %v1584
  %v2360 = vunpack.c.l.b16 %v1585
  %v2361 = vunpack.c.l.b16 %v1586
  %v2362 = vunpack.c.l.b16 %v1587
  %v2363 = vunpack.c.l.b16 %v1588
  %v2364 = vunpack.c.l.b16 %v1589
  %v2365 = vunpack.c.l.b16 %v1590
  %v2366 = vunpack.c.l.b16 %v1591
  %v2367 = vunpack.c.l.b16 %v1592
  %v2368 = vunpack.c.l.b16 %v1593
  %v2369 = vunpack.c.l.b16 %v1594
  %v2370 = vunpack.c.l.b16 %v1595
  %v2371 = vunpack.c.l.b16 %v1596
  %v2372 = vunpack.c.l.b16 %v1597
  %v2373 = vunpack.c.l.b16 %v1598
  %v2374 = vunpack.c.l.b16 %v1599
  %v2375 = vunpack.c.l.b16 %v1600
  %v2376 = vunpack.c.l.b16 %v1601
  %v2377 = vunpack.c.l.b16 %v1602
  %v2378 = vunpack.c.l.b16 %v1603
  %v2379 = vunpack.c.l.b16 %v1604
  %v2380 = vunpack.c.l.b16 %v1605
  %v2381 = vunpack.c.l.b16 %v1606
  %v2382 = vunpack.c.l.b16 %v1607
  %v2383 = vunpack.c.l.b16 %v1608
  %v2384 = vunpack.c.l.b16 %v1609
  %v2385 = vunpack.c.l.b16 %v1610
  %v2386 = vunpack.c.l.b16 %v1611
  %v2387 = vpack.c.b16 %v2004, %v2003
  %v2388 = vpack.c.b16 %v2006, %v2005
  %v2389 = vpack.c.b16 %v2008, %v2007
  %v2390 = vpack.c.b16 %v2010, %v2009
  %v2391 = vpack.c.b16 %v2012, %v2011
  %v2392 = vpack.c.b16 %v2014, %v2013
  %v2393 = vpack.c.b16 %v2016, %v2015
  %v2394 = vpack.c.b16 %v2018, %v2017
  %v2395 = vpack.c.b16 %v2020, %v2019
  %v2396 = vpack.c.b16 %v2022, %v2021
  %v2397 = vpack.c.b16 %v2024, %v2023
  %v2398 = vpack.c.b16 %v2026, %v2025
  %v2399 = vpack.c.b16 %v2028, %v2027
  %v2400 = vpack.c.b16 %v2030, %v2029
  %v2401 = vpack.c.b16 %v2032, %v2031
  %v2402 = vpack.c.b16 %v2034, %v2033
  %v2403 = vpack.c.b16 %v2036, %v2035
  %v2404 = vpack.c.b16 %v2038, %v2037
  %v2405 = vpack.c.b16 %v2040, %v2039
  %v2406 = vpack.c.b16 %v2042, %v2041
  %v2407 = vpack.c.b16 %v2044, %v2043
  %v2408 = vpack.c.b16 %v2046, %v2045
  %v2409 = vpack.c.b16 %v2048, %v2047
  %v2410 = vpack.c.b16 %v2050, %v2049
  %v2411 = vpack.c.b16 %v2052, %v2051
  %v2412 = vpack.c.b16 %v2054, %v2053
  %v2413 = vpack.c.b16 %v2056, %v2055
  %v2414 = vpack.c.b16 %v2058, %v2057
  %v2415 = vpack.c.b16 %v2060, %v2059
  %v2416 = vpack.c.b16 %v2062, %v2061
  %v2417 = vpack.c.b16 %v2064, %v2063
  %v2418 = vpack.c.b16 %v2066, %v2065
  %v2419 = vpack.c.b16 %v2068, %v2067
  %v2420 = vpack.c.b16 %v2070, %v2069
  %v2421 = vpack.c.b16 %v2072, %v2071
  %v2422 = vpack.c.b16 %v2074, %v2073
  %v2423 = vpack.c.b16 %v2076, %v2075
  %v2424 = vpack.c.b16 %v2078, %v2077
  %v2425 = vpack.c.b16 %v2080, %v2079
  %v2426 = vpack.c.b16 %v2082, %v2081
  %v2427 = vpack.c.b16 %v2084, %v2083
  %v2428 = vpack.c.b16 %v2086, %v2085
  %v2429 = vpack.c.b16 %v2088, %v2087
  %v2430 = vpack.c.b16 %v2090, %v2089
  %v2431 = vpack.c.b16 %v2092, %v2091
  %v2432 = vpack.c.b16 %v2094, %v2093
  %v2433 = vpack.c.b16 %v2096, %v2095
  %v2434 = vpack.c.b16 %v2098, %v2097
  %v2435 = vpack.c.b16 %v2100, %v2099
  %v2436 = vpack.c.b16 %v2102, %v2101
  %v2437 = vpack.c.b16 %v2104, %v2103
  %v2438 = vpack.c.b16 %v2106, %v2105
  %v2439 = vpack.c.b16 %v2108, %v2107
  %v2440 = vpack.c.b16 %v2110, %v2109
  %v2441 = vpack.c.b16 %v2112, %v2111
  %v2442 = vpack.c.b16 %v2114, %v2113
  %v2443 = vpack.c.b16 %v2116, %v2115
  %v2444 = vpack.c.b16 %v2118, %v2117
  %v2445 = vpack.c.b16 %v2120, %v2119
  %v2446 = vpack.c.b16 %v2122, %v2121
  %v2447 = vpack.c.b16 %v2124, %v2123
  %v2448 = vpack.c.b16 %v2126, %v2125
  %v2449 = vpack.c.b16 %v2128, %v2127
  %v2450 = vpack.c.b16 %v2130, %v2129
  %v2451 = vpack.c.b16 %v2132, %v2131
  %v2452 = vpack.c.b16 %v2134, %v2133
  %v2453 = vpack.c.b16 %v2136, %v2135
  %v2454 = vpack.c.b16 %v2138, %v2137
  %v2455 = vpack.c.b16 %v2140, %v2139
  %v2456 = vpack.c.b16 %v2142, %v2141
  %v2457 = vpack.c.b16 %v2144, %v2143
  %v2458 = vpack.c.b16 %v2146, %v2145
  %v2459 = vpack.c.b16 %v2148, %v2147
  %v2460 = vpack.c.b16 %v2150, %v2149
  %v2461 = vpack.c.b16 %v2152, %v2151
  %v2462 = vpack.c.b16 %v2154, %v2153
  %v2463 = vpack.c.b16 %v2156, %v2155
  %v2464 = vpack.c.b16 %v2158, %v2157
  %v2465 = vpack.c.b16 %v2160, %v2159
  %v2466 = vpack.c.b16 %v2162, %v2161
  %v2467 = vpack.c.b16 %v2164, %v2163
  %v2468 = vpack.c.b16 %v2166, %v2165
  %v2469 = vpack.c.b16 %v2168, %v2167
  %v2470 = vpack.c.b16 %v2170, %v2169
  %v2471 = vpack.c.b16 %v2172, %v2171
  %v2472 = vpack.c.b16 %v2174, %v2173
  %v2473 = vpack.c.b16 %v2176, %v2175
  %v2474 = vpack.c.b16 %v2178, %v2177
  %v2475 = vpack.c.b16 %v2180, %v2179
  %v2476 = vpack.c.b16 %v2182, %v2181
  %v2477 = vpack.c.b16 %v2184, %v2183
  %v2478 = vpack.c.b16 %v2186, %v2185
  %v2479 = vpack.c.b16 %v2188, %v2187
  %v2480 = vpack.c.b16 %v2190, %v2189
  %v2481 = vpack.c.b16 %v2192, %v2191
  %v2482 = vpack.c.b16 %v2194, %v2193
  %v2483 = vpack.c.b16 %v2196, %v2195
  %v2484 = vpack.c.b16 %v2198, %v2197
  %v2485 = vpack.c.b16 %v2200, %v2199
  %v2486 = vpack.c.b16 %v2202, %v2201
  %v2487 = vpack.c.b16 %v2204, %v2203
  %v2488 = vpack.c.b16 %v2206, %v2205
  %v2489 = vpack.c.b16 %v2208, %v2207
  %v2490 = vpack.c.b16 %v2210, %v2209
  %v2491 = vpack.c.b16 %v2212, %v2211
  %v2492 = vpack.c.b16 %v2214, %v2213
  %v2493 = vpack.c.b16 %v2216, %v2215
  %v2494 = vpack.c.b16 %v2218, %v2217
  %v2495 = vpack.c.b16 %v2220, %v2219
  %v2496 = vpack.c.b16 %v2222, %v2221
  %v2497 = vpack.c.b16 %v2224, %v2223
  %v2498 = vpack.c.b16 %v2226, %v2225
  %v2499 = vpack.c.b16 %v2228, %v2227
  %v2500 = vpack.c.b16 %v2230, %v2229
  %v2501 = vpack.c.b16 %v2232, %v2231
  %v2502 = vpack.c.b16 %v2234, %v2233
  %v2503 = vpack.c.b16 %v2236, %v2235
  %v2504 = vpack.c.b16 %v2238, %v2237
  %v2505 = vpack.c.b16 %v2240, %v2239
  %v2506 = vpack.c.b16 %v2242, %v2241
  %v2507 = vpack.c.b16 %v2244, %v2243
  %v2508 = vpack.c.b16 %v2246, %v2245
  %v2509 = vpack.c.b16 %v2248, %v2247
  %v2510 = vpack.c.b16 %v2250, %v2249
  %v2511 = vpack.c.b16 %v2252, %v2251
  %v2512 = vpack.c.b16 %v2254, %v2253
  %v2513 = vpack.c.b16 %v2256, %v2255
  %v2514 = vpack.c.b16 %v2258, %v2257
  %v2515 = vpack.c.b16 %v2260, %v2259
  %v2516 = vpack.c.b16 %v2262, %v2261
  %v2517 = vpack.c.b16 %v2264, %v2263
  %v2518 = vpack.c.b16 %v2266, %v2265
  %v2519 = vpack.c.b16 %v2268, %v2267
  %v2520 = vpack.c.b16 %v2270, %v2269
  %v2521 = vpack.c.b16 %v2272, %v2271
  %v2522 = vpack.c.b16 %v2274, %v2273
  %v2523 = vpack.c.b16 %v2276, %v2275
  %v2524 = vpack.c.b16 %v2278, %v2277
  %v2525 = vpack.c.b16 %v2280, %v2279
  %v2526 = vpack.c.b16 %v2282, %v2281
  %v2527 = vpack.c.b16 %v2284, %v2283
  %v2528 = vpack.c.b16 %v2286, %v2285
  %v2529 = vpack.c.b16 %v2288, %v2287
  %v2530 = vpack.c.b16 %v2290, %v2289
  %v2531 = vpack.c.b16 %v2292, %v2291
  %v2532 = vpack.c.b16 %v2294, %v2293
  %v2533 = vpack.c.b16 %v2296, %v2295
  %v2534 = vpack.c.b16 %v2298, %v2297
  %v2535 = vpack.c.b16 %v2300, %v2299
  %v2536 = vpack.c.b16 %v2302, %v2301
  %v2537 = vpack.c.b16 %v2304, %v2303
  %v2538 = vpack.c.b16 %v2306, %v2305
  %v2539 = vpack.c.b16 %v2308, %v2307
  %v2540 = vpack.c.b16 %v2310, %v2309
  %v2541 = vpack.c.b16 %v2312, %v2311
  %v2542 = vpack.c.b16 %v2314, %v2313
  %v2543 = vpack.c.b16 %v2316, %v2315
  %v2544 = vpack.c.b16 %v2318, %v2317
  %v2545 = vpack.c.b16 %v2320, %v2319
  %v2546 = vpack.c.b16 %v2322, %v2321
  %v2547 = vpack.c.b16 %v2324, %v2323
  %v2548 = vpack.c.b16 %v2326, %v2325
  %v2549 = vpack.c.b16 %v2328, %v2327
  %v2550 = vpack.c.b16 %v2330, %v2329
  %v2551 = vpack.c.b16 %v2332, %v2331
  %v2552 = vpack.c.b16 %v2334, %v2333
  %v2553 = vpack.c.b16 %v2336, %v2335
  %v2554 = vpack.c.b16 %v2338, %v2337
  %v2555 = vpack.c.b16 %v2340, %v2339
  %v2556 = vpack.c.b16 %v2342, %v2341
  %v2557 = vpack.c.b16 %v2344, %v2343
  %v2558 = vpack.c.b16 %v2346, %v2345
  %v2559 = vpack.c.b16 %v2348, %v2347
  %v2560 = vpack.c.b16 %v2350, %v2349
  %v2561 = vpack.c.b16 %v2352, %v2351
  %v2562 = vpack.c.b16 %v2354, %v2353
  %v2563 = vpack.c.b16 %v2356, %v2355
  %v2564 = vpack.c.b16 %v2358, %v2357
  %v2565 = vpack.c.b16 %v2360, %v2359
  %v2566 = vpack.c.b16 %v2362, %v2361
  %v2567 = vpack.c.b16 %v2364, %v2363
  %v2568 = vpack.c.b16 %v2366, %v2365
  %v2569 = vpack.c.b16 %v2368, %v2367
  %v2570 = vpack.c.b16 %v2370, %v2369
  %v2571 = vpack.c.b16 %v2372, %v2371
  %v2572 = vpack.c.b16 %v2374, %v2373
  %v2573 = vpack.c.b16 %v2376, %v2375
  %v2574 = vpack.c.b16 %v2378, %v2377
  %v2575 = vpack.c.b16 %v2380, %v2379
  %v2576 = vpack.c.b16 %v2382, %v2381
  %v2577 = vpack.c.b16 %v2384, %v2383
  %v2578 = vpack.c.b16 %v2386, %v2385
  %2771 = vmatprep.subr.bf16.mxu0 0
  %2772 = vmatpush1.bf16.msra.mxu0 %v2387
  %2773 = vmatprep.subr.bf16.mxu0 0
  %2774 = vmatpush1.bf16.msra.mxu0 %v2388
  %2775 = vmatprep.subr.bf16.mxu0 0
  %2776 = vmatpush1.bf16.msra.mxu0 %v2389
  %2777 = vmatprep.subr.bf16.mxu0 0
  %2778 = vmatpush1.bf16.msra.mxu0 %v2390
  %2779 = vmatprep.subr.bf16.mxu0 0
  %2780 = vmatpush1.bf16.msra.mxu0 %v2391
  %2781 = vmatprep.subr.bf16.mxu0 0
  %2782 = vmatpush1.bf16.msra.mxu0 %v2392
  %2783 = vmatprep.subr.bf16.mxu0 0
  %2784 = vmatpush1.bf16.msra.mxu0 %v2393
  %2785 = vmatprep.subr.bf16.mxu0 0
  %2786 = vmatpush1.bf16.msra.mxu0 %v2394
  %2787 = vmatprep.subr.bf16.mxu0 0
  %2788 = vmatpush1.bf16.msra.mxu0 %v2395
  %2789 = vmatprep.subr.bf16.mxu0 0
  %2790 = vmatpush1.bf16.msra.mxu0 %v2396
  %2791 = vmatprep.subr.bf16.mxu0 0
  %2792 = vmatpush1.bf16.msra.mxu0 %v2397
  %2793 = vmatprep.subr.bf16.mxu0 0
  %2794 = vmatpush1.bf16.msra.mxu0 %v2398
  %2795 = vmatprep.subr.bf16.mxu0 0
  %2796 = vmatpush1.bf16.msra.mxu0 %v2399
  %2797 = vmatprep.subr.bf16.mxu0 0
  %2798 = vmatpush1.bf16.msra.mxu0 %v2400
  %2799 = vmatprep.subr.bf16.mxu0 0
  %2800 = vmatpush1.bf16.msra.mxu0 %v2401
  %2801 = vmatprep.subr.bf16.mxu0 0
  %2802 = vmatpush1.bf16.msra.mxu0 %v2402
  %2803 = vmatprep.mubr.bf16.mxu0 %v1205
  %2804 = vmatmul.mubr.bf16.gmra.mrb[0].mxu0 %v1204
  %v2805 = vpop.f32.mrb[0].mxu0
  %v2806 = vadd.f32 %v1617, %v2805
  %v2807 = vpop.f32.mrb[0].mxu0
  %v2808 = vpop.f32.mrb[0].mxu0
  %v2809 = vadd.f32 %v1617, %v2808
  %v2810 = vpop.f32.mrb[0].mxu0
  %2811 = vdwg.mxu0
  %2812 = vmatprep.subr.bf16.mxu0 0
  %2813 = vmatpush1.bf16.msra.mxu0 %v2403
  %2814 = vmatprep.subr.bf16.mxu0 0
  %2815 = vmatpush1.bf16.msra.mxu0 %v2404
  %2816 = vmatprep.subr.bf16.mxu0 0
  %2817 = vmatpush1.bf16.msra.mxu0 %v2405
  %2818 = vmatprep.subr.bf16.mxu0 0
  %2819 = vmatpush1.bf16.msra.mxu0 %v2406
  %2820 = vmatprep.subr.bf16.mxu0 0
  %2821 = vmatpush1.bf16.msra.mxu0 %v2407
  %2822 = vmatprep.subr.bf16.mxu0 0
  %2823 = vmatpush1.bf16.msra.mxu0 %v2408
  %2824 = vmatprep.subr.bf16.mxu0 0
  %2825 = vmatpush1.bf16.msra.mxu0 %v2409
  %2826 = vmatprep.subr.bf16.mxu0 0
  %2827 = vmatpush1.bf16.msra.mxu0 %v2410
  %2828 = vmatprep.subr.bf16.mxu0 0
  %2829 = vmatpush1.bf16.msra.mxu0 %v2411
  %2830 = vmatprep.subr.bf16.mxu0 0
  %2831 = vmatpush1.bf16.msra.mxu0 %v2412
  %2832 = vmatprep.subr.bf16.mxu0 0
  %2833 = vmatpush1.bf16.msra.mxu0 %v2413
  %2834 = vmatprep.subr.bf16.mxu0 0
  %2835 = vmatpush1.bf16.msra.mxu0 %v2414
  %2836 = vmatprep.subr.bf16.mxu0 0
  %2837 = vmatpush1.bf16.msra.mxu0 %v2415
  %2838 = vmatprep.subr.bf16.mxu0 0
  %2839 = vmatpush1.bf16.msra.mxu0 %v2416
  %2840 = vmatprep.subr.bf16.mxu0 0
  %2841 = vmatpush1.bf16.msra.mxu0 %v2417
  %2842 = vmatprep.subr.bf16.mxu0 0
  %2843 = vmatpush1.bf16.msra.mxu0 %v2418
  %2844 = vmatprep.mubr.bf16.mxu0 %v1207
  %2845 = vmatmul.mubr.bf16.gmra.mrb[0].mxu0 %v1206
  %v2846 = vpop.f32.mrb[0].mxu0
  %v2847 = vadd.f32 %v2806, %v2846
  %v2848 = vpop.f32.mrb[0].mxu0
  %v2849 = vpop.f32.mrb[0].mxu0
  %v2850 = vadd.f32 %v2809, %v2849
  %v2851 = vpop.f32.mrb[0].mxu0
  %2852 = vdwg.mxu0
  %2853 = vmatprep.subr.bf16.mxu0 0
  %2854 = vmatpush1.bf16.msra.mxu0 %v2419
  %2855 = vmatprep.subr.bf16.mxu0 0
  %2856 = vmatpush1.bf16.msra.mxu0 %v2420
  %2857 = vmatprep.subr.bf16.mxu0 0
  %2858 = vmatpush1.bf16.msra.mxu0 %v2421
  %2859 = vmatprep.subr.bf16.mxu0 0
  %2860 = vmatpush1.bf16.msra.mxu0 %v2422
  %2861 = vmatprep.subr.bf16.mxu0 0
  %2862 = vmatpush1.bf16.msra.mxu0 %v2423
  %2863 = vmatprep.subr.bf16.mxu0 0
  %2864 = vmatpush1.bf16.msra.mxu0 %v2424
  %2865 = vmatprep.subr.bf16.mxu0 0
  %2866 = vmatpush1.bf16.msra.mxu0 %v2425
  %2867 = vmatprep.subr.bf16.mxu0 0
  %2868 = vmatpush1.bf16.msra.mxu0 %v2426
  %2869 = vmatprep.subr.bf16.mxu0 0
  %2870 = vmatpush1.bf16.msra.mxu0 %v2427
  %2871 = vmatprep.subr.bf16.mxu0 0
  %2872 = vmatpush1.bf16.msra.mxu0 %v2428
  %2873 = vmatprep.subr.bf16.mxu0 0
  %2874 = vmatpush1.bf16.msra.mxu0 %v2429
  %2875 = vmatprep.subr.bf16.mxu0 0
  %2876 = vmatpush1.bf16.msra.mxu0 %v2430
  %2877 = vmatprep.subr.bf16.mxu0 0
  %2878 = vmatpush1.bf16.msra.mxu0 %v2431
  %2879 = vmatprep.subr.bf16.mxu0 0
  %2880 = vmatpush1.bf16.msra.mxu0 %v2432
  %2881 = vmatprep.subr.bf16.mxu0 0
  %2882 = vmatpush1.bf16.msra.mxu0 %v2433
  %2883 = vmatprep.subr.bf16.mxu0 0
  %2884 = vmatpush1.bf16.msra.mxu0 %v2434
  %2885 = vmatprep.mubr.bf16.mxu0 %v1209
  %2886 = vmatmul.mubr.bf16.gmra.mrb[0].mxu0 %v1208
  %v2887 = vpop.f32.mrb[0].mxu0
  %v2888 = vadd.f32 %v2847, %v2887
  %v2889 = vpop.f32.mrb[0].mxu0
  %v2890 = vpop.f32.mrb[0].mxu0
  %v2891 = vadd.f32 %v2850, %v2890
  %v2892 = vpop.f32.mrb[0].mxu0
  %2893 = vdwg.mxu0
  %2894 = vmatprep.subr.bf16.mxu0 0
  %2895 = vmatpush1.bf16.msra.mxu0 %v2435
  %2896 = vmatprep.subr.bf16.mxu0 0
  %2897 = vmatpush1.bf16.msra.mxu0 %v2436
  %2898 = vmatprep.subr.bf16.mxu0 0
  %2899 = vmatpush1.bf16.msra.mxu0 %v2437
  %2900 = vmatprep.subr.bf16.mxu0 0
  %2901 = vmatpush1.bf16.msra.mxu0 %v2438
  %2902 = vmatprep.subr.bf16.mxu0 0
  %2903 = vmatpush1.bf16.msra.mxu0 %v2439
  %2904 = vmatprep.subr.bf16.mxu0 0
  %2905 = vmatpush1.bf16.msra.mxu0 %v2440
  %2906 = vmatprep.subr.bf16.mxu0 0
  %2907 = vmatpush1.bf16.msra.mxu0 %v2441
  %2908 = vmatprep.subr.bf16.mxu0 0
  %2909 = vmatpush1.bf16.msra.mxu0 %v2442
  %2910 = vmatprep.subr.bf16.mxu0 0
  %2911 = vmatpush1.bf16.msra.mxu0 %v2443
  %2912 = vmatprep.subr.bf16.mxu0 0
  %2913 = vmatpush1.bf16.msra.mxu0 %v2444
  %2914 = vmatprep.subr.bf16.mxu0 0
  %2915 = vmatpush1.bf16.msra.mxu0 %v2445
  %2916 = vmatprep.subr.bf16.mxu0 0
  %2917 = vmatpush1.bf16.msra.mxu0 %v2446
  %2918 = vmatprep.subr.bf16.mxu0 0
  %2919 = vmatpush1.bf16.msra.mxu0 %v2447
  %2920 = vmatprep.subr.bf16.mxu0 0
  %2921 = vmatpush1.bf16.msra.mxu0 %v2448
  %2922 = vmatprep.subr.bf16.mxu0 0
  %2923 = vmatpush1.bf16.msra.mxu0 %v2449
  %2924 = vmatprep.subr.bf16.mxu0 0
  %2925 = vmatpush1.bf16.msra.mxu0 %v2450
  %2926 = vmatprep.mubr.bf16.mxu0 %v1211
  %2927 = vmatmul.mubr.bf16.gmra.mrb[0].mxu0 %v1210
  %v2928 = vpop.f32.mrb[0].mxu0
  %v2929 = vadd.f32 %v2888, %v2928
  %v2930 = vpop.f32.mrb[0].mxu0
  %v2931 = vpop.f32.mrb[0].mxu0
  %v2932 = vadd.f32 %v2891, %v2931
  %v2933 = vpop.f32.mrb[0].mxu0
  %2934 = vdwg.mxu0
  %2935 = vmatprep.subr.bf16.mxu0 0
  %2936 = vmatpush1.bf16.msra.mxu0 %v2451
  %2937 = vmatprep.subr.bf16.mxu0 0
  %2938 = vmatpush1.bf16.msra.mxu0 %v2452
  %2939 = vmatprep.subr.bf16.mxu0 0
  %2940 = vmatpush1.bf16.msra.mxu0 %v2453
  %2941 = vmatprep.subr.bf16.mxu0 0
  %2942 = vmatpush1.bf16.msra.mxu0 %v2454
  %2943 = vmatprep.subr.bf16.mxu0 0
  %2944 = vmatpush1.bf16.msra.mxu0 %v2455
  %2945 = vmatprep.subr.bf16.mxu0 0
  %2946 = vmatpush1.bf16.msra.mxu0 %v2456
  %2947 = vmatprep.subr.bf16.mxu0 0
  %2948 = vmatpush1.bf16.msra.mxu0 %v2457
  %2949 = vmatprep.subr.bf16.mxu0 0
  %2950 = vmatpush1.bf16.msra.mxu0 %v2458
  %2951 = vmatprep.subr.bf16.mxu0 0
  %2952 = vmatpush1.bf16.msra.mxu0 %v2459
  %2953 = vmatprep.subr.bf16.mxu0 0
  %2954 = vmatpush1.bf16.msra.mxu0 %v2460
  %2955 = vmatprep.subr.bf16.mxu0 0
  %2956 = vmatpush1.bf16.msra.mxu0 %v2461
  %2957 = vmatprep.subr.bf16.mxu0 0
  %2958 = vmatpush1.bf16.msra.mxu0 %v2462
  %2959 = vmatprep.subr.bf16.mxu0 0
  %2960 = vmatpush1.bf16.msra.mxu0 %v2463
  %2961 = vmatprep.subr.bf16.mxu0 0
  %2962 = vmatpush1.bf16.msra.mxu0 %v2464
  %2963 = vmatprep.subr.bf16.mxu0 0
  %2964 = vmatpush1.bf16.msra.mxu0 %v2465
  %2965 = vmatprep.subr.bf16.mxu0 0
  %2966 = vmatpush1.bf16.msra.mxu0 %v2466
  %2967 = vmatprep.mubr.bf16.mxu0 %v1213
  %2968 = vmatmul.mubr.bf16.gmra.mrb[0].mxu0 %v1212
  %v2969 = vpop.f32.mrb[0].mxu0
  %v2970 = vadd.f32 %v2929, %v2969
  %v2971 = vpop.f32.mrb[0].mxu0
  %v2972 = vpop.f32.mrb[0].mxu0
  %v2973 = vadd.f32 %v2932, %v2972
  %v2974 = vpop.f32.mrb[0].mxu0
  %2975 = vdwg.mxu0
  %2976 = vmatprep.subr.bf16.mxu0 0
  %2977 = vmatpush1.bf16.msra.mxu0 %v2467
  %2978 = vmatprep.subr.bf16.mxu0 0
  %2979 = vmatpush1.bf16.msra.mxu0 %v2468
  %2980 = vmatprep.subr.bf16.mxu0 0
  %2981 = vmatpush1.bf16.msra.mxu0 %v2469
  %2982 = vmatprep.subr.bf16.mxu0 0
  %2983 = vmatpush1.bf16.msra.mxu0 %v2470
  %2984 = vmatprep.subr.bf16.mxu0 0
  %2985 = vmatpush1.bf16.msra.mxu0 %v2471
  %2986 = vmatprep.subr.bf16.mxu0 0
  %2987 = vmatpush1.bf16.msra.mxu0 %v2472
  %2988 = vmatprep.subr.bf16.mxu0 0
  %2989 = vmatpush1.bf16.msra.mxu0 %v2473
  %2990 = vmatprep.subr.bf16.mxu0 0
  %2991 = vmatpush1.bf16.msra.mxu0 %v2474
  %2992 = vmatprep.subr.bf16.mxu0 0
  %2993 = vmatpush1.bf16.msra.mxu0 %v2475
  %2994 = vmatprep.subr.bf16.mxu0 0
  %2995 = vmatpush1.bf16.msra.mxu0 %v2476
  %2996 = vmatprep.subr.bf16.mxu0 0
  %2997 = vmatpush1.bf16.msra.mxu0 %v2477
  %2998 = vmatprep.subr.bf16.mxu0 0
  %2999 = vmatpush1.bf16.msra.mxu0 %v2478
  %3000 = vmatprep.subr.bf16.mxu0 0
  %3001 = vmatpush1.bf16.msra.mxu0 %v2479
  %3002 = vmatprep.subr.bf16.mxu0 0
  %3003 = vmatpush1.bf16.msra.mxu0 %v2480
  %3004 = vmatprep.subr.bf16.mxu0 0
  %3005 = vmatpush1.bf16.msra.mxu0 %v2481
  %3006 = vmatprep.subr.bf16.mxu0 0
  %3007 = vmatpush1.bf16.msra.mxu0 %v2482
  %3008 = vmatprep.mubr.bf16.mxu0 %v1215
  %3009 = vmatmul.mubr.bf16.gmra.mrb[0].mxu0 %v1214
  %v3010 = vpop.f32.mrb[0].mxu0
  %v3011 = vadd.f32 %v2970, %v3010
  %v3012 = vpop.f32.mrb[0].mxu0
  %v3013 = vpop.f32.mrb[0].mxu0
  %v3014 = vadd.f32 %v2973, %v3013
  %v3015 = vpop.f32.mrb[0].mxu0
  %3016 = vdwg.mxu0
  %3017 = vmatprep.subr.bf16.mxu0 0
  %3018 = vmatpush1.bf16.msra.mxu0 %v2483
  %3019 = vmatprep.subr.bf16.mxu0 0
  %3020 = vmatpush1.bf16.msra.mxu0 %v2484
  %3021 = vmatprep.subr.bf16.mxu0 0
  %3022 = vmatpush1.bf16.msra.mxu0 %v2485
  %3023 = vmatprep.subr.bf16.mxu0 0
  %3024 = vmatpush1.bf16.msra.mxu0 %v2486
  %3025 = vmatprep.subr.bf16.mxu0 0
  %3026 = vmatpush1.bf16.msra.mxu0 %v2487
  %3027 = vmatprep.subr.bf16.mxu0 0
  %3028 = vmatpush1.bf16.msra.mxu0 %v2488
  %3029 = vmatprep.subr.bf16.mxu0 0
  %3030 = vmatpush1.bf16.msra.mxu0 %v2489
  %3031 = vmatprep.subr.bf16.mxu0 0
  %3032 = vmatpush1.bf16.msra.mxu0 %v2490
  %3033 = vmatprep.subr.bf16.mxu0 0
  %3034 = vmatpush1.bf16.msra.mxu0 %v2491
  %3035 = vmatprep.subr.bf16.mxu0 0
  %3036 = vmatpush1.bf16.msra.mxu0 %v2492
  %3037 = vmatprep.subr.bf16.mxu0 0
  %3038 = vmatpush1.bf16.msra.mxu0 %v2493
  %3039 = vmatprep.subr.bf16.mxu0 0
  %3040 = vmatpush1.bf16.msra.mxu0 %v2494
  %3041 = vmatprep.subr.bf16.mxu0 0
  %3042 = vmatpush1.bf16.msra.mxu0 %v2495
  %3043 = vmatprep.subr.bf16.mxu0 0
  %3044 = vmatpush1.bf16.msra.mxu0 %v2496
  %3045 = vmatprep.subr.bf16.mxu0 0
  %3046 = vmatpush1.bf16.msra.mxu0 %v2497
  %3047 = vmatprep.subr.bf16.mxu0 0
  %3048 = vmatpush1.bf16.msra.mxu0 %v2498
  %3049 = vmatprep.mubr.bf16.mxu0 %v1217
  %3050 = vmatmul.mubr.bf16.gmra.mrb[0].mxu0 %v1216
  %v3051 = vpop.f32.mrb[0].mxu0
  %v3052 = vadd.f32 %v3011, %v3051
  %v3053 = vpop.f32.mrb[0].mxu0
  %v3054 = vpop.f32.mrb[0].mxu0
  %v3055 = vadd.f32 %v3014, %v3054
  %v3056 = vpop.f32.mrb[0].mxu0
  %3057 = vdwg.mxu0
  %3058 = vmatprep.subr.bf16.mxu0 0
  %3059 = vmatpush1.bf16.msra.mxu0 %v2499
  %3060 = vmatprep.subr.bf16.mxu0 0
  %3061 = vmatpush1.bf16.msra.mxu0 %v2500
  %3062 = vmatprep.subr.bf16.mxu0 0
  %3063 = vmatpush1.bf16.msra.mxu0 %v2501
  %3064 = vmatprep.subr.bf16.mxu0 0
  %3065 = vmatpush1.bf16.msra.mxu0 %v2502
  %3066 = vmatprep.subr.bf16.mxu0 0
  %3067 = vmatpush1.bf16.msra.mxu0 %v2503
  %3068 = vmatprep.subr.bf16.mxu0 0
  %3069 = vmatpush1.bf16.msra.mxu0 %v2504
  %3070 = vmatprep.subr.bf16.mxu0 0
  %3071 = vmatpush1.bf16.msra.mxu0 %v2505
  %3072 = vmatprep.subr.bf16.mxu0 0
  %3073 = vmatpush1.bf16.msra.mxu0 %v2506
  %3074 = vmatprep.subr.bf16.mxu0 0
  %3075 = vmatpush1.bf16.msra.mxu0 %v2507
  %3076 = vmatprep.subr.bf16.mxu0 0
  %3077 = vmatpush1.bf16.msra.mxu0 %v2508
  %3078 = vmatprep.subr.bf16.mxu0 0
  %3079 = vmatpush1.bf16.msra.mxu0 %v2509
  %3080 = vmatprep.subr.bf16.mxu0 0
  %3081 = vmatpush1.bf16.msra.mxu0 %v2510
  %3082 = vmatprep.subr.bf16.mxu0 0
  %3083 = vmatpush1.bf16.msra.mxu0 %v2511
  %3084 = vmatprep.subr.bf16.mxu0 0
  %3085 = vmatpush1.bf16.msra.mxu0 %v2512
  %3086 = vmatprep.subr.bf16.mxu0 0
  %3087 = vmatpush1.bf16.msra.mxu0 %v2513
  %3088 = vmatprep.subr.bf16.mxu0 0
  %3089 = vmatpush1.bf16.msra.mxu0 %v2514
  %3090 = vmatprep.mubr.bf16.mxu0 %v1219
  %3091 = vmatmul.mubr.bf16.gmra.mrb[0].mxu0 %v1218
  %v3092 = vpop.f32.mrb[0].mxu0
  %v3093 = vadd.f32 %v3052, %v3092
  %v3094 = vpop.f32.mrb[0].mxu0
  %v3095 = vpop.f32.mrb[0].mxu0
  %v3096 = vadd.f32 %v3055, %v3095
  %v3097 = vpop.f32.mrb[0].mxu0
  %3098 = vdwg.mxu0
  %3099 = vmatprep.subr.bf16.mxu0 0
  %3100 = vmatpush1.bf16.msra.mxu0 %v2515
  %3101 = vmatprep.subr.bf16.mxu0 0
  %3102 = vmatpush1.bf16.msra.mxu0 %v2516
  %3103 = vmatprep.subr.bf16.mxu0 0
  %3104 = vmatpush1.bf16.msra.mxu0 %v2517
  %3105 = vmatprep.subr.bf16.mxu0 0
  %3106 = vmatpush1.bf16.msra.mxu0 %v2518
  %3107 = vmatprep.subr.bf16.mxu0 0
  %3108 = vmatpush1.bf16.msra.mxu0 %v2519
  %3109 = vmatprep.subr.bf16.mxu0 0
  %3110 = vmatpush1.bf16.msra.mxu0 %v2520
  %3111 = vmatprep.subr.bf16.mxu0 0
  %3112 = vmatpush1.bf16.msra.mxu0 %v2521
  %3113 = vmatprep.subr.bf16.mxu0 0
  %3114 = vmatpush1.bf16.msra.mxu0 %v2522
  %3115 = vmatprep.subr.bf16.mxu0 0
  %3116 = vmatpush1.bf16.msra.mxu0 %v2523
  %3117 = vmatprep.subr.bf16.mxu0 0
  %3118 = vmatpush1.bf16.msra.mxu0 %v2524
  %3119 = vmatprep.subr.bf16.mxu0 0
  %3120 = vmatpush1.bf16.msra.mxu0 %v2525
  %3121 = vmatprep.subr.bf16.mxu0 0
  %3122 = vmatpush1.bf16.msra.mxu0 %v2526
  %3123 = vmatprep.subr.bf16.mxu0 0
  %3124 = vmatpush1.bf16.msra.mxu0 %v2527
  %3125 = vmatprep.subr.bf16.mxu0 0
  %3126 = vmatpush1.bf16.msra.mxu0 %v2528
  %3127 = vmatprep.subr.bf16.mxu0 0
  %3128 = vmatpush1.bf16.msra.mxu0 %v2529
  %3129 = vmatprep.subr.bf16.mxu0 0
  %3130 = vmatpush1.bf16.msra.mxu0 %v2530
  %3131 = vmatprep.mubr.bf16.mxu0 %v1221
  %3132 = vmatmul.mubr.bf16.gmra.mrb[0].mxu0 %v1220
  %v3133 = vpop.f32.mrb[0].mxu0
  %v3134 = vadd.f32 %v3093, %v3133
  %v3135 = vpop.f32.mrb[0].mxu0
  %v3136 = vpop.f32.mrb[0].mxu0
  %v3137 = vadd.f32 %v3096, %v3136
  %v3138 = vpop.f32.mrb[0].mxu0
  %3139 = vdwg.mxu0
  %3140 = vmatprep.subr.bf16.mxu0 0
  %3141 = vmatpush1.bf16.msra.mxu0 %v2531
  %3142 = vmatprep.subr.bf16.mxu0 0
  %3143 = vmatpush1.bf16.msra.mxu0 %v2532
  %3144 = vmatprep.subr.bf16.mxu0 0
  %3145 = vmatpush1.bf16.msra.mxu0 %v2533
  %3146 = vmatprep.subr.bf16.mxu0 0
  %3147 = vmatpush1.bf16.msra.mxu0 %v2534
  %3148 = vmatprep.subr.bf16.mxu0 0
  %3149 = vmatpush1.bf16.msra.mxu0 %v2535
  %3150 = vmatprep.subr.bf16.mxu0 0
  %3151 = vmatpush1.bf16.msra.mxu0 %v2536
  %3152 = vmatprep.subr.bf16.mxu0 0
  %3153 = vmatpush1.bf16.msra.mxu0 %v2537
  %3154 = vmatprep.subr.bf16.mxu0 0
  %3155 = vmatpush1.bf16.msra.mxu0 %v2538
  %3156 = vmatprep.subr.bf16.mxu0 0
  %3157 = vmatpush1.bf16.msra.mxu0 %v2539
  %3158 = vmatprep.subr.bf16.mxu0 0
  %3159 = vmatpush1.bf16.msra.mxu0 %v2540
  %3160 = vmatprep.subr.bf16.mxu0 0
  %3161 = vmatpush1.bf16.msra.mxu0 %v2541
  %3162 = vmatprep.subr.bf16.mxu0 0
  %3163 = vmatpush1.bf16.msra.mxu0 %v2542
  %3164 = vmatprep.subr.bf16.mxu0 0
  %3165 = vmatpush1.bf16.msra.mxu0 %v2543
  %3166 = vmatprep.subr.bf16.mxu0 0
  %3167 = vmatpush1.bf16.msra.mxu0 %v2544
  %3168 = vmatprep.subr.bf16.mxu0 0
  %3169 = vmatpush1.bf16.msra.mxu0 %v2545
  %3170 = vmatprep.subr.bf16.mxu0 0
  %3171 = vmatpush1.bf16.msra.mxu0 %v2546
  %3172 = vmatprep.mubr.bf16.mxu0 %v1223
  %3173 = vmatmul.mubr.bf16.gmra.mrb[0].mxu0 %v1222
  %v3174 = vpop.f32.mrb[0].mxu0
  %v3175 = vadd.f32 %v3134, %v3174
  %v3176 = vpop.f32.mrb[0].mxu0
  %v3177 = vpop.f32.mrb[0].mxu0
  %v3178 = vadd.f32 %v3137, %v3177
  %v3179 = vpop.f32.mrb[0].mxu0
  %3180 = vdwg.mxu0
  %3181 = vmatprep.subr.bf16.mxu0 0
  %3182 = vmatpush1.bf16.msra.mxu0 %v2547
  %3183 = vmatprep.subr.bf16.mxu0 0
  %3184 = vmatpush1.bf16.msra.mxu0 %v2548
  %3185 = vmatprep.subr.bf16.mxu0 0
  %3186 = vmatpush1.bf16.msra.mxu0 %v2549
  %3187 = vmatprep.subr.bf16.mxu0 0
  %3188 = vmatpush1.bf16.msra.mxu0 %v2550
  %3189 = vmatprep.subr.bf16.mxu0 0
  %3190 = vmatpush1.bf16.msra.mxu0 %v2551
  %3191 = vmatprep.subr.bf16.mxu0 0
  %3192 = vmatpush1.bf16.msra.mxu0 %v2552
  %3193 = vmatprep.subr.bf16.mxu0 0
  %3194 = vmatpush1.bf16.msra.mxu0 %v2553
  %3195 = vmatprep.subr.bf16.mxu0 0
  %3196 = vmatpush1.bf16.msra.mxu0 %v2554
  %3197 = vmatprep.subr.bf16.mxu0 0
  %3198 = vmatpush1.bf16.msra.mxu0 %v2555
  %3199 = vmatprep.subr.bf16.mxu0 0
  %3200 = vmatpush1.bf16.msra.mxu0 %v2556
  %3201 = vmatprep.subr.bf16.mxu0 0
  %3202 = vmatpush1.bf16.msra.mxu0 %v2557
  %3203 = vmatprep.subr.bf16.mxu0 0
  %3204 = vmatpush1.bf16.msra.mxu0 %v2558
  %3205 = vmatprep.subr.bf16.mxu0 0
  %3206 = vmatpush1.bf16.msra.mxu0 %v2559
  %3207 = vmatprep.subr.bf16.mxu0 0
  %3208 = vmatpush1.bf16.msra.mxu0 %v2560
  %3209 = vmatprep.subr.bf16.mxu0 0
  %3210 = vmatpush1.bf16.msra.mxu0 %v2561
  %3211 = vmatprep.subr.bf16.mxu0 0
  %3212 = vmatpush1.bf16.msra.mxu0 %v2562
  %3213 = vmatprep.mubr.bf16.mxu0 %v1225
  %3214 = vmatmul.mubr.bf16.gmra.mrb[0].mxu0 %v1224
  %v3215 = vpop.f32.mrb[0].mxu0
  %v3216 = vadd.f32 %v3175, %v3215
  %v3217 = vpop.f32.mrb[0].mxu0
  %v3218 = vpop.f32.mrb[0].mxu0
  %v3219 = vadd.f32 %v3178, %v3218
  %v3220 = vpop.f32.mrb[0].mxu0
  %3221 = vdwg.mxu0
  %3222 = vmatprep.subr.bf16.mxu0 0
  %3223 = vmatpush1.bf16.msra.mxu0 %v2563
  %3224 = vmatprep.subr.bf16.mxu0 0
  %3225 = vmatpush1.bf16.msra.mxu0 %v2564
  %3226 = vmatprep.subr.bf16.mxu0 0
  %3227 = vmatpush1.bf16.msra.mxu0 %v2565
  %3228 = vmatprep.subr.bf16.mxu0 0
  %3229 = vmatpush1.bf16.msra.mxu0 %v2566
  %3230 = vmatprep.subr.bf16.mxu0 0
  %3231 = vmatpush1.bf16.msra.mxu0 %v2567
  %3232 = vmatprep.subr.bf16.mxu0 0
  %3233 = vmatpush1.bf16.msra.mxu0 %v2568
  %3234 = vmatprep.subr.bf16.mxu0 0
  %3235 = vmatpush1.bf16.msra.mxu0 %v2569
  %3236 = vmatprep.subr.bf16.mxu0 0
  %3237 = vmatpush1.bf16.msra.mxu0 %v2570
  %3238 = vmatprep.subr.bf16.mxu0 0
  %3239 = vmatpush1.bf16.msra.mxu0 %v2571
  %3240 = vmatprep.subr.bf16.mxu0 0
  %3241 = vmatpush1.bf16.msra.mxu0 %v2572
  %3242 = vmatprep.subr.bf16.mxu0 0
  %3243 = vmatpush1.bf16.msra.mxu0 %v2573
  %3244 = vmatprep.subr.bf16.mxu0 0
  %3245 = vmatpush1.bf16.msra.mxu0 %v2574
  %3246 = vmatprep.subr.bf16.mxu0 0
  %3247 = vmatpush1.bf16.msra.mxu0 %v2575
  %3248 = vmatprep.subr.bf16.mxu0 0
  %3249 = vmatpush1.bf16.msra.mxu0 %v2576
  %3250 = vmatprep.subr.bf16.mxu0 0
  %3251 = vmatpush1.bf16.msra.mxu0 %v2577
  %3252 = vmatprep.subr.bf16.mxu0 0
  %3253 = vmatpush1.bf16.msra.mxu0 %v2578
  %3254 = vmatprep.mubr.bf16.mxu0 %v1227
  %3255 = vmatmul.mubr.bf16.gmra.mrb[0].mxu0 %v1226
  %v3256 = vpop.f32.mrb[0].mxu0
  %v3257 = vadd.f32 %v3216, %v3256
  %v3258 = vpop.f32.mrb[0].mxu0
  %v3259 = vpop.f32.mrb[0].mxu0
  %v3260 = vadd.f32 %v3219, %v3259
  %v3261 = vpop.f32.mrb[0].mxu0
  %3262 = vdwg.mxu0
  %v3263 = vld [vmem:[%s5] sm:$0x1]
  %v3264 = vld [vmem:[%s6] sm:$0x1]
  %v3265 = vsel %vm444, %v3257, 0.0
  %3266 = vadd.xlane.f32.xlu0 %v3265
  %v3267 = vpop.xlane.xlu0 %3266
  %v3268 = vsel %vm444, %v3260, 0.0
  %3269 = vadd.xlane.f32.xlu0 %v3268
  %v3270 = vpop.xlane.xlu0 %3269
  %v3271 = vrcp.pop 32.0
  %v3272 = vmul.f32 %v3267, %v3271
  %v3273 = vmul.f32 %v3270, %v3271
  %v3274 = vsub.f32 %v3257, %v3272
  %v3275 = vsub.f32 %v3260, %v3273
  %v3276 = vmul.f32 %v3274, %v3274
  %v3277 = vmul.f32 %v3275, %v3275
  %v3278 = vsel %vm444, %v3276, 0.0
  %3279 = vadd.xlane.f32.xlu0 %v3278
  %v3280 = vpop.xlane.xlu0 %3279
  %v3281 = vsel %vm444, %v3277, 0.0
  %3282 = vadd.xlane.f32.xlu0 %v3281
  %v3283 = vpop.xlane.xlu0 %3282
  %v3284 = vmul.f32 %v3280, %v3271
  %v3285 = vmul.f32 %v3283, %v3271
  %v3286 = vadd.f32 %v3284, 1e-05
  %v3287 = vadd.f32 %v3285, 1e-05
  %v3288 = vrsqrt.pop %v3286
  %v3289 = vrsqrt.pop %v3287
  %v3290 = vmul.f32 %v3274, %v3288
  %v3291 = vmul.f32 %v3275, %v3289
  %v3293 = vlaneseq
  %v3294 = vshrl.u32 %v3293, 7
  %v3295 = vsub.s32 0, %v3294
  %v3296 = vrot.slane %v3263, %v3295
  %v3298 = vmul.f32 %v3290, %v3296
  %v3299 = vmul.f32 %v3291, %v3296
  %v3301 = vlaneseq
  %v3302 = vshrl.u32 %v3301, 7
  %v3303 = vsub.s32 0, %v3302
  %v3304 = vrot.slane %v3264, %v3303
  %v3306 = vadd.f32 %v3298, %v3304
  %v3307 = vadd.f32 %v3299, %v3304
  %3308 = vst.msk [vmem:[%s7] sm:$0xff] %vm444, %v3306
  %3309 = vst.msk [vmem:[%s7 + $0x8] sm:$0xff] %vm444, %v3307
  // Predicated region
  $region30: #{multi_infer_bert_forward.15} parent=0 // pred_check
    _
  $region31: #{multi_infer_bert_forward.15} parent=0 // pred_check_branch
    %3311 = sbr.rel (0) target = $region33
  $region32: #{multi_infer_bert_forward.15} parent=0 // pred_region
    _
  $region33: #{multi_infer_bert_forward.15} parent=0 // pred_fallthru
    _
  // Predicated region
  $region34: #{multi_infer_bert_forward.15} parent=0 // pred_check
    _
  $region35: #{multi_infer_bert_forward.15} parent=0 // pred_check_branch
    %3313 = sbr.rel (0) target = $region37
  $region36: #{multi_infer_bert_forward.15} parent=0 // pred_region
    _
  $region37: #{multi_infer_bert_forward.15} parent=0 // pred_fallthru
    _

// kernel: multi_infer_bert_forward.22
$region0: #{multi_infer_bert_forward.22}
  #allocation0 [shape = 'u32[]', space=smem, size = 0x4, offset = 0x4, fixed_abs, tag = 'smem constant byte address 0x4 - core index']
  #allocation1 [shape = 'u32[144,128]{1,0:T(1,128)}', space=vmem, size = 0x12000, scoped, tag = 'internal scratch']
  %s0 = inlined_call_operand.vmem [shape: f32[2,8,8,6], index: 0, kind: input, shape index: {}]
  %s1 = inlined_call_operand.vmem [shape: f32[2,8,8], index: 1, kind: input, shape index: {}]
  %s2 = inlined_call_operand.vmem [shape: f32[2,8,6], index: 2, kind: output, shape index: {}]
  %s3 = sld [smem:[#allocation0]]
  $region41: #{multi_infer_bert_forward.22} parent=0
    _
  %s5 = ssub.s32 1, %s3
  %s6 = scalar_select 0, %s5, %s3
  loop: start=0, step=1, limit=4
  $region2: #{multi_infer_bert_forward.22} parent=0 // loop_pre_header
    _
  $region3: #{multi_infer_bert_forward.22} parent=0 // loop_header
    %s8 = sphi 0, %s12
    %p9 = scmp.ge.s32.totalorder %s8, 4
    %s18 = sphi 0, %s20
    %s21 = sphi 0, %s18
    %s22 = sphi 0, %s21
    %s38 = sphi 0, %s22
    %s44 = sphi 0, %s46
    %s47 = sphi 0, %s44
    %s48 = sphi 0, %s47
    %s64 = sphi 0, %s48
    %s70 = sphi 0, %s72
    %s73 = sphi 0, %s70
    %s74 = sphi 0, %s73
    %s90 = sphi 0, %s74
  $region4: #{multi_infer_bert_forward.22} parent=0 // loop_header_branch
    %11 = sbr.rel (%p9) target = $region8
  $region5: #{multi_infer_bert_forward.22} parent=0 // loop_body
    %s13 = ssub.s32 %s8, 1
    %s14 = ssub.s32 %s8, 2
    %s15 = sadd.s32 %s8, 1
    %s16 = ssub.s32 %s8, %s15
    %p17 = scmp.eq.s32.totalorder %s16, 0
    %s19 = sadd.s32 %s18, 1
    %s20 = scalar_select %p17, %s18, %s19
    %p23 = pneg %p17
    %p24 = scmp.eq.s32.totalorder %s8, 1
    %p25 = por %p23, %p24
    %p26 = scmp.ne.s32.totalorder %s18, %s21
    %p27 = scmp.eq.s32.totalorder %s8, 0
    %p28 = por %p26, %p27
    %p29 = scmp.ne.s32.totalorder %s18, %s21
    %p30 = scmp.eq.s32.totalorder %s13, 1
    %p31 = por %p29, %p30
    %p32 = scmp.ne.s32.totalorder %s21, %s22
    %p33 = scmp.eq.s32.totalorder %s13, 0
    %p34 = por %p32, %p33
    %p35 = scmp.ne.s32.totalorder %s21, %s22
    %p36 = scmp.eq.s32.totalorder %s14, 1
    %p37 = por %p35, %p36
    %p39 = scmp.ne.s32.totalorder %s22, %s38
    %p40 = scmp.eq.s32.totalorder %s14, 0
    %p41 = por %p39, %p40
    %s42 = ssub.s32 %s8, %s15
    %p43 = scmp.eq.s32.totalorder %s42, 0
    %s45 = sadd.s32 %s44, 1
    %s46 = scalar_select %p43, %s44, %s45
    %p49 = pneg %p43
    %p50 = scmp.eq.s32.totalorder %s8, 1
    %p51 = por %p49, %p50
    %p52 = scmp.ne.s32.totalorder %s44, %s47
    %p53 = scmp.eq.s32.totalorder %s8, 0
    %p54 = por %p52, %p53
    %p55 = scmp.ne.s32.totalorder %s44, %s47
    %p56 = scmp.eq.s32.totalorder %s13, 1
    %p57 = por %p55, %p56
    %p58 = scmp.ne.s32.totalorder %s47, %s48
    %p59 = scmp.eq.s32.totalorder %s13, 0
    %p60 = por %p58, %p59
    %p61 = scmp.ne.s32.totalorder %s47, %s48
    %p62 = scmp.eq.s32.totalorder %s14, 1
    %p63 = por %p61, %p62
    %p65 = scmp.ne.s32.totalorder %s48, %s64
    %p66 = scmp.eq.s32.totalorder %s14, 0
    %p67 = por %p65, %p66
    %s68 = ssub.s32 %s8, %s15
    %p69 = scmp.eq.s32.totalorder %s68, 0
    %s71 = sadd.s32 %s70, 1
    %s72 = scalar_select %p69, %s70, %s71
    %p75 = pneg %p69
    %p76 = scmp.eq.s32.totalorder %s8, 1
    %p77 = por %p75, %p76
    %p78 = scmp.ne.s32.totalorder %s70, %s73
    %p79 = scmp.eq.s32.totalorder %s8, 0
    %p80 = por %p78, %p79
    %p81 = scmp.ne.s32.totalorder %s70, %s73
    %p82 = scmp.eq.s32.totalorder %s13, 1
    %p83 = por %p81, %p82
    %p84 = scmp.ne.s32.totalorder %s73, %s74
    %p85 = scmp.eq.s32.totalorder %s13, 0
    %p86 = por %p84, %p85
    %p87 = scmp.ne.s32.totalorder %s73, %s74
    %p88 = scmp.eq.s32.totalorder %s14, 1
    %p89 = por %p87, %p88
    %p91 = scmp.ne.s32.totalorder %s74, %s90
    %p92 = scmp.eq.s32.totalorder %s14, 0
    %p93 = por %p91, %p92
    %p94 = scmp.le.s32.totalorder 1, %s8
    %p95 = scmp.lt.s32.totalorder %s8, 3
    %p96 = pnand %p94, %p95
    %p97 = pneg %p96
    // Predicated region
    $region9: #{multi_infer_bert_forward.22} parent=5 // pred_check
      _
    $region10: #{multi_infer_bert_forward.22} parent=5 // pred_check_branch
      %99 = sbr.rel (%p96) target = $region12
    $region11: #{multi_infer_bert_forward.22} parent=5 // pred_region
      %s100 = ssub.s32 %s8, 1
    $region12: #{multi_infer_bert_forward.22} parent=5 // pred_fallthru
      _
    %p101 = scmp.lt.s32.totalorder %s8, 2
    // Predicated region
    $region13: #{multi_infer_bert_forward.22} parent=5 // pred_check
      %p102 = pneg %p101
    $region14: #{multi_infer_bert_forward.22} parent=5 // pred_check_branch
      %104 = sbr.rel (%p102) target = $region16
    $region15: #{multi_infer_bert_forward.22} parent=5 // pred_region
      // Predicated region
      $region17: #{multi_infer_bert_forward.22} parent=15 // pred_check
        %p105 = pneg %p28
      $region18: #{multi_infer_bert_forward.22} parent=15 // pred_check_branch
        %107 = sbr.rel (%p105) target = $region20
      $region19: #{multi_infer_bert_forward.22} parent=15 // pred_region
        %p108 = scmp.lt.s32.totalorder %s8, 1
        %s109 = scalar_select %p108, %s8, 1
        %s110 = smul.addr %s109, 8
        %s111 = smul.addr %s110, 8
        %s112 = scalar_lea.vmem %s0, %s111
      $region20: #{multi_infer_bert_forward.22} parent=15 // pred_fallthru
        _
      // Predicated region
      $region21: #{multi_infer_bert_forward.22} parent=15 // pred_check
        %p113 = pneg %p54
      $region22: #{multi_infer_bert_forward.22} parent=15 // pred_check_branch
        %115 = sbr.rel (%p113) target = $region24
      $region23: #{multi_infer_bert_forward.22} parent=15 // pred_region
        %p116 = scmp.lt.s32.totalorder %s8, 1
        %s117 = scalar_select %p116, %s8, 1
        %s118 = smul.addr %s117, 8
        %s119 = scalar_lea.vmem %s1, %s118
      $region24: #{multi_infer_bert_forward.22} parent=15 // pred_fallthru
        _
    $region16: #{multi_infer_bert_forward.22} parent=5 // pred_fallthru
      _
    %p120 = scmp.le.s32.totalorder 1, %s8
    %p121 = scmp.lt.s32.totalorder %s8, 3
    %p122 = pnand %p120, %p121
    %p123 = pneg %p122
    // Predicated region
    $region25: #{multi_infer_bert_forward.22} parent=5 // pred_check
      _
    $region26: #{multi_infer_bert_forward.22} parent=5 // pred_check_branch
      %125 = sbr.rel (%p122) target = $region28
    $region27: #{multi_infer_bert_forward.22} parent=5 // pred_region
      %s126 = ssub.s32 %s8, 1
      %p127 = scmp.lt.s32.totalorder %s13, 1
      %s128 = scalar_select %p127, %s13, 1
      %s129 = smul.addr %s128, 8
      %s130 = smul.addr %s129, 8
      %s131 = scalar_lea.vmem %s0, %s130
      %p132 = pneg %p34
      %p133 = pneg %p31
      %p134 = scmp.lt.s32.totalorder %s13, 1
      %s135 = scalar_select %p134, %s13, 1
      %s136 = smul.addr %s135, 8
      %s137 = scalar_lea.vmem %s1, %s136
      %p138 = pneg %p60
      %p139 = pneg %p57
      %p140 = pneg %p86
      %p141 = pneg %p83
      %p142 = scmp.lt.s32.totalorder %s13, 1
      %s143 = scalar_select %p142, %s13, 1
      %s144 = smul.addr %s143, 8
      %s145 = scalar_lea.vmem %s2, %s144
      %p146 = scmp.lt.s32.totalorder %s13, 1
      %s147 = scalar_select %p146, %s13, 1
      %s148 = smul.addr %s147, 8
      %s149 = smul.addr %s148, 8
      %s150 = scalar_lea.vmem %s0, %s149
      %p151 = scmp.lt.s32.totalorder %s13, 1
      %s152 = scalar_select %p151, %s13, 1
      %s153 = smul.addr %s152, 8
      %s154 = scalar_lea.vmem %s1, %s153
      %p155 = scmp.lt.s32.totalorder %s13, 1
      %s156 = scalar_select %p155, %s13, 1
      %s157 = smul.addr %s156, 8
      %s158 = scalar_lea.vmem %s2, %s157
      %v159 = vld [vmem:[%s150] sm:$0xff]
      %v160 = vld [vmem:[%s150 + $0x8] sm:$0xff]
      %v161 = vld [vmem:[%s150 + $0x10] sm:$0xff]
      %v162 = vld [vmem:[%s150 + $0x18] sm:$0xff]
      %v163 = vld [vmem:[%s150 + $0x20] sm:$0xff]
      %v164 = vld [vmem:[%s150 + $0x28] sm:$0xff]
      %v165 = vld [vmem:[%s150 + $0x30] sm:$0xff]
      %v166 = vld [vmem:[%s150 + $0x38] sm:$0xff]
      %v167 = vld [vmem:[%s154] sm:$0xff]
      %v168 = vlaneseq
      %v169 = vshrl.u32 %v168, 7
      %v170 = vsub.s32 0, %v169
      %v171 = vrot.slane %v167, %v170
      %173 = vbcast.lane.b32.xlu0 %v171, 256
      %v174 = vpop.permute.xlu0 %173
      %v175 = vlaneseq
      %v176 = vshrl.u32 %v175, 7
      %v177 = vsub.s32 1, %v176
      %v178 = vrot.slane %v167, %v177
      %180 = vbcast.lane.b32.xlu0 %v178, 256
      %v181 = vpop.permute.xlu0 %180
      %v182 = vlaneseq
      %v183 = vshrl.u32 %v182, 7
      %v184 = vsub.s32 2, %v183
      %v185 = vrot.slane %v167, %v184
      %187 = vbcast.lane.b32.xlu0 %v185, 256
      %v188 = vpop.permute.xlu0 %187
      %v189 = vlaneseq
      %v190 = vshrl.u32 %v189, 7
      %v191 = vsub.s32 3, %v190
      %v192 = vrot.slane %v167, %v191
      %194 = vbcast.lane.b32.xlu0 %v192, 256
      %v195 = vpop.permute.xlu0 %194
      %v196 = vlaneseq
      %v197 = vshrl.u32 %v196, 7
      %v198 = vsub.s32 4, %v197
      %v199 = vrot.slane %v167, %v198
      %201 = vbcast.lane.b32.xlu0 %v199, 256
      %v202 = vpop.permute.xlu0 %201
      %v203 = vlaneseq
      %v204 = vshrl.u32 %v203, 7
      %v205 = vsub.s32 5, %v204
      %v206 = vrot.slane %v167, %v205
      %208 = vbcast.lane.b32.xlu0 %v206, 256
      %v209 = vpop.permute.xlu0 %208
      %v210 = vlaneseq
      %v211 = vshrl.u32 %v210, 7
      %v212 = vsub.s32 6, %v211
      %v213 = vrot.slane %v167, %v212
      %215 = vbcast.lane.b32.xlu0 %v213, 256
      %v216 = vpop.permute.xlu0 %215
      %v217 = vlaneseq
      %v218 = vshrl.u32 %v217, 7
      %v219 = vsub.s32 7, %v218
      %v220 = vrot.slane %v167, %v219
      %222 = vbcast.lane.b32.xlu0 %v220, 256
      %v223 = vpop.permute.xlu0 %222
      %v224 = vmul.f32 %v159, %v174
      %v225 = vmul.f32 %v160, %v181
      %v226 = vmul.f32 %v161, %v188
      %v227 = vmul.f32 %v162, %v195
      %v228 = vmul.f32 %v163, %v202
      %v229 = vmul.f32 %v164, %v209
      %v230 = vmul.f32 %v165, %v216
      %v231 = vmul.f32 %v166, %v223
      %vm232 = vcmask 48128
      %v233 = vsel %vm232, %v224, -inf
      %v234 = vsel %vm232, %v225, -inf
      %v235 = vsel %vm232, %v226, -inf
      %v236 = vsel %vm232, %v227, -inf
      %v237 = vsel %vm232, %v228, -inf
      %v238 = vmax.f32 %v233, %v237
      %v239 = vsel %vm232, %v229, -inf
      %v240 = vmax.f32 %v234, %v239
      %v241 = vsel %vm232, %v230, -inf
      %v242 = vmax.f32 %v235, %v241
      %v243 = vsel %vm232, %v231, -inf
      %v244 = vmax.f32 %v236, %v243
      %v245 = vmax.f32 %v238, %v240
      %v246 = vmax.f32 %v242, %v244
      %v247 = vmax.f32 %v245, %v246
      %v248 = vrot.slane %v233, 4
      %v249 = vmax.f32 %v233, %v248
      %v250 = vrot.slane %v249, 2
      %v251 = vmax.f32 %v249, %v250
      %v252 = vrot.slane %v251, 1
      %v253 = vmax.f32 %v251, %v252
      %v254 = vrot.slane %v234, 4
      %v255 = vmax.f32 %v234, %v254
      %v256 = vrot.slane %v255, 2
      %v257 = vmax.f32 %v255, %v256
      %v258 = vrot.slane %v257, 1
      %v259 = vmax.f32 %v257, %v258
      %v260 = vrot.slane %v235, 4
      %v261 = vmax.f32 %v235, %v260
      %v262 = vrot.slane %v261, 2
      %v263 = vmax.f32 %v261, %v262
      %v264 = vrot.slane %v263, 1
      %v265 = vmax.f32 %v263, %v264
      %v266 = vrot.slane %v236, 4
      %v267 = vmax.f32 %v236, %v266
      %v268 = vrot.slane %v267, 2
      %v269 = vmax.f32 %v267, %v268
      %v270 = vrot.slane %v269, 1
      %v271 = vmax.f32 %v269, %v270
      %v272 = vrot.slane %v237, 4
      %v273 = vmax.f32 %v237, %v272
      %v274 = vrot.slane %v273, 2
      %v275 = vmax.f32 %v273, %v274
      %v276 = vrot.slane %v275, 1
      %v277 = vmax.f32 %v275, %v276
      %v278 = vrot.slane %v239, 4
      %v279 = vmax.f32 %v239, %v278
      %v280 = vrot.slane %v279, 2
      %v281 = vmax.f32 %v279, %v280
      %v282 = vrot.slane %v281, 1
      %v283 = vmax.f32 %v281, %v282
      %v284 = vrot.slane %v241, 4
      %v285 = vmax.f32 %v241, %v284
      %v286 = vrot.slane %v285, 2
      %v287 = vmax.f32 %v285, %v286
      %v288 = vrot.slane %v287, 1
      %v289 = vmax.f32 %v287, %v288
      %v290 = vrot.slane %v243, 4
      %v291 = vmax.f32 %v243, %v290
      %v292 = vrot.slane %v291, 2
      %v293 = vmax.f32 %v291, %v292
      %v294 = vrot.slane %v293, 1
      %v295 = vmax.f32 %v293, %v294
      %vm304 = vcmask 1041409
      %v305 = vsel %vm304, %v259, %v253
      %vm306 = vcmask 1042434
      %v307 = vsel %vm306, %v265, %v305
      %vm308 = vcmask 1043459
      %v309 = vsel %vm308, %v271, %v307
      %vm310 = vcmask 1044484
      %v311 = vsel %vm310, %v277, %v309
      %vm312 = vcmask 1045509
      %v313 = vsel %vm312, %v283, %v311
      %vm314 = vcmask 1046534
      %v315 = vsel %vm314, %v289, %v313
      %vm316 = vcmask 1047559
      %v317 = vsel %vm316, %v295, %v315
      %v319 = vmax.f32 %v247, %v317
      %320 = vst.msk [vmem:[%s158] sm:$0xff] %vm232, %v319
      %p321 = scmp.lt.s32.totalorder %s13, 1
      %s322 = scalar_select %p321, %s13, 1
      %s323 = smul.addr %s322, 8
      %s324 = scalar_lea.vmem %s2, %s323
      // Predicated region
      $region29: #{multi_infer_bert_forward.22} parent=27 // pred_check
        %p325 = pneg %p83
      $region30: #{multi_infer_bert_forward.22} parent=27 // pred_check_branch
        %327 = sbr.rel (%p325) target = $region32
      $region31: #{multi_infer_bert_forward.22} parent=27 // pred_region
        _
      $region32: #{multi_infer_bert_forward.22} parent=27 // pred_fallthru
        _
    $region28: #{multi_infer_bert_forward.22} parent=5 // pred_fallthru
      _
    %p328 = scmp.le.s32.totalorder 2, %s8
    // Predicated region
    $region33: #{multi_infer_bert_forward.22} parent=5 // pred_check
      %p329 = pneg %p328
    $region34: #{multi_infer_bert_forward.22} parent=5 // pred_check_branch
      %331 = sbr.rel (%p329) target = $region36
    $region35: #{multi_infer_bert_forward.22} parent=5 // pred_region
      %s332 = ssub.s32 %s8, 2
      // Predicated region
      $region37: #{multi_infer_bert_forward.22} parent=35 // pred_check
        %p333 = pneg %p89
      $region38: #{multi_infer_bert_forward.22} parent=35 // pred_check_branch
        %335 = sbr.rel (%p333) target = $region40
      $region39: #{multi_infer_bert_forward.22} parent=35 // pred_region
        %p336 = scmp.lt.s32.totalorder %s14, 1
        %s337 = scalar_select %p336, %s14, 1
        %s338 = smul.addr %s337, 8
        %s339 = scalar_lea.vmem %s2, %s338
      $region40: #{multi_infer_bert_forward.22} parent=35 // pred_fallthru
        _
    $region36: #{multi_infer_bert_forward.22} parent=5 // pred_fallthru
      _
  $region6: #{multi_infer_bert_forward.22} parent=0 // loop_footer
    %s12 = sadd.s32 1, %s8
  $region7: #{multi_infer_bert_forward.22} parent=0 // loop_footer_branch
    %7 = sbr.rel target = $region3
  $region8: #{multi_infer_bert_forward.22} parent=0 // loop_exit
    _

// kernel: multi_infer_bert_forward.23
$region0: #{multi_infer_bert_forward.23}
  #allocation0 [shape = 'u32[]', space=smem, size = 0x4, offset = 0x4, fixed_abs, tag = 'smem constant byte address 0x4 - core index']
  #allocation1 [shape = 'u32[144,128]{1,0:T(1,128)}', space=vmem, size = 0x12000, scoped, tag = 'internal scratch']
  %s0 = inlined_call_operand.vmem [shape: f32[2,8,32], index: 0, kind: input, shape index: {}, may-alias: {0,1}]
  %s1 = inlined_call_operand.vmem [shape: f32[2,8,32], index: 1, kind: input, shape index: {}, may-alias: {0,1}]
  %s2 = inlined_call_operand.vmem [shape: f32[2,8,6], index: 2, kind: input, shape index: {}, may-alias: {2,3}]
  %s3 = inlined_call_operand.vmem [shape: f32[2,8,6], index: 3, kind: input, shape index: {}, may-alias: {2,3}]
  %s4 = inlined_call_operand.vmem [shape: f32[2,8,8,6], index: 4, kind: input, shape index: {}]
  %s5 = inlined_call_operand.vmem [shape: bf16[32,64], index: 5, kind: input, shape index: {}]
  %s6 = inlined_call_operand.vmem [shape: bf16[32,64], index: 6, kind: input, shape index: {}]
  %s7 = inlined_call_operand.vmem [shape: f32[6,64], index: 7, kind: input, shape index: {}]
  %s8 = inlined_call_operand.vmem [shape: f32[6,64], index: 8, kind: input, shape index: {}]
  %s9 = inlined_call_operand.vmem [shape: f32[6,64], index: 9, kind: input, shape index: {}]
  %s10 = inlined_call_operand.vmem [shape: f32[1,64], index: 10, kind: input, shape index: {}]
  %s11 = inlined_call_operand.vmem [shape: bf16[64,6], index: 11, kind: input, shape index: {}]
  %s12 = inlined_call_operand.vmem [shape: f32[1,6], index: 12, kind: input, shape index: {}]
  %s13 = inlined_call_operand.vmem [shape: f32[2,8,8,64], index: 13, kind: output, shape index: {0}]
  %s14 = inlined_call_operand.vmem [shape: f32[2,8,8,6], index: 14, kind: output, shape index: {1}]
  %15 = xla_tuple %s13, %s14
  %s16 = sld [smem:[#allocation0]]
  $region93: #{multi_infer_bert_forward.23} parent=0
    _
  %s18 = ssub.s32 1, %s16
  %s19 = scalar_select 0, %s18, %s16
  loop: start=0, step=1, limit=4
  $region2: #{multi_infer_bert_forward.23} parent=0 // loop_pre_header
    _
  $region3: #{multi_infer_bert_forward.23} parent=0 // loop_header
    %s21 = sphi 0, %s25
    %p22 = scmp.ge.s32.totalorder %s21, 4
    %s28 = sphi 0, %s40
    %s29 = sphi 0, %s36
    %s30 = sphi 0, %s28
    %s31 = sphi 0, %s29
    %s32 = sphi 0, %s30
    %s33 = sphi 0, %s31
    %s45 = sphi 0, %s47
    %s48 = sphi 0, %s45
    %s49 = sphi 0, %s48
    %s65 = sphi 0, %s49
    %s71 = sphi 0, %s73
    %s74 = sphi 0, %s71
    %s75 = sphi 0, %s74
    %s91 = sphi 0, %s75
    %s99 = sphi 0, %s101
    %s102 = sphi 0, %s99
    %s103 = sphi 0, %s102
    %s119 = sphi 0, %s103
    %s125 = sphi 0, %s127
    %s128 = sphi 0, %s125
    %s129 = sphi 0, %s128
    %s145 = sphi 0, %s129
    %s153 = sphi 0, %s155
    %s156 = sphi 0, %s153
    %s157 = sphi 0, %s156
    %s173 = sphi 0, %s157
    %s177 = sphi 0, %s177
    %s179 = sphi 0, %s177
    %s180 = sphi 0, %s179
    %s194 = sphi 0, %s180
    %s198 = sphi 0, %s198
    %s200 = sphi 0, %s198
    %s201 = sphi 0, %s200
    %s215 = sphi 0, %s201
    %s219 = sphi 0, %s219
    %s221 = sphi 0, %s219
    %s222 = sphi 0, %s221
    %s236 = sphi 0, %s222
    %s240 = sphi 0, %s240
    %s242 = sphi 0, %s240
    %s243 = sphi 0, %s242
    %s257 = sphi 0, %s243
    %s261 = sphi 0, %s261
    %s263 = sphi 0, %s261
    %s264 = sphi 0, %s263
    %s278 = sphi 0, %s264
    %s282 = sphi 0, %s282
    %s284 = sphi 0, %s282
    %s285 = sphi 0, %s284
    %s299 = sphi 0, %s285
    %s303 = sphi 0, %s303
    %s305 = sphi 0, %s303
    %s306 = sphi 0, %s305
    %s320 = sphi 0, %s306
    %s324 = sphi 0, %s324
    %s326 = sphi 0, %s324
    %s327 = sphi 0, %s326
    %s341 = sphi 0, %s327
    %s349 = sphi 0, %s351
    %s352 = sphi 0, %s349
    %s353 = sphi 0, %s352
    %s369 = sphi 0, %s353
    %s377 = sphi 0, %s379
    %s380 = sphi 0, %s377
    %s381 = sphi 0, %s380
    %s397 = sphi 0, %s381
  $region4: #{multi_infer_bert_forward.23} parent=0 // loop_header_branch
    %24 = sbr.rel (%p22) target = $region8
  $region5: #{multi_infer_bert_forward.23} parent=0 // loop_body
    %s26 = ssub.s32 %s21, 1
    %s27 = ssub.s32 %s21, 2
    %s34 = sadd.s32 1, %s29
    %p35 = scmp.ge.s32.totalorder %s34, 1
    %s36 = scalar_select %p35, 0, %s34
    %s37 = sadd.s32 1, %s28
    %s38 = scalar_select %p35, %s37, %s28
    %p39 = scmp.ge.s32.totalorder %s38, 2
    %s40 = scalar_select %p39, 0, %s38
    %s41 = ssub.s32 %s28, %s40
    %s42 = ssub.s32 %s29, %s36
    %s43 = sor.u32 %s41, %s42
    %p44 = scmp.eq.s32.totalorder %s43, 0
    %s46 = sadd.s32 %s45, 1
    %s47 = scalar_select %p44, %s45, %s46
    %p50 = pneg %p44
    %p51 = scmp.eq.s32.totalorder %s21, 1
    %p52 = por %p50, %p51
    %p53 = scmp.ne.s32.totalorder %s45, %s48
    %p54 = scmp.eq.s32.totalorder %s21, 0
    %p55 = por %p53, %p54
    %p56 = scmp.ne.s32.totalorder %s45, %s48
    %p57 = scmp.eq.s32.totalorder %s26, 1
    %p58 = por %p56, %p57
    %p59 = scmp.ne.s32.totalorder %s48, %s49
    %p60 = scmp.eq.s32.totalorder %s26, 0
    %p61 = por %p59, %p60
    %p62 = scmp.ne.s32.totalorder %s48, %s49
    %p63 = scmp.eq.s32.totalorder %s27, 1
    %p64 = por %p62, %p63
    %p66 = scmp.ne.s32.totalorder %s49, %s65
    %p67 = scmp.eq.s32.totalorder %s27, 0
    %p68 = por %p66, %p67
    %s69 = ssub.s32 %s28, %s40
    %p70 = scmp.eq.s32.totalorder %s69, 0
    %s72 = sadd.s32 %s71, 1
    %s73 = scalar_select %p70, %s71, %s72
    %p76 = pneg %p70
    %p77 = scmp.eq.s32.totalorder %s21, 1
    %p78 = por %p76, %p77
    %p79 = scmp.ne.s32.totalorder %s71, %s74
    %p80 = scmp.eq.s32.totalorder %s21, 0
    %p81 = por %p79, %p80
    %p82 = scmp.ne.s32.totalorder %s71, %s74
    %p83 = scmp.eq.s32.totalorder %s26, 1
    %p84 = por %p82, %p83
    %p85 = scmp.ne.s32.totalorder %s74, %s75
    %p86 = scmp.eq.s32.totalorder %s26, 0
    %p87 = por %p85, %p86
    %p88 = scmp.ne.s32.totalorder %s74, %s75
    %p89 = scmp.eq.s32.totalorder %s27, 1
    %p90 = por %p88, %p89
    %p92 = scmp.ne.s32.totalorder %s75, %s91
    %p93 = scmp.eq.s32.totalorder %s27, 0
    %p94 = por %p92, %p93
    %s95 = ssub.s32 %s28, %s40
    %s96 = ssub.s32 %s29, %s36
    %s97 = sor.u32 %s95, %s96
    %p98 = scmp.eq.s32.totalorder %s97, 0
    %s100 = sadd.s32 %s99, 1
    %s101 = scalar_select %p98, %s99, %s100
    %p104 = pneg %p98
    %p105 = scmp.eq.s32.totalorder %s21, 1
    %p106 = por %p104, %p105
    %p107 = scmp.ne.s32.totalorder %s99, %s102
    %p108 = scmp.eq.s32.totalorder %s21, 0
    %p109 = por %p107, %p108
    %p110 = scmp.ne.s32.totalorder %s99, %s102
    %p111 = scmp.eq.s32.totalorder %s26, 1
    %p112 = por %p110, %p111
    %p113 = scmp.ne.s32.totalorder %s102, %s103
    %p114 = scmp.eq.s32.totalorder %s26, 0
    %p115 = por %p113, %p114
    %p116 = scmp.ne.s32.totalorder %s102, %s103
    %p117 = scmp.eq.s32.totalorder %s27, 1
    %p118 = por %p116, %p117
    %p120 = scmp.ne.s32.totalorder %s103, %s119
    %p121 = scmp.eq.s32.totalorder %s27, 0
    %p122 = por %p120, %p121
    %s123 = ssub.s32 %s28, %s40
    %p124 = scmp.eq.s32.totalorder %s123, 0
    %s126 = sadd.s32 %s125, 1
    %s127 = scalar_select %p124, %s125, %s126
    %p130 = pneg %p124
    %p131 = scmp.eq.s32.totalorder %s21, 1
    %p132 = por %p130, %p131
    %p133 = scmp.ne.s32.totalorder %s125, %s128
    %p134 = scmp.eq.s32.totalorder %s21, 0
    %p135 = por %p133, %p134
    %p136 = scmp.ne.s32.totalorder %s125, %s128
    %p137 = scmp.eq.s32.totalorder %s26, 1
    %p138 = por %p136, %p137
    %p139 = scmp.ne.s32.totalorder %s128, %s129
    %p140 = scmp.eq.s32.totalorder %s26, 0
    %p141 = por %p139, %p140
    %p142 = scmp.ne.s32.totalorder %s128, %s129
    %p143 = scmp.eq.s32.totalorder %s27, 1
    %p144 = por %p142, %p143
    %p146 = scmp.ne.s32.totalorder %s129, %s145
    %p147 = scmp.eq.s32.totalorder %s27, 0
    %p148 = por %p146, %p147
    %s149 = ssub.s32 %s28, %s40
    %s150 = ssub.s32 %s29, %s36
    %s151 = sor.u32 %s149, %s150
    %p152 = scmp.eq.s32.totalorder %s151, 0
    %s154 = sadd.s32 %s153, 1
    %s155 = scalar_select %p152, %s153, %s154
    %p158 = pneg %p152
    %p159 = scmp.eq.s32.totalorder %s21, 1
    %p160 = por %p158, %p159
    %p161 = scmp.ne.s32.totalorder %s153, %s156
    %p162 = scmp.eq.s32.totalorder %s21, 0
    %p163 = por %p161, %p162
    %p164 = scmp.ne.s32.totalorder %s153, %s156
    %p165 = scmp.eq.s32.totalorder %s26, 1
    %p166 = por %p164, %p165
    %p167 = scmp.ne.s32.totalorder %s156, %s157
    %p168 = scmp.eq.s32.totalorder %s26, 0
    %p169 = por %p167, %p168
    %p170 = scmp.ne.s32.totalorder %s156, %s157
    %p171 = scmp.eq.s32.totalorder %s27, 1
    %p172 = por %p170, %p171
    %p174 = scmp.ne.s32.totalorder %s157, %s173
    %p175 = scmp.eq.s32.totalorder %s27, 0
    %p176 = por %p174, %p175
    %s178 = sadd.s32 %s177, 1
    %p181 = scmp.eq.s32.totalorder %s21, 1
    %p182 = scmp.ne.s32.totalorder %s177, %s179
    %p183 = scmp.eq.s32.totalorder %s21, 0
    %p184 = por %p182, %p183
    %p185 = scmp.ne.s32.totalorder %s177, %s179
    %p186 = scmp.eq.s32.totalorder %s26, 1
    %p187 = por %p185, %p186
    %p188 = scmp.ne.s32.totalorder %s179, %s180
    %p189 = scmp.eq.s32.totalorder %s26, 0
    %p190 = por %p188, %p189
    %p191 = scmp.ne.s32.totalorder %s179, %s180
    %p192 = scmp.eq.s32.totalorder %s27, 1
    %p193 = por %p191, %p192
    %p195 = scmp.ne.s32.totalorder %s180, %s194
    %p196 = scmp.eq.s32.totalorder %s27, 0
    %p197 = por %p195, %p196
    %s199 = sadd.s32 %s198, 1
    %p202 = scmp.eq.s32.totalorder %s21, 1
    %p203 = scmp.ne.s32.totalorder %s198, %s200
    %p204 = scmp.eq.s32.totalorder %s21, 0
    %p205 = por %p203, %p204
    %p206 = scmp.ne.s32.totalorder %s198, %s200
    %p207 = scmp.eq.s32.totalorder %s26, 1
    %p208 = por %p206, %p207
    %p209 = scmp.ne.s32.totalorder %s200, %s201
    %p210 = scmp.eq.s32.totalorder %s26, 0
    %p211 = por %p209, %p210
    %p212 = scmp.ne.s32.totalorder %s200, %s201
    %p213 = scmp.eq.s32.totalorder %s27, 1
    %p214 = por %p212, %p213
    %p216 = scmp.ne.s32.totalorder %s201, %s215
    %p217 = scmp.eq.s32.totalorder %s27, 0
    %p218 = por %p216, %p217
    %s220 = sadd.s32 %s219, 1
    %p223 = scmp.eq.s32.totalorder %s21, 1
    %p224 = scmp.ne.s32.totalorder %s219, %s221
    %p225 = scmp.eq.s32.totalorder %s21, 0
    %p226 = por %p224, %p225
    %p227 = scmp.ne.s32.totalorder %s219, %s221
    %p228 = scmp.eq.s32.totalorder %s26, 1
    %p229 = por %p227, %p228
    %p230 = scmp.ne.s32.totalorder %s221, %s222
    %p231 = scmp.eq.s32.totalorder %s26, 0
    %p232 = por %p230, %p231
    %p233 = scmp.ne.s32.totalorder %s221, %s222
    %p234 = scmp.eq.s32.totalorder %s27, 1
    %p235 = por %p233, %p234
    %p237 = scmp.ne.s32.totalorder %s222, %s236
    %p238 = scmp.eq.s32.totalorder %s27, 0
    %p239 = por %p237, %p238
    %s241 = sadd.s32 %s240, 1
    %p244 = scmp.eq.s32.totalorder %s21, 1
    %p245 = scmp.ne.s32.totalorder %s240, %s242
    %p246 = scmp.eq.s32.totalorder %s21, 0
    %p247 = por %p245, %p246
    %p248 = scmp.ne.s32.totalorder %s240, %s242
    %p249 = scmp.eq.s32.totalorder %s26, 1
    %p250 = por %p248, %p249
    %p251 = scmp.ne.s32.totalorder %s242, %s243
    %p252 = scmp.eq.s32.totalorder %s26, 0
    %p253 = por %p251, %p252
    %p254 = scmp.ne.s32.totalorder %s242, %s243
    %p255 = scmp.eq.s32.totalorder %s27, 1
    %p256 = por %p254, %p255
    %p258 = scmp.ne.s32.totalorder %s243, %s257
    %p259 = scmp.eq.s32.totalorder %s27, 0
    %p260 = por %p258, %p259
    %s262 = sadd.s32 %s261, 1
    %p265 = scmp.eq.s32.totalorder %s21, 1
    %p266 = scmp.ne.s32.totalorder %s261, %s263
    %p267 = scmp.eq.s32.totalorder %s21, 0
    %p268 = por %p266, %p267
    %p269 = scmp.ne.s32.totalorder %s261, %s263
    %p270 = scmp.eq.s32.totalorder %s26, 1
    %p271 = por %p269, %p270
    %p272 = scmp.ne.s32.totalorder %s263, %s264
    %p273 = scmp.eq.s32.totalorder %s26, 0
    %p274 = por %p272, %p273
    %p275 = scmp.ne.s32.totalorder %s263, %s264
    %p276 = scmp.eq.s32.totalorder %s27, 1
    %p277 = por %p275, %p276
    %p279 = scmp.ne.s32.totalorder %s264, %s278
    %p280 = scmp.eq.s32.totalorder %s27, 0
    %p281 = por %p279, %p280
    %s283 = sadd.s32 %s282, 1
    %p286 = scmp.eq.s32.totalorder %s21, 1
    %p287 = scmp.ne.s32.totalorder %s282, %s284
    %p288 = scmp.eq.s32.totalorder %s21, 0
    %p289 = por %p287, %p288
    %p290 = scmp.ne.s32.totalorder %s282, %s284
    %p291 = scmp.eq.s32.totalorder %s26, 1
    %p292 = por %p290, %p291
    %p293 = scmp.ne.s32.totalorder %s284, %s285
    %p294 = scmp.eq.s32.totalorder %s26, 0
    %p295 = por %p293, %p294
    %p296 = scmp.ne.s32.totalorder %s284, %s285
    %p297 = scmp.eq.s32.totalorder %s27, 1
    %p298 = por %p296, %p297
    %p300 = scmp.ne.s32.totalorder %s285, %s299
    %p301 = scmp.eq.s32.totalorder %s27, 0
    %p302 = por %p300, %p301
    %s304 = sadd.s32 %s303, 1
    %p307 = scmp.eq.s32.totalorder %s21, 1
    %p308 = scmp.ne.s32.totalorder %s303, %s305
    %p309 = scmp.eq.s32.totalorder %s21, 0
    %p310 = por %p308, %p309
    %p311 = scmp.ne.s32.totalorder %s303, %s305
    %p312 = scmp.eq.s32.totalorder %s26, 1
    %p313 = por %p311, %p312
    %p314 = scmp.ne.s32.totalorder %s305, %s306
    %p315 = scmp.eq.s32.totalorder %s26, 0
    %p316 = por %p314, %p315
    %p317 = scmp.ne.s32.totalorder %s305, %s306
    %p318 = scmp.eq.s32.totalorder %s27, 1
    %p319 = por %p317, %p318
    %p321 = scmp.ne.s32.totalorder %s306, %s320
    %p322 = scmp.eq.s32.totalorder %s27, 0
    %p323 = por %p321, %p322
    %s325 = sadd.s32 %s324, 1
    %p328 = scmp.eq.s32.totalorder %s21, 1
    %p329 = scmp.ne.s32.totalorder %s324, %s326
    %p330 = scmp.eq.s32.totalorder %s21, 0
    %p331 = por %p329, %p330
    %p332 = scmp.ne.s32.totalorder %s324, %s326
    %p333 = scmp.eq.s32.totalorder %s26, 1
    %p334 = por %p332, %p333
    %p335 = scmp.ne.s32.totalorder %s326, %s327
    %p336 = scmp.eq.s32.totalorder %s26, 0
    %p337 = por %p335, %p336
    %p338 = scmp.ne.s32.totalorder %s326, %s327
    %p339 = scmp.eq.s32.totalorder %s27, 1
    %p340 = por %p338, %p339
    %p342 = scmp.ne.s32.totalorder %s327, %s341
    %p343 = scmp.eq.s32.totalorder %s27, 0
    %p344 = por %p342, %p343
    %s345 = ssub.s32 %s28, %s40
    %s346 = ssub.s32 %s29, %s36
    %s347 = sor.u32 %s345, %s346
    %p348 = scmp.eq.s32.totalorder %s347, 0
    %s350 = sadd.s32 %s349, 1
    %s351 = scalar_select %p348, %s349, %s350
    %p354 = pneg %p348
    %p355 = scmp.eq.s32.totalorder %s21, 1
    %p356 = por %p354, %p355
    %p357 = scmp.ne.s32.totalorder %s349, %s352
    %p358 = scmp.eq.s32.totalorder %s21, 0
    %p359 = por %p357, %p358
    %p360 = scmp.ne.s32.totalorder %s349, %s352
    %p361 = scmp.eq.s32.totalorder %s26, 1
    %p362 = por %p360, %p361
    %p363 = scmp.ne.s32.totalorder %s352, %s353
    %p364 = scmp.eq.s32.totalorder %s26, 0
    %p365 = por %p363, %p364
    %p366 = scmp.ne.s32.totalorder %s352, %s353
    %p367 = scmp.eq.s32.totalorder %s27, 1
    %p368 = por %p366, %p367
    %p370 = scmp.ne.s32.totalorder %s353, %s369
    %p371 = scmp.eq.s32.totalorder %s27, 0
    %p372 = por %p370, %p371
    %s373 = ssub.s32 %s28, %s40
    %s374 = ssub.s32 %s29, %s36
    %s375 = sor.u32 %s373, %s374
    %p376 = scmp.eq.s32.totalorder %s375, 0
    %s378 = sadd.s32 %s377, 1
    %s379 = scalar_select %p376, %s377, %s378
    %p382 = pneg %p376
    %p383 = scmp.eq.s32.totalorder %s21, 1
    %p384 = por %p382, %p383
    %p385 = scmp.ne.s32.totalorder %s377, %s380
    %p386 = scmp.eq.s32.totalorder %s21, 0
    %p387 = por %p385, %p386
    %p388 = scmp.ne.s32.totalorder %s377, %s380
    %p389 = scmp.eq.s32.totalorder %s26, 1
    %p390 = por %p388, %p389
    %p391 = scmp.ne.s32.totalorder %s380, %s381
    %p392 = scmp.eq.s32.totalorder %s26, 0
    %p393 = por %p391, %p392
    %p394 = scmp.ne.s32.totalorder %s380, %s381
    %p395 = scmp.eq.s32.totalorder %s27, 1
    %p396 = por %p394, %p395
    %p398 = scmp.ne.s32.totalorder %s381, %s397
    %p399 = scmp.eq.s32.totalorder %s27, 0
    %p400 = por %p398, %p399
    %p401 = scmp.le.s32.totalorder 1, %s21
    %p402 = scmp.lt.s32.totalorder %s21, 3
    %p403 = pnand %p401, %p402
    %p404 = pneg %p403
    // Predicated region
    $region9: #{multi_infer_bert_forward.23} parent=5 // pred_check
      _
    $region10: #{multi_infer_bert_forward.23} parent=5 // pred_check_branch
      %406 = sbr.rel (%p403) target = $region12
    $region11: #{multi_infer_bert_forward.23} parent=5 // pred_region
      %s407 = ssub.s32 %s21, 1
      // Predicated region
      $region13: #{multi_infer_bert_forward.23} parent=11 // pred_check
        %p408 = pneg %p190
      $region14: #{multi_infer_bert_forward.23} parent=11 // pred_check_branch
        %410 = sbr.rel (%p408) target = $region16
      $region15: #{multi_infer_bert_forward.23} parent=11 // pred_region
        _
      $region16: #{multi_infer_bert_forward.23} parent=11 // pred_fallthru
        _
      // Predicated region
      $region17: #{multi_infer_bert_forward.23} parent=11 // pred_check
        %p411 = pneg %p211
      $region18: #{multi_infer_bert_forward.23} parent=11 // pred_check_branch
        %413 = sbr.rel (%p411) target = $region20
      $region19: #{multi_infer_bert_forward.23} parent=11 // pred_region
        _
      $region20: #{multi_infer_bert_forward.23} parent=11 // pred_fallthru
        _
      // Predicated region
      $region21: #{multi_infer_bert_forward.23} parent=11 // pred_check
        %p414 = pneg %p232
      $region22: #{multi_infer_bert_forward.23} parent=11 // pred_check_branch
        %416 = sbr.rel (%p414) target = $region24
      $region23: #{multi_infer_bert_forward.23} parent=11 // pred_region
        _
      $region24: #{multi_infer_bert_forward.23} parent=11 // pred_fallthru
        _
      // Predicated region
      $region25: #{multi_infer_bert_forward.23} parent=11 // pred_check
        %p417 = pneg %p253
      $region26: #{multi_infer_bert_forward.23} parent=11 // pred_check_branch
        %419 = sbr.rel (%p417) target = $region28
      $region27: #{multi_infer_bert_forward.23} parent=11 // pred_region
        _
      $region28: #{multi_infer_bert_forward.23} parent=11 // pred_fallthru
        _
      // Predicated region
      $region29: #{multi_infer_bert_forward.23} parent=11 // pred_check
        %p420 = pneg %p274
      $region30: #{multi_infer_bert_forward.23} parent=11 // pred_check_branch
        %422 = sbr.rel (%p420) target = $region32
      $region31: #{multi_infer_bert_forward.23} parent=11 // pred_region
        _
      $region32: #{multi_infer_bert_forward.23} parent=11 // pred_fallthru
        _
      // Predicated region
      $region33: #{multi_infer_bert_forward.23} parent=11 // pred_check
        %p423 = pneg %p295
      $region34: #{multi_infer_bert_forward.23} parent=11 // pred_check_branch
        %425 = sbr.rel (%p423) target = $region36
      $region35: #{multi_infer_bert_forward.23} parent=11 // pred_region
        _
      $region36: #{multi_infer_bert_forward.23} parent=11 // pred_fallthru
        _
      // Predicated region
      $region37: #{multi_infer_bert_forward.23} parent=11 // pred_check
        %p426 = pneg %p316
      $region38: #{multi_infer_bert_forward.23} parent=11 // pred_check_branch
        %428 = sbr.rel (%p426) target = $region40
      $region39: #{multi_infer_bert_forward.23} parent=11 // pred_region
        _
      $region40: #{multi_infer_bert_forward.23} parent=11 // pred_fallthru
        _
      // Predicated region
      $region41: #{multi_infer_bert_forward.23} parent=11 // pred_check
        %p429 = pneg %p337
      $region42: #{multi_infer_bert_forward.23} parent=11 // pred_check_branch
        %431 = sbr.rel (%p429) target = $region44
      $region43: #{multi_infer_bert_forward.23} parent=11 // pred_region
        _
      $region44: #{multi_infer_bert_forward.23} parent=11 // pred_fallthru
        _
    $region12: #{multi_infer_bert_forward.23} parent=5 // pred_fallthru
      _
    %p432 = scmp.lt.s32.totalorder %s21, 2
    // Predicated region
    $region45: #{multi_infer_bert_forward.23} parent=5 // pred_check
      %p433 = pneg %p432
    $region46: #{multi_infer_bert_forward.23} parent=5 // pred_check_branch
      %435 = sbr.rel (%p433) target = $region48
    $region47: #{multi_infer_bert_forward.23} parent=5 // pred_region
      // Predicated region
      $region49: #{multi_infer_bert_forward.23} parent=47 // pred_check
        %p436 = pneg %p55
      $region50: #{multi_infer_bert_forward.23} parent=47 // pred_check_branch
        %438 = sbr.rel (%p436) target = $region52
      $region51: #{multi_infer_bert_forward.23} parent=47 // pred_region
        %p439 = scmp.lt.s32.totalorder %s28, 1
        %s440 = scalar_select %p439, %s28, 1
        %p441 = scmp.lt.s32.totalorder %s29, 0
        %s442 = scalar_select %p441, %s29, 0
        %s443 = sadd.s32 %s442, %s440
        %s444 = smul.addr %s443, 8
        %s445 = scalar_lea.vmem %s0, %s444
      $region52: #{multi_infer_bert_forward.23} parent=47 // pred_fallthru
        _
      // Predicated region
      $region53: #{multi_infer_bert_forward.23} parent=47 // pred_check
        %p446 = pneg %p81
      $region54: #{multi_infer_bert_forward.23} parent=47 // pred_check_branch
        %448 = sbr.rel (%p446) target = $region56
      $region55: #{multi_infer_bert_forward.23} parent=47 // pred_region
        %p449 = scmp.lt.s32.totalorder %s28, 1
        %s450 = scalar_select %p449, %s28, 1
        %s451 = smul.addr %s450, 8
        %s452 = scalar_lea.vmem %s1, %s451
      $region56: #{multi_infer_bert_forward.23} parent=47 // pred_fallthru
        _
      // Predicated region
      $region57: #{multi_infer_bert_forward.23} parent=47 // pred_check
        %p453 = pneg %p109
      $region58: #{multi_infer_bert_forward.23} parent=47 // pred_check_branch
        %455 = sbr.rel (%p453) target = $region60
      $region59: #{multi_infer_bert_forward.23} parent=47 // pred_region
        %p456 = scmp.lt.s32.totalorder %s28, 1
        %s457 = scalar_select %p456, %s28, 1
        %p458 = scmp.lt.s32.totalorder %s29, 0
        %s459 = scalar_select %p458, %s29, 0
        %s460 = sadd.s32 %s459, %s457
        %s461 = smul.addr %s460, 8
        %s462 = scalar_lea.vmem %s2, %s461
      $region60: #{multi_infer_bert_forward.23} parent=47 // pred_fallthru
        _
      // Predicated region
      $region61: #{multi_infer_bert_forward.23} parent=47 // pred_check
        %p463 = pneg %p135
      $region62: #{multi_infer_bert_forward.23} parent=47 // pred_check_branch
        %465 = sbr.rel (%p463) target = $region64
      $region63: #{multi_infer_bert_forward.23} parent=47 // pred_region
        %p466 = scmp.lt.s32.totalorder %s28, 1
        %s467 = scalar_select %p466, %s28, 1
        %s468 = smul.addr %s467, 8
        %s469 = scalar_lea.vmem %s3, %s468
      $region64: #{multi_infer_bert_forward.23} parent=47 // pred_fallthru
        _
      // Predicated region
      $region65: #{multi_infer_bert_forward.23} parent=47 // pred_check
        %p470 = pneg %p163
      $region66: #{multi_infer_bert_forward.23} parent=47 // pred_check_branch
        %472 = sbr.rel (%p470) target = $region68
      $region67: #{multi_infer_bert_forward.23} parent=47 // pred_region
        %s473 = smul.u32 8, %s29
        %p474 = scmp.lt.s32.totalorder %s28, 1
        %s475 = scalar_select %p474, %s28, 1
        %p476 = scmp.lt.s32.totalorder %s473, 7
        %s477 = scalar_select %p476, %s473, 7
        %s478 = smul.addr %s475, 8
        %s479 = sadd.s32 %s477, %s478
        %s480 = smul.addr %s479, 8
        %s481 = scalar_lea.vmem %s4, %s480
        %s482 = smul.u32 8, %s29
      $region68: #{multi_infer_bert_forward.23} parent=47 // pred_fallthru
        _
    $region48: #{multi_infer_bert_forward.23} parent=5 // pred_fallthru
      _
    %p483 = scmp.le.s32.totalorder 1, %s21
    %p484 = scmp.lt.s32.totalorder %s21, 3
    %p485 = pnand %p483, %p484
    %p486 = pneg %p485
    // Predicated region
    $region69: #{multi_infer_bert_forward.23} parent=5 // pred_check
      _
    $region70: #{multi_infer_bert_forward.23} parent=5 // pred_check_branch
      %488 = sbr.rel (%p485) target = $region72
    $region71: #{multi_infer_bert_forward.23} parent=5 // pred_region
      %s489 = ssub.s32 %s21, 1
      %p490 = scmp.lt.s32.totalorder %s30, 1
      %s491 = scalar_select %p490, %s30, 1
      %p492 = scmp.lt.s32.totalorder %s31, 0
      %s493 = scalar_select %p492, %s31, 0
      %s494 = sadd.s32 %s493, %s491
      %s495 = smul.addr %s494, 8
      %s496 = scalar_lea.vmem %s0, %s495
      %p497 = pneg %p61
      %p498 = pneg %p58
      %p499 = scmp.lt.s32.totalorder %s30, 1
      %s500 = scalar_select %p499, %s30, 1
      %s501 = smul.addr %s500, 8
      %s502 = scalar_lea.vmem %s1, %s501
      %p503 = pneg %p87
      %p504 = pneg %p84
      %p505 = scmp.lt.s32.totalorder %s30, 1
      %s506 = scalar_select %p505, %s30, 1
      %p507 = scmp.lt.s32.totalorder %s31, 0
      %s508 = scalar_select %p507, %s31, 0
      %s509 = sadd.s32 %s508, %s506
      %s510 = smul.addr %s509, 8
      %s511 = scalar_lea.vmem %s2, %s510
      %p512 = pneg %p115
      %p513 = pneg %p112
      %p514 = scmp.lt.s32.totalorder %s30, 1
      %s515 = scalar_select %p514, %s30, 1
      %s516 = smul.addr %s515, 8
      %s517 = scalar_lea.vmem %s3, %s516
      %p518 = pneg %p141
      %p519 = pneg %p138
      %s520 = smul.u32 8, %s31
      %p521 = scmp.lt.s32.totalorder %s30, 1
      %s522 = scalar_select %p521, %s30, 1
      %p523 = scmp.lt.s32.totalorder %s520, 7
      %s524 = scalar_select %p523, %s520, 7
      %s525 = smul.addr %s522, 8
      %s526 = sadd.s32 %s524, %s525
      %s527 = smul.addr %s526, 8
      %s528 = scalar_lea.vmem %s4, %s527
      %p529 = pneg %p169
      %p530 = pneg %p166
      %p531 = pneg %p190
      %p532 = pneg %p187
      %p533 = pneg %p211
      %p534 = pneg %p208
      %p535 = pneg %p232
      %p536 = pneg %p229
      %p537 = pneg %p253
      %p538 = pneg %p250
      %p539 = pneg %p274
      %p540 = pneg %p271
      %p541 = pneg %p295
      %p542 = pneg %p292
      %p543 = pneg %p316
      %p544 = pneg %p313
      %p545 = pneg %p337
      %p546 = pneg %p334
      %p547 = pneg %p365
      %p548 = pneg %p362
      %s549 = smul.u32 8, %s31
      %p550 = scmp.lt.s32.totalorder %s30, 1
      %s551 = scalar_select %p550, %s30, 1
      %p552 = scmp.lt.s32.totalorder %s549, 7
      %s553 = scalar_select %p552, %s549, 7
      %s554 = smul.addr %s551, 8
      %s555 = sadd.s32 %s553, %s554
      %s556 = smul.addr %s555, 8
      %s557 = scalar_lea.vmem %s13, %s556
      %p558 = pneg %p393
      %p559 = pneg %p390
      %s560 = smul.u32 8, %s31
      %p561 = scmp.lt.s32.totalorder %s30, 1
      %s562 = scalar_select %p561, %s30, 1
      %p563 = scmp.lt.s32.totalorder %s560, 7
      %s564 = scalar_select %p563, %s560, 7
      %s565 = smul.addr %s562, 8
      %s566 = sadd.s32 %s564, %s565
      %s567 = smul.addr %s566, 8
      %s568 = scalar_lea.vmem %s14, %s567
      %p569 = scmp.lt.s32.totalorder %s30, 1
      %s570 = scalar_select %p569, %s30, 1
      %p571 = scmp.lt.s32.totalorder %s31, 0
      %s572 = scalar_select %p571, %s31, 0
      %s573 = sadd.s32 %s572, %s570
      %s574 = smul.addr %s573, 8
      %s575 = scalar_lea.vmem %s0, %s574
      %p576 = scmp.lt.s32.totalorder %s30, 1
      %s577 = scalar_select %p576, %s30, 1
      %s578 = smul.addr %s577, 8
      %s579 = scalar_lea.vmem %s1, %s578
      %p580 = scmp.lt.s32.totalorder %s30, 1
      %s581 = scalar_select %p580, %s30, 1
      %p582 = scmp.lt.s32.totalorder %s31, 0
      %s583 = scalar_select %p582, %s31, 0
      %s584 = sadd.s32 %s583, %s581
      %s585 = smul.addr %s584, 8
      %s586 = scalar_lea.vmem %s2, %s585
      %p587 = scmp.lt.s32.totalorder %s30, 1
      %s588 = scalar_select %p587, %s30, 1
      %s589 = smul.addr %s588, 8
      %s590 = scalar_lea.vmem %s3, %s589
      %s591 = smul.u32 8, %s31
      %p592 = scmp.lt.s32.totalorder %s30, 1
      %s593 = scalar_select %p592, %s30, 1
      %p594 = scmp.lt.s32.totalorder %s591, 7
      %s595 = scalar_select %p594, %s591, 7
      %s596 = smul.addr %s593, 8
      %s597 = sadd.s32 %s595, %s596
      %s598 = smul.addr %s597, 8
      %s599 = scalar_lea.vmem %s4, %s598
      %s600 = smul.u32 8, %s31
      %s601 = smul.u32 8, %s31
      %p602 = scmp.lt.s32.totalorder %s30, 1
      %s603 = scalar_select %p602, %s30, 1
      %p604 = scmp.lt.s32.totalorder %s601, 7
      %s605 = scalar_select %p604, %s601, 7
      %s606 = smul.addr %s603, 8
      %s607 = sadd.s32 %s605, %s606
      %s608 = smul.addr %s607, 8
      %s609 = scalar_lea.vmem %s13, %s608
      %s610 = smul.u32 8, %s31
      %s611 = smul.u32 8, %s31
      %p612 = scmp.lt.s32.totalorder %s30, 1
      %s613 = scalar_select %p612, %s30, 1
      %p614 = scmp.lt.s32.totalorder %s611, 7
      %s615 = scalar_select %p614, %s611, 7
      %s616 = smul.addr %s613, 8
      %s617 = sadd.s32 %s615, %s616
      %s618 = smul.addr %s617, 8
      %s619 = scalar_lea.vmem %s14, %s618
      %s620 = smul.u32 8, %s31
      %v622 = vld [vmem:[%s599] sm:$0xff]
      %v623 = vld [vmem:[%s599 + $0x8] sm:$0xff]
      %v624 = vld [vmem:[%s599 + $0x10] sm:$0xff]
      %v625 = vld [vmem:[%s599 + $0x18] sm:$0xff]
      %v626 = vld [vmem:[%s599 + $0x20] sm:$0xff]
      %v627 = vld [vmem:[%s599 + $0x28] sm:$0xff]
      %v628 = vld [vmem:[%s599 + $0x30] sm:$0xff]
      %v629 = vld [vmem:[%s599 + $0x38] sm:$0xff]
      %v630 = vld [vmem:[%s575] sm:$0xff]
      %v631 = vpack.c.bf16 %v630, %v630
      %v632 = vld [vmem:[%s5] sm:$0xf]
      %v633 = vld [vmem:[%s5 + $0x4] sm:$0xf]
      %v634 = vld [vmem:[%s5 + $0x8] sm:$0xf]
      %v635 = vld [vmem:[%s5 + $0xc] sm:$0xf]
      %v636 = vld [vmem:[%s586] sm:$0xff]
      %v637 = vld [vmem:[%s7] sm:$0x3f]
      %vm638 = vcmask 48128
      %v640 = vsel %vm638, %v636, 0
      %vm642 = vcmask 1045504
      %v644 = vsel %vm642, %v637, 0
      %646 = vmatprep.subr.mxu0 0.0
      %647 = vmatpush1.msra.mxu0 %v644
      %648 = vmatprep.subr.mxu0 0.0
      %649 = vmatpush1.msra.mxu0 0.0
      %650 = vmatprep.subr.mxu0 0.0
      %651 = vmatpush1.msra.mxu0 0.0
      %652 = vmatprep.subr.mxu0 0.0
      %653 = vmatpush1.msra.mxu0 0.0
      %654 = vmatprep.subr.mxu0 0.0
      %655 = vmatpush1.msra.mxu0 0.0
      %656 = vmatprep.subr.mxu0 0.0
      %657 = vmatpush1.msra.mxu0 0.0
      %658 = vmatprep.subr.mxu0 0.0
      %659 = vmatpush1.msra.mxu0 0.0
      %660 = vmatprep.subr.mxu0 0.0
      %661 = vmatpush1.msra.mxu0 0.0
      %662 = vmatprep.subr.mxu0 0.0
      %663 = vmatpush1.msra.mxu0 0.0
      %664 = vmatprep.subr.mxu0 0.0
      %665 = vmatpush1.msra.mxu0 0.0
      %666 = vmatprep.subr.mxu0 0.0
      %667 = vmatpush1.msra.mxu0 0.0
      %668 = vmatprep.subr.mxu0 0.0
      %669 = vmatpush1.msra.mxu0 0.0
      %670 = vmatprep.subr.mxu0 0.0
      %671 = vmatpush1.msra.mxu0 0.0
      %672 = vmatprep.subr.mxu0 0.0
      %673 = vmatpush1.msra.mxu0 0.0
      %674 = vmatprep.subr.mxu0 0.0
      %675 = vmatpush1.msra.mxu0 0.0
      %676 = vmatprep.subr.mxu0 0.0
      %677 = vmatpush1.msra.mxu0 0.0
      %678 = vmatprep.subr.mxu0 0.0
      %679 = vmatpush1.msra.mxu0 0.0
      %680 = vmatprep.subr.mxu0 0.0
      %681 = vmatpush1.msra.mxu0 0.0
      %682 = vmatprep.subr.mxu0 0.0
      %683 = vmatpush1.msra.mxu0 0.0
      %684 = vmatprep.subr.mxu0 0.0
      %685 = vmatpush1.msra.mxu0 0.0
      %686 = vmatprep.subr.mxu0 0.0
      %687 = vmatpush1.msra.mxu0 0.0
      %688 = vmatprep.subr.mxu0 0.0
      %689 = vmatpush1.msra.mxu0 0.0
      %690 = vmatprep.subr.mxu0 0.0
      %691 = vmatpush1.msra.mxu0 0.0
      %692 = vmatprep.subr.mxu0 0.0
      %693 = vmatpush1.msra.mxu0 0.0
      %694 = vmatprep.subr.mxu0 0.0
      %695 = vmatpush1.msra.mxu0 0.0
      %696 = vmatprep.subr.mxu0 0.0
      %697 = vmatpush1.msra.mxu0 0.0
      %698 = vmatprep.subr.mxu0 0.0
      %699 = vmatpush1.msra.mxu0 0.0
      %700 = vmatprep.subr.mxu0 0.0
      %701 = vmatpush1.msra.mxu0 0.0
      %702 = vmatprep.subr.mxu0 0.0
      %703 = vmatpush1.msra.mxu0 0.0
      %704 = vmatprep.subr.mxu0 0.0
      %705 = vmatpush1.msra.mxu0 0.0
      %706 = vmatprep.subr.mxu0 0.0
      %707 = vmatpush1.msra.mxu0 0.0
      %708 = vmatprep.subr.mxu0 0.0
      %709 = vmatpush1.msra.mxu0 0.0
      %710 = vmatprep.mubr.f32.mxu0 0.0
      %711 = vmatmul.mubr.f32.gmra.mrb[0].mxu0 %v640
      %v712 = vpop.f32.mrb[0].mxu0
      %v713 = vadd.f32 0.0, %v712
      %v714 = vpop.f32.mrb[0].mxu0
      %715 = vdwg.mxu0
      %v720 = vunpack.c.l.b16 %v632
      %v721 = vunpack.c.l.b16 %v633
      %v722 = vunpack.c.l.b16 %v634
      %v723 = vunpack.c.l.b16 %v635
      %v724 = vpack.c.b16 %v721, %v720
      %v725 = vpack.c.b16 %v723, %v722
      %vm728 = vcmask 261120
      %v730 = vsel %vm728, %v631, 0
      %732 = vmatprep.subr.bf16.mxu0 0
      %733 = vmatpush1.bf16.msra.mxu0 %v724
      %734 = vmatprep.subr.bf16.mxu0 0
      %735 = vmatpush1.bf16.msra.mxu0 %v725
      %736 = vmatprep.subr.bf16.mxu0 0
      %737 = vmatpush1.bf16.msra.mxu0 0
      %738 = vmatprep.subr.bf16.mxu0 0
      %739 = vmatpush1.bf16.msra.mxu0 0
      %740 = vmatprep.subr.bf16.mxu0 0
      %741 = vmatpush1.bf16.msra.mxu0 0
      %742 = vmatprep.subr.bf16.mxu0 0
      %743 = vmatpush1.bf16.msra.mxu0 0
      %744 = vmatprep.subr.bf16.mxu0 0
      %745 = vmatpush1.bf16.msra.mxu0 0
      %746 = vmatprep.subr.bf16.mxu0 0
      %747 = vmatpush1.bf16.msra.mxu0 0
      %748 = vmatprep.subr.bf16.mxu0 0
      %749 = vmatpush1.bf16.msra.mxu0 0
      %750 = vmatprep.subr.bf16.mxu0 0
      %751 = vmatpush1.bf16.msra.mxu0 0
      %752 = vmatprep.subr.bf16.mxu0 0
      %753 = vmatpush1.bf16.msra.mxu0 0
      %754 = vmatprep.subr.bf16.mxu0 0
      %755 = vmatpush1.bf16.msra.mxu0 0
      %756 = vmatprep.subr.bf16.mxu0 0
      %757 = vmatpush1.bf16.msra.mxu0 0
      %758 = vmatprep.subr.bf16.mxu0 0
      %759 = vmatpush1.bf16.msra.mxu0 0
      %760 = vmatprep.subr.bf16.mxu0 0
      %761 = vmatpush1.bf16.msra.mxu0 0
      %762 = vmatprep.subr.bf16.mxu0 0
      %763 = vmatpush1.bf16.msra.mxu0 0
      %764 = vmatprep.mubr.bf16.mxu0 0
      %765 = vmatmul.mubr.bf16.gmra.mrb[0].mxu0 %v730
      %v766 = vpop.f32.mrb[0].mxu0
      %v767 = vadd.f32 %v713, %v766
      %v768 = vpop.f32.mrb[0].mxu0
      %v769 = vpop.f32.mrb[0].mxu0
      %v770 = vpop.f32.mrb[0].mxu0
      %771 = vdwg.mxu0
      %v772 = vld [vmem:[%s579] sm:$0xff]
      %v773 = vpack.c.bf16 %v772, %v772
      %v774 = vld [vmem:[%s6] sm:$0xf]
      %v775 = vld [vmem:[%s6 + $0x4] sm:$0xf]
      %v776 = vld [vmem:[%s6 + $0x8] sm:$0xf]
      %v777 = vld [vmem:[%s6 + $0xc] sm:$0xf]
      %v778 = vld [vmem:[%s590] sm:$0xff]
      %v779 = vld [vmem:[%s8] sm:$0x3f]
      %v781 = vsel %vm638, %v778, 0
      %v784 = vsel %vm642, %v779, 0
      %786 = vmatprep.subr.mxu0 0.0
      %787 = vmatpush1.msra.mxu0 %v784
      %788 = vmatprep.subr.mxu0 0.0
      %789 = vmatpush1.msra.mxu0 0.0
      %790 = vmatprep.subr.mxu0 0.0
      %791 = vmatpush1.msra.mxu0 0.0
      %792 = vmatprep.subr.mxu0 0.0
      %793 = vmatpush1.msra.mxu0 0.0
      %794 = vmatprep.subr.mxu0 0.0
      %795 = vmatpush1.msra.mxu0 0.0
      %796 = vmatprep.subr.mxu0 0.0
      %797 = vmatpush1.msra.mxu0 0.0
      %798 = vmatprep.subr.mxu0 0.0
      %799 = vmatpush1.msra.mxu0 0.0
      %800 = vmatprep.subr.mxu0 0.0
      %801 = vmatpush1.msra.mxu0 0.0
      %802 = vmatprep.subr.mxu0 0.0
      %803 = vmatpush1.msra.mxu0 0.0
      %804 = vmatprep.subr.mxu0 0.0
      %805 = vmatpush1.msra.mxu0 0.0
      %806 = vmatprep.subr.mxu0 0.0
      %807 = vmatpush1.msra.mxu0 0.0
      %808 = vmatprep.subr.mxu0 0.0
      %809 = vmatpush1.msra.mxu0 0.0
      %810 = vmatprep.subr.mxu0 0.0
      %811 = vmatpush1.msra.mxu0 0.0
      %812 = vmatprep.subr.mxu0 0.0
      %813 = vmatpush1.msra.mxu0 0.0
      %814 = vmatprep.subr.mxu0 0.0
      %815 = vmatpush1.msra.mxu0 0.0
      %816 = vmatprep.subr.mxu0 0.0
      %817 = vmatpush1.msra.mxu0 0.0
      %818 = vmatprep.subr.mxu0 0.0
      %819 = vmatpush1.msra.mxu0 0.0
      %820 = vmatprep.subr.mxu0 0.0
      %821 = vmatpush1.msra.mxu0 0.0
      %822 = vmatprep.subr.mxu0 0.0
      %823 = vmatpush1.msra.mxu0 0.0
      %824 = vmatprep.subr.mxu0 0.0
      %825 = vmatpush1.msra.mxu0 0.0
      %826 = vmatprep.subr.mxu0 0.0
      %827 = vmatpush1.msra.mxu0 0.0
      %828 = vmatprep.subr.mxu0 0.0
      %829 = vmatpush1.msra.mxu0 0.0
      %830 = vmatprep.subr.mxu0 0.0
      %831 = vmatpush1.msra.mxu0 0.0
      %832 = vmatprep.subr.mxu0 0.0
      %833 = vmatpush1.msra.mxu0 0.0
      %834 = vmatprep.subr.mxu0 0.0
      %835 = vmatpush1.msra.mxu0 0.0
      %836 = vmatprep.subr.mxu0 0.0
      %837 = vmatpush1.msra.mxu0 0.0
      %838 = vmatprep.subr.mxu0 0.0
      %839 = vmatpush1.msra.mxu0 0.0
      %840 = vmatprep.subr.mxu0 0.0
      %841 = vmatpush1.msra.mxu0 0.0
      %842 = vmatprep.subr.mxu0 0.0
      %843 = vmatpush1.msra.mxu0 0.0
      %844 = vmatprep.subr.mxu0 0.0
      %845 = vmatpush1.msra.mxu0 0.0
      %846 = vmatprep.subr.mxu0 0.0
      %847 = vmatpush1.msra.mxu0 0.0
      %848 = vmatprep.subr.mxu0 0.0
      %849 = vmatpush1.msra.mxu0 0.0
      %850 = vmatprep.mubr.f32.mxu0 0.0
      %851 = vmatmul.mubr.f32.gmra.mrb[0].mxu0 %v781
      %v852 = vpop.f32.mrb[0].mxu0
      %v853 = vadd.f32 0.0, %v852
      %v854 = vpop.f32.mrb[0].mxu0
      %855 = vdwg.mxu0
      %v860 = vunpack.c.l.b16 %v774
      %v861 = vunpack.c.l.b16 %v775
      %v862 = vunpack.c.l.b16 %v776
      %v863 = vunpack.c.l.b16 %v777
      %v864 = vpack.c.b16 %v861, %v860
      %v865 = vpack.c.b16 %v863, %v862
      %v869 = vsel %vm728, %v773, 0
      %871 = vmatprep.subr.bf16.mxu0 0
      %872 = vmatpush1.bf16.msra.mxu0 %v864
      %873 = vmatprep.subr.bf16.mxu0 0
      %874 = vmatpush1.bf16.msra.mxu0 %v865
      %875 = vmatprep.subr.bf16.mxu0 0
      %876 = vmatpush1.bf16.msra.mxu0 0
      %877 = vmatprep.subr.bf16.mxu0 0
      %878 = vmatpush1.bf16.msra.mxu0 0
      %879 = vmatprep.subr.bf16.mxu0 0
      %880 = vmatpush1.bf16.msra.mxu0 0
      %881 = vmatprep.subr.bf16.mxu0 0
      %882 = vmatpush1.bf16.msra.mxu0 0
      %883 = vmatprep.subr.bf16.mxu0 0
      %884 = vmatpush1.bf16.msra.mxu0 0
      %885 = vmatprep.subr.bf16.mxu0 0
      %886 = vmatpush1.bf16.msra.mxu0 0
      %887 = vmatprep.subr.bf16.mxu0 0
      %888 = vmatpush1.bf16.msra.mxu0 0
      %889 = vmatprep.subr.bf16.mxu0 0
      %890 = vmatpush1.bf16.msra.mxu0 0
      %891 = vmatprep.subr.bf16.mxu0 0
      %892 = vmatpush1.bf16.msra.mxu0 0
      %893 = vmatprep.subr.bf16.mxu0 0
      %894 = vmatpush1.bf16.msra.mxu0 0
      %895 = vmatprep.subr.bf16.mxu0 0
      %896 = vmatpush1.bf16.msra.mxu0 0
      %897 = vmatprep.subr.bf16.mxu0 0
      %898 = vmatpush1.bf16.msra.mxu0 0
      %899 = vmatprep.subr.bf16.mxu0 0
      %900 = vmatpush1.bf16.msra.mxu0 0
      %901 = vmatprep.subr.bf16.mxu0 0
      %902 = vmatpush1.bf16.msra.mxu0 0
      %903 = vmatprep.mubr.bf16.mxu0 0
      %904 = vmatmul.mubr.bf16.gmra.mrb[0].mxu0 %v869
      %v905 = vpop.f32.mrb[0].mxu0
      %v906 = vadd.f32 %v853, %v905
      %v907 = vpop.f32.mrb[0].mxu0
      %v908 = vpop.f32.mrb[0].mxu0
      %v909 = vpop.f32.mrb[0].mxu0
      %910 = vdwg.mxu0
      %v911 = vld [vmem:[%s9] sm:$0x3f]
      %v913 = vsel %vm638, %v622, 0
      %v916 = vsel %vm638, %v623, 0
      %v919 = vsel %vm638, %v624, 0
      %v922 = vsel %vm638, %v625, 0
      %v925 = vsel %vm638, %v626, 0
      %v928 = vsel %vm638, %v627, 0
      %v931 = vsel %vm638, %v628, 0
      %v934 = vsel %vm638, %v629, 0
      %v937 = vsel %vm642, %v911, 0
      %939 = vmatprep.subr.mxu0 0.0
      %940 = vmatpush1.msra.mxu0 %v937
      %941 = vmatprep.subr.mxu0 0.0
      %942 = vmatpush1.msra.mxu0 0.0
      %943 = vmatprep.subr.mxu0 0.0
      %944 = vmatpush1.msra.mxu0 0.0
      %945 = vmatprep.subr.mxu0 0.0
      %946 = vmatpush1.msra.mxu0 0.0
      %947 = vmatprep.subr.mxu0 0.0
      %948 = vmatpush1.msra.mxu0 0.0
      %949 = vmatprep.subr.mxu0 0.0
      %950 = vmatpush1.msra.mxu0 0.0
      %951 = vmatprep.subr.mxu0 0.0
      %952 = vmatpush1.msra.mxu0 0.0
      %953 = vmatprep.subr.mxu0 0.0
      %954 = vmatpush1.msra.mxu0 0.0
      %955 = vmatprep.subr.mxu0 0.0
      %956 = vmatpush1.msra.mxu0 0.0
      %957 = vmatprep.subr.mxu0 0.0
      %958 = vmatpush1.msra.mxu0 0.0
      %959 = vmatprep.subr.mxu0 0.0
      %960 = vmatpush1.msra.mxu0 0.0
      %961 = vmatprep.subr.mxu0 0.0
      %962 = vmatpush1.msra.mxu0 0.0
      %963 = vmatprep.subr.mxu0 0.0
      %964 = vmatpush1.msra.mxu0 0.0
      %965 = vmatprep.subr.mxu0 0.0
      %966 = vmatpush1.msra.mxu0 0.0
      %967 = vmatprep.subr.mxu0 0.0
      %968 = vmatpush1.msra.mxu0 0.0
      %969 = vmatprep.subr.mxu0 0.0
      %970 = vmatpush1.msra.mxu0 0.0
      %971 = vmatprep.subr.mxu0 0.0
      %972 = vmatpush1.msra.mxu0 0.0
      %973 = vmatprep.subr.mxu0 0.0
      %974 = vmatpush1.msra.mxu0 0.0
      %975 = vmatprep.subr.mxu0 0.0
      %976 = vmatpush1.msra.mxu0 0.0
      %977 = vmatprep.subr.mxu0 0.0
      %978 = vmatpush1.msra.mxu0 0.0
      %979 = vmatprep.subr.mxu0 0.0
      %980 = vmatpush1.msra.mxu0 0.0
      %981 = vmatprep.subr.mxu0 0.0
      %982 = vmatpush1.msra.mxu0 0.0
      %983 = vmatprep.subr.mxu0 0.0
      %984 = vmatpush1.msra.mxu0 0.0
      %985 = vmatprep.subr.mxu0 0.0
      %986 = vmatpush1.msra.mxu0 0.0
      %987 = vmatprep.subr.mxu0 0.0
      %988 = vmatpush1.msra.mxu0 0.0
      %989 = vmatprep.subr.mxu0 0.0
      %990 = vmatpush1.msra.mxu0 0.0
      %991 = vmatprep.subr.mxu0 0.0
      %992 = vmatpush1.msra.mxu0 0.0
      %993 = vmatprep.subr.mxu0 0.0
      %994 = vmatpush1.msra.mxu0 0.0
      %995 = vmatprep.subr.mxu0 0.0
      %996 = vmatpush1.msra.mxu0 0.0
      %997 = vmatprep.subr.mxu0 0.0
      %998 = vmatpush1.msra.mxu0 0.0
      %999 = vmatprep.subr.mxu0 0.0
      %1000 = vmatpush1.msra.mxu0 0.0
      %1001 = vmatprep.subr.mxu0 0.0
      %1002 = vmatpush1.msra.mxu0 0.0
      %1003 = vmatprep.mubr.f32.mxu0 0.0
      %1004 = vmatmul.mubr.f32.gmra.mrb[0].mxu0 %v913
      %v1005 = vpop.f32.mrb[0].mxu0
      %v1006 = vadd.f32 0.0, %v1005
      %v1007 = vpop.f32.mrb[0].mxu0
      %1008 = vmatprep.mubr.f32.mxu0 0.0
      %1009 = vmatmul.mubr.f32.gmra.mrb[0].mxu0 %v916
      %v1010 = vpop.f32.mrb[0].mxu0
      %v1011 = vadd.f32 0.0, %v1010
      %v1012 = vpop.f32.mrb[0].mxu0
      %1013 = vmatprep.mubr.f32.mxu0 0.0
      %1014 = vmatmul.mubr.f32.gmra.mrb[0].mxu0 %v919
      %v1015 = vpop.f32.mrb[0].mxu0
      %v1016 = vadd.f32 0.0, %v1015
      %v1017 = vpop.f32.mrb[0].mxu0
      %1018 = vmatprep.mubr.f32.mxu0 0.0
      %1019 = vmatmul.mubr.f32.gmra.mrb[0].mxu0 %v922
      %v1020 = vpop.f32.mrb[0].mxu0
      %v1021 = vadd.f32 0.0, %v1020
      %v1022 = vpop.f32.mrb[0].mxu0
      %1023 = vmatprep.mubr.f32.mxu0 0.0
      %1024 = vmatmul.mubr.f32.gmra.mrb[0].mxu0 %v925
      %v1025 = vpop.f32.mrb[0].mxu0
      %v1026 = vadd.f32 0.0, %v1025
      %v1027 = vpop.f32.mrb[0].mxu0
      %1028 = vmatprep.mubr.f32.mxu0 0.0
      %1029 = vmatmul.mubr.f32.gmra.mrb[0].mxu0 %v928
      %v1030 = vpop.f32.mrb[0].mxu0
      %v1031 = vadd.f32 0.0, %v1030
      %v1032 = vpop.f32.mrb[0].mxu0
      %1033 = vmatprep.mubr.f32.mxu0 0.0
      %1034 = vmatmul.mubr.f32.gmra.mrb[0].mxu0 %v931
      %v1035 = vpop.f32.mrb[0].mxu0
      %v1036 = vadd.f32 0.0, %v1035
      %v1037 = vpop.f32.mrb[0].mxu0
      %1038 = vmatprep.mubr.f32.mxu0 0.0
      %1039 = vmatmul.mubr.f32.gmra.mrb[0].mxu0 %v934
      %v1040 = vpop.f32.mrb[0].mxu0
      %v1041 = vadd.f32 0.0, %v1040
      %v1042 = vpop.f32.mrb[0].mxu0
      %1043 = vdwg.mxu0
      %v1045 = vcombine.high %v767, %v767
      %v1047 = vunpack.c.l.s4 1966171168
      %v1048 = vunpack.c.0.s8 %v1047
      %v1049 = vlaneseq
      %v1050 = vshrl.u32 %v1049, 7
      %v1051 = vsub.s32 %v1048, %v1050
      %v1052 = vrot.slane %v767, %v1051
      %v1054 = vunpack.c.l.s4 1966171168
      %v1055 = vunpack.c.0.s8 %v1054
      %v1056 = vlaneseq
      %v1057 = vshrl.u32 %v1056, 7
      %v1058 = vsub.s32 %v1055, %v1057
      %v1059 = vrot.slane %v1045, %v1058
      %v1060 = vcombine.high %v1052, %v1052
      %v1061 = vcombine.high %v1059, %v1059
      %v1063 = vunpack.c.l.s4 1966171168
      %v1064 = vunpack.c.0.s8 %v1063
      %v1065 = vlaneseq
      %v1066 = vshrl.u32 %v1065, 7
      %v1067 = vsub.s32 %v1064, %v1066
      %v1068 = vrot.slane %v1052, %v1067
      %v1070 = vunpack.c.l.s4 1966171168
      %v1071 = vunpack.c.0.s8 %v1070
      %v1072 = vlaneseq
      %v1073 = vshrl.u32 %v1072, 7
      %v1074 = vsub.s32 %v1071, %v1073
      %v1075 = vrot.slane %v1059, %v1074
      %v1077 = vunpack.c.l.s4 1966171168
      %v1078 = vunpack.c.0.s8 %v1077
      %v1079 = vlaneseq
      %v1080 = vshrl.u32 %v1079, 7
      %v1081 = vsub.s32 %v1078, %v1080
      %v1082 = vrot.slane %v1060, %v1081
      %v1084 = vunpack.c.l.s4 1966171168
      %v1085 = vunpack.c.0.s8 %v1084
      %v1086 = vlaneseq
      %v1087 = vshrl.u32 %v1086, 7
      %v1088 = vsub.s32 %v1085, %v1087
      %v1089 = vrot.slane %v1061, %v1088
      %v1090 = vcombine.high %v1068, %v1068
      %v1091 = vcombine.high %v1075, %v1075
      %v1092 = vcombine.high %v1082, %v1082
      %v1093 = vcombine.high %v1089, %v1089
      %v1094 = vlaneseq
      %v1095 = vshrl.u32 %v1094, 7
      %v1096 = vsub.s32 0, %v1095
      %v1097 = vrot.slane %v1068, %v1096
      %v1098 = vlaneseq
      %v1099 = vshrl.u32 %v1098, 7
      %v1100 = vsub.s32 0, %v1099
      %v1101 = vrot.slane %v1082, %v1100
      %v1102 = vlaneseq
      %v1103 = vshrl.u32 %v1102, 7
      %v1104 = vsub.s32 0, %v1103
      %v1105 = vrot.slane %v1090, %v1104
      %v1106 = vlaneseq
      %v1107 = vshrl.u32 %v1106, 7
      %v1108 = vsub.s32 0, %v1107
      %v1109 = vrot.slane %v1092, %v1108
      %v1110 = vlaneseq
      %v1111 = vshrl.u32 %v1110, 7
      %v1112 = vsub.s32 0, %v1111
      %v1113 = vrot.slane %v1075, %v1112
      %v1114 = vlaneseq
      %v1115 = vshrl.u32 %v1114, 7
      %v1116 = vsub.s32 0, %v1115
      %v1117 = vrot.slane %v1089, %v1116
      %v1118 = vlaneseq
      %v1119 = vshrl.u32 %v1118, 7
      %v1120 = vsub.s32 0, %v1119
      %v1121 = vrot.slane %v1091, %v1120
      %v1122 = vlaneseq
      %v1123 = vshrl.u32 %v1122, 7
      %v1124 = vsub.s32 0, %v1123
      %v1125 = vrot.slane %v1093, %v1124
      %v1134 = vadd.f32 %v1097, %v906
      %v1135 = vadd.f32 %v1101, %v906
      %v1136 = vadd.f32 %v1105, %v906
      %v1137 = vadd.f32 %v1109, %v906
      %v1138 = vadd.f32 %v1113, %v906
      %v1139 = vadd.f32 %v1117, %v906
      %v1140 = vadd.f32 %v1121, %v906
      %v1141 = vadd.f32 %v1125, %v906
      %v1142 = vadd.f32 %v1134, %v1006
      %v1143 = vadd.f32 %v1135, %v1011
      %v1144 = vadd.f32 %v1136, %v1016
      %v1145 = vadd.f32 %v1137, %v1021
      %v1146 = vadd.f32 %v1138, %v1026
      %v1147 = vadd.f32 %v1139, %v1031
      %v1148 = vadd.f32 %v1140, %v1036
      %v1149 = vadd.f32 %v1141, %v1041
      %v1150 = vld [vmem:[%s10] sm:$0x1]
      %v1152 = vlaneseq
      %v1153 = vshrl.u32 %v1152, 7
      %v1154 = vsub.s32 0, %v1153
      %v1155 = vrot.slane %v1150, %v1154
      %v1157 = vadd.f32 %v1142, %v1155
      %v1158 = vadd.f32 %v1143, %v1155
      %v1159 = vadd.f32 %v1144, %v1155
      %v1160 = vadd.f32 %v1145, %v1155
      %v1161 = vadd.f32 %v1146, %v1155
      %v1162 = vadd.f32 %v1147, %v1155
      %v1163 = vadd.f32 %v1148, %v1155
      %v1164 = vadd.f32 %v1149, %v1155
      %v1165 = vpack.c.bf16 %v1158, %v1157
      %v1166 = vpack.c.bf16 %v1160, %v1159
      %v1167 = vpack.c.bf16 %v1162, %v1161
      %v1168 = vpack.c.bf16 %v1164, %v1163
      %v1169 = vld [vmem:[%s11] sm:$0xf]
      %v1170 = vld [vmem:[%s11 + $0x4] sm:$0xf]
      %v1171 = vld [vmem:[%s11 + $0x8] sm:$0xf]
      %v1172 = vld [vmem:[%s11 + $0xc] sm:$0xf]
      %v1173 = vld [vmem:[%s11 + $0x10] sm:$0xf]
      %v1174 = vld [vmem:[%s11 + $0x14] sm:$0xf]
      %v1175 = vld [vmem:[%s11 + $0x18] sm:$0xf]
      %v1176 = vld [vmem:[%s11 + $0x1c] sm:$0xf]
      %v1177 = vld [vmem:[%s12] sm:$0x1]
      %v1179 = vlaneseq
      %v1180 = vshrl.u32 %v1179, 7
      %v1181 = vsub.s32 0, %v1180
      %v1182 = vrot.slane %v1177, %v1181
      %v1192 = vunpack.c.l.b16 %v1169
      %v1193 = vunpack.c.l.b16 %v1170
      %v1194 = vunpack.c.l.b16 %v1171
      %v1195 = vunpack.c.l.b16 %v1172
      %v1196 = vunpack.c.l.b16 %v1173
      %v1197 = vunpack.c.l.b16 %v1174
      %v1198 = vunpack.c.l.b16 %v1175
      %v1199 = vunpack.c.l.b16 %v1176
      %v1200 = vpack.c.b16 %v1193, %v1192
      %v1201 = vpack.c.b16 %v1195, %v1194
      %v1202 = vpack.c.b16 %v1197, %v1196
      %v1203 = vpack.c.b16 %v1199, %v1198
      %vm1208 = vcmask 523264
      %v1210 = vsel %vm1208, %v1165, 0
      %v1213 = vsel %vm1208, %v1166, 0
      %v1216 = vsel %vm1208, %v1167, 0
      %v1219 = vsel %vm1208, %v1168, 0
      %1221 = vmatprep.subr.bf16.mxu0 0
      %1222 = vmatpush1.bf16.msra.mxu0 %v1200
      %1223 = vmatprep.subr.bf16.mxu0 0
      %1224 = vmatpush1.bf16.msra.mxu0 %v1201
      %1225 = vmatprep.subr.bf16.mxu0 0
      %1226 = vmatpush1.bf16.msra.mxu0 %v1202
      %1227 = vmatprep.subr.bf16.mxu0 0
      %1228 = vmatpush1.bf16.msra.mxu0 %v1203
      %1229 = vmatprep.subr.bf16.mxu0 0
      %1230 = vmatpush1.bf16.msra.mxu0 0
      %1231 = vmatprep.subr.bf16.mxu0 0
      %1232 = vmatpush1.bf16.msra.mxu0 0
      %1233 = vmatprep.subr.bf16.mxu0 0
      %1234 = vmatpush1.bf16.msra.mxu0 0
      %1235 = vmatprep.subr.bf16.mxu0 0
      %1236 = vmatpush1.bf16.msra.mxu0 0
      %1237 = vmatprep.subr.bf16.mxu0 0
      %1238 = vmatpush1.bf16.msra.mxu0 0
      %1239 = vmatprep.subr.bf16.mxu0 0
      %1240 = vmatpush1.bf16.msra.mxu0 0
      %1241 = vmatprep.subr.bf16.mxu0 0
      %1242 = vmatpush1.bf16.msra.mxu0 0
      %1243 = vmatprep.subr.bf16.mxu0 0
      %1244 = vmatpush1.bf16.msra.mxu0 0
      %1245 = vmatprep.subr.bf16.mxu0 0
      %1246 = vmatpush1.bf16.msra.mxu0 0
      %1247 = vmatprep.subr.bf16.mxu0 0
      %1248 = vmatpush1.bf16.msra.mxu0 0
      %1249 = vmatprep.subr.bf16.mxu0 0
      %1250 = vmatpush1.bf16.msra.mxu0 0
      %1251 = vmatprep.subr.bf16.mxu0 0
      %1252 = vmatpush1.bf16.msra.mxu0 0
      %1253 = vmatprep.mubr.bf16.mxu0 0
      %1254 = vmatmul.mubr.bf16.gmra.mrb[0].mxu0 %v1210
      %v1255 = vpop.f32.mrb[0].mxu0
      %v1256 = vadd.f32 %v1182, %v1255
      %v1257 = vpop.f32.mrb[0].mxu0
      %v1258 = vpop.f32.mrb[0].mxu0
      %v1259 = vadd.f32 %v1182, %v1258
      %v1260 = vpop.f32.mrb[0].mxu0
      %1261 = vmatprep.mubr.bf16.mxu0 0
      %1262 = vmatmul.mubr.bf16.gmra.mrb[0].mxu0 %v1213
      %v1263 = vpop.f32.mrb[0].mxu0
      %v1264 = vadd.f32 %v1182, %v1263
      %v1265 = vpop.f32.mrb[0].mxu0
      %v1266 = vpop.f32.mrb[0].mxu0
      %v1267 = vadd.f32 %v1182, %v1266
      %v1268 = vpop.f32.mrb[0].mxu0
      %1269 = vmatprep.mubr.bf16.mxu0 0
      %1270 = vmatmul.mubr.bf16.gmra.mrb[0].mxu0 %v1216
      %v1271 = vpop.f32.mrb[0].mxu0
      %v1272 = vadd.f32 %v1182, %v1271
      %v1273 = vpop.f32.mrb[0].mxu0
      %v1274 = vpop.f32.mrb[0].mxu0
      %v1275 = vadd.f32 %v1182, %v1274
      %v1276 = vpop.f32.mrb[0].mxu0
      %1277 = vmatprep.mubr.bf16.mxu0 0
      %1278 = vmatmul.mubr.bf16.gmra.mrb[0].mxu0 %v1219
      %v1279 = vpop.f32.mrb[0].mxu0
      %v1280 = vadd.f32 %v1182, %v1279
      %v1281 = vpop.f32.mrb[0].mxu0
      %v1282 = vpop.f32.mrb[0].mxu0
      %v1283 = vadd.f32 %v1182, %v1282
      %v1284 = vpop.f32.mrb[0].mxu0
      %1285 = vdwg.mxu0
      %1286 = vst.msk [vmem:[%s609] sm:$0xff] %vm1208, %v1157
      %1287 = vst.msk [vmem:[%s609 + $0x8] sm:$0xff] %vm1208, %v1158
      %1288 = vst.msk [vmem:[%s609 + $0x10] sm:$0xff] %vm1208, %v1159
      %1289 = vst.msk [vmem:[%s609 + $0x18] sm:$0xff] %vm1208, %v1160
      %1290 = vst.msk [vmem:[%s609 + $0x20] sm:$0xff] %vm1208, %v1161
      %1291 = vst.msk [vmem:[%s609 + $0x28] sm:$0xff] %vm1208, %v1162
      %1292 = vst.msk [vmem:[%s609 + $0x30] sm:$0xff] %vm1208, %v1163
      %1293 = vst.msk [vmem:[%s609 + $0x38] sm:$0xff] %vm1208, %v1164
      %1294 = vst.msk [vmem:[%s619] sm:$0xff] %vm638, %v1256
      %1295 = vst.msk [vmem:[%s619 + $0x8] sm:$0xff] %vm638, %v1259
      %1296 = vst.msk [vmem:[%s619 + $0x10] sm:$0xff] %vm638, %v1264
      %1297 = vst.msk [vmem:[%s619 + $0x18] sm:$0xff] %vm638, %v1267
      %1298 = vst.msk [vmem:[%s619 + $0x20] sm:$0xff] %vm638, %v1272
      %1299 = vst.msk [vmem:[%s619 + $0x28] sm:$0xff] %vm638, %v1275
      %1300 = vst.msk [vmem:[%s619 + $0x30] sm:$0xff] %vm638, %v1280
      %1301 = vst.msk [vmem:[%s619 + $0x38] sm:$0xff] %vm638, %v1283
      %s1302 = smul.u32 8, %s31
      %p1303 = scmp.lt.s32.totalorder %s30, 1
      %s1304 = scalar_select %p1303, %s30, 1
      %p1305 = scmp.lt.s32.totalorder %s1302, 7
      %s1306 = scalar_select %p1305, %s1302, 7
      %s1307 = smul.addr %s1304, 8
      %s1308 = sadd.s32 %s1306, %s1307
      %s1309 = smul.addr %s1308, 8
      %s1310 = scalar_lea.vmem %s13, %s1309
      %s1311 = smul.u32 8, %s31
      %p1312 = scmp.lt.s32.totalorder %s30, 1
      %s1313 = scalar_select %p1312, %s30, 1
      %p1314 = scmp.lt.s32.totalorder %s1311, 7
      %s1315 = scalar_select %p1314, %s1311, 7
      %s1316 = smul.addr %s1313, 8
      %s1317 = sadd.s32 %s1315, %s1316
      %s1318 = smul.addr %s1317, 8
      %s1319 = scalar_lea.vmem %s14, %s1318
      // Predicated region
      $region73: #{multi_infer_bert_forward.23} parent=71 // pred_check
        %p1320 = pneg %p362
      $region74: #{multi_infer_bert_forward.23} parent=71 // pred_check_branch
        %1322 = sbr.rel (%p1320) target = $region76
      $region75: #{multi_infer_bert_forward.23} parent=71 // pred_region
        %s1323 = smul.u32 8, %s31
      $region76: #{multi_infer_bert_forward.23} parent=71 // pred_fallthru
        _
      // Predicated region
      $region77: #{multi_infer_bert_forward.23} parent=71 // pred_check
        %p1324 = pneg %p390
      $region78: #{multi_infer_bert_forward.23} parent=71 // pred_check_branch
        %1326 = sbr.rel (%p1324) target = $region80
      $region79: #{multi_infer_bert_forward.23} parent=71 // pred_region
        %s1327 = smul.u32 8, %s31
      $region80: #{multi_infer_bert_forward.23} parent=71 // pred_fallthru
        _
    $region72: #{multi_infer_bert_forward.23} parent=5 // pred_fallthru
      _
    %p1328 = scmp.le.s32.totalorder 2, %s21
    // Predicated region
    $region81: #{multi_infer_bert_forward.23} parent=5 // pred_check
      %p1329 = pneg %p1328
    $region82: #{multi_infer_bert_forward.23} parent=5 // pred_check_branch
      %1331 = sbr.rel (%p1329) target = $region84
    $region83: #{multi_infer_bert_forward.23} parent=5 // pred_region
      %s1332 = ssub.s32 %s21, 2
      // Predicated region
      $region85: #{multi_infer_bert_forward.23} parent=83 // pred_check
        %p1333 = pneg %p368
      $region86: #{multi_infer_bert_forward.23} parent=83 // pred_check_branch
        %1335 = sbr.rel (%p1333) target = $region88
      $region87: #{multi_infer_bert_forward.23} parent=83 // pred_region
        %s1336 = smul.u32 8, %s33
        %p1337 = scmp.lt.s32.totalorder %s32, 1
        %s1338 = scalar_select %p1337, %s32, 1
        %p1339 = scmp.lt.s32.totalorder %s1336, 7
        %s1340 = scalar_select %p1339, %s1336, 7
        %s1341 = smul.addr %s1338, 8
        %s1342 = sadd.s32 %s1340, %s1341
        %s1343 = smul.addr %s1342, 8
        %s1344 = scalar_lea.vmem %s13, %s1343
      $region88: #{multi_infer_bert_forward.23} parent=83 // pred_fallthru
        _
      // Predicated region
      $region89: #{multi_infer_bert_forward.23} parent=83 // pred_check
        %p1345 = pneg %p396
      $region90: #{multi_infer_bert_forward.23} parent=83 // pred_check_branch
        %1347 = sbr.rel (%p1345) target = $region92
      $region91: #{multi_infer_bert_forward.23} parent=83 // pred_region
        %s1348 = smul.u32 8, %s33
        %p1349 = scmp.lt.s32.totalorder %s32, 1
        %s1350 = scalar_select %p1349, %s32, 1
        %p1351 = scmp.lt.s32.totalorder %s1348, 7
        %s1352 = scalar_select %p1351, %s1348, 7
        %s1353 = smul.addr %s1350, 8
        %s1354 = sadd.s32 %s1352, %s1353
        %s1355 = smul.addr %s1354, 8
        %s1356 = scalar_lea.vmem %s14, %s1355
      $region92: #{multi_infer_bert_forward.23} parent=83 // pred_fallthru
        _
    $region84: #{multi_infer_bert_forward.23} parent=5 // pred_fallthru
      _
  $region6: #{multi_infer_bert_forward.23} parent=0 // loop_footer
    %s25 = sadd.s32 1, %s21
  $region7: #{multi_infer_bert_forward.23} parent=0 // loop_footer_branch
    %20 = sbr.rel target = $region3
  $region8: #{multi_infer_bert_forward.23} parent=0 // loop_exit
    _

// kernel: multi_infer_bert_forward.25
$region0: #{multi_infer_bert_forward.25}
  #allocation0 [shape = 'u32[]', space=smem, size = 0x4, offset = 0x4, fixed_abs, tag = 'smem constant byte address 0x4 - core index']
  #allocation1 [shape = 'u32[144,128]{1,0:T(1,128)}', space=vmem, size = 0x12000, scoped, tag = 'internal scratch']
  %s0 = inlined_call_operand.vmem [shape: f32[2,8,8,64], index: 0, kind: input, shape index: {}, may-alias: {0,11}]
  %s1 = inlined_call_operand.vmem [shape: f32[2,8,6], index: 1, kind: input, shape index: {}, may-alias: {1,2}]
  %s2 = inlined_call_operand.vmem [shape: f32[2,8,6], index: 2, kind: input, shape index: {}, may-alias: {1,2}]
  %s3 = inlined_call_operand.vmem [shape: f32[2,8,8,6], index: 3, kind: input, shape index: {}]
  %s4 = inlined_call_operand.vmem [shape: bf16[64,64], index: 4, kind: input, shape index: {}]
  %s5 = inlined_call_operand.vmem [shape: f32[6,64], index: 5, kind: input, shape index: {}]
  %s6 = inlined_call_operand.vmem [shape: f32[6,64], index: 6, kind: input, shape index: {}]
  %s7 = inlined_call_operand.vmem [shape: f32[6,64], index: 7, kind: input, shape index: {}]
  %s8 = inlined_call_operand.vmem [shape: f32[1,64], index: 8, kind: input, shape index: {}]
  %s9 = inlined_call_operand.vmem [shape: bf16[64,6], index: 9, kind: input, shape index: {}]
  %s10 = inlined_call_operand.vmem [shape: f32[1,6], index: 10, kind: input, shape index: {}]
  %s11 = inlined_call_operand.vmem [shape: f32[2,8,8,64], index: 11, kind: output, shape index: {0}, may-alias: {0,11}]
  %s12 = inlined_call_operand.vmem [shape: f32[2,8,8,6], index: 12, kind: output, shape index: {1}]
  %13 = xla_tuple %s11, %s12
  %s14 = sld [smem:[#allocation0]]
  $region85: #{multi_infer_bert_forward.25} parent=0
    _
  %s16 = ssub.s32 1, %s14
  %s17 = scalar_select 0, %s16, %s14
  loop: start=0, step=1, limit=4
  $region2: #{multi_infer_bert_forward.25} parent=0 // loop_pre_header
    _
  $region3: #{multi_infer_bert_forward.25} parent=0 // loop_header
    %s19 = sphi 0, %s23
    %p20 = scmp.ge.s32.totalorder %s19, 4
    %s26 = sphi 0, %s38
    %s27 = sphi 0, %s34
    %s28 = sphi 0, %s26
    %s29 = sphi 0, %s27
    %s30 = sphi 0, %s28
    %s31 = sphi 0, %s29
    %s43 = sphi 0, %s45
    %s46 = sphi 0, %s43
    %s47 = sphi 0, %s46
    %s63 = sphi 0, %s47
    %s71 = sphi 0, %s73
    %s74 = sphi 0, %s71
    %s75 = sphi 0, %s74
    %s91 = sphi 0, %s75
    %s97 = sphi 0, %s99
    %s100 = sphi 0, %s97
    %s101 = sphi 0, %s100
    %s117 = sphi 0, %s101
    %s125 = sphi 0, %s127
    %s128 = sphi 0, %s125
    %s129 = sphi 0, %s128
    %s145 = sphi 0, %s129
    %s149 = sphi 0, %s149
    %s151 = sphi 0, %s149
    %s152 = sphi 0, %s151
    %s166 = sphi 0, %s152
    %s170 = sphi 0, %s170
    %s172 = sphi 0, %s170
    %s173 = sphi 0, %s172
    %s187 = sphi 0, %s173
    %s191 = sphi 0, %s191
    %s193 = sphi 0, %s191
    %s194 = sphi 0, %s193
    %s208 = sphi 0, %s194
    %s212 = sphi 0, %s212
    %s214 = sphi 0, %s212
    %s215 = sphi 0, %s214
    %s229 = sphi 0, %s215
    %s233 = sphi 0, %s233
    %s235 = sphi 0, %s233
    %s236 = sphi 0, %s235
    %s250 = sphi 0, %s236
    %s254 = sphi 0, %s254
    %s256 = sphi 0, %s254
    %s257 = sphi 0, %s256
    %s271 = sphi 0, %s257
    %s275 = sphi 0, %s275
    %s277 = sphi 0, %s275
    %s278 = sphi 0, %s277
    %s292 = sphi 0, %s278
    %s300 = sphi 0, %s302
    %s303 = sphi 0, %s300
    %s304 = sphi 0, %s303
    %s320 = sphi 0, %s304
    %s328 = sphi 0, %s330
    %s331 = sphi 0, %s328
    %s332 = sphi 0, %s331
    %s348 = sphi 0, %s332
  $region4: #{multi_infer_bert_forward.25} parent=0 // loop_header_branch
    %22 = sbr.rel (%p20) target = $region8
  $region5: #{multi_infer_bert_forward.25} parent=0 // loop_body
    %s24 = ssub.s32 %s19, 1
    %s25 = ssub.s32 %s19, 2
    %s32 = sadd.s32 1, %s27
    %p33 = scmp.ge.s32.totalorder %s32, 1
    %s34 = scalar_select %p33, 0, %s32
    %s35 = sadd.s32 1, %s26
    %s36 = scalar_select %p33, %s35, %s26
    %p37 = scmp.ge.s32.totalorder %s36, 2
    %s38 = scalar_select %p37, 0, %s36
    %s39 = ssub.s32 %s26, %s38
    %s40 = ssub.s32 %s27, %s34
    %s41 = sor.u32 %s39, %s40
    %p42 = scmp.eq.s32.totalorder %s41, 0
    %s44 = sadd.s32 %s43, 1
    %s45 = scalar_select %p42, %s43, %s44
    %p48 = pneg %p42
    %p49 = scmp.eq.s32.totalorder %s19, 1
    %p50 = por %p48, %p49
    %p51 = scmp.ne.s32.totalorder %s43, %s46
    %p52 = scmp.eq.s32.totalorder %s19, 0
    %p53 = por %p51, %p52
    %p54 = scmp.ne.s32.totalorder %s43, %s46
    %p55 = scmp.eq.s32.totalorder %s24, 1
    %p56 = por %p54, %p55
    %p57 = scmp.ne.s32.totalorder %s46, %s47
    %p58 = scmp.eq.s32.totalorder %s24, 0
    %p59 = por %p57, %p58
    %p60 = scmp.ne.s32.totalorder %s46, %s47
    %p61 = scmp.eq.s32.totalorder %s25, 1
    %p62 = por %p60, %p61
    %p64 = scmp.ne.s32.totalorder %s47, %s63
    %p65 = scmp.eq.s32.totalorder %s25, 0
    %p66 = por %p64, %p65
    %s67 = ssub.s32 %s26, %s38
    %s68 = ssub.s32 %s27, %s34
    %s69 = sor.u32 %s67, %s68
    %p70 = scmp.eq.s32.totalorder %s69, 0
    %s72 = sadd.s32 %s71, 1
    %s73 = scalar_select %p70, %s71, %s72
    %p76 = pneg %p70
    %p77 = scmp.eq.s32.totalorder %s19, 1
    %p78 = por %p76, %p77
    %p79 = scmp.ne.s32.totalorder %s71, %s74
    %p80 = scmp.eq.s32.totalorder %s19, 0
    %p81 = por %p79, %p80
    %p82 = scmp.ne.s32.totalorder %s71, %s74
    %p83 = scmp.eq.s32.totalorder %s24, 1
    %p84 = por %p82, %p83
    %p85 = scmp.ne.s32.totalorder %s74, %s75
    %p86 = scmp.eq.s32.totalorder %s24, 0
    %p87 = por %p85, %p86
    %p88 = scmp.ne.s32.totalorder %s74, %s75
    %p89 = scmp.eq.s32.totalorder %s25, 1
    %p90 = por %p88, %p89
    %p92 = scmp.ne.s32.totalorder %s75, %s91
    %p93 = scmp.eq.s32.totalorder %s25, 0
    %p94 = por %p92, %p93
    %s95 = ssub.s32 %s26, %s38
    %p96 = scmp.eq.s32.totalorder %s95, 0
    %s98 = sadd.s32 %s97, 1
    %s99 = scalar_select %p96, %s97, %s98
    %p102 = pneg %p96
    %p103 = scmp.eq.s32.totalorder %s19, 1
    %p104 = por %p102, %p103
    %p105 = scmp.ne.s32.totalorder %s97, %s100
    %p106 = scmp.eq.s32.totalorder %s19, 0
    %p107 = por %p105, %p106
    %p108 = scmp.ne.s32.totalorder %s97, %s100
    %p109 = scmp.eq.s32.totalorder %s24, 1
    %p110 = por %p108, %p109
    %p111 = scmp.ne.s32.totalorder %s100, %s101
    %p112 = scmp.eq.s32.totalorder %s24, 0
    %p113 = por %p111, %p112
    %p114 = scmp.ne.s32.totalorder %s100, %s101
    %p115 = scmp.eq.s32.totalorder %s25, 1
    %p116 = por %p114, %p115
    %p118 = scmp.ne.s32.totalorder %s101, %s117
    %p119 = scmp.eq.s32.totalorder %s25, 0
    %p120 = por %p118, %p119
    %s121 = ssub.s32 %s26, %s38
    %s122 = ssub.s32 %s27, %s34
    %s123 = sor.u32 %s121, %s122
    %p124 = scmp.eq.s32.totalorder %s123, 0
    %s126 = sadd.s32 %s125, 1
    %s127 = scalar_select %p124, %s125, %s126
    %p130 = pneg %p124
    %p131 = scmp.eq.s32.totalorder %s19, 1
    %p132 = por %p130, %p131
    %p133 = scmp.ne.s32.totalorder %s125, %s128
    %p134 = scmp.eq.s32.totalorder %s19, 0
    %p135 = por %p133, %p134
    %p136 = scmp.ne.s32.totalorder %s125, %s128
    %p137 = scmp.eq.s32.totalorder %s24, 1
    %p138 = por %p136, %p137
    %p139 = scmp.ne.s32.totalorder %s128, %s129
    %p140 = scmp.eq.s32.totalorder %s24, 0
    %p141 = por %p139, %p140
    %p142 = scmp.ne.s32.totalorder %s128, %s129
    %p143 = scmp.eq.s32.totalorder %s25, 1
    %p144 = por %p142, %p143
    %p146 = scmp.ne.s32.totalorder %s129, %s145
    %p147 = scmp.eq.s32.totalorder %s25, 0
    %p148 = por %p146, %p147
    %s150 = sadd.s32 %s149, 1
    %p153 = scmp.eq.s32.totalorder %s19, 1
    %p154 = scmp.ne.s32.totalorder %s149, %s151
    %p155 = scmp.eq.s32.totalorder %s19, 0
    %p156 = por %p154, %p155
    %p157 = scmp.ne.s32.totalorder %s149, %s151
    %p158 = scmp.eq.s32.totalorder %s24, 1
    %p159 = por %p157, %p158
    %p160 = scmp.ne.s32.totalorder %s151, %s152
    %p161 = scmp.eq.s32.totalorder %s24, 0
    %p162 = por %p160, %p161
    %p163 = scmp.ne.s32.totalorder %s151, %s152
    %p164 = scmp.eq.s32.totalorder %s25, 1
    %p165 = por %p163, %p164
    %p167 = scmp.ne.s32.totalorder %s152, %s166
    %p168 = scmp.eq.s32.totalorder %s25, 0
    %p169 = por %p167, %p168
    %s171 = sadd.s32 %s170, 1
    %p174 = scmp.eq.s32.totalorder %s19, 1
    %p175 = scmp.ne.s32.totalorder %s170, %s172
    %p176 = scmp.eq.s32.totalorder %s19, 0
    %p177 = por %p175, %p176
    %p178 = scmp.ne.s32.totalorder %s170, %s172
    %p179 = scmp.eq.s32.totalorder %s24, 1
    %p180 = por %p178, %p179
    %p181 = scmp.ne.s32.totalorder %s172, %s173
    %p182 = scmp.eq.s32.totalorder %s24, 0
    %p183 = por %p181, %p182
    %p184 = scmp.ne.s32.totalorder %s172, %s173
    %p185 = scmp.eq.s32.totalorder %s25, 1
    %p186 = por %p184, %p185
    %p188 = scmp.ne.s32.totalorder %s173, %s187
    %p189 = scmp.eq.s32.totalorder %s25, 0
    %p190 = por %p188, %p189
    %s192 = sadd.s32 %s191, 1
    %p195 = scmp.eq.s32.totalorder %s19, 1
    %p196 = scmp.ne.s32.totalorder %s191, %s193
    %p197 = scmp.eq.s32.totalorder %s19, 0
    %p198 = por %p196, %p197
    %p199 = scmp.ne.s32.totalorder %s191, %s193
    %p200 = scmp.eq.s32.totalorder %s24, 1
    %p201 = por %p199, %p200
    %p202 = scmp.ne.s32.totalorder %s193, %s194
    %p203 = scmp.eq.s32.totalorder %s24, 0
    %p204 = por %p202, %p203
    %p205 = scmp.ne.s32.totalorder %s193, %s194
    %p206 = scmp.eq.s32.totalorder %s25, 1
    %p207 = por %p205, %p206
    %p209 = scmp.ne.s32.totalorder %s194, %s208
    %p210 = scmp.eq.s32.totalorder %s25, 0
    %p211 = por %p209, %p210
    %s213 = sadd.s32 %s212, 1
    %p216 = scmp.eq.s32.totalorder %s19, 1
    %p217 = scmp.ne.s32.totalorder %s212, %s214
    %p218 = scmp.eq.s32.totalorder %s19, 0
    %p219 = por %p217, %p218
    %p220 = scmp.ne.s32.totalorder %s212, %s214
    %p221 = scmp.eq.s32.totalorder %s24, 1
    %p222 = por %p220, %p221
    %p223 = scmp.ne.s32.totalorder %s214, %s215
    %p224 = scmp.eq.s32.totalorder %s24, 0
    %p225 = por %p223, %p224
    %p226 = scmp.ne.s32.totalorder %s214, %s215
    %p227 = scmp.eq.s32.totalorder %s25, 1
    %p228 = por %p226, %p227
    %p230 = scmp.ne.s32.totalorder %s215, %s229
    %p231 = scmp.eq.s32.totalorder %s25, 0
    %p232 = por %p230, %p231
    %s234 = sadd.s32 %s233, 1
    %p237 = scmp.eq.s32.totalorder %s19, 1
    %p238 = scmp.ne.s32.totalorder %s233, %s235
    %p239 = scmp.eq.s32.totalorder %s19, 0
    %p240 = por %p238, %p239
    %p241 = scmp.ne.s32.totalorder %s233, %s235
    %p242 = scmp.eq.s32.totalorder %s24, 1
    %p243 = por %p241, %p242
    %p244 = scmp.ne.s32.totalorder %s235, %s236
    %p245 = scmp.eq.s32.totalorder %s24, 0
    %p246 = por %p244, %p245
    %p247 = scmp.ne.s32.totalorder %s235, %s236
    %p248 = scmp.eq.s32.totalorder %s25, 1
    %p249 = por %p247, %p248
    %p251 = scmp.ne.s32.totalorder %s236, %s250
    %p252 = scmp.eq.s32.totalorder %s25, 0
    %p253 = por %p251, %p252
    %s255 = sadd.s32 %s254, 1
    %p258 = scmp.eq.s32.totalorder %s19, 1
    %p259 = scmp.ne.s32.totalorder %s254, %s256
    %p260 = scmp.eq.s32.totalorder %s19, 0
    %p261 = por %p259, %p260
    %p262 = scmp.ne.s32.totalorder %s254, %s256
    %p263 = scmp.eq.s32.totalorder %s24, 1
    %p264 = por %p262, %p263
    %p265 = scmp.ne.s32.totalorder %s256, %s257
    %p266 = scmp.eq.s32.totalorder %s24, 0
    %p267 = por %p265, %p266
    %p268 = scmp.ne.s32.totalorder %s256, %s257
    %p269 = scmp.eq.s32.totalorder %s25, 1
    %p270 = por %p268, %p269
    %p272 = scmp.ne.s32.totalorder %s257, %s271
    %p273 = scmp.eq.s32.totalorder %s25, 0
    %p274 = por %p272, %p273
    %s276 = sadd.s32 %s275, 1
    %p279 = scmp.eq.s32.totalorder %s19, 1
    %p280 = scmp.ne.s32.totalorder %s275, %s277
    %p281 = scmp.eq.s32.totalorder %s19, 0
    %p282 = por %p280, %p281
    %p283 = scmp.ne.s32.totalorder %s275, %s277
    %p284 = scmp.eq.s32.totalorder %s24, 1
    %p285 = por %p283, %p284
    %p286 = scmp.ne.s32.totalorder %s277, %s278
    %p287 = scmp.eq.s32.totalorder %s24, 0
    %p288 = por %p286, %p287
    %p289 = scmp.ne.s32.totalorder %s277, %s278
    %p290 = scmp.eq.s32.totalorder %s25, 1
    %p291 = por %p289, %p290
    %p293 = scmp.ne.s32.totalorder %s278, %s292
    %p294 = scmp.eq.s32.totalorder %s25, 0
    %p295 = por %p293, %p294
    %s296 = ssub.s32 %s26, %s38
    %s297 = ssub.s32 %s27, %s34
    %s298 = sor.u32 %s296, %s297
    %p299 = scmp.eq.s32.totalorder %s298, 0
    %s301 = sadd.s32 %s300, 1
    %s302 = scalar_select %p299, %s300, %s301
    %p305 = pneg %p299
    %p306 = scmp.eq.s32.totalorder %s19, 1
    %p307 = por %p305, %p306
    %p308 = scmp.ne.s32.totalorder %s300, %s303
    %p309 = scmp.eq.s32.totalorder %s19, 0
    %p310 = por %p308, %p309
    %p311 = scmp.ne.s32.totalorder %s300, %s303
    %p312 = scmp.eq.s32.totalorder %s24, 1
    %p313 = por %p311, %p312
    %p314 = scmp.ne.s32.totalorder %s303, %s304
    %p315 = scmp.eq.s32.totalorder %s24, 0
    %p316 = por %p314, %p315
    %p317 = scmp.ne.s32.totalorder %s303, %s304
    %p318 = scmp.eq.s32.totalorder %s25, 1
    %p319 = por %p317, %p318
    %p321 = scmp.ne.s32.totalorder %s304, %s320
    %p322 = scmp.eq.s32.totalorder %s25, 0
    %p323 = por %p321, %p322
    %s324 = ssub.s32 %s26, %s38
    %s325 = ssub.s32 %s27, %s34
    %s326 = sor.u32 %s324, %s325
    %p327 = scmp.eq.s32.totalorder %s326, 0
    %s329 = sadd.s32 %s328, 1
    %s330 = scalar_select %p327, %s328, %s329
    %p333 = pneg %p327
    %p334 = scmp.eq.s32.totalorder %s19, 1
    %p335 = por %p333, %p334
    %p336 = scmp.ne.s32.totalorder %s328, %s331
    %p337 = scmp.eq.s32.totalorder %s19, 0
    %p338 = por %p336, %p337
    %p339 = scmp.ne.s32.totalorder %s328, %s331
    %p340 = scmp.eq.s32.totalorder %s24, 1
    %p341 = por %p339, %p340
    %p342 = scmp.ne.s32.totalorder %s331, %s332
    %p343 = scmp.eq.s32.totalorder %s24, 0
    %p344 = por %p342, %p343
    %p345 = scmp.ne.s32.totalorder %s331, %s332
    %p346 = scmp.eq.s32.totalorder %s25, 1
    %p347 = por %p345, %p346
    %p349 = scmp.ne.s32.totalorder %s332, %s348
    %p350 = scmp.eq.s32.totalorder %s25, 0
    %p351 = por %p349, %p350
    %p352 = scmp.le.s32.totalorder 1, %s19
    %p353 = scmp.lt.s32.totalorder %s19, 3
    %p354 = pnand %p352, %p353
    %p355 = pneg %p354
    // Predicated region
    $region9: #{multi_infer_bert_forward.25} parent=5 // pred_check
      _
    $region10: #{multi_infer_bert_forward.25} parent=5 // pred_check_branch
      %357 = sbr.rel (%p354) target = $region12
    $region11: #{multi_infer_bert_forward.25} parent=5 // pred_region
      %s358 = ssub.s32 %s19, 1
      // Predicated region
      $region13: #{multi_infer_bert_forward.25} parent=11 // pred_check
        %p359 = pneg %p162
      $region14: #{multi_infer_bert_forward.25} parent=11 // pred_check_branch
        %361 = sbr.rel (%p359) target = $region16
      $region15: #{multi_infer_bert_forward.25} parent=11 // pred_region
        _
      $region16: #{multi_infer_bert_forward.25} parent=11 // pred_fallthru
        _
      // Predicated region
      $region17: #{multi_infer_bert_forward.25} parent=11 // pred_check
        %p362 = pneg %p183
      $region18: #{multi_infer_bert_forward.25} parent=11 // pred_check_branch
        %364 = sbr.rel (%p362) target = $region20
      $region19: #{multi_infer_bert_forward.25} parent=11 // pred_region
        _
      $region20: #{multi_infer_bert_forward.25} parent=11 // pred_fallthru
        _
      // Predicated region
      $region21: #{multi_infer_bert_forward.25} parent=11 // pred_check
        %p365 = pneg %p204
      $region22: #{multi_infer_bert_forward.25} parent=11 // pred_check_branch
        %367 = sbr.rel (%p365) target = $region24
      $region23: #{multi_infer_bert_forward.25} parent=11 // pred_region
        _
      $region24: #{multi_infer_bert_forward.25} parent=11 // pred_fallthru
        _
      // Predicated region
      $region25: #{multi_infer_bert_forward.25} parent=11 // pred_check
        %p368 = pneg %p225
      $region26: #{multi_infer_bert_forward.25} parent=11 // pred_check_branch
        %370 = sbr.rel (%p368) target = $region28
      $region27: #{multi_infer_bert_forward.25} parent=11 // pred_region
        _
      $region28: #{multi_infer_bert_forward.25} parent=11 // pred_fallthru
        _
      // Predicated region
      $region29: #{multi_infer_bert_forward.25} parent=11 // pred_check
        %p371 = pneg %p246
      $region30: #{multi_infer_bert_forward.25} parent=11 // pred_check_branch
        %373 = sbr.rel (%p371) target = $region32
      $region31: #{multi_infer_bert_forward.25} parent=11 // pred_region
        _
      $region32: #{multi_infer_bert_forward.25} parent=11 // pred_fallthru
        _
      // Predicated region
      $region33: #{multi_infer_bert_forward.25} parent=11 // pred_check
        %p374 = pneg %p267
      $region34: #{multi_infer_bert_forward.25} parent=11 // pred_check_branch
        %376 = sbr.rel (%p374) target = $region36
      $region35: #{multi_infer_bert_forward.25} parent=11 // pred_region
        _
      $region36: #{multi_infer_bert_forward.25} parent=11 // pred_fallthru
        _
      // Predicated region
      $region37: #{multi_infer_bert_forward.25} parent=11 // pred_check
        %p377 = pneg %p288
      $region38: #{multi_infer_bert_forward.25} parent=11 // pred_check_branch
        %379 = sbr.rel (%p377) target = $region40
      $region39: #{multi_infer_bert_forward.25} parent=11 // pred_region
        _
      $region40: #{multi_infer_bert_forward.25} parent=11 // pred_fallthru
        _
    $region12: #{multi_infer_bert_forward.25} parent=5 // pred_fallthru
      _
    %p380 = scmp.lt.s32.totalorder %s19, 2
    // Predicated region
    $region41: #{multi_infer_bert_forward.25} parent=5 // pred_check
      %p381 = pneg %p380
    $region42: #{multi_infer_bert_forward.25} parent=5 // pred_check_branch
      %383 = sbr.rel (%p381) target = $region44
    $region43: #{multi_infer_bert_forward.25} parent=5 // pred_region
      // Predicated region
      $region45: #{multi_infer_bert_forward.25} parent=43 // pred_check
        %p384 = pneg %p53
      $region46: #{multi_infer_bert_forward.25} parent=43 // pred_check_branch
        %386 = sbr.rel (%p384) target = $region48
      $region47: #{multi_infer_bert_forward.25} parent=43 // pred_region
        %s387 = smul.u32 8, %s27
        %p388 = scmp.lt.s32.totalorder %s26, 1
        %s389 = scalar_select %p388, %s26, 1
        %p390 = scmp.lt.s32.totalorder %s387, 7
        %s391 = scalar_select %p390, %s387, 7
        %s392 = smul.addr %s389, 8
        %s393 = sadd.s32 %s391, %s392
        %s394 = smul.addr %s393, 8
        %s395 = scalar_lea.vmem %s0, %s394
        %s396 = smul.u32 8, %s27
      $region48: #{multi_infer_bert_forward.25} parent=43 // pred_fallthru
        _
      // Predicated region
      $region49: #{multi_infer_bert_forward.25} parent=43 // pred_check
        %p397 = pneg %p81
      $region50: #{multi_infer_bert_forward.25} parent=43 // pred_check_branch
        %399 = sbr.rel (%p397) target = $region52
      $region51: #{multi_infer_bert_forward.25} parent=43 // pred_region
        %p400 = scmp.lt.s32.totalorder %s26, 1
        %s401 = scalar_select %p400, %s26, 1
        %p402 = scmp.lt.s32.totalorder %s27, 0
        %s403 = scalar_select %p402, %s27, 0
        %s404 = sadd.s32 %s403, %s401
        %s405 = smul.addr %s404, 8
        %s406 = scalar_lea.vmem %s1, %s405
      $region52: #{multi_infer_bert_forward.25} parent=43 // pred_fallthru
        _
      // Predicated region
      $region53: #{multi_infer_bert_forward.25} parent=43 // pred_check
        %p407 = pneg %p107
      $region54: #{multi_infer_bert_forward.25} parent=43 // pred_check_branch
        %409 = sbr.rel (%p407) target = $region56
      $region55: #{multi_infer_bert_forward.25} parent=43 // pred_region
        %p410 = scmp.lt.s32.totalorder %s26, 1
        %s411 = scalar_select %p410, %s26, 1
        %s412 = smul.addr %s411, 8
        %s413 = scalar_lea.vmem %s2, %s412
      $region56: #{multi_infer_bert_forward.25} parent=43 // pred_fallthru
        _
      // Predicated region
      $region57: #{multi_infer_bert_forward.25} parent=43 // pred_check
        %p414 = pneg %p135
      $region58: #{multi_infer_bert_forward.25} parent=43 // pred_check_branch
        %416 = sbr.rel (%p414) target = $region60
      $region59: #{multi_infer_bert_forward.25} parent=43 // pred_region
        %s417 = smul.u32 8, %s27
        %p418 = scmp.lt.s32.totalorder %s26, 1
        %s419 = scalar_select %p418, %s26, 1
        %p420 = scmp.lt.s32.totalorder %s417, 7
        %s421 = scalar_select %p420, %s417, 7
        %s422 = smul.addr %s419, 8
        %s423 = sadd.s32 %s421, %s422
        %s424 = smul.addr %s423, 8
        %s425 = scalar_lea.vmem %s3, %s424
        %s426 = smul.u32 8, %s27
      $region60: #{multi_infer_bert_forward.25} parent=43 // pred_fallthru
        _
    $region44: #{multi_infer_bert_forward.25} parent=5 // pred_fallthru
      _
    %p427 = scmp.le.s32.totalorder 1, %s19
    %p428 = scmp.lt.s32.totalorder %s19, 3
    %p429 = pnand %p427, %p428
    %p430 = pneg %p429
    // Predicated region
    $region61: #{multi_infer_bert_forward.25} parent=5 // pred_check
      _
    $region62: #{multi_infer_bert_forward.25} parent=5 // pred_check_branch
      %432 = sbr.rel (%p429) target = $region64
    $region63: #{multi_infer_bert_forward.25} parent=5 // pred_region
      %s433 = ssub.s32 %s19, 1
      %s434 = smul.u32 8, %s29
      %p435 = scmp.lt.s32.totalorder %s28, 1
      %s436 = scalar_select %p435, %s28, 1
      %p437 = scmp.lt.s32.totalorder %s434, 7
      %s438 = scalar_select %p437, %s434, 7
      %s439 = smul.addr %s436, 8
      %s440 = sadd.s32 %s438, %s439
      %s441 = smul.addr %s440, 8
      %s442 = scalar_lea.vmem %s0, %s441
      %p443 = pneg %p59
      %p444 = pneg %p56
      %p445 = scmp.lt.s32.totalorder %s28, 1
      %s446 = scalar_select %p445, %s28, 1
      %p447 = scmp.lt.s32.totalorder %s29, 0
      %s448 = scalar_select %p447, %s29, 0
      %s449 = sadd.s32 %s448, %s446
      %s450 = smul.addr %s449, 8
      %s451 = scalar_lea.vmem %s1, %s450
      %p452 = pneg %p87
      %p453 = pneg %p84
      %p454 = scmp.lt.s32.totalorder %s28, 1
      %s455 = scalar_select %p454, %s28, 1
      %s456 = smul.addr %s455, 8
      %s457 = scalar_lea.vmem %s2, %s456
      %p458 = pneg %p113
      %p459 = pneg %p110
      %s460 = smul.u32 8, %s29
      %p461 = scmp.lt.s32.totalorder %s28, 1
      %s462 = scalar_select %p461, %s28, 1
      %p463 = scmp.lt.s32.totalorder %s460, 7
      %s464 = scalar_select %p463, %s460, 7
      %s465 = smul.addr %s462, 8
      %s466 = sadd.s32 %s464, %s465
      %s467 = smul.addr %s466, 8
      %s468 = scalar_lea.vmem %s3, %s467
      %p469 = pneg %p141
      %p470 = pneg %p138
      %p471 = pneg %p162
      %p472 = pneg %p159
      %p473 = pneg %p183
      %p474 = pneg %p180
      %p475 = pneg %p204
      %p476 = pneg %p201
      %p477 = pneg %p225
      %p478 = pneg %p222
      %p479 = pneg %p246
      %p480 = pneg %p243
      %p481 = pneg %p267
      %p482 = pneg %p264
      %p483 = pneg %p288
      %p484 = pneg %p285
      %p485 = pneg %p316
      %p486 = pneg %p313
      %s487 = smul.u32 8, %s29
      %p488 = scmp.lt.s32.totalorder %s28, 1
      %s489 = scalar_select %p488, %s28, 1
      %p490 = scmp.lt.s32.totalorder %s487, 7
      %s491 = scalar_select %p490, %s487, 7
      %s492 = smul.addr %s489, 8
      %s493 = sadd.s32 %s491, %s492
      %s494 = smul.addr %s493, 8
      %s495 = scalar_lea.vmem %s11, %s494
      %p496 = pneg %p344
      %p497 = pneg %p341
      %s498 = smul.u32 8, %s29
      %p499 = scmp.lt.s32.totalorder %s28, 1
      %s500 = scalar_select %p499, %s28, 1
      %p501 = scmp.lt.s32.totalorder %s498, 7
      %s502 = scalar_select %p501, %s498, 7
      %s503 = smul.addr %s500, 8
      %s504 = sadd.s32 %s502, %s503
      %s505 = smul.addr %s504, 8
      %s506 = scalar_lea.vmem %s12, %s505
      %s507 = smul.u32 8, %s29
      %p508 = scmp.lt.s32.totalorder %s28, 1
      %s509 = scalar_select %p508, %s28, 1
      %p510 = scmp.lt.s32.totalorder %s507, 7
      %s511 = scalar_select %p510, %s507, 7
      %s512 = smul.addr %s509, 8
      %s513 = sadd.s32 %s511, %s512
      %s514 = smul.addr %s513, 8
      %s515 = scalar_lea.vmem %s0, %s514
      %s516 = smul.u32 8, %s29
      %p517 = scmp.lt.s32.totalorder %s28, 1
      %s518 = scalar_select %p517, %s28, 1
      %p519 = scmp.lt.s32.totalorder %s29, 0
      %s520 = scalar_select %p519, %s29, 0
      %s521 = sadd.s32 %s520, %s518
      %s522 = smul.addr %s521, 8
      %s523 = scalar_lea.vmem %s1, %s522
      %p524 = scmp.lt.s32.totalorder %s28, 1
      %s525 = scalar_select %p524, %s28, 1
      %s526 = smul.addr %s525, 8
      %s527 = scalar_lea.vmem %s2, %s526
      %s528 = smul.u32 8, %s29
      %p529 = scmp.lt.s32.totalorder %s28, 1
      %s530 = scalar_select %p529, %s28, 1
      %p531 = scmp.lt.s32.totalorder %s528, 7
      %s532 = scalar_select %p531, %s528, 7
      %s533 = smul.addr %s530, 8
      %s534 = sadd.s32 %s532, %s533
      %s535 = smul.addr %s534, 8
      %s536 = scalar_lea.vmem %s3, %s535
      %s537 = smul.u32 8, %s29
      %s538 = smul.u32 8, %s29
      %p539 = scmp.lt.s32.totalorder %s28, 1
      %s540 = scalar_select %p539, %s28, 1
      %p541 = scmp.lt.s32.totalorder %s538, 7
      %s542 = scalar_select %p541, %s538, 7
      %s543 = smul.addr %s540, 8
      %s544 = sadd.s32 %s542, %s543
      %s545 = smul.addr %s544, 8
      %s546 = scalar_lea.vmem %s11, %s545
      %s547 = smul.u32 8, %s29
      %s548 = smul.u32 8, %s29
      %p549 = scmp.lt.s32.totalorder %s28, 1
      %s550 = scalar_select %p549, %s28, 1
      %p551 = scmp.lt.s32.totalorder %s548, 7
      %s552 = scalar_select %p551, %s548, 7
      %s553 = smul.addr %s550, 8
      %s554 = sadd.s32 %s552, %s553
      %s555 = smul.addr %s554, 8
      %s556 = scalar_lea.vmem %s12, %s555
      %s557 = smul.u32 8, %s29
      %v559 = vld [vmem:[%s515] sm:$0xff]
      %v560 = vld [vmem:[%s515 + $0x8] sm:$0xff]
      %v561 = vld [vmem:[%s515 + $0x10] sm:$0xff]
      %v562 = vld [vmem:[%s515 + $0x18] sm:$0xff]
      %v563 = vld [vmem:[%s515 + $0x20] sm:$0xff]
      %v564 = vld [vmem:[%s515 + $0x28] sm:$0xff]
      %v565 = vld [vmem:[%s515 + $0x30] sm:$0xff]
      %v566 = vld [vmem:[%s515 + $0x38] sm:$0xff]
      %v567 = vld [vmem:[%s536] sm:$0xff]
      %v568 = vld [vmem:[%s536 + $0x8] sm:$0xff]
      %v569 = vld [vmem:[%s536 + $0x10] sm:$0xff]
      %v570 = vld [vmem:[%s536 + $0x18] sm:$0xff]
      %v571 = vld [vmem:[%s536 + $0x20] sm:$0xff]
      %v572 = vld [vmem:[%s536 + $0x28] sm:$0xff]
      %v573 = vld [vmem:[%s536 + $0x30] sm:$0xff]
      %v574 = vld [vmem:[%s536 + $0x38] sm:$0xff]
      %v575 = vpack.c.bf16 %v560, %v559
      %v576 = vpack.c.bf16 %v562, %v561
      %v577 = vpack.c.bf16 %v564, %v563
      %v578 = vpack.c.bf16 %v566, %v565
      %v579 = vld [vmem:[%s4] sm:$0xf]
      %v580 = vld [vmem:[%s4 + $0x4] sm:$0xf]
      %v581 = vld [vmem:[%s4 + $0x8] sm:$0xf]
      %v582 = vld [vmem:[%s4 + $0xc] sm:$0xf]
      %v583 = vld [vmem:[%s4 + $0x10] sm:$0xf]
      %v584 = vld [vmem:[%s4 + $0x14] sm:$0xf]
      %v585 = vld [vmem:[%s4 + $0x18] sm:$0xf]
      %v586 = vld [vmem:[%s4 + $0x1c] sm:$0xf]
      %v595 = vunpack.c.l.b16 %v579
      %v596 = vunpack.c.l.b16 %v580
      %v597 = vunpack.c.l.b16 %v581
      %v598 = vunpack.c.l.b16 %v582
      %v599 = vunpack.c.l.b16 %v583
      %v600 = vunpack.c.l.b16 %v584
      %v601 = vunpack.c.l.b16 %v585
      %v602 = vunpack.c.l.b16 %v586
      %v603 = vpack.c.b16 %v596, %v595
      %v604 = vpack.c.b16 %v598, %v597
      %v605 = vpack.c.b16 %v600, %v599
      %v606 = vpack.c.b16 %v602, %v601
      %vm611 = vcmask 523264
      %v613 = vsel %vm611, %v575, 0
      %v616 = vsel %vm611, %v576, 0
      %v619 = vsel %vm611, %v577, 0
      %v622 = vsel %vm611, %v578, 0
      %624 = vmatprep.subr.bf16.mxu0 0
      %625 = vmatpush1.bf16.msra.mxu0 %v603
      %626 = vmatprep.subr.bf16.mxu0 0
      %627 = vmatpush1.bf16.msra.mxu0 %v604
      %628 = vmatprep.subr.bf16.mxu0 0
      %629 = vmatpush1.bf16.msra.mxu0 %v605
      %630 = vmatprep.subr.bf16.mxu0 0
      %631 = vmatpush1.bf16.msra.mxu0 %v606
      %632 = vmatprep.subr.bf16.mxu0 0
      %633 = vmatpush1.bf16.msra.mxu0 0
      %634 = vmatprep.subr.bf16.mxu0 0
      %635 = vmatpush1.bf16.msra.mxu0 0
      %636 = vmatprep.subr.bf16.mxu0 0
      %637 = vmatpush1.bf16.msra.mxu0 0
      %638 = vmatprep.subr.bf16.mxu0 0
      %639 = vmatpush1.bf16.msra.mxu0 0
      %640 = vmatprep.subr.bf16.mxu0 0
      %641 = vmatpush1.bf16.msra.mxu0 0
      %642 = vmatprep.subr.bf16.mxu0 0
      %643 = vmatpush1.bf16.msra.mxu0 0
      %644 = vmatprep.subr.bf16.mxu0 0
      %645 = vmatpush1.bf16.msra.mxu0 0
      %646 = vmatprep.subr.bf16.mxu0 0
      %647 = vmatpush1.bf16.msra.mxu0 0
      %648 = vmatprep.subr.bf16.mxu0 0
      %649 = vmatpush1.bf16.msra.mxu0 0
      %650 = vmatprep.subr.bf16.mxu0 0
      %651 = vmatpush1.bf16.msra.mxu0 0
      %652 = vmatprep.subr.bf16.mxu0 0
      %653 = vmatpush1.bf16.msra.mxu0 0
      %654 = vmatprep.subr.bf16.mxu0 0
      %655 = vmatpush1.bf16.msra.mxu0 0
      %656 = vmatprep.mubr.bf16.mxu0 0
      %657 = vmatmul.mubr.bf16.gmra.mrb[0].mxu0 %v613
      %v658 = vpop.f32.mrb[0].mxu0
      %v659 = vadd.f32 0.0, %v658
      %v660 = vpop.f32.mrb[0].mxu0
      %v661 = vpop.f32.mrb[0].mxu0
      %v662 = vadd.f32 0.0, %v661
      %v663 = vpop.f32.mrb[0].mxu0
      %664 = vmatprep.mubr.bf16.mxu0 0
      %665 = vmatmul.mubr.bf16.gmra.mrb[0].mxu0 %v616
      %v666 = vpop.f32.mrb[0].mxu0
      %v667 = vadd.f32 0.0, %v666
      %v668 = vpop.f32.mrb[0].mxu0
      %v669 = vpop.f32.mrb[0].mxu0
      %v670 = vadd.f32 0.0, %v669
      %v671 = vpop.f32.mrb[0].mxu0
      %672 = vmatprep.mubr.bf16.mxu0 0
      %673 = vmatmul.mubr.bf16.gmra.mrb[0].mxu0 %v619
      %v674 = vpop.f32.mrb[0].mxu0
      %v675 = vadd.f32 0.0, %v674
      %v676 = vpop.f32.mrb[0].mxu0
      %v677 = vpop.f32.mrb[0].mxu0
      %v678 = vadd.f32 0.0, %v677
      %v679 = vpop.f32.mrb[0].mxu0
      %680 = vmatprep.mubr.bf16.mxu0 0
      %681 = vmatmul.mubr.bf16.gmra.mrb[0].mxu0 %v622
      %v682 = vpop.f32.mrb[0].mxu0
      %v683 = vadd.f32 0.0, %v682
      %v684 = vpop.f32.mrb[0].mxu0
      %v685 = vpop.f32.mrb[0].mxu0
      %v686 = vadd.f32 0.0, %v685
      %v687 = vpop.f32.mrb[0].mxu0
      %688 = vdwg.mxu0
      %v689 = vld [vmem:[%s523] sm:$0xff]
      %v690 = vld [vmem:[%s5] sm:$0x3f]
      %vm691 = vcmask 48128
      %v693 = vsel %vm691, %v689, 0
      %vm695 = vcmask 1045504
      %v697 = vsel %vm695, %v690, 0
      %699 = vmatprep.subr.mxu0 0.0
      %700 = vmatpush1.msra.mxu0 %v697
      %701 = vmatprep.subr.mxu0 0.0
      %702 = vmatpush1.msra.mxu0 0.0
      %703 = vmatprep.subr.mxu0 0.0
      %704 = vmatpush1.msra.mxu0 0.0
      %705 = vmatprep.subr.mxu0 0.0
      %706 = vmatpush1.msra.mxu0 0.0
      %707 = vmatprep.subr.mxu0 0.0
      %708 = vmatpush1.msra.mxu0 0.0
      %709 = vmatprep.subr.mxu0 0.0
      %710 = vmatpush1.msra.mxu0 0.0
      %711 = vmatprep.subr.mxu0 0.0
      %712 = vmatpush1.msra.mxu0 0.0
      %713 = vmatprep.subr.mxu0 0.0
      %714 = vmatpush1.msra.mxu0 0.0
      %715 = vmatprep.subr.mxu0 0.0
      %716 = vmatpush1.msra.mxu0 0.0
      %717 = vmatprep.subr.mxu0 0.0
      %718 = vmatpush1.msra.mxu0 0.0
      %719 = vmatprep.subr.mxu0 0.0
      %720 = vmatpush1.msra.mxu0 0.0
      %721 = vmatprep.subr.mxu0 0.0
      %722 = vmatpush1.msra.mxu0 0.0
      %723 = vmatprep.subr.mxu0 0.0
      %724 = vmatpush1.msra.mxu0 0.0
      %725 = vmatprep.subr.mxu0 0.0
      %726 = vmatpush1.msra.mxu0 0.0
      %727 = vmatprep.subr.mxu0 0.0
      %728 = vmatpush1.msra.mxu0 0.0
      %729 = vmatprep.subr.mxu0 0.0
      %730 = vmatpush1.msra.mxu0 0.0
      %731 = vmatprep.subr.mxu0 0.0
      %732 = vmatpush1.msra.mxu0 0.0
      %733 = vmatprep.subr.mxu0 0.0
      %734 = vmatpush1.msra.mxu0 0.0
      %735 = vmatprep.subr.mxu0 0.0
      %736 = vmatpush1.msra.mxu0 0.0
      %737 = vmatprep.subr.mxu0 0.0
      %738 = vmatpush1.msra.mxu0 0.0
      %739 = vmatprep.subr.mxu0 0.0
      %740 = vmatpush1.msra.mxu0 0.0
      %741 = vmatprep.subr.mxu0 0.0
      %742 = vmatpush1.msra.mxu0 0.0
      %743 = vmatprep.subr.mxu0 0.0
      %744 = vmatpush1.msra.mxu0 0.0
      %745 = vmatprep.subr.mxu0 0.0
      %746 = vmatpush1.msra.mxu0 0.0
      %747 = vmatprep.subr.mxu0 0.0
      %748 = vmatpush1.msra.mxu0 0.0
      %749 = vmatprep.subr.mxu0 0.0
      %750 = vmatpush1.msra.mxu0 0.0
      %751 = vmatprep.subr.mxu0 0.0
      %752 = vmatpush1.msra.mxu0 0.0
      %753 = vmatprep.subr.mxu0 0.0
      %754 = vmatpush1.msra.mxu0 0.0
      %755 = vmatprep.subr.mxu0 0.0
      %756 = vmatpush1.msra.mxu0 0.0
      %757 = vmatprep.subr.mxu0 0.0
      %758 = vmatpush1.msra.mxu0 0.0
      %759 = vmatprep.subr.mxu0 0.0
      %760 = vmatpush1.msra.mxu0 0.0
      %761 = vmatprep.subr.mxu0 0.0
      %762 = vmatpush1.msra.mxu0 0.0
      %763 = vmatprep.mubr.f32.mxu0 0.0
      %764 = vmatmul.mubr.f32.gmra.mrb[0].mxu0 %v693
      %v765 = vpop.f32.mrb[0].mxu0
      %v766 = vadd.f32 0.0, %v765
      %v767 = vpop.f32.mrb[0].mxu0
      %768 = vdwg.mxu0
      %v769 = vld [vmem:[%s527] sm:$0xff]
      %v770 = vld [vmem:[%s6] sm:$0x3f]
      %v772 = vsel %vm691, %v769, 0
      %v775 = vsel %vm695, %v770, 0
      %777 = vmatprep.subr.mxu0 0.0
      %778 = vmatpush1.msra.mxu0 %v775
      %779 = vmatprep.subr.mxu0 0.0
      %780 = vmatpush1.msra.mxu0 0.0
      %781 = vmatprep.subr.mxu0 0.0
      %782 = vmatpush1.msra.mxu0 0.0
      %783 = vmatprep.subr.mxu0 0.0
      %784 = vmatpush1.msra.mxu0 0.0
      %785 = vmatprep.subr.mxu0 0.0
      %786 = vmatpush1.msra.mxu0 0.0
      %787 = vmatprep.subr.mxu0 0.0
      %788 = vmatpush1.msra.mxu0 0.0
      %789 = vmatprep.subr.mxu0 0.0
      %790 = vmatpush1.msra.mxu0 0.0
      %791 = vmatprep.subr.mxu0 0.0
      %792 = vmatpush1.msra.mxu0 0.0
      %793 = vmatprep.subr.mxu0 0.0
      %794 = vmatpush1.msra.mxu0 0.0
      %795 = vmatprep.subr.mxu0 0.0
      %796 = vmatpush1.msra.mxu0 0.0
      %797 = vmatprep.subr.mxu0 0.0
      %798 = vmatpush1.msra.mxu0 0.0
      %799 = vmatprep.subr.mxu0 0.0
      %800 = vmatpush1.msra.mxu0 0.0
      %801 = vmatprep.subr.mxu0 0.0
      %802 = vmatpush1.msra.mxu0 0.0
      %803 = vmatprep.subr.mxu0 0.0
      %804 = vmatpush1.msra.mxu0 0.0
      %805 = vmatprep.subr.mxu0 0.0
      %806 = vmatpush1.msra.mxu0 0.0
      %807 = vmatprep.subr.mxu0 0.0
      %808 = vmatpush1.msra.mxu0 0.0
      %809 = vmatprep.subr.mxu0 0.0
      %810 = vmatpush1.msra.mxu0 0.0
      %811 = vmatprep.subr.mxu0 0.0
      %812 = vmatpush1.msra.mxu0 0.0
      %813 = vmatprep.subr.mxu0 0.0
      %814 = vmatpush1.msra.mxu0 0.0
      %815 = vmatprep.subr.mxu0 0.0
      %816 = vmatpush1.msra.mxu0 0.0
      %817 = vmatprep.subr.mxu0 0.0
      %818 = vmatpush1.msra.mxu0 0.0
      %819 = vmatprep.subr.mxu0 0.0
      %820 = vmatpush1.msra.mxu0 0.0
      %821 = vmatprep.subr.mxu0 0.0
      %822 = vmatpush1.msra.mxu0 0.0
      %823 = vmatprep.subr.mxu0 0.0
      %824 = vmatpush1.msra.mxu0 0.0
      %825 = vmatprep.subr.mxu0 0.0
      %826 = vmatpush1.msra.mxu0 0.0
      %827 = vmatprep.subr.mxu0 0.0
      %828 = vmatpush1.msra.mxu0 0.0
      %829 = vmatprep.subr.mxu0 0.0
      %830 = vmatpush1.msra.mxu0 0.0
      %831 = vmatprep.subr.mxu0 0.0
      %832 = vmatpush1.msra.mxu0 0.0
      %833 = vmatprep.subr.mxu0 0.0
      %834 = vmatpush1.msra.mxu0 0.0
      %835 = vmatprep.subr.mxu0 0.0
      %836 = vmatpush1.msra.mxu0 0.0
      %837 = vmatprep.subr.mxu0 0.0
      %838 = vmatpush1.msra.mxu0 0.0
      %839 = vmatprep.subr.mxu0 0.0
      %840 = vmatpush1.msra.mxu0 0.0
      %841 = vmatprep.mubr.f32.mxu0 0.0
      %842 = vmatmul.mubr.f32.gmra.mrb[0].mxu0 %v772
      %v843 = vpop.f32.mrb[0].mxu0
      %v844 = vadd.f32 0.0, %v843
      %v845 = vpop.f32.mrb[0].mxu0
      %846 = vdwg.mxu0
      %v847 = vld [vmem:[%s7] sm:$0x3f]
      %v849 = vsel %vm691, %v567, 0
      %v852 = vsel %vm691, %v568, 0
      %v855 = vsel %vm691, %v569, 0
      %v858 = vsel %vm691, %v570, 0
      %v861 = vsel %vm691, %v571, 0
      %v864 = vsel %vm691, %v572, 0
      %v867 = vsel %vm691, %v573, 0
      %v870 = vsel %vm691, %v574, 0
      %v873 = vsel %vm695, %v847, 0
      %875 = vmatprep.subr.mxu0 0.0
      %876 = vmatpush1.msra.mxu0 %v873
      %877 = vmatprep.subr.mxu0 0.0
      %878 = vmatpush1.msra.mxu0 0.0
      %879 = vmatprep.subr.mxu0 0.0
      %880 = vmatpush1.msra.mxu0 0.0
      %881 = vmatprep.subr.mxu0 0.0
      %882 = vmatpush1.msra.mxu0 0.0
      %883 = vmatprep.subr.mxu0 0.0
      %884 = vmatpush1.msra.mxu0 0.0
      %885 = vmatprep.subr.mxu0 0.0
      %886 = vmatpush1.msra.mxu0 0.0
      %887 = vmatprep.subr.mxu0 0.0
      %888 = vmatpush1.msra.mxu0 0.0
      %889 = vmatprep.subr.mxu0 0.0
      %890 = vmatpush1.msra.mxu0 0.0
      %891 = vmatprep.subr.mxu0 0.0
      %892 = vmatpush1.msra.mxu0 0.0
      %893 = vmatprep.subr.mxu0 0.0
      %894 = vmatpush1.msra.mxu0 0.0
      %895 = vmatprep.subr.mxu0 0.0
      %896 = vmatpush1.msra.mxu0 0.0
      %897 = vmatprep.subr.mxu0 0.0
      %898 = vmatpush1.msra.mxu0 0.0
      %899 = vmatprep.subr.mxu0 0.0
      %900 = vmatpush1.msra.mxu0 0.0
      %901 = vmatprep.subr.mxu0 0.0
      %902 = vmatpush1.msra.mxu0 0.0
      %903 = vmatprep.subr.mxu0 0.0
      %904 = vmatpush1.msra.mxu0 0.0
      %905 = vmatprep.subr.mxu0 0.0
      %906 = vmatpush1.msra.mxu0 0.0
      %907 = vmatprep.subr.mxu0 0.0
      %908 = vmatpush1.msra.mxu0 0.0
      %909 = vmatprep.subr.mxu0 0.0
      %910 = vmatpush1.msra.mxu0 0.0
      %911 = vmatprep.subr.mxu0 0.0
      %912 = vmatpush1.msra.mxu0 0.0
      %913 = vmatprep.subr.mxu0 0.0
      %914 = vmatpush1.msra.mxu0 0.0
      %915 = vmatprep.subr.mxu0 0.0
      %916 = vmatpush1.msra.mxu0 0.0
      %917 = vmatprep.subr.mxu0 0.0
      %918 = vmatpush1.msra.mxu0 0.0
      %919 = vmatprep.subr.mxu0 0.0
      %920 = vmatpush1.msra.mxu0 0.0
      %921 = vmatprep.subr.mxu0 0.0
      %922 = vmatpush1.msra.mxu0 0.0
      %923 = vmatprep.subr.mxu0 0.0
      %924 = vmatpush1.msra.mxu0 0.0
      %925 = vmatprep.subr.mxu0 0.0
      %926 = vmatpush1.msra.mxu0 0.0
      %927 = vmatprep.subr.mxu0 0.0
      %928 = vmatpush1.msra.mxu0 0.0
      %929 = vmatprep.subr.mxu0 0.0
      %930 = vmatpush1.msra.mxu0 0.0
      %931 = vmatprep.subr.mxu0 0.0
      %932 = vmatpush1.msra.mxu0 0.0
      %933 = vmatprep.subr.mxu0 0.0
      %934 = vmatpush1.msra.mxu0 0.0
      %935 = vmatprep.subr.mxu0 0.0
      %936 = vmatpush1.msra.mxu0 0.0
      %937 = vmatprep.subr.mxu0 0.0
      %938 = vmatpush1.msra.mxu0 0.0
      %939 = vmatprep.mubr.f32.mxu0 0.0
      %940 = vmatmul.mubr.f32.gmra.mrb[0].mxu0 %v849
      %v941 = vpop.f32.mrb[0].mxu0
      %v942 = vadd.f32 0.0, %v941
      %v943 = vpop.f32.mrb[0].mxu0
      %944 = vmatprep.mubr.f32.mxu0 0.0
      %945 = vmatmul.mubr.f32.gmra.mrb[0].mxu0 %v852
      %v946 = vpop.f32.mrb[0].mxu0
      %v947 = vadd.f32 0.0, %v946
      %v948 = vpop.f32.mrb[0].mxu0
      %949 = vmatprep.mubr.f32.mxu0 0.0
      %950 = vmatmul.mubr.f32.gmra.mrb[0].mxu0 %v855
      %v951 = vpop.f32.mrb[0].mxu0
      %v952 = vadd.f32 0.0, %v951
      %v953 = vpop.f32.mrb[0].mxu0
      %954 = vmatprep.mubr.f32.mxu0 0.0
      %955 = vmatmul.mubr.f32.gmra.mrb[0].mxu0 %v858
      %v956 = vpop.f32.mrb[0].mxu0
      %v957 = vadd.f32 0.0, %v956
      %v958 = vpop.f32.mrb[0].mxu0
      %959 = vmatprep.mubr.f32.mxu0 0.0
      %960 = vmatmul.mubr.f32.gmra.mrb[0].mxu0 %v861
      %v961 = vpop.f32.mrb[0].mxu0
      %v962 = vadd.f32 0.0, %v961
      %v963 = vpop.f32.mrb[0].mxu0
      %964 = vmatprep.mubr.f32.mxu0 0.0
      %965 = vmatmul.mubr.f32.gmra.mrb[0].mxu0 %v864
      %v966 = vpop.f32.mrb[0].mxu0
      %v967 = vadd.f32 0.0, %v966
      %v968 = vpop.f32.mrb[0].mxu0
      %969 = vmatprep.mubr.f32.mxu0 0.0
      %970 = vmatmul.mubr.f32.gmra.mrb[0].mxu0 %v867
      %v971 = vpop.f32.mrb[0].mxu0
      %v972 = vadd.f32 0.0, %v971
      %v973 = vpop.f32.mrb[0].mxu0
      %974 = vmatprep.mubr.f32.mxu0 0.0
      %975 = vmatmul.mubr.f32.gmra.mrb[0].mxu0 %v870
      %v976 = vpop.f32.mrb[0].mxu0
      %v977 = vadd.f32 0.0, %v976
      %v978 = vpop.f32.mrb[0].mxu0
      %979 = vdwg.mxu0
      %v981 = vcombine.high %v766, %v766
      %v983 = vunpack.c.l.s4 1966171168
      %v984 = vunpack.c.0.s8 %v983
      %v985 = vlaneseq
      %v986 = vshrl.u32 %v985, 7
      %v987 = vsub.s32 %v984, %v986
      %v988 = vrot.slane %v766, %v987
      %v990 = vunpack.c.l.s4 1966171168
      %v991 = vunpack.c.0.s8 %v990
      %v992 = vlaneseq
      %v993 = vshrl.u32 %v992, 7
      %v994 = vsub.s32 %v991, %v993
      %v995 = vrot.slane %v981, %v994
      %v996 = vcombine.high %v988, %v988
      %v997 = vcombine.high %v995, %v995
      %v999 = vunpack.c.l.s4 1966171168
      %v1000 = vunpack.c.0.s8 %v999
      %v1001 = vlaneseq
      %v1002 = vshrl.u32 %v1001, 7
      %v1003 = vsub.s32 %v1000, %v1002
      %v1004 = vrot.slane %v988, %v1003
      %v1006 = vunpack.c.l.s4 1966171168
      %v1007 = vunpack.c.0.s8 %v1006
      %v1008 = vlaneseq
      %v1009 = vshrl.u32 %v1008, 7
      %v1010 = vsub.s32 %v1007, %v1009
      %v1011 = vrot.slane %v995, %v1010
      %v1013 = vunpack.c.l.s4 1966171168
      %v1014 = vunpack.c.0.s8 %v1013
      %v1015 = vlaneseq
      %v1016 = vshrl.u32 %v1015, 7
      %v1017 = vsub.s32 %v1014, %v1016
      %v1018 = vrot.slane %v996, %v1017
      %v1020 = vunpack.c.l.s4 1966171168
      %v1021 = vunpack.c.0.s8 %v1020
      %v1022 = vlaneseq
      %v1023 = vshrl.u32 %v1022, 7
      %v1024 = vsub.s32 %v1021, %v1023
      %v1025 = vrot.slane %v997, %v1024
      %v1026 = vcombine.high %v1004, %v1004
      %v1027 = vcombine.high %v1011, %v1011
      %v1028 = vcombine.high %v1018, %v1018
      %v1029 = vcombine.high %v1025, %v1025
      %v1030 = vlaneseq
      %v1031 = vshrl.u32 %v1030, 7
      %v1032 = vsub.s32 0, %v1031
      %v1033 = vrot.slane %v1004, %v1032
      %v1034 = vlaneseq
      %v1035 = vshrl.u32 %v1034, 7
      %v1036 = vsub.s32 0, %v1035
      %v1037 = vrot.slane %v1018, %v1036
      %v1038 = vlaneseq
      %v1039 = vshrl.u32 %v1038, 7
      %v1040 = vsub.s32 0, %v1039
      %v1041 = vrot.slane %v1026, %v1040
      %v1042 = vlaneseq
      %v1043 = vshrl.u32 %v1042, 7
      %v1044 = vsub.s32 0, %v1043
      %v1045 = vrot.slane %v1028, %v1044
      %v1046 = vlaneseq
      %v1047 = vshrl.u32 %v1046, 7
      %v1048 = vsub.s32 0, %v1047
      %v1049 = vrot.slane %v1011, %v1048
      %v1050 = vlaneseq
      %v1051 = vshrl.u32 %v1050, 7
      %v1052 = vsub.s32 0, %v1051
      %v1053 = vrot.slane %v1025, %v1052
      %v1054 = vlaneseq
      %v1055 = vshrl.u32 %v1054, 7
      %v1056 = vsub.s32 0, %v1055
      %v1057 = vrot.slane %v1027, %v1056
      %v1058 = vlaneseq
      %v1059 = vshrl.u32 %v1058, 7
      %v1060 = vsub.s32 0, %v1059
      %v1061 = vrot.slane %v1029, %v1060
      %v1070 = vadd.f32 %v659, %v1033
      %v1071 = vadd.f32 %v662, %v1037
      %v1072 = vadd.f32 %v667, %v1041
      %v1073 = vadd.f32 %v670, %v1045
      %v1074 = vadd.f32 %v675, %v1049
      %v1075 = vadd.f32 %v678, %v1053
      %v1076 = vadd.f32 %v683, %v1057
      %v1077 = vadd.f32 %v686, %v1061
      %v1078 = vadd.f32 %v1070, %v844
      %v1079 = vadd.f32 %v1071, %v844
      %v1080 = vadd.f32 %v1072, %v844
      %v1081 = vadd.f32 %v1073, %v844
      %v1082 = vadd.f32 %v1074, %v844
      %v1083 = vadd.f32 %v1075, %v844
      %v1084 = vadd.f32 %v1076, %v844
      %v1085 = vadd.f32 %v1077, %v844
      %v1086 = vadd.f32 %v1078, %v942
      %v1087 = vadd.f32 %v1079, %v947
      %v1088 = vadd.f32 %v1080, %v952
      %v1089 = vadd.f32 %v1081, %v957
      %v1090 = vadd.f32 %v1082, %v962
      %v1091 = vadd.f32 %v1083, %v967
      %v1092 = vadd.f32 %v1084, %v972
      %v1093 = vadd.f32 %v1085, %v977
      %v1094 = vld [vmem:[%s8] sm:$0x1]
      %v1096 = vlaneseq
      %v1097 = vshrl.u32 %v1096, 7
      %v1098 = vsub.s32 0, %v1097
      %v1099 = vrot.slane %v1094, %v1098
      %v1101 = vadd.f32 %v1086, %v1099
      %v1102 = vadd.f32 %v1087, %v1099
      %v1103 = vadd.f32 %v1088, %v1099
      %v1104 = vadd.f32 %v1089, %v1099
      %v1105 = vadd.f32 %v1090, %v1099
      %v1106 = vadd.f32 %v1091, %v1099
      %v1107 = vadd.f32 %v1092, %v1099
      %v1108 = vadd.f32 %v1093, %v1099
      %v1109 = vpack.c.bf16 %v1102, %v1101
      %v1110 = vpack.c.bf16 %v1104, %v1103
      %v1111 = vpack.c.bf16 %v1106, %v1105
      %v1112 = vpack.c.bf16 %v1108, %v1107
      %v1113 = vld [vmem:[%s9] sm:$0xf]
      %v1114 = vld [vmem:[%s9 + $0x4] sm:$0xf]
      %v1115 = vld [vmem:[%s9 + $0x8] sm:$0xf]
      %v1116 = vld [vmem:[%s9 + $0xc] sm:$0xf]
      %v1117 = vld [vmem:[%s9 + $0x10] sm:$0xf]
      %v1118 = vld [vmem:[%s9 + $0x14] sm:$0xf]
      %v1119 = vld [vmem:[%s9 + $0x18] sm:$0xf]
      %v1120 = vld [vmem:[%s9 + $0x1c] sm:$0xf]
      %v1121 = vld [vmem:[%s10] sm:$0x1]
      %v1123 = vlaneseq
      %v1124 = vshrl.u32 %v1123, 7
      %v1125 = vsub.s32 0, %v1124
      %v1126 = vrot.slane %v1121, %v1125
      %v1136 = vunpack.c.l.b16 %v1113
      %v1137 = vunpack.c.l.b16 %v1114
      %v1138 = vunpack.c.l.b16 %v1115
      %v1139 = vunpack.c.l.b16 %v1116
      %v1140 = vunpack.c.l.b16 %v1117
      %v1141 = vunpack.c.l.b16 %v1118
      %v1142 = vunpack.c.l.b16 %v1119
      %v1143 = vunpack.c.l.b16 %v1120
      %v1144 = vpack.c.b16 %v1137, %v1136
      %v1145 = vpack.c.b16 %v1139, %v1138
      %v1146 = vpack.c.b16 %v1141, %v1140
      %v1147 = vpack.c.b16 %v1143, %v1142
      %v1153 = vsel %vm611, %v1109, 0
      %v1156 = vsel %vm611, %v1110, 0
      %v1159 = vsel %vm611, %v1111, 0
      %v1162 = vsel %vm611, %v1112, 0
      %1164 = vmatprep.subr.bf16.mxu0 0
      %1165 = vmatpush1.bf16.msra.mxu0 %v1144
      %1166 = vmatprep.subr.bf16.mxu0 0
      %1167 = vmatpush1.bf16.msra.mxu0 %v1145
      %1168 = vmatprep.subr.bf16.mxu0 0
      %1169 = vmatpush1.bf16.msra.mxu0 %v1146
      %1170 = vmatprep.subr.bf16.mxu0 0
      %1171 = vmatpush1.bf16.msra.mxu0 %v1147
      %1172 = vmatprep.subr.bf16.mxu0 0
      %1173 = vmatpush1.bf16.msra.mxu0 0
      %1174 = vmatprep.subr.bf16.mxu0 0
      %1175 = vmatpush1.bf16.msra.mxu0 0
      %1176 = vmatprep.subr.bf16.mxu0 0
      %1177 = vmatpush1.bf16.msra.mxu0 0
      %1178 = vmatprep.subr.bf16.mxu0 0
      %1179 = vmatpush1.bf16.msra.mxu0 0
      %1180 = vmatprep.subr.bf16.mxu0 0
      %1181 = vmatpush1.bf16.msra.mxu0 0
      %1182 = vmatprep.subr.bf16.mxu0 0
      %1183 = vmatpush1.bf16.msra.mxu0 0
      %1184 = vmatprep.subr.bf16.mxu0 0
      %1185 = vmatpush1.bf16.msra.mxu0 0
      %1186 = vmatprep.subr.bf16.mxu0 0
      %1187 = vmatpush1.bf16.msra.mxu0 0
      %1188 = vmatprep.subr.bf16.mxu0 0
      %1189 = vmatpush1.bf16.msra.mxu0 0
      %1190 = vmatprep.subr.bf16.mxu0 0
      %1191 = vmatpush1.bf16.msra.mxu0 0
      %1192 = vmatprep.subr.bf16.mxu0 0
      %1193 = vmatpush1.bf16.msra.mxu0 0
      %1194 = vmatprep.subr.bf16.mxu0 0
      %1195 = vmatpush1.bf16.msra.mxu0 0
      %1196 = vmatprep.mubr.bf16.mxu0 0
      %1197 = vmatmul.mubr.bf16.gmra.mrb[0].mxu0 %v1153
      %v1198 = vpop.f32.mrb[0].mxu0
      %v1199 = vadd.f32 %v1126, %v1198
      %v1200 = vpop.f32.mrb[0].mxu0
      %v1201 = vpop.f32.mrb[0].mxu0
      %v1202 = vadd.f32 %v1126, %v1201
      %v1203 = vpop.f32.mrb[0].mxu0
      %1204 = vmatprep.mubr.bf16.mxu0 0
      %1205 = vmatmul.mubr.bf16.gmra.mrb[0].mxu0 %v1156
      %v1206 = vpop.f32.mrb[0].mxu0
      %v1207 = vadd.f32 %v1126, %v1206
      %v1208 = vpop.f32.mrb[0].mxu0
      %v1209 = vpop.f32.mrb[0].mxu0
      %v1210 = vadd.f32 %v1126, %v1209
      %v1211 = vpop.f32.mrb[0].mxu0
      %1212 = vmatprep.mubr.bf16.mxu0 0
      %1213 = vmatmul.mubr.bf16.gmra.mrb[0].mxu0 %v1159
      %v1214 = vpop.f32.mrb[0].mxu0
      %v1215 = vadd.f32 %v1126, %v1214
      %v1216 = vpop.f32.mrb[0].mxu0
      %v1217 = vpop.f32.mrb[0].mxu0
      %v1218 = vadd.f32 %v1126, %v1217
      %v1219 = vpop.f32.mrb[0].mxu0
      %1220 = vmatprep.mubr.bf16.mxu0 0
      %1221 = vmatmul.mubr.bf16.gmra.mrb[0].mxu0 %v1162
      %v1222 = vpop.f32.mrb[0].mxu0
      %v1223 = vadd.f32 %v1126, %v1222
      %v1224 = vpop.f32.mrb[0].mxu0
      %v1225 = vpop.f32.mrb[0].mxu0
      %v1226 = vadd.f32 %v1126, %v1225
      %v1227 = vpop.f32.mrb[0].mxu0
      %1228 = vdwg.mxu0
      %1229 = vst.msk [vmem:[%s546] sm:$0xff] %vm611, %v1101
      %1230 = vst.msk [vmem:[%s546 + $0x8] sm:$0xff] %vm611, %v1102
      %1231 = vst.msk [vmem:[%s546 + $0x10] sm:$0xff] %vm611, %v1103
      %1232 = vst.msk [vmem:[%s546 + $0x18] sm:$0xff] %vm611, %v1104
      %1233 = vst.msk [vmem:[%s546 + $0x20] sm:$0xff] %vm611, %v1105
      %1234 = vst.msk [vmem:[%s546 + $0x28] sm:$0xff] %vm611, %v1106
      %1235 = vst.msk [vmem:[%s546 + $0x30] sm:$0xff] %vm611, %v1107
      %1236 = vst.msk [vmem:[%s546 + $0x38] sm:$0xff] %vm611, %v1108
      %1237 = vst.msk [vmem:[%s556] sm:$0xff] %vm691, %v1199
      %1238 = vst.msk [vmem:[%s556 + $0x8] sm:$0xff] %vm691, %v1202
      %1239 = vst.msk [vmem:[%s556 + $0x10] sm:$0xff] %vm691, %v1207
      %1240 = vst.msk [vmem:[%s556 + $0x18] sm:$0xff] %vm691, %v1210
      %1241 = vst.msk [vmem:[%s556 + $0x20] sm:$0xff] %vm691, %v1215
      %1242 = vst.msk [vmem:[%s556 + $0x28] sm:$0xff] %vm691, %v1218
      %1243 = vst.msk [vmem:[%s556 + $0x30] sm:$0xff] %vm691, %v1223
      %1244 = vst.msk [vmem:[%s556 + $0x38] sm:$0xff] %vm691, %v1226
      %s1245 = smul.u32 8, %s29
      %p1246 = scmp.lt.s32.totalorder %s28, 1
      %s1247 = scalar_select %p1246, %s28, 1
      %p1248 = scmp.lt.s32.totalorder %s1245, 7
      %s1249 = scalar_select %p1248, %s1245, 7
      %s1250 = smul.addr %s1247, 8
      %s1251 = sadd.s32 %s1249, %s1250
      %s1252 = smul.addr %s1251, 8
      %s1253 = scalar_lea.vmem %s11, %s1252
      %s1254 = smul.u32 8, %s29
      %p1255 = scmp.lt.s32.totalorder %s28, 1
      %s1256 = scalar_select %p1255, %s28, 1
      %p1257 = scmp.lt.s32.totalorder %s1254, 7
      %s1258 = scalar_select %p1257, %s1254, 7
      %s1259 = smul.addr %s1256, 8
      %s1260 = sadd.s32 %s1258, %s1259
      %s1261 = smul.addr %s1260, 8
      %s1262 = scalar_lea.vmem %s12, %s1261
      // Predicated region
      $region65: #{multi_infer_bert_forward.25} parent=63 // pred_check
        %p1263 = pneg %p313
      $region66: #{multi_infer_bert_forward.25} parent=63 // pred_check_branch
        %1265 = sbr.rel (%p1263) target = $region68
      $region67: #{multi_infer_bert_forward.25} parent=63 // pred_region
        %s1266 = smul.u32 8, %s29
      $region68: #{multi_infer_bert_forward.25} parent=63 // pred_fallthru
        _
      // Predicated region
      $region69: #{multi_infer_bert_forward.25} parent=63 // pred_check
        %p1267 = pneg %p341
      $region70: #{multi_infer_bert_forward.25} parent=63 // pred_check_branch
        %1269 = sbr.rel (%p1267) target = $region72
      $region71: #{multi_infer_bert_forward.25} parent=63 // pred_region
        %s1270 = smul.u32 8, %s29
      $region72: #{multi_infer_bert_forward.25} parent=63 // pred_fallthru
        _
    $region64: #{multi_infer_bert_forward.25} parent=5 // pred_fallthru
      _
    %p1271 = scmp.le.s32.totalorder 2, %s19
    // Predicated region
    $region73: #{multi_infer_bert_forward.25} parent=5 // pred_check
      %p1272 = pneg %p1271
    $region74: #{multi_infer_bert_forward.25} parent=5 // pred_check_branch
      %1274 = sbr.rel (%p1272) target = $region76
    $region75: #{multi_infer_bert_forward.25} parent=5 // pred_region
      %s1275 = ssub.s32 %s19, 2
      // Predicated region
      $region77: #{multi_infer_bert_forward.25} parent=75 // pred_check
        %p1276 = pneg %p319
      $region78: #{multi_infer_bert_forward.25} parent=75 // pred_check_branch
        %1278 = sbr.rel (%p1276) target = $region80
      $region79: #{multi_infer_bert_forward.25} parent=75 // pred_region
        %s1279 = smul.u32 8, %s31
        %p1280 = scmp.lt.s32.totalorder %s30, 1
        %s1281 = scalar_select %p1280, %s30, 1
        %p1282 = scmp.lt.s32.totalorder %s1279, 7
        %s1283 = scalar_select %p1282, %s1279, 7
        %s1284 = smul.addr %s1281, 8
        %s1285 = sadd.s32 %s1283, %s1284
        %s1286 = smul.addr %s1285, 8
        %s1287 = scalar_lea.vmem %s11, %s1286
      $region80: #{multi_infer_bert_forward.25} parent=75 // pred_fallthru
        _
      // Predicated region
      $region81: #{multi_infer_bert_forward.25} parent=75 // pred_check
        %p1288 = pneg %p347
      $region82: #{multi_infer_bert_forward.25} parent=75 // pred_check_branch
        %1290 = sbr.rel (%p1288) target = $region84
      $region83: #{multi_infer_bert_forward.25} parent=75 // pred_region
        %s1291 = smul.u32 8, %s31
        %p1292 = scmp.lt.s32.totalorder %s30, 1
        %s1293 = scalar_select %p1292, %s30, 1
        %p1294 = scmp.lt.s32.totalorder %s1291, 7
        %s1295 = scalar_select %p1294, %s1291, 7
        %s1296 = smul.addr %s1293, 8
        %s1297 = sadd.s32 %s1295, %s1296
        %s1298 = smul.addr %s1297, 8
        %s1299 = scalar_lea.vmem %s12, %s1298
      $region84: #{multi_infer_bert_forward.25} parent=75 // pred_fallthru
        _
    $region76: #{multi_infer_bert_forward.25} parent=5 // pred_fallthru
      _
  $region6: #{multi_infer_bert_forward.25} parent=0 // loop_footer
    %s23 = sadd.s32 1, %s19
  $region7: #{multi_infer_bert_forward.25} parent=0 // loop_footer_branch
    %18 = sbr.rel target = $region3
  $region8: #{multi_infer_bert_forward.25} parent=0 // loop_exit
    _

// kernel: multi_infer_bert_forward.27
$region0: #{multi_infer_bert_forward.27}
  #allocation0 [shape = 'u32[]', space=smem, size = 0x4, offset = 0x4, fixed_abs, tag = 'smem constant byte address 0x4 - core index']
  #allocation1 [shape = 'u32[144,128]{1,0:T(1,128)}', space=vmem, size = 0x12000, scoped, tag = 'internal scratch']
  %s0 = inlined_call_operand.vmem [shape: f32[2,8,8,64], index: 0, kind: input, shape index: {}]
  %s1 = inlined_call_operand.vmem [shape: f32[2,8,6], index: 1, kind: input, shape index: {}, may-alias: {1,2}]
  %s2 = inlined_call_operand.vmem [shape: f32[2,8,6], index: 2, kind: input, shape index: {}, may-alias: {1,2}]
  %s3 = inlined_call_operand.vmem [shape: f32[2,8,8,6], index: 3, kind: input, shape index: {}]
  %s4 = inlined_call_operand.vmem [shape: bf16[64,64], index: 4, kind: input, shape index: {}]
  %s5 = inlined_call_operand.vmem [shape: f32[6,64], index: 5, kind: input, shape index: {}]
  %s6 = inlined_call_operand.vmem [shape: f32[6,64], index: 6, kind: input, shape index: {}]
  %s7 = inlined_call_operand.vmem [shape: f32[6,64], index: 7, kind: input, shape index: {}]
  %s8 = inlined_call_operand.vmem [shape: f32[1,64], index: 8, kind: input, shape index: {}]
  %s9 = inlined_call_operand.vmem [shape: bf16[64,6], index: 9, kind: input, shape index: {}]
  %s10 = inlined_call_operand.vmem [shape: f32[1,6], index: 10, kind: input, shape index: {}]
  %s11 = inlined_call_operand.vmem [shape: f32[2,8,8,6], index: 11, kind: output, shape index: {}]
  %s12 = sld [smem:[#allocation0]]
  $region77: #{multi_infer_bert_forward.27} parent=0
    _
  %s14 = ssub.s32 1, %s12
  %s15 = scalar_select 0, %s14, %s12
  loop: start=0, step=1, limit=4
  $region2: #{multi_infer_bert_forward.27} parent=0 // loop_pre_header
    _
  $region3: #{multi_infer_bert_forward.27} parent=0 // loop_header
    %s17 = sphi 0, %s21
    %p18 = scmp.ge.s32.totalorder %s17, 4
    %s24 = sphi 0, %s36
    %s25 = sphi 0, %s32
    %s26 = sphi 0, %s24
    %s27 = sphi 0, %s25
    %s28 = sphi 0, %s26
    %s29 = sphi 0, %s27
    %s41 = sphi 0, %s43
    %s44 = sphi 0, %s41
    %s45 = sphi 0, %s44
    %s61 = sphi 0, %s45
    %s69 = sphi 0, %s71
    %s72 = sphi 0, %s69
    %s73 = sphi 0, %s72
    %s89 = sphi 0, %s73
    %s95 = sphi 0, %s97
    %s98 = sphi 0, %s95
    %s99 = sphi 0, %s98
    %s115 = sphi 0, %s99
    %s123 = sphi 0, %s125
    %s126 = sphi 0, %s123
    %s127 = sphi 0, %s126
    %s143 = sphi 0, %s127
    %s147 = sphi 0, %s147
    %s149 = sphi 0, %s147
    %s150 = sphi 0, %s149
    %s164 = sphi 0, %s150
    %s168 = sphi 0, %s168
    %s170 = sphi 0, %s168
    %s171 = sphi 0, %s170
    %s185 = sphi 0, %s171
    %s189 = sphi 0, %s189
    %s191 = sphi 0, %s189
    %s192 = sphi 0, %s191
    %s206 = sphi 0, %s192
    %s210 = sphi 0, %s210
    %s212 = sphi 0, %s210
    %s213 = sphi 0, %s212
    %s227 = sphi 0, %s213
    %s231 = sphi 0, %s231
    %s233 = sphi 0, %s231
    %s234 = sphi 0, %s233
    %s248 = sphi 0, %s234
    %s252 = sphi 0, %s252
    %s254 = sphi 0, %s252
    %s255 = sphi 0, %s254
    %s269 = sphi 0, %s255
    %s273 = sphi 0, %s273
    %s275 = sphi 0, %s273
    %s276 = sphi 0, %s275
    %s290 = sphi 0, %s276
    %s298 = sphi 0, %s300
    %s301 = sphi 0, %s298
    %s302 = sphi 0, %s301
    %s318 = sphi 0, %s302
  $region4: #{multi_infer_bert_forward.27} parent=0 // loop_header_branch
    %20 = sbr.rel (%p18) target = $region8
  $region5: #{multi_infer_bert_forward.27} parent=0 // loop_body
    %s22 = ssub.s32 %s17, 1
    %s23 = ssub.s32 %s17, 2
    %s30 = sadd.s32 1, %s25
    %p31 = scmp.ge.s32.totalorder %s30, 1
    %s32 = scalar_select %p31, 0, %s30
    %s33 = sadd.s32 1, %s24
    %s34 = scalar_select %p31, %s33, %s24
    %p35 = scmp.ge.s32.totalorder %s34, 2
    %s36 = scalar_select %p35, 0, %s34
    %s37 = ssub.s32 %s24, %s36
    %s38 = ssub.s32 %s25, %s32
    %s39 = sor.u32 %s37, %s38
    %p40 = scmp.eq.s32.totalorder %s39, 0
    %s42 = sadd.s32 %s41, 1
    %s43 = scalar_select %p40, %s41, %s42
    %p46 = pneg %p40
    %p47 = scmp.eq.s32.totalorder %s17, 1
    %p48 = por %p46, %p47
    %p49 = scmp.ne.s32.totalorder %s41, %s44
    %p50 = scmp.eq.s32.totalorder %s17, 0
    %p51 = por %p49, %p50
    %p52 = scmp.ne.s32.totalorder %s41, %s44
    %p53 = scmp.eq.s32.totalorder %s22, 1
    %p54 = por %p52, %p53
    %p55 = scmp.ne.s32.totalorder %s44, %s45
    %p56 = scmp.eq.s32.totalorder %s22, 0
    %p57 = por %p55, %p56
    %p58 = scmp.ne.s32.totalorder %s44, %s45
    %p59 = scmp.eq.s32.totalorder %s23, 1
    %p60 = por %p58, %p59
    %p62 = scmp.ne.s32.totalorder %s45, %s61
    %p63 = scmp.eq.s32.totalorder %s23, 0
    %p64 = por %p62, %p63
    %s65 = ssub.s32 %s24, %s36
    %s66 = ssub.s32 %s25, %s32
    %s67 = sor.u32 %s65, %s66
    %p68 = scmp.eq.s32.totalorder %s67, 0
    %s70 = sadd.s32 %s69, 1
    %s71 = scalar_select %p68, %s69, %s70
    %p74 = pneg %p68
    %p75 = scmp.eq.s32.totalorder %s17, 1
    %p76 = por %p74, %p75
    %p77 = scmp.ne.s32.totalorder %s69, %s72
    %p78 = scmp.eq.s32.totalorder %s17, 0
    %p79 = por %p77, %p78
    %p80 = scmp.ne.s32.totalorder %s69, %s72
    %p81 = scmp.eq.s32.totalorder %s22, 1
    %p82 = por %p80, %p81
    %p83 = scmp.ne.s32.totalorder %s72, %s73
    %p84 = scmp.eq.s32.totalorder %s22, 0
    %p85 = por %p83, %p84
    %p86 = scmp.ne.s32.totalorder %s72, %s73
    %p87 = scmp.eq.s32.totalorder %s23, 1
    %p88 = por %p86, %p87
    %p90 = scmp.ne.s32.totalorder %s73, %s89
    %p91 = scmp.eq.s32.totalorder %s23, 0
    %p92 = por %p90, %p91
    %s93 = ssub.s32 %s24, %s36
    %p94 = scmp.eq.s32.totalorder %s93, 0
    %s96 = sadd.s32 %s95, 1
    %s97 = scalar_select %p94, %s95, %s96
    %p100 = pneg %p94
    %p101 = scmp.eq.s32.totalorder %s17, 1
    %p102 = por %p100, %p101
    %p103 = scmp.ne.s32.totalorder %s95, %s98
    %p104 = scmp.eq.s32.totalorder %s17, 0
    %p105 = por %p103, %p104
    %p106 = scmp.ne.s32.totalorder %s95, %s98
    %p107 = scmp.eq.s32.totalorder %s22, 1
    %p108 = por %p106, %p107
    %p109 = scmp.ne.s32.totalorder %s98, %s99
    %p110 = scmp.eq.s32.totalorder %s22, 0
    %p111 = por %p109, %p110
    %p112 = scmp.ne.s32.totalorder %s98, %s99
    %p113 = scmp.eq.s32.totalorder %s23, 1
    %p114 = por %p112, %p113
    %p116 = scmp.ne.s32.totalorder %s99, %s115
    %p117 = scmp.eq.s32.totalorder %s23, 0
    %p118 = por %p116, %p117
    %s119 = ssub.s32 %s24, %s36
    %s120 = ssub.s32 %s25, %s32
    %s121 = sor.u32 %s119, %s120
    %p122 = scmp.eq.s32.totalorder %s121, 0
    %s124 = sadd.s32 %s123, 1
    %s125 = scalar_select %p122, %s123, %s124
    %p128 = pneg %p122
    %p129 = scmp.eq.s32.totalorder %s17, 1
    %p130 = por %p128, %p129
    %p131 = scmp.ne.s32.totalorder %s123, %s126
    %p132 = scmp.eq.s32.totalorder %s17, 0
    %p133 = por %p131, %p132
    %p134 = scmp.ne.s32.totalorder %s123, %s126
    %p135 = scmp.eq.s32.totalorder %s22, 1
    %p136 = por %p134, %p135
    %p137 = scmp.ne.s32.totalorder %s126, %s127
    %p138 = scmp.eq.s32.totalorder %s22, 0
    %p139 = por %p137, %p138
    %p140 = scmp.ne.s32.totalorder %s126, %s127
    %p141 = scmp.eq.s32.totalorder %s23, 1
    %p142 = por %p140, %p141
    %p144 = scmp.ne.s32.totalorder %s127, %s143
    %p145 = scmp.eq.s32.totalorder %s23, 0
    %p146 = por %p144, %p145
    %s148 = sadd.s32 %s147, 1
    %p151 = scmp.eq.s32.totalorder %s17, 1
    %p152 = scmp.ne.s32.totalorder %s147, %s149
    %p153 = scmp.eq.s32.totalorder %s17, 0
    %p154 = por %p152, %p153
    %p155 = scmp.ne.s32.totalorder %s147, %s149
    %p156 = scmp.eq.s32.totalorder %s22, 1
    %p157 = por %p155, %p156
    %p158 = scmp.ne.s32.totalorder %s149, %s150
    %p159 = scmp.eq.s32.totalorder %s22, 0
    %p160 = por %p158, %p159
    %p161 = scmp.ne.s32.totalorder %s149, %s150
    %p162 = scmp.eq.s32.totalorder %s23, 1
    %p163 = por %p161, %p162
    %p165 = scmp.ne.s32.totalorder %s150, %s164
    %p166 = scmp.eq.s32.totalorder %s23, 0
    %p167 = por %p165, %p166
    %s169 = sadd.s32 %s168, 1
    %p172 = scmp.eq.s32.totalorder %s17, 1
    %p173 = scmp.ne.s32.totalorder %s168, %s170
    %p174 = scmp.eq.s32.totalorder %s17, 0
    %p175 = por %p173, %p174
    %p176 = scmp.ne.s32.totalorder %s168, %s170
    %p177 = scmp.eq.s32.totalorder %s22, 1
    %p178 = por %p176, %p177
    %p179 = scmp.ne.s32.totalorder %s170, %s171
    %p180 = scmp.eq.s32.totalorder %s22, 0
    %p181 = por %p179, %p180
    %p182 = scmp.ne.s32.totalorder %s170, %s171
    %p183 = scmp.eq.s32.totalorder %s23, 1
    %p184 = por %p182, %p183
    %p186 = scmp.ne.s32.totalorder %s171, %s185
    %p187 = scmp.eq.s32.totalorder %s23, 0
    %p188 = por %p186, %p187
    %s190 = sadd.s32 %s189, 1
    %p193 = scmp.eq.s32.totalorder %s17, 1
    %p194 = scmp.ne.s32.totalorder %s189, %s191
    %p195 = scmp.eq.s32.totalorder %s17, 0
    %p196 = por %p194, %p195
    %p197 = scmp.ne.s32.totalorder %s189, %s191
    %p198 = scmp.eq.s32.totalorder %s22, 1
    %p199 = por %p197, %p198
    %p200 = scmp.ne.s32.totalorder %s191, %s192
    %p201 = scmp.eq.s32.totalorder %s22, 0
    %p202 = por %p200, %p201
    %p203 = scmp.ne.s32.totalorder %s191, %s192
    %p204 = scmp.eq.s32.totalorder %s23, 1
    %p205 = por %p203, %p204
    %p207 = scmp.ne.s32.totalorder %s192, %s206
    %p208 = scmp.eq.s32.totalorder %s23, 0
    %p209 = por %p207, %p208
    %s211 = sadd.s32 %s210, 1
    %p214 = scmp.eq.s32.totalorder %s17, 1
    %p215 = scmp.ne.s32.totalorder %s210, %s212
    %p216 = scmp.eq.s32.totalorder %s17, 0
    %p217 = por %p215, %p216
    %p218 = scmp.ne.s32.totalorder %s210, %s212
    %p219 = scmp.eq.s32.totalorder %s22, 1
    %p220 = por %p218, %p219
    %p221 = scmp.ne.s32.totalorder %s212, %s213
    %p222 = scmp.eq.s32.totalorder %s22, 0
    %p223 = por %p221, %p222
    %p224 = scmp.ne.s32.totalorder %s212, %s213
    %p225 = scmp.eq.s32.totalorder %s23, 1
    %p226 = por %p224, %p225
    %p228 = scmp.ne.s32.totalorder %s213, %s227
    %p229 = scmp.eq.s32.totalorder %s23, 0
    %p230 = por %p228, %p229
    %s232 = sadd.s32 %s231, 1
    %p235 = scmp.eq.s32.totalorder %s17, 1
    %p236 = scmp.ne.s32.totalorder %s231, %s233
    %p237 = scmp.eq.s32.totalorder %s17, 0
    %p238 = por %p236, %p237
    %p239 = scmp.ne.s32.totalorder %s231, %s233
    %p240 = scmp.eq.s32.totalorder %s22, 1
    %p241 = por %p239, %p240
    %p242 = scmp.ne.s32.totalorder %s233, %s234
    %p243 = scmp.eq.s32.totalorder %s22, 0
    %p244 = por %p242, %p243
    %p245 = scmp.ne.s32.totalorder %s233, %s234
    %p246 = scmp.eq.s32.totalorder %s23, 1
    %p247 = por %p245, %p246
    %p249 = scmp.ne.s32.totalorder %s234, %s248
    %p250 = scmp.eq.s32.totalorder %s23, 0
    %p251 = por %p249, %p250
    %s253 = sadd.s32 %s252, 1
    %p256 = scmp.eq.s32.totalorder %s17, 1
    %p257 = scmp.ne.s32.totalorder %s252, %s254
    %p258 = scmp.eq.s32.totalorder %s17, 0
    %p259 = por %p257, %p258
    %p260 = scmp.ne.s32.totalorder %s252, %s254
    %p261 = scmp.eq.s32.totalorder %s22, 1
    %p262 = por %p260, %p261
    %p263 = scmp.ne.s32.totalorder %s254, %s255
    %p264 = scmp.eq.s32.totalorder %s22, 0
    %p265 = por %p263, %p264
    %p266 = scmp.ne.s32.totalorder %s254, %s255
    %p267 = scmp.eq.s32.totalorder %s23, 1
    %p268 = por %p266, %p267
    %p270 = scmp.ne.s32.totalorder %s255, %s269
    %p271 = scmp.eq.s32.totalorder %s23, 0
    %p272 = por %p270, %p271
    %s274 = sadd.s32 %s273, 1
    %p277 = scmp.eq.s32.totalorder %s17, 1
    %p278 = scmp.ne.s32.totalorder %s273, %s275
    %p279 = scmp.eq.s32.totalorder %s17, 0
    %p280 = por %p278, %p279
    %p281 = scmp.ne.s32.totalorder %s273, %s275
    %p282 = scmp.eq.s32.totalorder %s22, 1
    %p283 = por %p281, %p282
    %p284 = scmp.ne.s32.totalorder %s275, %s276
    %p285 = scmp.eq.s32.totalorder %s22, 0
    %p286 = por %p284, %p285
    %p287 = scmp.ne.s32.totalorder %s275, %s276
    %p288 = scmp.eq.s32.totalorder %s23, 1
    %p289 = por %p287, %p288
    %p291 = scmp.ne.s32.totalorder %s276, %s290
    %p292 = scmp.eq.s32.totalorder %s23, 0
    %p293 = por %p291, %p292
    %s294 = ssub.s32 %s24, %s36
    %s295 = ssub.s32 %s25, %s32
    %s296 = sor.u32 %s294, %s295
    %p297 = scmp.eq.s32.totalorder %s296, 0
    %s299 = sadd.s32 %s298, 1
    %s300 = scalar_select %p297, %s298, %s299
    %p303 = pneg %p297
    %p304 = scmp.eq.s32.totalorder %s17, 1
    %p305 = por %p303, %p304
    %p306 = scmp.ne.s32.totalorder %s298, %s301
    %p307 = scmp.eq.s32.totalorder %s17, 0
    %p308 = por %p306, %p307
    %p309 = scmp.ne.s32.totalorder %s298, %s301
    %p310 = scmp.eq.s32.totalorder %s22, 1
    %p311 = por %p309, %p310
    %p312 = scmp.ne.s32.totalorder %s301, %s302
    %p313 = scmp.eq.s32.totalorder %s22, 0
    %p314 = por %p312, %p313
    %p315 = scmp.ne.s32.totalorder %s301, %s302
    %p316 = scmp.eq.s32.totalorder %s23, 1
    %p317 = por %p315, %p316
    %p319 = scmp.ne.s32.totalorder %s302, %s318
    %p320 = scmp.eq.s32.totalorder %s23, 0
    %p321 = por %p319, %p320
    %p322 = scmp.le.s32.totalorder 1, %s17
    %p323 = scmp.lt.s32.totalorder %s17, 3
    %p324 = pnand %p322, %p323
    %p325 = pneg %p324
    // Predicated region
    $region9: #{multi_infer_bert_forward.27} parent=5 // pred_check
      _
    $region10: #{multi_infer_bert_forward.27} parent=5 // pred_check_branch
      %327 = sbr.rel (%p324) target = $region12
    $region11: #{multi_infer_bert_forward.27} parent=5 // pred_region
      %s328 = ssub.s32 %s17, 1
      // Predicated region
      $region13: #{multi_infer_bert_forward.27} parent=11 // pred_check
        %p329 = pneg %p160
      $region14: #{multi_infer_bert_forward.27} parent=11 // pred_check_branch
        %331 = sbr.rel (%p329) target = $region16
      $region15: #{multi_infer_bert_forward.27} parent=11 // pred_region
        _
      $region16: #{multi_infer_bert_forward.27} parent=11 // pred_fallthru
        _
      // Predicated region
      $region17: #{multi_infer_bert_forward.27} parent=11 // pred_check
        %p332 = pneg %p181
      $region18: #{multi_infer_bert_forward.27} parent=11 // pred_check_branch
        %334 = sbr.rel (%p332) target = $region20
      $region19: #{multi_infer_bert_forward.27} parent=11 // pred_region
        _
      $region20: #{multi_infer_bert_forward.27} parent=11 // pred_fallthru
        _
      // Predicated region
      $region21: #{multi_infer_bert_forward.27} parent=11 // pred_check
        %p335 = pneg %p202
      $region22: #{multi_infer_bert_forward.27} parent=11 // pred_check_branch
        %337 = sbr.rel (%p335) target = $region24
      $region23: #{multi_infer_bert_forward.27} parent=11 // pred_region
        _
      $region24: #{multi_infer_bert_forward.27} parent=11 // pred_fallthru
        _
      // Predicated region
      $region25: #{multi_infer_bert_forward.27} parent=11 // pred_check
        %p338 = pneg %p223
      $region26: #{multi_infer_bert_forward.27} parent=11 // pred_check_branch
        %340 = sbr.rel (%p338) target = $region28
      $region27: #{multi_infer_bert_forward.27} parent=11 // pred_region
        _
      $region28: #{multi_infer_bert_forward.27} parent=11 // pred_fallthru
        _
      // Predicated region
      $region29: #{multi_infer_bert_forward.27} parent=11 // pred_check
        %p341 = pneg %p244
      $region30: #{multi_infer_bert_forward.27} parent=11 // pred_check_branch
        %343 = sbr.rel (%p341) target = $region32
      $region31: #{multi_infer_bert_forward.27} parent=11 // pred_region
        _
      $region32: #{multi_infer_bert_forward.27} parent=11 // pred_fallthru
        _
      // Predicated region
      $region33: #{multi_infer_bert_forward.27} parent=11 // pred_check
        %p344 = pneg %p265
      $region34: #{multi_infer_bert_forward.27} parent=11 // pred_check_branch
        %346 = sbr.rel (%p344) target = $region36
      $region35: #{multi_infer_bert_forward.27} parent=11 // pred_region
        _
      $region36: #{multi_infer_bert_forward.27} parent=11 // pred_fallthru
        _
      // Predicated region
      $region37: #{multi_infer_bert_forward.27} parent=11 // pred_check
        %p347 = pneg %p286
      $region38: #{multi_infer_bert_forward.27} parent=11 // pred_check_branch
        %349 = sbr.rel (%p347) target = $region40
      $region39: #{multi_infer_bert_forward.27} parent=11 // pred_region
        _
      $region40: #{multi_infer_bert_forward.27} parent=11 // pred_fallthru
        _
    $region12: #{multi_infer_bert_forward.27} parent=5 // pred_fallthru
      _
    %p350 = scmp.lt.s32.totalorder %s17, 2
    // Predicated region
    $region41: #{multi_infer_bert_forward.27} parent=5 // pred_check
      %p351 = pneg %p350
    $region42: #{multi_infer_bert_forward.27} parent=5 // pred_check_branch
      %353 = sbr.rel (%p351) target = $region44
    $region43: #{multi_infer_bert_forward.27} parent=5 // pred_region
      // Predicated region
      $region45: #{multi_infer_bert_forward.27} parent=43 // pred_check
        %p354 = pneg %p51
      $region46: #{multi_infer_bert_forward.27} parent=43 // pred_check_branch
        %356 = sbr.rel (%p354) target = $region48
      $region47: #{multi_infer_bert_forward.27} parent=43 // pred_region
        %s357 = smul.u32 8, %s25
        %p358 = scmp.lt.s32.totalorder %s24, 1
        %s359 = scalar_select %p358, %s24, 1
        %p360 = scmp.lt.s32.totalorder %s357, 7
        %s361 = scalar_select %p360, %s357, 7
        %s362 = smul.addr %s359, 8
        %s363 = sadd.s32 %s361, %s362
        %s364 = smul.addr %s363, 8
        %s365 = scalar_lea.vmem %s0, %s364
        %s366 = smul.u32 8, %s25
      $region48: #{multi_infer_bert_forward.27} parent=43 // pred_fallthru
        _
      // Predicated region
      $region49: #{multi_infer_bert_forward.27} parent=43 // pred_check
        %p367 = pneg %p79
      $region50: #{multi_infer_bert_forward.27} parent=43 // pred_check_branch
        %369 = sbr.rel (%p367) target = $region52
      $region51: #{multi_infer_bert_forward.27} parent=43 // pred_region
        %p370 = scmp.lt.s32.totalorder %s24, 1
        %s371 = scalar_select %p370, %s24, 1
        %p372 = scmp.lt.s32.totalorder %s25, 0
        %s373 = scalar_select %p372, %s25, 0
        %s374 = sadd.s32 %s373, %s371
        %s375 = smul.addr %s374, 8
        %s376 = scalar_lea.vmem %s1, %s375
      $region52: #{multi_infer_bert_forward.27} parent=43 // pred_fallthru
        _
      // Predicated region
      $region53: #{multi_infer_bert_forward.27} parent=43 // pred_check
        %p377 = pneg %p105
      $region54: #{multi_infer_bert_forward.27} parent=43 // pred_check_branch
        %379 = sbr.rel (%p377) target = $region56
      $region55: #{multi_infer_bert_forward.27} parent=43 // pred_region
        %p380 = scmp.lt.s32.totalorder %s24, 1
        %s381 = scalar_select %p380, %s24, 1
        %s382 = smul.addr %s381, 8
        %s383 = scalar_lea.vmem %s2, %s382
      $region56: #{multi_infer_bert_forward.27} parent=43 // pred_fallthru
        _
      // Predicated region
      $region57: #{multi_infer_bert_forward.27} parent=43 // pred_check
        %p384 = pneg %p133
      $region58: #{multi_infer_bert_forward.27} parent=43 // pred_check_branch
        %386 = sbr.rel (%p384) target = $region60
      $region59: #{multi_infer_bert_forward.27} parent=43 // pred_region
        %s387 = smul.u32 8, %s25
        %p388 = scmp.lt.s32.totalorder %s24, 1
        %s389 = scalar_select %p388, %s24, 1
        %p390 = scmp.lt.s32.totalorder %s387, 7
        %s391 = scalar_select %p390, %s387, 7
        %s392 = smul.addr %s389, 8
        %s393 = sadd.s32 %s391, %s392
        %s394 = smul.addr %s393, 8
        %s395 = scalar_lea.vmem %s3, %s394
        %s396 = smul.u32 8, %s25
      $region60: #{multi_infer_bert_forward.27} parent=43 // pred_fallthru
        _
    $region44: #{multi_infer_bert_forward.27} parent=5 // pred_fallthru
      _
    %p397 = scmp.le.s32.totalorder 1, %s17
    %p398 = scmp.lt.s32.totalorder %s17, 3
    %p399 = pnand %p397, %p398
    %p400 = pneg %p399
    // Predicated region
    $region61: #{multi_infer_bert_forward.27} parent=5 // pred_check
      _
    $region62: #{multi_infer_bert_forward.27} parent=5 // pred_check_branch
      %402 = sbr.rel (%p399) target = $region64
    $region63: #{multi_infer_bert_forward.27} parent=5 // pred_region
      %s403 = ssub.s32 %s17, 1
      %s404 = smul.u32 8, %s27
      %p405 = scmp.lt.s32.totalorder %s26, 1
      %s406 = scalar_select %p405, %s26, 1
      %p407 = scmp.lt.s32.totalorder %s404, 7
      %s408 = scalar_select %p407, %s404, 7
      %s409 = smul.addr %s406, 8
      %s410 = sadd.s32 %s408, %s409
      %s411 = smul.addr %s410, 8
      %s412 = scalar_lea.vmem %s0, %s411
      %p413 = pneg %p57
      %p414 = pneg %p54
      %p415 = scmp.lt.s32.totalorder %s26, 1
      %s416 = scalar_select %p415, %s26, 1
      %p417 = scmp.lt.s32.totalorder %s27, 0
      %s418 = scalar_select %p417, %s27, 0
      %s419 = sadd.s32 %s418, %s416
      %s420 = smul.addr %s419, 8
      %s421 = scalar_lea.vmem %s1, %s420
      %p422 = pneg %p85
      %p423 = pneg %p82
      %p424 = scmp.lt.s32.totalorder %s26, 1
      %s425 = scalar_select %p424, %s26, 1
      %s426 = smul.addr %s425, 8
      %s427 = scalar_lea.vmem %s2, %s426
      %p428 = pneg %p111
      %p429 = pneg %p108
      %s430 = smul.u32 8, %s27
      %p431 = scmp.lt.s32.totalorder %s26, 1
      %s432 = scalar_select %p431, %s26, 1
      %p433 = scmp.lt.s32.totalorder %s430, 7
      %s434 = scalar_select %p433, %s430, 7
      %s435 = smul.addr %s432, 8
      %s436 = sadd.s32 %s434, %s435
      %s437 = smul.addr %s436, 8
      %s438 = scalar_lea.vmem %s3, %s437
      %p439 = pneg %p139
      %p440 = pneg %p136
      %p441 = pneg %p160
      %p442 = pneg %p157
      %p443 = pneg %p181
      %p444 = pneg %p178
      %p445 = pneg %p202
      %p446 = pneg %p199
      %p447 = pneg %p223
      %p448 = pneg %p220
      %p449 = pneg %p244
      %p450 = pneg %p241
      %p451 = pneg %p265
      %p452 = pneg %p262
      %p453 = pneg %p286
      %p454 = pneg %p283
      %p455 = pneg %p314
      %p456 = pneg %p311
      %s457 = smul.u32 8, %s27
      %p458 = scmp.lt.s32.totalorder %s26, 1
      %s459 = scalar_select %p458, %s26, 1
      %p460 = scmp.lt.s32.totalorder %s457, 7
      %s461 = scalar_select %p460, %s457, 7
      %s462 = smul.addr %s459, 8
      %s463 = sadd.s32 %s461, %s462
      %s464 = smul.addr %s463, 8
      %s465 = scalar_lea.vmem %s11, %s464
      %s466 = smul.u32 8, %s27
      %p467 = scmp.lt.s32.totalorder %s26, 1
      %s468 = scalar_select %p467, %s26, 1
      %p469 = scmp.lt.s32.totalorder %s466, 7
      %s470 = scalar_select %p469, %s466, 7
      %s471 = smul.addr %s468, 8
      %s472 = sadd.s32 %s470, %s471
      %s473 = smul.addr %s472, 8
      %s474 = scalar_lea.vmem %s0, %s473
      %s475 = smul.u32 8, %s27
      %p476 = scmp.lt.s32.totalorder %s26, 1
      %s477 = scalar_select %p476, %s26, 1
      %p478 = scmp.lt.s32.totalorder %s27, 0
      %s479 = scalar_select %p478, %s27, 0
      %s480 = sadd.s32 %s479, %s477
      %s481 = smul.addr %s480, 8
      %s482 = scalar_lea.vmem %s1, %s481
      %p483 = scmp.lt.s32.totalorder %s26, 1
      %s484 = scalar_select %p483, %s26, 1
      %s485 = smul.addr %s484, 8
      %s486 = scalar_lea.vmem %s2, %s485
      %s487 = smul.u32 8, %s27
      %p488 = scmp.lt.s32.totalorder %s26, 1
      %s489 = scalar_select %p488, %s26, 1
      %p490 = scmp.lt.s32.totalorder %s487, 7
      %s491 = scalar_select %p490, %s487, 7
      %s492 = smul.addr %s489, 8
      %s493 = sadd.s32 %s491, %s492
      %s494 = smul.addr %s493, 8
      %s495 = scalar_lea.vmem %s3, %s494
      %s496 = smul.u32 8, %s27
      %s497 = smul.u32 8, %s27
      %p498 = scmp.lt.s32.totalorder %s26, 1
      %s499 = scalar_select %p498, %s26, 1
      %p500 = scmp.lt.s32.totalorder %s497, 7
      %s501 = scalar_select %p500, %s497, 7
      %s502 = smul.addr %s499, 8
      %s503 = sadd.s32 %s501, %s502
      %s504 = smul.addr %s503, 8
      %s505 = scalar_lea.vmem %s11, %s504
      %s506 = smul.u32 8, %s27
      %v508 = vld [vmem:[%s474] sm:$0xff]
      %v509 = vld [vmem:[%s474 + $0x8] sm:$0xff]
      %v510 = vld [vmem:[%s474 + $0x10] sm:$0xff]
      %v511 = vld [vmem:[%s474 + $0x18] sm:$0xff]
      %v512 = vld [vmem:[%s474 + $0x20] sm:$0xff]
      %v513 = vld [vmem:[%s474 + $0x28] sm:$0xff]
      %v514 = vld [vmem:[%s474 + $0x30] sm:$0xff]
      %v515 = vld [vmem:[%s474 + $0x38] sm:$0xff]
      %v516 = vld [vmem:[%s495] sm:$0xff]
      %v517 = vld [vmem:[%s495 + $0x8] sm:$0xff]
      %v518 = vld [vmem:[%s495 + $0x10] sm:$0xff]
      %v519 = vld [vmem:[%s495 + $0x18] sm:$0xff]
      %v520 = vld [vmem:[%s495 + $0x20] sm:$0xff]
      %v521 = vld [vmem:[%s495 + $0x28] sm:$0xff]
      %v522 = vld [vmem:[%s495 + $0x30] sm:$0xff]
      %v523 = vld [vmem:[%s495 + $0x38] sm:$0xff]
      %v524 = vpack.c.bf16 %v509, %v508
      %v525 = vpack.c.bf16 %v511, %v510
      %v526 = vpack.c.bf16 %v513, %v512
      %v527 = vpack.c.bf16 %v515, %v514
      %v528 = vld [vmem:[%s4] sm:$0xf]
      %v529 = vld [vmem:[%s4 + $0x4] sm:$0xf]
      %v530 = vld [vmem:[%s4 + $0x8] sm:$0xf]
      %v531 = vld [vmem:[%s4 + $0xc] sm:$0xf]
      %v532 = vld [vmem:[%s4 + $0x10] sm:$0xf]
      %v533 = vld [vmem:[%s4 + $0x14] sm:$0xf]
      %v534 = vld [vmem:[%s4 + $0x18] sm:$0xf]
      %v535 = vld [vmem:[%s4 + $0x1c] sm:$0xf]
      %v544 = vunpack.c.l.b16 %v528
      %v545 = vunpack.c.l.b16 %v529
      %v546 = vunpack.c.l.b16 %v530
      %v547 = vunpack.c.l.b16 %v531
      %v548 = vunpack.c.l.b16 %v532
      %v549 = vunpack.c.l.b16 %v533
      %v550 = vunpack.c.l.b16 %v534
      %v551 = vunpack.c.l.b16 %v535
      %v552 = vpack.c.b16 %v545, %v544
      %v553 = vpack.c.b16 %v547, %v546
      %v554 = vpack.c.b16 %v549, %v548
      %v555 = vpack.c.b16 %v551, %v550
      %vm560 = vcmask 523264
      %v562 = vsel %vm560, %v524, 0
      %v565 = vsel %vm560, %v525, 0
      %v568 = vsel %vm560, %v526, 0
      %v571 = vsel %vm560, %v527, 0
      %573 = vmatprep.subr.bf16.mxu0 0
      %574 = vmatpush1.bf16.msra.mxu0 %v552
      %575 = vmatprep.subr.bf16.mxu0 0
      %576 = vmatpush1.bf16.msra.mxu0 %v553
      %577 = vmatprep.subr.bf16.mxu0 0
      %578 = vmatpush1.bf16.msra.mxu0 %v554
      %579 = vmatprep.subr.bf16.mxu0 0
      %580 = vmatpush1.bf16.msra.mxu0 %v555
      %581 = vmatprep.subr.bf16.mxu0 0
      %582 = vmatpush1.bf16.msra.mxu0 0
      %583 = vmatprep.subr.bf16.mxu0 0
      %584 = vmatpush1.bf16.msra.mxu0 0
      %585 = vmatprep.subr.bf16.mxu0 0
      %586 = vmatpush1.bf16.msra.mxu0 0
      %587 = vmatprep.subr.bf16.mxu0 0
      %588 = vmatpush1.bf16.msra.mxu0 0
      %589 = vmatprep.subr.bf16.mxu0 0
      %590 = vmatpush1.bf16.msra.mxu0 0
      %591 = vmatprep.subr.bf16.mxu0 0
      %592 = vmatpush1.bf16.msra.mxu0 0
      %593 = vmatprep.subr.bf16.mxu0 0
      %594 = vmatpush1.bf16.msra.mxu0 0
      %595 = vmatprep.subr.bf16.mxu0 0
      %596 = vmatpush1.bf16.msra.mxu0 0
      %597 = vmatprep.subr.bf16.mxu0 0
      %598 = vmatpush1.bf16.msra.mxu0 0
      %599 = vmatprep.subr.bf16.mxu0 0
      %600 = vmatpush1.bf16.msra.mxu0 0
      %601 = vmatprep.subr.bf16.mxu0 0
      %602 = vmatpush1.bf16.msra.mxu0 0
      %603 = vmatprep.subr.bf16.mxu0 0
      %604 = vmatpush1.bf16.msra.mxu0 0
      %605 = vmatprep.mubr.bf16.mxu0 0
      %606 = vmatmul.mubr.bf16.gmra.mrb[0].mxu0 %v562
      %v607 = vpop.f32.mrb[0].mxu0
      %v608 = vadd.f32 0.0, %v607
      %v609 = vpop.f32.mrb[0].mxu0
      %v610 = vpop.f32.mrb[0].mxu0
      %v611 = vadd.f32 0.0, %v610
      %v612 = vpop.f32.mrb[0].mxu0
      %613 = vmatprep.mubr.bf16.mxu0 0
      %614 = vmatmul.mubr.bf16.gmra.mrb[0].mxu0 %v565
      %v615 = vpop.f32.mrb[0].mxu0
      %v616 = vadd.f32 0.0, %v615
      %v617 = vpop.f32.mrb[0].mxu0
      %v618 = vpop.f32.mrb[0].mxu0
      %v619 = vadd.f32 0.0, %v618
      %v620 = vpop.f32.mrb[0].mxu0
      %621 = vmatprep.mubr.bf16.mxu0 0
      %622 = vmatmul.mubr.bf16.gmra.mrb[0].mxu0 %v568
      %v623 = vpop.f32.mrb[0].mxu0
      %v624 = vadd.f32 0.0, %v623
      %v625 = vpop.f32.mrb[0].mxu0
      %v626 = vpop.f32.mrb[0].mxu0
      %v627 = vadd.f32 0.0, %v626
      %v628 = vpop.f32.mrb[0].mxu0
      %629 = vmatprep.mubr.bf16.mxu0 0
      %630 = vmatmul.mubr.bf16.gmra.mrb[0].mxu0 %v571
      %v631 = vpop.f32.mrb[0].mxu0
      %v632 = vadd.f32 0.0, %v631
      %v633 = vpop.f32.mrb[0].mxu0
      %v634 = vpop.f32.mrb[0].mxu0
      %v635 = vadd.f32 0.0, %v634
      %v636 = vpop.f32.mrb[0].mxu0
      %637 = vdwg.mxu0
      %v638 = vld [vmem:[%s482] sm:$0xff]
      %v639 = vld [vmem:[%s5] sm:$0x3f]
      %vm640 = vcmask 48128
      %v642 = vsel %vm640, %v638, 0
      %vm644 = vcmask 1045504
      %v646 = vsel %vm644, %v639, 0
      %648 = vmatprep.subr.mxu0 0.0
      %649 = vmatpush1.msra.mxu0 %v646
      %650 = vmatprep.subr.mxu0 0.0
      %651 = vmatpush1.msra.mxu0 0.0
      %652 = vmatprep.subr.mxu0 0.0
      %653 = vmatpush1.msra.mxu0 0.0
      %654 = vmatprep.subr.mxu0 0.0
      %655 = vmatpush1.msra.mxu0 0.0
      %656 = vmatprep.subr.mxu0 0.0
      %657 = vmatpush1.msra.mxu0 0.0
      %658 = vmatprep.subr.mxu0 0.0
      %659 = vmatpush1.msra.mxu0 0.0
      %660 = vmatprep.subr.mxu0 0.0
      %661 = vmatpush1.msra.mxu0 0.0
      %662 = vmatprep.subr.mxu0 0.0
      %663 = vmatpush1.msra.mxu0 0.0
      %664 = vmatprep.subr.mxu0 0.0
      %665 = vmatpush1.msra.mxu0 0.0
      %666 = vmatprep.subr.mxu0 0.0
      %667 = vmatpush1.msra.mxu0 0.0
      %668 = vmatprep.subr.mxu0 0.0
      %669 = vmatpush1.msra.mxu0 0.0
      %670 = vmatprep.subr.mxu0 0.0
      %671 = vmatpush1.msra.mxu0 0.0
      %672 = vmatprep.subr.mxu0 0.0
      %673 = vmatpush1.msra.mxu0 0.0
      %674 = vmatprep.subr.mxu0 0.0
      %675 = vmatpush1.msra.mxu0 0.0
      %676 = vmatprep.subr.mxu0 0.0
      %677 = vmatpush1.msra.mxu0 0.0
      %678 = vmatprep.subr.mxu0 0.0
      %679 = vmatpush1.msra.mxu0 0.0
      %680 = vmatprep.subr.mxu0 0.0
      %681 = vmatpush1.msra.mxu0 0.0
      %682 = vmatprep.subr.mxu0 0.0
      %683 = vmatpush1.msra.mxu0 0.0
      %684 = vmatprep.subr.mxu0 0.0
      %685 = vmatpush1.msra.mxu0 0.0
      %686 = vmatprep.subr.mxu0 0.0
      %687 = vmatpush1.msra.mxu0 0.0
      %688 = vmatprep.subr.mxu0 0.0
      %689 = vmatpush1.msra.mxu0 0.0
      %690 = vmatprep.subr.mxu0 0.0
      %691 = vmatpush1.msra.mxu0 0.0
      %692 = vmatprep.subr.mxu0 0.0
      %693 = vmatpush1.msra.mxu0 0.0
      %694 = vmatprep.subr.mxu0 0.0
      %695 = vmatpush1.msra.mxu0 0.0
      %696 = vmatprep.subr.mxu0 0.0
      %697 = vmatpush1.msra.mxu0 0.0
      %698 = vmatprep.subr.mxu0 0.0
      %699 = vmatpush1.msra.mxu0 0.0
      %700 = vmatprep.subr.mxu0 0.0
      %701 = vmatpush1.msra.mxu0 0.0
      %702 = vmatprep.subr.mxu0 0.0
      %703 = vmatpush1.msra.mxu0 0.0
      %704 = vmatprep.subr.mxu0 0.0
      %705 = vmatpush1.msra.mxu0 0.0
      %706 = vmatprep.subr.mxu0 0.0
      %707 = vmatpush1.msra.mxu0 0.0
      %708 = vmatprep.subr.mxu0 0.0
      %709 = vmatpush1.msra.mxu0 0.0
      %710 = vmatprep.subr.mxu0 0.0
      %711 = vmatpush1.msra.mxu0 0.0
      %712 = vmatprep.mubr.f32.mxu0 0.0
      %713 = vmatmul.mubr.f32.gmra.mrb[0].mxu0 %v642
      %v714 = vpop.f32.mrb[0].mxu0
      %v715 = vadd.f32 0.0, %v714
      %v716 = vpop.f32.mrb[0].mxu0
      %717 = vdwg.mxu0
      %v718 = vld [vmem:[%s486] sm:$0xff]
      %v719 = vld [vmem:[%s6] sm:$0x3f]
      %v721 = vsel %vm640, %v718, 0
      %v724 = vsel %vm644, %v719, 0
      %726 = vmatprep.subr.mxu0 0.0
      %727 = vmatpush1.msra.mxu0 %v724
      %728 = vmatprep.subr.mxu0 0.0
      %729 = vmatpush1.msra.mxu0 0.0
      %730 = vmatprep.subr.mxu0 0.0
      %731 = vmatpush1.msra.mxu0 0.0
      %732 = vmatprep.subr.mxu0 0.0
      %733 = vmatpush1.msra.mxu0 0.0
      %734 = vmatprep.subr.mxu0 0.0
      %735 = vmatpush1.msra.mxu0 0.0
      %736 = vmatprep.subr.mxu0 0.0
      %737 = vmatpush1.msra.mxu0 0.0
      %738 = vmatprep.subr.mxu0 0.0
      %739 = vmatpush1.msra.mxu0 0.0
      %740 = vmatprep.subr.mxu0 0.0
      %741 = vmatpush1.msra.mxu0 0.0
      %742 = vmatprep.subr.mxu0 0.0
      %743 = vmatpush1.msra.mxu0 0.0
      %744 = vmatprep.subr.mxu0 0.0
      %745 = vmatpush1.msra.mxu0 0.0
      %746 = vmatprep.subr.mxu0 0.0
      %747 = vmatpush1.msra.mxu0 0.0
      %748 = vmatprep.subr.mxu0 0.0
      %749 = vmatpush1.msra.mxu0 0.0
      %750 = vmatprep.subr.mxu0 0.0
      %751 = vmatpush1.msra.mxu0 0.0
      %752 = vmatprep.subr.mxu0 0.0
      %753 = vmatpush1.msra.mxu0 0.0
      %754 = vmatprep.subr.mxu0 0.0
      %755 = vmatpush1.msra.mxu0 0.0
      %756 = vmatprep.subr.mxu0 0.0
      %757 = vmatpush1.msra.mxu0 0.0
      %758 = vmatprep.subr.mxu0 0.0
      %759 = vmatpush1.msra.mxu0 0.0
      %760 = vmatprep.subr.mxu0 0.0
      %761 = vmatpush1.msra.mxu0 0.0
      %762 = vmatprep.subr.mxu0 0.0
      %763 = vmatpush1.msra.mxu0 0.0
      %764 = vmatprep.subr.mxu0 0.0
      %765 = vmatpush1.msra.mxu0 0.0
      %766 = vmatprep.subr.mxu0 0.0
      %767 = vmatpush1.msra.mxu0 0.0
      %768 = vmatprep.subr.mxu0 0.0
      %769 = vmatpush1.msra.mxu0 0.0
      %770 = vmatprep.subr.mxu0 0.0
      %771 = vmatpush1.msra.mxu0 0.0
      %772 = vmatprep.subr.mxu0 0.0
      %773 = vmatpush1.msra.mxu0 0.0
      %774 = vmatprep.subr.mxu0 0.0
      %775 = vmatpush1.msra.mxu0 0.0
      %776 = vmatprep.subr.mxu0 0.0
      %777 = vmatpush1.msra.mxu0 0.0
      %778 = vmatprep.subr.mxu0 0.0
      %779 = vmatpush1.msra.mxu0 0.0
      %780 = vmatprep.subr.mxu0 0.0
      %781 = vmatpush1.msra.mxu0 0.0
      %782 = vmatprep.subr.mxu0 0.0
      %783 = vmatpush1.msra.mxu0 0.0
      %784 = vmatprep.subr.mxu0 0.0
      %785 = vmatpush1.msra.mxu0 0.0
      %786 = vmatprep.subr.mxu0 0.0
      %787 = vmatpush1.msra.mxu0 0.0
      %788 = vmatprep.subr.mxu0 0.0
      %789 = vmatpush1.msra.mxu0 0.0
      %790 = vmatprep.mubr.f32.mxu0 0.0
      %791 = vmatmul.mubr.f32.gmra.mrb[0].mxu0 %v721
      %v792 = vpop.f32.mrb[0].mxu0
      %v793 = vadd.f32 0.0, %v792
      %v794 = vpop.f32.mrb[0].mxu0
      %795 = vdwg.mxu0
      %v796 = vld [vmem:[%s7] sm:$0x3f]
      %v798 = vsel %vm640, %v516, 0
      %v801 = vsel %vm640, %v517, 0
      %v804 = vsel %vm640, %v518, 0
      %v807 = vsel %vm640, %v519, 0
      %v810 = vsel %vm640, %v520, 0
      %v813 = vsel %vm640, %v521, 0
      %v816 = vsel %vm640, %v522, 0
      %v819 = vsel %vm640, %v523, 0
      %v822 = vsel %vm644, %v796, 0
      %824 = vmatprep.subr.mxu0 0.0
      %825 = vmatpush1.msra.mxu0 %v822
      %826 = vmatprep.subr.mxu0 0.0
      %827 = vmatpush1.msra.mxu0 0.0
      %828 = vmatprep.subr.mxu0 0.0
      %829 = vmatpush1.msra.mxu0 0.0
      %830 = vmatprep.subr.mxu0 0.0
      %831 = vmatpush1.msra.mxu0 0.0
      %832 = vmatprep.subr.mxu0 0.0
      %833 = vmatpush1.msra.mxu0 0.0
      %834 = vmatprep.subr.mxu0 0.0
      %835 = vmatpush1.msra.mxu0 0.0
      %836 = vmatprep.subr.mxu0 0.0
      %837 = vmatpush1.msra.mxu0 0.0
      %838 = vmatprep.subr.mxu0 0.0
      %839 = vmatpush1.msra.mxu0 0.0
      %840 = vmatprep.subr.mxu0 0.0
      %841 = vmatpush1.msra.mxu0 0.0
      %842 = vmatprep.subr.mxu0 0.0
      %843 = vmatpush1.msra.mxu0 0.0
      %844 = vmatprep.subr.mxu0 0.0
      %845 = vmatpush1.msra.mxu0 0.0
      %846 = vmatprep.subr.mxu0 0.0
      %847 = vmatpush1.msra.mxu0 0.0
      %848 = vmatprep.subr.mxu0 0.0
      %849 = vmatpush1.msra.mxu0 0.0
      %850 = vmatprep.subr.mxu0 0.0
      %851 = vmatpush1.msra.mxu0 0.0
      %852 = vmatprep.subr.mxu0 0.0
      %853 = vmatpush1.msra.mxu0 0.0
      %854 = vmatprep.subr.mxu0 0.0
      %855 = vmatpush1.msra.mxu0 0.0
      %856 = vmatprep.subr.mxu0 0.0
      %857 = vmatpush1.msra.mxu0 0.0
      %858 = vmatprep.subr.mxu0 0.0
      %859 = vmatpush1.msra.mxu0 0.0
      %860 = vmatprep.subr.mxu0 0.0
      %861 = vmatpush1.msra.mxu0 0.0
      %862 = vmatprep.subr.mxu0 0.0
      %863 = vmatpush1.msra.mxu0 0.0
      %864 = vmatprep.subr.mxu0 0.0
      %865 = vmatpush1.msra.mxu0 0.0
      %866 = vmatprep.subr.mxu0 0.0
      %867 = vmatpush1.msra.mxu0 0.0
      %868 = vmatprep.subr.mxu0 0.0
      %869 = vmatpush1.msra.mxu0 0.0
      %870 = vmatprep.subr.mxu0 0.0
      %871 = vmatpush1.msra.mxu0 0.0
      %872 = vmatprep.subr.mxu0 0.0
      %873 = vmatpush1.msra.mxu0 0.0
      %874 = vmatprep.subr.mxu0 0.0
      %875 = vmatpush1.msra.mxu0 0.0
      %876 = vmatprep.subr.mxu0 0.0
      %877 = vmatpush1.msra.mxu0 0.0
      %878 = vmatprep.subr.mxu0 0.0
      %879 = vmatpush1.msra.mxu0 0.0
      %880 = vmatprep.subr.mxu0 0.0
      %881 = vmatpush1.msra.mxu0 0.0
      %882 = vmatprep.subr.mxu0 0.0
      %883 = vmatpush1.msra.mxu0 0.0
      %884 = vmatprep.subr.mxu0 0.0
      %885 = vmatpush1.msra.mxu0 0.0
      %886 = vmatprep.subr.mxu0 0.0
      %887 = vmatpush1.msra.mxu0 0.0
      %888 = vmatprep.mubr.f32.mxu0 0.0
      %889 = vmatmul.mubr.f32.gmra.mrb[0].mxu0 %v798
      %v890 = vpop.f32.mrb[0].mxu0
      %v891 = vadd.f32 0.0, %v890
      %v892 = vpop.f32.mrb[0].mxu0
      %893 = vmatprep.mubr.f32.mxu0 0.0
      %894 = vmatmul.mubr.f32.gmra.mrb[0].mxu0 %v801
      %v895 = vpop.f32.mrb[0].mxu0
      %v896 = vadd.f32 0.0, %v895
      %v897 = vpop.f32.mrb[0].mxu0
      %898 = vmatprep.mubr.f32.mxu0 0.0
      %899 = vmatmul.mubr.f32.gmra.mrb[0].mxu0 %v804
      %v900 = vpop.f32.mrb[0].mxu0
      %v901 = vadd.f32 0.0, %v900
      %v902 = vpop.f32.mrb[0].mxu0
      %903 = vmatprep.mubr.f32.mxu0 0.0
      %904 = vmatmul.mubr.f32.gmra.mrb[0].mxu0 %v807
      %v905 = vpop.f32.mrb[0].mxu0
      %v906 = vadd.f32 0.0, %v905
      %v907 = vpop.f32.mrb[0].mxu0
      %908 = vmatprep.mubr.f32.mxu0 0.0
      %909 = vmatmul.mubr.f32.gmra.mrb[0].mxu0 %v810
      %v910 = vpop.f32.mrb[0].mxu0
      %v911 = vadd.f32 0.0, %v910
      %v912 = vpop.f32.mrb[0].mxu0
      %913 = vmatprep.mubr.f32.mxu0 0.0
      %914 = vmatmul.mubr.f32.gmra.mrb[0].mxu0 %v813
      %v915 = vpop.f32.mrb[0].mxu0
      %v916 = vadd.f32 0.0, %v915
      %v917 = vpop.f32.mrb[0].mxu0
      %918 = vmatprep.mubr.f32.mxu0 0.0
      %919 = vmatmul.mubr.f32.gmra.mrb[0].mxu0 %v816
      %v920 = vpop.f32.mrb[0].mxu0
      %v921 = vadd.f32 0.0, %v920
      %v922 = vpop.f32.mrb[0].mxu0
      %923 = vmatprep.mubr.f32.mxu0 0.0
      %924 = vmatmul.mubr.f32.gmra.mrb[0].mxu0 %v819
      %v925 = vpop.f32.mrb[0].mxu0
      %v926 = vadd.f32 0.0, %v925
      %v927 = vpop.f32.mrb[0].mxu0
      %928 = vdwg.mxu0
      %v930 = vcombine.high %v715, %v715
      %v932 = vunpack.c.l.s4 1966171168
      %v933 = vunpack.c.0.s8 %v932
      %v934 = vlaneseq
      %v935 = vshrl.u32 %v934, 7
      %v936 = vsub.s32 %v933, %v935
      %v937 = vrot.slane %v715, %v936
      %v939 = vunpack.c.l.s4 1966171168
      %v940 = vunpack.c.0.s8 %v939
      %v941 = vlaneseq
      %v942 = vshrl.u32 %v941, 7
      %v943 = vsub.s32 %v940, %v942
      %v944 = vrot.slane %v930, %v943
      %v945 = vcombine.high %v937, %v937
      %v946 = vcombine.high %v944, %v944
      %v948 = vunpack.c.l.s4 1966171168
      %v949 = vunpack.c.0.s8 %v948
      %v950 = vlaneseq
      %v951 = vshrl.u32 %v950, 7
      %v952 = vsub.s32 %v949, %v951
      %v953 = vrot.slane %v937, %v952
      %v955 = vunpack.c.l.s4 1966171168
      %v956 = vunpack.c.0.s8 %v955
      %v957 = vlaneseq
      %v958 = vshrl.u32 %v957, 7
      %v959 = vsub.s32 %v956, %v958
      %v960 = vrot.slane %v944, %v959
      %v962 = vunpack.c.l.s4 1966171168
      %v963 = vunpack.c.0.s8 %v962
      %v964 = vlaneseq
      %v965 = vshrl.u32 %v964, 7
      %v966 = vsub.s32 %v963, %v965
      %v967 = vrot.slane %v945, %v966
      %v969 = vunpack.c.l.s4 1966171168
      %v970 = vunpack.c.0.s8 %v969
      %v971 = vlaneseq
      %v972 = vshrl.u32 %v971, 7
      %v973 = vsub.s32 %v970, %v972
      %v974 = vrot.slane %v946, %v973
      %v975 = vcombine.high %v953, %v953
      %v976 = vcombine.high %v960, %v960
      %v977 = vcombine.high %v967, %v967
      %v978 = vcombine.high %v974, %v974
      %v979 = vlaneseq
      %v980 = vshrl.u32 %v979, 7
      %v981 = vsub.s32 0, %v980
      %v982 = vrot.slane %v953, %v981
      %v983 = vlaneseq
      %v984 = vshrl.u32 %v983, 7
      %v985 = vsub.s32 0, %v984
      %v986 = vrot.slane %v967, %v985
      %v987 = vlaneseq
      %v988 = vshrl.u32 %v987, 7
      %v989 = vsub.s32 0, %v988
      %v990 = vrot.slane %v975, %v989
      %v991 = vlaneseq
      %v992 = vshrl.u32 %v991, 7
      %v993 = vsub.s32 0, %v992
      %v994 = vrot.slane %v977, %v993
      %v995 = vlaneseq
      %v996 = vshrl.u32 %v995, 7
      %v997 = vsub.s32 0, %v996
      %v998 = vrot.slane %v960, %v997
      %v999 = vlaneseq
      %v1000 = vshrl.u32 %v999, 7
      %v1001 = vsub.s32 0, %v1000
      %v1002 = vrot.slane %v974, %v1001
      %v1003 = vlaneseq
      %v1004 = vshrl.u32 %v1003, 7
      %v1005 = vsub.s32 0, %v1004
      %v1006 = vrot.slane %v976, %v1005
      %v1007 = vlaneseq
      %v1008 = vshrl.u32 %v1007, 7
      %v1009 = vsub.s32 0, %v1008
      %v1010 = vrot.slane %v978, %v1009
      %v1019 = vadd.f32 %v608, %v982
      %v1020 = vadd.f32 %v611, %v986
      %v1021 = vadd.f32 %v616, %v990
      %v1022 = vadd.f32 %v619, %v994
      %v1023 = vadd.f32 %v624, %v998
      %v1024 = vadd.f32 %v627, %v1002
      %v1025 = vadd.f32 %v632, %v1006
      %v1026 = vadd.f32 %v635, %v1010
      %v1027 = vadd.f32 %v1019, %v793
      %v1028 = vadd.f32 %v1020, %v793
      %v1029 = vadd.f32 %v1021, %v793
      %v1030 = vadd.f32 %v1022, %v793
      %v1031 = vadd.f32 %v1023, %v793
      %v1032 = vadd.f32 %v1024, %v793
      %v1033 = vadd.f32 %v1025, %v793
      %v1034 = vadd.f32 %v1026, %v793
      %v1035 = vadd.f32 %v1027, %v891
      %v1036 = vadd.f32 %v1028, %v896
      %v1037 = vadd.f32 %v1029, %v901
      %v1038 = vadd.f32 %v1030, %v906
      %v1039 = vadd.f32 %v1031, %v911
      %v1040 = vadd.f32 %v1032, %v916
      %v1041 = vadd.f32 %v1033, %v921
      %v1042 = vadd.f32 %v1034, %v926
      %v1043 = vld [vmem:[%s8] sm:$0x1]
      %v1045 = vlaneseq
      %v1046 = vshrl.u32 %v1045, 7
      %v1047 = vsub.s32 0, %v1046
      %v1048 = vrot.slane %v1043, %v1047
      %v1050 = vadd.f32 %v1035, %v1048
      %v1051 = vadd.f32 %v1036, %v1048
      %v1052 = vadd.f32 %v1037, %v1048
      %v1053 = vadd.f32 %v1038, %v1048
      %v1054 = vadd.f32 %v1039, %v1048
      %v1055 = vadd.f32 %v1040, %v1048
      %v1056 = vadd.f32 %v1041, %v1048
      %v1057 = vadd.f32 %v1042, %v1048
      %v1058 = vpack.c.bf16 %v1051, %v1050
      %v1059 = vpack.c.bf16 %v1053, %v1052
      %v1060 = vpack.c.bf16 %v1055, %v1054
      %v1061 = vpack.c.bf16 %v1057, %v1056
      %v1062 = vld [vmem:[%s9] sm:$0xf]
      %v1063 = vld [vmem:[%s9 + $0x4] sm:$0xf]
      %v1064 = vld [vmem:[%s9 + $0x8] sm:$0xf]
      %v1065 = vld [vmem:[%s9 + $0xc] sm:$0xf]
      %v1066 = vld [vmem:[%s9 + $0x10] sm:$0xf]
      %v1067 = vld [vmem:[%s9 + $0x14] sm:$0xf]
      %v1068 = vld [vmem:[%s9 + $0x18] sm:$0xf]
      %v1069 = vld [vmem:[%s9 + $0x1c] sm:$0xf]
      %v1070 = vld [vmem:[%s10] sm:$0x1]
      %v1072 = vlaneseq
      %v1073 = vshrl.u32 %v1072, 7
      %v1074 = vsub.s32 0, %v1073
      %v1075 = vrot.slane %v1070, %v1074
      %v1085 = vunpack.c.l.b16 %v1062
      %v1086 = vunpack.c.l.b16 %v1063
      %v1087 = vunpack.c.l.b16 %v1064
      %v1088 = vunpack.c.l.b16 %v1065
      %v1089 = vunpack.c.l.b16 %v1066
      %v1090 = vunpack.c.l.b16 %v1067
      %v1091 = vunpack.c.l.b16 %v1068
      %v1092 = vunpack.c.l.b16 %v1069
      %v1093 = vpack.c.b16 %v1086, %v1085
      %v1094 = vpack.c.b16 %v1088, %v1087
      %v1095 = vpack.c.b16 %v1090, %v1089
      %v1096 = vpack.c.b16 %v1092, %v1091
      %v1102 = vsel %vm560, %v1058, 0
      %v1105 = vsel %vm560, %v1059, 0
      %v1108 = vsel %vm560, %v1060, 0
      %v1111 = vsel %vm560, %v1061, 0
      %1113 = vmatprep.subr.bf16.mxu0 0
      %1114 = vmatpush1.bf16.msra.mxu0 %v1093
      %1115 = vmatprep.subr.bf16.mxu0 0
      %1116 = vmatpush1.bf16.msra.mxu0 %v1094
      %1117 = vmatprep.subr.bf16.mxu0 0
      %1118 = vmatpush1.bf16.msra.mxu0 %v1095
      %1119 = vmatprep.subr.bf16.mxu0 0
      %1120 = vmatpush1.bf16.msra.mxu0 %v1096
      %1121 = vmatprep.subr.bf16.mxu0 0
      %1122 = vmatpush1.bf16.msra.mxu0 0
      %1123 = vmatprep.subr.bf16.mxu0 0
      %1124 = vmatpush1.bf16.msra.mxu0 0
      %1125 = vmatprep.subr.bf16.mxu0 0
      %1126 = vmatpush1.bf16.msra.mxu0 0
      %1127 = vmatprep.subr.bf16.mxu0 0
      %1128 = vmatpush1.bf16.msra.mxu0 0
      %1129 = vmatprep.subr.bf16.mxu0 0
      %1130 = vmatpush1.bf16.msra.mxu0 0
      %1131 = vmatprep.subr.bf16.mxu0 0
      %1132 = vmatpush1.bf16.msra.mxu0 0
      %1133 = vmatprep.subr.bf16.mxu0 0
      %1134 = vmatpush1.bf16.msra.mxu0 0
      %1135 = vmatprep.subr.bf16.mxu0 0
      %1136 = vmatpush1.bf16.msra.mxu0 0
      %1137 = vmatprep.subr.bf16.mxu0 0
      %1138 = vmatpush1.bf16.msra.mxu0 0
      %1139 = vmatprep.subr.bf16.mxu0 0
      %1140 = vmatpush1.bf16.msra.mxu0 0
      %1141 = vmatprep.subr.bf16.mxu0 0
      %1142 = vmatpush1.bf16.msra.mxu0 0
      %1143 = vmatprep.subr.bf16.mxu0 0
      %1144 = vmatpush1.bf16.msra.mxu0 0
      %1145 = vmatprep.mubr.bf16.mxu0 0
      %1146 = vmatmul.mubr.bf16.gmra.mrb[0].mxu0 %v1102
      %v1147 = vpop.f32.mrb[0].mxu0
      %v1148 = vadd.f32 %v1075, %v1147
      %v1149 = vpop.f32.mrb[0].mxu0
      %v1150 = vpop.f32.mrb[0].mxu0
      %v1151 = vadd.f32 %v1075, %v1150
      %v1152 = vpop.f32.mrb[0].mxu0
      %1153 = vmatprep.mubr.bf16.mxu0 0
      %1154 = vmatmul.mubr.bf16.gmra.mrb[0].mxu0 %v1105
      %v1155 = vpop.f32.mrb[0].mxu0
      %v1156 = vadd.f32 %v1075, %v1155
      %v1157 = vpop.f32.mrb[0].mxu0
      %v1158 = vpop.f32.mrb[0].mxu0
      %v1159 = vadd.f32 %v1075, %v1158
      %v1160 = vpop.f32.mrb[0].mxu0
      %1161 = vmatprep.mubr.bf16.mxu0 0
      %1162 = vmatmul.mubr.bf16.gmra.mrb[0].mxu0 %v1108
      %v1163 = vpop.f32.mrb[0].mxu0
      %v1164 = vadd.f32 %v1075, %v1163
      %v1165 = vpop.f32.mrb[0].mxu0
      %v1166 = vpop.f32.mrb[0].mxu0
      %v1167 = vadd.f32 %v1075, %v1166
      %v1168 = vpop.f32.mrb[0].mxu0
      %1169 = vmatprep.mubr.bf16.mxu0 0
      %1170 = vmatmul.mubr.bf16.gmra.mrb[0].mxu0 %v1111
      %v1171 = vpop.f32.mrb[0].mxu0
      %v1172 = vadd.f32 %v1075, %v1171
      %v1173 = vpop.f32.mrb[0].mxu0
      %v1174 = vpop.f32.mrb[0].mxu0
      %v1175 = vadd.f32 %v1075, %v1174
      %v1176 = vpop.f32.mrb[0].mxu0
      %1177 = vdwg.mxu0
      %1178 = vst.msk [vmem:[%s505] sm:$0xff] %vm640, %v1148
      %1179 = vst.msk [vmem:[%s505 + $0x8] sm:$0xff] %vm640, %v1151
      %1180 = vst.msk [vmem:[%s505 + $0x10] sm:$0xff] %vm640, %v1156
      %1181 = vst.msk [vmem:[%s505 + $0x18] sm:$0xff] %vm640, %v1159
      %1182 = vst.msk [vmem:[%s505 + $0x20] sm:$0xff] %vm640, %v1164
      %1183 = vst.msk [vmem:[%s505 + $0x28] sm:$0xff] %vm640, %v1167
      %1184 = vst.msk [vmem:[%s505 + $0x30] sm:$0xff] %vm640, %v1172
      %1185 = vst.msk [vmem:[%s505 + $0x38] sm:$0xff] %vm640, %v1175
      %s1186 = smul.u32 8, %s27
      %p1187 = scmp.lt.s32.totalorder %s26, 1
      %s1188 = scalar_select %p1187, %s26, 1
      %p1189 = scmp.lt.s32.totalorder %s1186, 7
      %s1190 = scalar_select %p1189, %s1186, 7
      %s1191 = smul.addr %s1188, 8
      %s1192 = sadd.s32 %s1190, %s1191
      %s1193 = smul.addr %s1192, 8
      %s1194 = scalar_lea.vmem %s11, %s1193
      // Predicated region
      $region65: #{multi_infer_bert_forward.27} parent=63 // pred_check
        %p1195 = pneg %p311
      $region66: #{multi_infer_bert_forward.27} parent=63 // pred_check_branch
        %1197 = sbr.rel (%p1195) target = $region68
      $region67: #{multi_infer_bert_forward.27} parent=63 // pred_region
        %s1198 = smul.u32 8, %s27
      $region68: #{multi_infer_bert_forward.27} parent=63 // pred_fallthru
        _
    $region64: #{multi_infer_bert_forward.27} parent=5 // pred_fallthru
      _
    %p1199 = scmp.le.s32.totalorder 2, %s17
    // Predicated region
    $region69: #{multi_infer_bert_forward.27} parent=5 // pred_check
      %p1200 = pneg %p1199
    $region70: #{multi_infer_bert_forward.27} parent=5 // pred_check_branch
      %1202 = sbr.rel (%p1200) target = $region72
    $region71: #{multi_infer_bert_forward.27} parent=5 // pred_region
      %s1203 = ssub.s32 %s17, 2
      // Predicated region
      $region73: #{multi_infer_bert_forward.27} parent=71 // pred_check
        %p1204 = pneg %p317
      $region74: #{multi_infer_bert_forward.27} parent=71 // pred_check_branch
        %1206 = sbr.rel (%p1204) target = $region76
      $region75: #{multi_infer_bert_forward.27} parent=71 // pred_region
        %s1207 = smul.u32 8, %s29
        %p1208 = scmp.lt.s32.totalorder %s28, 1
        %s1209 = scalar_select %p1208, %s28, 1
        %p1210 = scmp.lt.s32.totalorder %s1207, 7
        %s1211 = scalar_select %p1210, %s1207, 7
        %s1212 = smul.addr %s1209, 8
        %s1213 = sadd.s32 %s1211, %s1212
        %s1214 = smul.addr %s1213, 8
        %s1215 = scalar_lea.vmem %s11, %s1214
      $region76: #{multi_infer_bert_forward.27} parent=71 // pred_fallthru
        _
    $region72: #{multi_infer_bert_forward.27} parent=5 // pred_fallthru
      _
  $region6: #{multi_infer_bert_forward.27} parent=0 // loop_footer
    %s21 = sadd.s32 1, %s17
  $region7: #{multi_infer_bert_forward.27} parent=0 // loop_footer_branch
    %16 = sbr.rel target = $region3
  $region8: #{multi_infer_bert_forward.27} parent=0 // loop_exit
    _

</llo_original>
